<compile_context>
chip_gen: v7x
topology: tpu7x:2x2x1
jax: 0.10.0
libtpu: 0.0.40
codegen_flags: <defaults>
</compile_context>

<pallas_src>
import functools

import jax
import jax.numpy as jnp
import numpy as np
from jax import lax
from jax.experimental import pallas as pl
from jax.experimental.pallas import tpu as pltpu

# ----------------------------- configuration ------------------------------
NUM_INPUT_CHANNELS = 4
POS_ENC_BASIS = 4
NUM_FILTERS = 32
NUM_EARLY_LAYERS = 2
NUM_LATE_LAYERS = 2
NUM_OUTPUT_CHANNELS = 3
USE_BIAS = True

NUM_SIN_FEATURES = 2 * POS_ENC_BASIS * NUM_INPUT_CHANNELS            # 32
INPUT_FEATURES = NUM_INPUT_CHANNELS + NUM_SIN_FEATURES               # 36

TM = 1024   # points per grid step (HBM tile on the lane axis)
SUB = 256   # points per in-kernel sub-block (bounds live vregs; multiple of 128)


# ------------------------------- kernel -----------------------------------
def cppn_kernel(x_ref, w_in_ref, w_sq_ref, b_ref, o_ref, *,
                num_early_layers, num_late_layers, sub):
    """CPPN forward for one tile of TM points, points-on-lanes layout.

    x_ref   : (C, TM)          coordinates, points on the 128-lane axis
    w_in_ref: (E + F [+ F], C) rows: [S ; W_first[:, :C] ; W_skip[:, :C]]
    w_sq_ref: (n_blocks*F, F)  F-row blocks: [W_first_sin, early..., W_skip_sin,
                               W_skip_v, late..., W_out (zero-padded to F rows)]
    b_ref   : (F, n_cols)      col 0 = pos-enc phase, cols 1.. = per-layer biases
    o_ref   : (O, TM)          outputs, points on the lane axis (lane-dense store)
    """
    f = NUM_FILTERS
    e = NUM_SIN_FEATURES
    o = NUM_OUTPUT_CHANNELS
    tm = x_ref.shape[-1]

    def mm(a, v):
        return jnp.dot(a, v, preferred_element_type=jnp.float32)

    def sq(k):                     # k-th (F, F) square-weight block (static slice)
        return w_sq_ref[k * f:(k + 1) * f, :]

    def bias(j):                   # j-th bias column, broadcast over the lane axis
        return b_ref[:, 1 + j:2 + j]

    phase = b_ref[0:e, 0:1]        # hoisted once per grid step

    def body(j, carry):
        start = pl.multiple_of(j * sub, sub)
        x = x_ref[:, pl.ds(start, sub)]                     # (C, sub)

        # One K=C matmul produces all x-projections at once:
        #   rows [0:E)      = S @ x          (scaled coords -> sin argument)
        #   rows [E:E+F)    = W_first_x @ x  (first layer, raw-coordinate part)
        #   rows [E+F:E+2F) = W_skip_x @ x   (skip layer,  raw-coordinate part)
        t = mm(w_in_ref[...], x)

        # Fused positional encoding: one dense sin over an (E, sub) block
        # (replaces 2*L lane-sparse sins + a 9-way concatenate). Kept in f32.
        sin_part = jnp.sin(t[0:e, :] + phase)               # (E, sub)

        ki = 0   # square-weight block counter
        li = 0   # bias column counter (after the phase column)

        # first layer: relu(W_x @ x + W_sin @ sin + b)
        h = jnp.maximum(t[e:e + f, :] + mm(sq(ki), sin_part) + bias(li), 0.0)
        ki += 1
        li += 1

        for _ in range(num_early_layers):
            h = jnp.maximum(mm(sq(ki), h) + bias(li), 0.0)
            ki += 1
            li += 1

        if num_late_layers > 0:
            # skip connection: relu(W_x @ x + W_sin @ sin + W_v @ h + b)
            h = jnp.maximum(t[e + f:e + 2 * f, :] + mm(sq(ki), sin_part)
                            + mm(sq(ki + 1), h) + bias(li), 0.0)
            ki += 2
            li += 1
            for _ in range(num_late_layers - 1):
                h = jnp.maximum(mm(sq(ki), h) + bias(li), 0.0)
                ki += 1
                li += 1

        # output linear (weight block zero-padded to F rows; first O rows are real)
        out = mm(sq(ki), h) + bias(li)                      # (F, sub)
        o_ref[:, pl.ds(start, sub)] = out[0:o, :]
        return carry

    lax.fori_loop(0, tm // sub, body, 0, unroll=True)


# --------------------------- parameter packing ------------------------------
def pack_params(params):
    """Pack torch-layout params into the three slabs consumed by the kernel."""
    c, f, o = NUM_INPUT_CHANNELS, NUM_FILTERS, NUM_OUTPUT_CHANNELS
    l_basis, e = POS_ENC_BASIS, NUM_SIN_FEATURES
    # Keeps every slab slice 8-sublane aligned and phase/bias columns uniform.
    assert e == f and f % 8 == 0 and o <= f

    p = [(np.asarray(w, np.float32), np.asarray(b, np.float32)) for (w, b) in params]
    idx = 0
    w0, b0 = p[idx]; idx += 1
    early = p[idx:idx + NUM_EARLY_LAYERS]; idx += NUM_EARLY_LAYERS
    if NUM_LATE_LAYERS > 0:
        wsk, bsk = p[idx]; idx += 1
        late = p[idx:idx + NUM_LATE_LAYERS - 1]; idx += NUM_LATE_LAYERS - 1
    else:
        wsk, bsk, late = None, None, []
    wo, bo = p[idx]

    # Fused pos-enc operator: sin(S @ x + phase) with torch flattening order
    # feature index = l*2*C + s*C + c_,  s in {0 (sin), 1 (sin + pi/2 = cos)}.
    s_mat = np.zeros((e, c), np.float32)
    phase = np.zeros((e,), np.float32)
    for l in range(l_basis):
        for s in range(2):
            for c_ in range(c):
                fi = l * 2 * c + s * c + c_
                s_mat[fi, c_] = 2.0 ** l
                phase[fi] = s * 0.5 * np.pi

    # (1) K=C input-projection slab: [S ; W_first_x ; W_skip_x]
    w_in_blocks = [s_mat, w0[:, :c]]
    if wsk is not None:
        w_in_blocks.append(wsk[:, :c])
    w_in = np.concatenate(w_in_blocks, axis=0)

    # (2) square-weight slab (F-row blocks, kernel consumption order)
    w_sq_blocks = [w0[:, c:]]                                 # W_first_sin
    w_sq_blocks += [w for (w, _) in early]
    if wsk is not None:
        w_sq_blocks += [wsk[:, c:c + e], wsk[:, c + e:]]      # W_skip_sin, W_skip_v
        w_sq_blocks += [w for (w, _) in late]
    wo_pad = np.zeros((f, f), np.float32)
    wo_pad[:o, :] = wo
    w_sq_blocks.append(wo_pad)
    w_sq = np.concatenate(w_sq_blocks, axis=0)

    # (3) bias/phase slab: col 0 = phase, cols 1.. = biases (output bias zero-padded)
    bias_cols = [phase, b0] + [b for (_, b) in early]
    if wsk is not None:
        bias_cols += [bsk] + [b for (_, b) in late]
    bo_pad = np.zeros((f,), np.float32)
    bo_pad[:o] = bo
    bias_cols.append(bo_pad)
    b_slab = np.zeros((f, len(bias_cols)), np.float32)
    for j, col in enumerate(bias_cols):
        b_slab[:len(col), j] = col

    return jnp.asarray(w_in), jnp.asarray(w_sq), jnp.asarray(b_slab)


# ------------------------------- wrapper -----------------------------------
def cppn_forward(x, params, *, tm=TM, sub=SUB):
    """x: (N, NUM_INPUT_CHANNELS) float32; params: list of torch-layout (W, b)."""
    n, c = x.shape
    assert c == NUM_INPUT_CHANNELS
    assert tm % sub == 0 and sub % 128 == 0

    # Pad the point count up to a tile multiple (kernel tiling stays aligned).
    n_pad = pl.cdiv(n, tm) * tm
    if n_pad != n:
        x = jnp.pad(x, ((0, n_pad - n), (0, 0)))

    w_in, w_sq, b_slab = pack_params(params)

    # Layout plumbing only: present points on the lane axis to the kernel.
    xt = x.T                                              # (C, n_pad)

    kernel = functools.partial(
        cppn_kernel,
        num_early_layers=NUM_EARLY_LAYERS,
        num_late_layers=NUM_LATE_LAYERS,
        sub=sub,
    )

    out_t = pl.pallas_call(
        kernel,
        out_shape=jax.ShapeDtypeStruct((NUM_OUTPUT_CHANNELS, n_pad), jnp.float32),
        grid=(n_pad // tm,),
        in_specs=[
            pl.BlockSpec((c, tm), lambda i: (0, i)),
            pl.BlockSpec(w_in.shape, lambda i: (0, 0)),
            pl.BlockSpec(w_sq.shape, lambda i: (0, 0)),
            pl.BlockSpec(b_slab.shape, lambda i: (0, 0)),
        ],
        out_specs=pl.BlockSpec((NUM_OUTPUT_CHANNELS, tm), lambda i: (0, i)),
        compiler_params=pltpu.CompilerParams(
            dimension_semantics=("parallel",)),
    )(xt, w_in, w_sq, b_slab)

    out = out_t.T                                         # (n_pad, O), module layout
    if n_pad != n:
        out = out[:n]
    return out


# --------------------------- parameter init --------------------------------
def init_params(key):
    """Deterministic synthetic weights in torch layout: W (out, in), b (out,)."""
    dims = [(INPUT_FEATURES, NUM_FILTERS)]                       # first layer
    for _ in range(NUM_EARLY_LAYERS):
        dims.append((NUM_FILTERS, NUM_FILTERS))                  # early layers
    if NUM_LATE_LAYERS > 0:
        dims.append((NUM_FILTERS + INPUT_FEATURES, NUM_FILTERS))  # skip connection
        for _ in range(NUM_LATE_LAYERS - 1):
            dims.append((NUM_FILTERS, NUM_FILTERS))              # late layers
    dims.append((NUM_FILTERS, NUM_OUTPUT_CHANNELS))              # output linear

    params = []
    for fan_in, fan_out in dims:
        key, kw, kb = jax.random.split(key, 3)
        bound = 1.0 / np.sqrt(fan_in)
        w = jax.random.uniform(kw, (fan_out, fan_in), jnp.float32, -bound, bound)
        if USE_BIAS:
            b = jax.random.uniform(kb, (fan_out,), jnp.float32, -bound, bound)
        else:
            b = jnp.zeros((fan_out,), jnp.float32)
        params.append((w, b))
    return params


# --------------------------- pure-JAX reference -----------------------------
def cppn_reference(x, params):
    hi = jax.lax.Precision.HIGHEST

    parts = [x]
    for l in range(POS_ENC_BASIS):
        xb = x * jnp.float32(2.0 ** l)
        parts.append(jnp.sin(xb))
        parts.append(jnp.sin(xb + jnp.float32(0.5 * np.pi)))
    enc = jnp.concatenate(parts, axis=-1)

    def lin(v, wb):
        w, b = wb
        return jnp.dot(v, w.T, precision=hi) + b

    idx = 0
    v = enc
    for _ in range(NUM_EARLY_LAYERS + 1):
        v = jnp.maximum(lin(v, params[idx]), 0.0)
        idx += 1
    if NUM_LATE_LAYERS > 0:
        v = jnp.maximum(lin(jnp.concatenate([enc, v], axis=-1), params[idx]), 0.0)
        idx += 1
        for _ in range(NUM_LATE_LAYERS - 1):
            v = jnp.maximum(lin(v, params[idx]), 0.0)
            idx += 1
    return lin(v, params[idx])


# --------------------------------- main -------------------------------------
if __name__ == "__main__":
    key = jax.random.PRNGKey(0)
    key, kx = jax.random.split(key)

    N = 4096  # coordinate points: 4 grid steps of TM=1024 (>= 2 parallel steps for megacore)
    x = jax.random.normal(kx, (N, NUM_INPUT_CHANNELS), dtype=jnp.float32)
    params = init_params(key)

    out = cppn_forward(x, params)
    out = jax.block_until_ready(out)

    ref = cppn_reference(x, params)
    np.testing.assert_allclose(np.asarray(out), np.asarray(ref), rtol=5e-5, atol=5e-5)

    print("KERNEL_OK")
</pallas_src>

<mosaic_0001>
module attributes {stable_mosaic.version = 11 : i64} {
  func.func @cppn_kernel(%arg0: i32, %arg1: memref<4x1024xf32, #tpu.memory_space<vmem>>, %arg2: memref<96x4xf32, #tpu.memory_space<vmem>>, %arg3: memref<224x32xf32, #tpu.memory_space<vmem>>, %arg4: memref<32x7xf32, #tpu.memory_space<vmem>>, %arg5: memref<3x1024xf32, #tpu.memory_space<vmem>>) attributes {dimension_semantics = [#tpu.dimension_semantics<parallel>], iteration_bounds = array<i64: 4>, scalar_prefetch = 0 : i64, scratch_operands = 0 : i64, tpu.core_type = #tpu.core_type<tc>, window_params = [{transform_indices = @transform_0, window_bounds = array<i64: 4, 1024>}, {pipeline_mode = #tpu.pipeline_mode<synchronous>, transform_indices = @transform_1, window_bounds = array<i64: 96, 4>}, {pipeline_mode = #tpu.pipeline_mode<synchronous>, transform_indices = @transform_2, window_bounds = array<i64: 224, 32>}, {pipeline_mode = #tpu.pipeline_mode<synchronous>, transform_indices = @transform_3, window_bounds = array<i64: 32, 7>}, {transform_indices = @transform_4, window_bounds = array<i64: 3, 1024>}]} {
    %c0 = arith.constant 0 : index
    %c0_0 = arith.constant 0 : index
    %0 = vector.load %arg4[%c0, %c0_0] : memref<32x7xf32, #tpu.memory_space<vmem>>, vector<32x1xf32>
    %c0_i32 = arith.constant 0 : i32
    %c256_i32 = arith.constant 256 : i32
    %1 = arith.muli %c0_i32, %c256_i32 : i32
    %2 = tpu.assume_multiple %1, 256 : i32
    %c0_1 = arith.constant 0 : index
    %3 = arith.index_cast %2 : i32 to index
    %4 = vector.load %arg1[%c0_1, %3] : memref<4x1024xf32, #tpu.memory_space<vmem>>, vector<4x256xf32>
    %c0_2 = arith.constant 0 : index
    %c0_3 = arith.constant 0 : index
    %5 = vector.load %arg2[%c0_2, %c0_3] : memref<96x4xf32, #tpu.memory_space<vmem>>, vector<96x4xf32>
    %cst = arith.constant dense<0.000000e+00> : vector<96x256xf32>
    %6 = tpu.matmul %5, %4, %cst {dimension_numbers = #tpu.dot_dimension_numbers<[1], [0], [0], [1], [0, 0, 1, 1], [], []>} : vector<96x4xf32>, vector<4x256xf32>, vector<96x256xf32> -> vector<96x256xf32>
    %7 = vector.extract_strided_slice %6 {offsets = [0, 0], sizes = [32, 256], strides = [1, 1]} : vector<96x256xf32> to vector<32x256xf32>
    %8 = vector.broadcast %0 : vector<32x1xf32> to vector<32x256xf32>
    %9 = arith.addf %7, %8 : vector<32x256xf32>
    %10 = math.sin %9 : vector<32x256xf32>
    %11 = vector.extract_strided_slice %6 {offsets = [32, 0], sizes = [32, 256], strides = [1, 1]} : vector<96x256xf32> to vector<32x256xf32>
    %c0_4 = arith.constant 0 : index
    %c0_5 = arith.constant 0 : index
    %12 = vector.load %arg3[%c0_4, %c0_5] : memref<224x32xf32, #tpu.memory_space<vmem>>, vector<32x32xf32>
    %cst_6 = arith.constant dense<0.000000e+00> : vector<32x256xf32>
    %13 = tpu.matmul %12, %10, %cst_6 {dimension_numbers = #tpu.dot_dimension_numbers<[1], [0], [0], [1], [0, 0, 1, 1], [], []>} : vector<32x32xf32>, vector<32x256xf32>, vector<32x256xf32> -> vector<32x256xf32>
    %14 = arith.addf %11, %13 : vector<32x256xf32>
    %c0_7 = arith.constant 0 : index
    %c1 = arith.constant 1 : index
    %15 = vector.load %arg4[%c0_7, %c1] : memref<32x7xf32, #tpu.memory_space<vmem>>, vector<32x1xf32>
    %16 = vector.broadcast %15 : vector<32x1xf32> to vector<32x256xf32>
    %17 = arith.addf %14, %16 : vector<32x256xf32>
    %cst_8 = arith.constant 0.000000e+00 : f32
    %18 = vector.broadcast %cst_8 : f32 to vector<32x256xf32>
    %19 = arith.maximumf %17, %18 : vector<32x256xf32>
    %c32 = arith.constant 32 : index
    %c0_9 = arith.constant 0 : index
    %20 = vector.load %arg3[%c32, %c0_9] : memref<224x32xf32, #tpu.memory_space<vmem>>, vector<32x32xf32>
    %cst_10 = arith.constant dense<0.000000e+00> : vector<32x256xf32>
    %21 = tpu.matmul %20, %19, %cst_10 {dimension_numbers = #tpu.dot_dimension_numbers<[1], [0], [0], [1], [0, 0, 1, 1], [], []>} : vector<32x32xf32>, vector<32x256xf32>, vector<32x256xf32> -> vector<32x256xf32>
    %c0_11 = arith.constant 0 : index
    %c2 = arith.constant 2 : index
    %22 = vector.load %arg4[%c0_11, %c2] : memref<32x7xf32, #tpu.memory_space<vmem>>, vector<32x1xf32>
    %23 = vector.broadcast %22 : vector<32x1xf32> to vector<32x256xf32>
    %24 = arith.addf %21, %23 : vector<32x256xf32>
    %cst_12 = arith.constant 0.000000e+00 : f32
    %25 = vector.broadcast %cst_12 : f32 to vector<32x256xf32>
    %26 = arith.maximumf %24, %25 : vector<32x256xf32>
    %c64 = arith.constant 64 : index
    %c0_13 = arith.constant 0 : index
    %27 = vector.load %arg3[%c64, %c0_13] : memref<224x32xf32, #tpu.memory_space<vmem>>, vector<32x32xf32>
    %cst_14 = arith.constant dense<0.000000e+00> : vector<32x256xf32>
    %28 = tpu.matmul %27, %26, %cst_14 {dimension_numbers = #tpu.dot_dimension_numbers<[1], [0], [0], [1], [0, 0, 1, 1], [], []>} : vector<32x32xf32>, vector<32x256xf32>, vector<32x256xf32> -> vector<32x256xf32>
    %c0_15 = arith.constant 0 : index
    %c3 = arith.constant 3 : index
    %29 = vector.load %arg4[%c0_15, %c3] : memref<32x7xf32, #tpu.memory_space<vmem>>, vector<32x1xf32>
    %30 = vector.broadcast %29 : vector<32x1xf32> to vector<32x256xf32>
    %31 = arith.addf %28, %30 : vector<32x256xf32>
    %cst_16 = arith.constant 0.000000e+00 : f32
    %32 = vector.broadcast %cst_16 : f32 to vector<32x256xf32>
    %33 = arith.maximumf %31, %32 : vector<32x256xf32>
    %34 = vector.extract_strided_slice %6 {offsets = [64, 0], sizes = [32, 256], strides = [1, 1]} : vector<96x256xf32> to vector<32x256xf32>
    %c96 = arith.constant 96 : index
    %c0_17 = arith.constant 0 : index
    %35 = vector.load %arg3[%c96, %c0_17] : memref<224x32xf32, #tpu.memory_space<vmem>>, vector<32x32xf32>
    %cst_18 = arith.constant dense<0.000000e+00> : vector<32x256xf32>
    %36 = tpu.matmul %35, %10, %cst_18 {dimension_numbers = #tpu.dot_dimension_numbers<[1], [0], [0], [1], [0, 0, 1, 1], [], []>} : vector<32x32xf32>, vector<32x256xf32>, vector<32x256xf32> -> vector<32x256xf32>
    %37 = arith.addf %34, %36 : vector<32x256xf32>
    %c128 = arith.constant 128 : index
    %c0_19 = arith.constant 0 : index
    %38 = vector.load %arg3[%c128, %c0_19] : memref<224x32xf32, #tpu.memory_space<vmem>>, vector<32x32xf32>
    %cst_20 = arith.constant dense<0.000000e+00> : vector<32x256xf32>
    %39 = tpu.matmul %38, %33, %cst_20 {dimension_numbers = #tpu.dot_dimension_numbers<[1], [0], [0], [1], [0, 0, 1, 1], [], []>} : vector<32x32xf32>, vector<32x256xf32>, vector<32x256xf32> -> vector<32x256xf32>
    %40 = arith.addf %37, %39 : vector<32x256xf32>
    %c0_21 = arith.constant 0 : index
    %c4 = arith.constant 4 : index
    %41 = vector.load %arg4[%c0_21, %c4] : memref<32x7xf32, #tpu.memory_space<vmem>>, vector<32x1xf32>
    %42 = vector.broadcast %41 : vector<32x1xf32> to vector<32x256xf32>
    %43 = arith.addf %40, %42 : vector<32x256xf32>
    %cst_22 = arith.constant 0.000000e+00 : f32
    %44 = vector.broadcast %cst_22 : f32 to vector<32x256xf32>
    %45 = arith.maximumf %43, %44 : vector<32x256xf32>
    %c160 = arith.constant 160 : index
    %c0_23 = arith.constant 0 : index
    %46 = vector.load %arg3[%c160, %c0_23] : memref<224x32xf32, #tpu.memory_space<vmem>>, vector<32x32xf32>
    %cst_24 = arith.constant dense<0.000000e+00> : vector<32x256xf32>
    %47 = tpu.matmul %46, %45, %cst_24 {dimension_numbers = #tpu.dot_dimension_numbers<[1], [0], [0], [1], [0, 0, 1, 1], [], []>} : vector<32x32xf32>, vector<32x256xf32>, vector<32x256xf32> -> vector<32x256xf32>
    %c0_25 = arith.constant 0 : index
    %c5 = arith.constant 5 : index
    %48 = vector.load %arg4[%c0_25, %c5] : memref<32x7xf32, #tpu.memory_space<vmem>>, vector<32x1xf32>
    %49 = vector.broadcast %48 : vector<32x1xf32> to vector<32x256xf32>
    %50 = arith.addf %47, %49 : vector<32x256xf32>
    %cst_26 = arith.constant 0.000000e+00 : f32
    %51 = vector.broadcast %cst_26 : f32 to vector<32x256xf32>
    %52 = arith.maximumf %50, %51 : vector<32x256xf32>
    %c192 = arith.constant 192 : index
    %c0_27 = arith.constant 0 : index
    %53 = vector.load %arg3[%c192, %c0_27] : memref<224x32xf32, #tpu.memory_space<vmem>>, vector<32x32xf32>
    %cst_28 = arith.constant dense<0.000000e+00> : vector<32x256xf32>
    %54 = tpu.matmul %53, %52, %cst_28 {dimension_numbers = #tpu.dot_dimension_numbers<[1], [0], [0], [1], [0, 0, 1, 1], [], []>} : vector<32x32xf32>, vector<32x256xf32>, vector<32x256xf32> -> vector<32x256xf32>
    %c0_29 = arith.constant 0 : index
    %c6 = arith.constant 6 : index
    %55 = vector.load %arg4[%c0_29, %c6] : memref<32x7xf32, #tpu.memory_space<vmem>>, vector<32x1xf32>
    %56 = vector.broadcast %55 : vector<32x1xf32> to vector<32x256xf32>
    %57 = arith.addf %54, %56 : vector<32x256xf32>
    %58 = vector.extract_strided_slice %57 {offsets = [0, 0], sizes = [3, 256], strides = [1, 1]} : vector<32x256xf32> to vector<3x256xf32>
    %c0_30 = arith.constant 0 : index
    %59 = arith.index_cast %2 : i32 to index
    %60 = vector.load %arg5[%c0_30, %59] : memref<3x1024xf32, #tpu.memory_space<vmem>>, vector<3x256xf32>
    tpu.vector_store %arg5[%c0_30, %59], %58 {strides = array<i32>} : memref<3x1024xf32, #tpu.memory_space<vmem>>, vector<3x256xf32>,
    %c1_i32 = arith.constant 1 : i32
    %c256_i32_31 = arith.constant 256 : i32
    %61 = arith.muli %c1_i32, %c256_i32_31 : i32
    %62 = tpu.assume_multiple %61, 256 : i32
    %c0_32 = arith.constant 0 : index
    %63 = arith.index_cast %62 : i32 to index
    %64 = vector.load %arg1[%c0_32, %63] : memref<4x1024xf32, #tpu.memory_space<vmem>>, vector<4x256xf32>
    %c0_33 = arith.constant 0 : index
    %c0_34 = arith.constant 0 : index
    %65 = vector.load %arg2[%c0_33, %c0_34] : memref<96x4xf32, #tpu.memory_space<vmem>>, vector<96x4xf32>
    %cst_35 = arith.constant dense<0.000000e+00> : vector<96x256xf32>
    %66 = tpu.matmul %65, %64, %cst_35 {dimension_numbers = #tpu.dot_dimension_numbers<[1], [0], [0], [1], [0, 0, 1, 1], [], []>} : vector<96x4xf32>, vector<4x256xf32>, vector<96x256xf32> -> vector<96x256xf32>
    %67 = vector.extract_strided_slice %66 {offsets = [0, 0], sizes = [32, 256], strides = [1, 1]} : vector<96x256xf32> to vector<32x256xf32>
    %68 = vector.broadcast %0 : vector<32x1xf32> to vector<32x256xf32>
    %69 = arith.addf %67, %68 : vector<32x256xf32>
    %70 = math.sin %69 : vector<32x256xf32>
    %71 = vector.extract_strided_slice %66 {offsets = [32, 0], sizes = [32, 256], strides = [1, 1]} : vector<96x256xf32> to vector<32x256xf32>
    %c0_36 = arith.constant 0 : index
    %c0_37 = arith.constant 0 : index
    %72 = vector.load %arg3[%c0_36, %c0_37] : memref<224x32xf32, #tpu.memory_space<vmem>>, vector<32x32xf32>
    %cst_38 = arith.constant dense<0.000000e+00> : vector<32x256xf32>
    %73 = tpu.matmul %72, %70, %cst_38 {dimension_numbers = #tpu.dot_dimension_numbers<[1], [0], [0], [1], [0, 0, 1, 1], [], []>} : vector<32x32xf32>, vector<32x256xf32>, vector<32x256xf32> -> vector<32x256xf32>
    %74 = arith.addf %71, %73 : vector<32x256xf32>
    %c0_39 = arith.constant 0 : index
    %c1_40 = arith.constant 1 : index
    %75 = vector.load %arg4[%c0_39, %c1_40] : memref<32x7xf32, #tpu.memory_space<vmem>>, vector<32x1xf32>
    %76 = vector.broadcast %75 : vector<32x1xf32> to vector<32x256xf32>
    %77 = arith.addf %74, %76 : vector<32x256xf32>
    %cst_41 = arith.constant 0.000000e+00 : f32
    %78 = vector.broadcast %cst_41 : f32 to vector<32x256xf32>
    %79 = arith.maximumf %77, %78 : vector<32x256xf32>
    %c32_42 = arith.constant 32 : index
    %c0_43 = arith.constant 0 : index
    %80 = vector.load %arg3[%c32_42, %c0_43] : memref<224x32xf32, #tpu.memory_space<vmem>>, vector<32x32xf32>
    %cst_44 = arith.constant dense<0.000000e+00> : vector<32x256xf32>
    %81 = tpu.matmul %80, %79, %cst_44 {dimension_numbers = #tpu.dot_dimension_numbers<[1], [0], [0], [1], [0, 0, 1, 1], [], []>} : vector<32x32xf32>, vector<32x256xf32>, vector<32x256xf32> -> vector<32x256xf32>
    %c0_45 = arith.constant 0 : index
    %c2_46 = arith.constant 2 : index
    %82 = vector.load %arg4[%c0_45, %c2_46] : memref<32x7xf32, #tpu.memory_space<vmem>>, vector<32x1xf32>
    %83 = vector.broadcast %82 : vector<32x1xf32> to vector<32x256xf32>
    %84 = arith.addf %81, %83 : vector<32x256xf32>
    %cst_47 = arith.constant 0.000000e+00 : f32
    %85 = vector.broadcast %cst_47 : f32 to vector<32x256xf32>
    %86 = arith.maximumf %84, %85 : vector<32x256xf32>
    %c64_48 = arith.constant 64 : index
    %c0_49 = arith.constant 0 : index
    %87 = vector.load %arg3[%c64_48, %c0_49] : memref<224x32xf32, #tpu.memory_space<vmem>>, vector<32x32xf32>
    %cst_50 = arith.constant dense<0.000000e+00> : vector<32x256xf32>
    %88 = tpu.matmul %87, %86, %cst_50 {dimension_numbers = #tpu.dot_dimension_numbers<[1], [0], [0], [1], [0, 0, 1, 1], [], []>} : vector<32x32xf32>, vector<32x256xf32>, vector<32x256xf32> -> vector<32x256xf32>
    %c0_51 = arith.constant 0 : index
    %c3_52 = arith.constant 3 : index
    %89 = vector.load %arg4[%c0_51, %c3_52] : memref<32x7xf32, #tpu.memory_space<vmem>>, vector<32x1xf32>
    %90 = vector.broadcast %89 : vector<32x1xf32> to vector<32x256xf32>
    %91 = arith.addf %88, %90 : vector<32x256xf32>
    %cst_53 = arith.constant 0.000000e+00 : f32
    %92 = vector.broadcast %cst_53 : f32 to vector<32x256xf32>
    %93 = arith.maximumf %91, %92 : vector<32x256xf32>
    %94 = vector.extract_strided_slice %66 {offsets = [64, 0], sizes = [32, 256], strides = [1, 1]} : vector<96x256xf32> to vector<32x256xf32>
    %c96_54 = arith.constant 96 : index
    %c0_55 = arith.constant 0 : index
    %95 = vector.load %arg3[%c96_54, %c0_55] : memref<224x32xf32, #tpu.memory_space<vmem>>, vector<32x32xf32>
    %cst_56 = arith.constant dense<0.000000e+00> : vector<32x256xf32>
    %96 = tpu.matmul %95, %70, %cst_56 {dimension_numbers = #tpu.dot_dimension_numbers<[1], [0], [0], [1], [0, 0, 1, 1], [], []>} : vector<32x32xf32>, vector<32x256xf32>, vector<32x256xf32> -> vector<32x256xf32>
    %97 = arith.addf %94, %96 : vector<32x256xf32>
    %c128_57 = arith.constant 128 : index
    %c0_58 = arith.constant 0 : index
    %98 = vector.load %arg3[%c128_57, %c0_58] : memref<224x32xf32, #tpu.memory_space<vmem>>, vector<32x32xf32>
    %cst_59 = arith.constant dense<0.000000e+00> : vector<32x256xf32>
    %99 = tpu.matmul %98, %93, %cst_59 {dimension_numbers = #tpu.dot_dimension_numbers<[1], [0], [0], [1], [0, 0, 1, 1], [], []>} : vector<32x32xf32>, vector<32x256xf32>, vector<32x256xf32> -> vector<32x256xf32>
    %100 = arith.addf %97, %99 : vector<32x256xf32>
    %c0_60 = arith.constant 0 : index
    %c4_61 = arith.constant 4 : index
    %101 = vector.load %arg4[%c0_60, %c4_61] : memref<32x7xf32, #tpu.memory_space<vmem>>, vector<32x1xf32>
    %102 = vector.broadcast %101 : vector<32x1xf32> to vector<32x256xf32>
    %103 = arith.addf %100, %102 : vector<32x256xf32>
    %cst_62 = arith.constant 0.000000e+00 : f32
    %104 = vector.broadcast %cst_62 : f32 to vector<32x256xf32>
    %105 = arith.maximumf %103, %104 : vector<32x256xf32>
    %c160_63 = arith.constant 160 : index
    %c0_64 = arith.constant 0 : index
    %106 = vector.load %arg3[%c160_63, %c0_64] : memref<224x32xf32, #tpu.memory_space<vmem>>, vector<32x32xf32>
    %cst_65 = arith.constant dense<0.000000e+00> : vector<32x256xf32>
    %107 = tpu.matmul %106, %105, %cst_65 {dimension_numbers = #tpu.dot_dimension_numbers<[1], [0], [0], [1], [0, 0, 1, 1], [], []>} : vector<32x32xf32>, vector<32x256xf32>, vector<32x256xf32> -> vector<32x256xf32>
    %c0_66 = arith.constant 0 : index
    %c5_67 = arith.constant 5 : index
    %108 = vector.load %arg4[%c0_66, %c5_67] : memref<32x7xf32, #tpu.memory_space<vmem>>, vector<32x1xf32>
    %109 = vector.broadcast %108 : vector<32x1xf32> to vector<32x256xf32>
    %110 = arith.addf %107, %109 : vector<32x256xf32>
    %cst_68 = arith.constant 0.000000e+00 : f32
    %111 = vector.broadcast %cst_68 : f32 to vector<32x256xf32>
    %112 = arith.maximumf %110, %111 : vector<32x256xf32>
    %c192_69 = arith.constant 192 : index
    %c0_70 = arith.constant 0 : index
    %113 = vector.load %arg3[%c192_69, %c0_70] : memref<224x32xf32, #tpu.memory_space<vmem>>, vector<32x32xf32>
    %cst_71 = arith.constant dense<0.000000e+00> : vector<32x256xf32>
    %114 = tpu.matmul %113, %112, %cst_71 {dimension_numbers = #tpu.dot_dimension_numbers<[1], [0], [0], [1], [0, 0, 1, 1], [], []>} : vector<32x32xf32>, vector<32x256xf32>, vector<32x256xf32> -> vector<32x256xf32>
    %c0_72 = arith.constant 0 : index
    %c6_73 = arith.constant 6 : index
    %115 = vector.load %arg4[%c0_72, %c6_73] : memref<32x7xf32, #tpu.memory_space<vmem>>, vector<32x1xf32>
    %116 = vector.broadcast %115 : vector<32x1xf32> to vector<32x256xf32>
    %117 = arith.addf %114, %116 : vector<32x256xf32>
    %118 = vector.extract_strided_slice %117 {offsets = [0, 0], sizes = [3, 256], strides = [1, 1]} : vector<32x256xf32> to vector<3x256xf32>
    %c0_74 = arith.constant 0 : index
    %119 = arith.index_cast %62 : i32 to index
    %120 = vector.load %arg5[%c0_74, %119] : memref<3x1024xf32, #tpu.memory_space<vmem>>, vector<3x256xf32>
    tpu.vector_store %arg5[%c0_74, %119], %118 {strides = array<i32>} : memref<3x1024xf32, #tpu.memory_space<vmem>>, vector<3x256xf32>,
    %c2_i32 = arith.constant 2 : i32
    %c256_i32_75 = arith.constant 256 : i32
    %121 = arith.muli %c2_i32, %c256_i32_75 : i32
    %122 = tpu.assume_multiple %121, 256 : i32
    %c0_76 = arith.constant 0 : index
    %123 = arith.index_cast %122 : i32 to index
    %124 = vector.load %arg1[%c0_76, %123] : memref<4x1024xf32, #tpu.memory_space<vmem>>, vector<4x256xf32>
    %c0_77 = arith.constant 0 : index
    %c0_78 = arith.constant 0 : index
    %125 = vector.load %arg2[%c0_77, %c0_78] : memref<96x4xf32, #tpu.memory_space<vmem>>, vector<96x4xf32>
    %cst_79 = arith.constant dense<0.000000e+00> : vector<96x256xf32>
    %126 = tpu.matmul %125, %124, %cst_79 {dimension_numbers = #tpu.dot_dimension_numbers<[1], [0], [0], [1], [0, 0, 1, 1], [], []>} : vector<96x4xf32>, vector<4x256xf32>, vector<96x256xf32> -> vector<96x256xf32>
    %127 = vector.extract_strided_slice %126 {offsets = [0, 0], sizes = [32, 256], strides = [1, 1]} : vector<96x256xf32> to vector<32x256xf32>
    %128 = vector.broadcast %0 : vector<32x1xf32> to vector<32x256xf32>
    %129 = arith.addf %127, %128 : vector<32x256xf32>
    %130 = math.sin %129 : vector<32x256xf32>
    %131 = vector.extract_strided_slice %126 {offsets = [32, 0], sizes = [32, 256], strides = [1, 1]} : vector<96x256xf32> to vector<32x256xf32>
    %c0_80 = arith.constant 0 : index
    %c0_81 = arith.constant 0 : index
    %132 = vector.load %arg3[%c0_80, %c0_81] : memref<224x32xf32, #tpu.memory_space<vmem>>, vector<32x32xf32>
    %cst_82 = arith.constant dense<0.000000e+00> : vector<32x256xf32>
    %133 = tpu.matmul %132, %130, %cst_82 {dimension_numbers = #tpu.dot_dimension_numbers<[1], [0], [0], [1], [0, 0, 1, 1], [], []>} : vector<32x32xf32>, vector<32x256xf32>, vector<32x256xf32> -> vector<32x256xf32>
    %134 = arith.addf %131, %133 : vector<32x256xf32>
    %c0_83 = arith.constant 0 : index
    %c1_84 = arith.constant 1 : index
    %135 = vector.load %arg4[%c0_83, %c1_84] : memref<32x7xf32, #tpu.memory_space<vmem>>, vector<32x1xf32>
    %136 = vector.broadcast %135 : vector<32x1xf32> to vector<32x256xf32>
    %137 = arith.addf %134, %136 : vector<32x256xf32>
    %cst_85 = arith.constant 0.000000e+00 : f32
    %138 = vector.broadcast %cst_85 : f32 to vector<32x256xf32>
    %139 = arith.maximumf %137, %138 : vector<32x256xf32>
    %c32_86 = arith.constant 32 : index
    %c0_87 = arith.constant 0 : index
    %140 = vector.load %arg3[%c32_86, %c0_87] : memref<224x32xf32, #tpu.memory_space<vmem>>, vector<32x32xf32>
    %cst_88 = arith.constant dense<0.000000e+00> : vector<32x256xf32>
    %141 = tpu.matmul %140, %139, %cst_88 {dimension_numbers = #tpu.dot_dimension_numbers<[1], [0], [0], [1], [0, 0, 1, 1], [], []>} : vector<32x32xf32>, vector<32x256xf32>, vector<32x256xf32> -> vector<32x256xf32>
    %c0_89 = arith.constant 0 : index
    %c2_90 = arith.constant 2 : index
    %142 = vector.load %arg4[%c0_89, %c2_90] : memref<32x7xf32, #tpu.memory_space<vmem>>, vector<32x1xf32>
    %143 = vector.broadcast %142 : vector<32x1xf32> to vector<32x256xf32>
    %144 = arith.addf %141, %143 : vector<32x256xf32>
    %cst_91 = arith.constant 0.000000e+00 : f32
    %145 = vector.broadcast %cst_91 : f32 to vector<32x256xf32>
    %146 = arith.maximumf %144, %145 : vector<32x256xf32>
    %c64_92 = arith.constant 64 : index
    %c0_93 = arith.constant 0 : index
    %147 = vector.load %arg3[%c64_92, %c0_93] : memref<224x32xf32, #tpu.memory_space<vmem>>, vector<32x32xf32>
    %cst_94 = arith.constant dense<0.000000e+00> : vector<32x256xf32>
    %148 = tpu.matmul %147, %146, %cst_94 {dimension_numbers = #tpu.dot_dimension_numbers<[1], [0], [0], [1], [0, 0, 1, 1], [], []>} : vector<32x32xf32>, vector<32x256xf32>, vector<32x256xf32> -> vector<32x256xf32>
    %c0_95 = arith.constant 0 : index
    %c3_96 = arith.constant 3 : index
    %149 = vector.load %arg4[%c0_95, %c3_96] : memref<32x7xf32, #tpu.memory_space<vmem>>, vector<32x1xf32>
    %150 = vector.broadcast %149 : vector<32x1xf32> to vector<32x256xf32>
    %151 = arith.addf %148, %150 : vector<32x256xf32>
    %cst_97 = arith.constant 0.000000e+00 : f32
    %152 = vector.broadcast %cst_97 : f32 to vector<32x256xf32>
    %153 = arith.maximumf %151, %152 : vector<32x256xf32>
    %154 = vector.extract_strided_slice %126 {offsets = [64, 0], sizes = [32, 256], strides = [1, 1]} : vector<96x256xf32> to vector<32x256xf32>
    %c96_98 = arith.constant 96 : index
    %c0_99 = arith.constant 0 : index
    %155 = vector.load %arg3[%c96_98, %c0_99] : memref<224x32xf32, #tpu.memory_space<vmem>>, vector<32x32xf32>
    %cst_100 = arith.constant dense<0.000000e+00> : vector<32x256xf32>
    %156 = tpu.matmul %155, %130, %cst_100 {dimension_numbers = #tpu.dot_dimension_numbers<[1], [0], [0], [1], [0, 0, 1, 1], [], []>} : vector<32x32xf32>, vector<32x256xf32>, vector<32x256xf32> -> vector<32x256xf32>
    %157 = arith.addf %154, %156 : vector<32x256xf32>
    %c128_101 = arith.constant 128 : index
    %c0_102 = arith.constant 0 : index
    %158 = vector.load %arg3[%c128_101, %c0_102] : memref<224x32xf32, #tpu.memory_space<vmem>>, vector<32x32xf32>
    %cst_103 = arith.constant dense<0.000000e+00> : vector<32x256xf32>
    %159 = tpu.matmul %158, %153, %cst_103 {dimension_numbers = #tpu.dot_dimension_numbers<[1], [0], [0], [1], [0, 0, 1, 1], [], []>} : vector<32x32xf32>, vector<32x256xf32>, vector<32x256xf32> -> vector<32x256xf32>
    %160 = arith.addf %157, %159 : vector<32x256xf32>
    %c0_104 = arith.constant 0 : index
    %c4_105 = arith.constant 4 : index
    %161 = vector.load %arg4[%c0_104, %c4_105] : memref<32x7xf32, #tpu.memory_space<vmem>>, vector<32x1xf32>
    %162 = vector.broadcast %161 : vector<32x1xf32> to vector<32x256xf32>
    %163 = arith.addf %160, %162 : vector<32x256xf32>
    %cst_106 = arith.constant 0.000000e+00 : f32
    %164 = vector.broadcast %cst_106 : f32 to vector<32x256xf32>
    %165 = arith.maximumf %163, %164 : vector<32x256xf32>
    %c160_107 = arith.constant 160 : index
    %c0_108 = arith.constant 0 : index
    %166 = vector.load %arg3[%c160_107, %c0_108] : memref<224x32xf32, #tpu.memory_space<vmem>>, vector<32x32xf32>
    %cst_109 = arith.constant dense<0.000000e+00> : vector<32x256xf32>
    %167 = tpu.matmul %166, %165, %cst_109 {dimension_numbers = #tpu.dot_dimension_numbers<[1], [0], [0], [1], [0, 0, 1, 1], [], []>} : vector<32x32xf32>, vector<32x256xf32>, vector<32x256xf32> -> vector<32x256xf32>
    %c0_110 = arith.constant 0 : index
    %c5_111 = arith.constant 5 : index
    %168 = vector.load %arg4[%c0_110, %c5_111] : memref<32x7xf32, #tpu.memory_space<vmem>>, vector<32x1xf32>
    %169 = vector.broadcast %168 : vector<32x1xf32> to vector<32x256xf32>
    %170 = arith.addf %167, %169 : vector<32x256xf32>
    %cst_112 = arith.constant 0.000000e+00 : f32
    %171 = vector.broadcast %cst_112 : f32 to vector<32x256xf32>
    %172 = arith.maximumf %170, %171 : vector<32x256xf32>
    %c192_113 = arith.constant 192 : index
    %c0_114 = arith.constant 0 : index
    %173 = vector.load %arg3[%c192_113, %c0_114] : memref<224x32xf32, #tpu.memory_space<vmem>>, vector<32x32xf32>
    %cst_115 = arith.constant dense<0.000000e+00> : vector<32x256xf32>
    %174 = tpu.matmul %173, %172, %cst_115 {dimension_numbers = #tpu.dot_dimension_numbers<[1], [0], [0], [1], [0, 0, 1, 1], [], []>} : vector<32x32xf32>, vector<32x256xf32>, vector<32x256xf32> -> vector<32x256xf32>
    %c0_116 = arith.constant 0 : index
    %c6_117 = arith.constant 6 : index
    %175 = vector.load %arg4[%c0_116, %c6_117] : memref<32x7xf32, #tpu.memory_space<vmem>>, vector<32x1xf32>
    %176 = vector.broadcast %175 : vector<32x1xf32> to vector<32x256xf32>
    %177 = arith.addf %174, %176 : vector<32x256xf32>
    %178 = vector.extract_strided_slice %177 {offsets = [0, 0], sizes = [3, 256], strides = [1, 1]} : vector<32x256xf32> to vector<3x256xf32>
    %c0_118 = arith.constant 0 : index
    %179 = arith.index_cast %122 : i32 to index
    %180 = vector.load %arg5[%c0_118, %179] : memref<3x1024xf32, #tpu.memory_space<vmem>>, vector<3x256xf32>
    tpu.vector_store %arg5[%c0_118, %179], %178 {strides = array<i32>} : memref<3x1024xf32, #tpu.memory_space<vmem>>, vector<3x256xf32>,
    %c3_i32 = arith.constant 3 : i32
    %c256_i32_119 = arith.constant 256 : i32
    %181 = arith.muli %c3_i32, %c256_i32_119 : i32
    %182 = tpu.assume_multiple %181, 256 : i32
    %c0_120 = arith.constant 0 : index
    %183 = arith.index_cast %182 : i32 to index
    %184 = vector.load %arg1[%c0_120, %183] : memref<4x1024xf32, #tpu.memory_space<vmem>>, vector<4x256xf32>
    %c0_121 = arith.constant 0 : index
    %c0_122 = arith.constant 0 : index
    %185 = vector.load %arg2[%c0_121, %c0_122] : memref<96x4xf32, #tpu.memory_space<vmem>>, vector<96x4xf32>
    %cst_123 = arith.constant dense<0.000000e+00> : vector<96x256xf32>
    %186 = tpu.matmul %185, %184, %cst_123 {dimension_numbers = #tpu.dot_dimension_numbers<[1], [0], [0], [1], [0, 0, 1, 1], [], []>} : vector<96x4xf32>, vector<4x256xf32>, vector<96x256xf32> -> vector<96x256xf32>
    %187 = vector.extract_strided_slice %186 {offsets = [0, 0], sizes = [32, 256], strides = [1, 1]} : vector<96x256xf32> to vector<32x256xf32>
    %188 = vector.broadcast %0 : vector<32x1xf32> to vector<32x256xf32>
    %189 = arith.addf %187, %188 : vector<32x256xf32>
    %190 = math.sin %189 : vector<32x256xf32>
    %191 = vector.extract_strided_slice %186 {offsets = [32, 0], sizes = [32, 256], strides = [1, 1]} : vector<96x256xf32> to vector<32x256xf32>
    %c0_124 = arith.constant 0 : index
    %c0_125 = arith.constant 0 : index
    %192 = vector.load %arg3[%c0_124, %c0_125] : memref<224x32xf32, #tpu.memory_space<vmem>>, vector<32x32xf32>
    %cst_126 = arith.constant dense<0.000000e+00> : vector<32x256xf32>
    %193 = tpu.matmul %192, %190, %cst_126 {dimension_numbers = #tpu.dot_dimension_numbers<[1], [0], [0], [1], [0, 0, 1, 1], [], []>} : vector<32x32xf32>, vector<32x256xf32>, vector<32x256xf32> -> vector<32x256xf32>
    %194 = arith.addf %191, %193 : vector<32x256xf32>
    %c0_127 = arith.constant 0 : index
    %c1_128 = arith.constant 1 : index
    %195 = vector.load %arg4[%c0_127, %c1_128] : memref<32x7xf32, #tpu.memory_space<vmem>>, vector<32x1xf32>
    %196 = vector.broadcast %195 : vector<32x1xf32> to vector<32x256xf32>
    %197 = arith.addf %194, %196 : vector<32x256xf32>
    %cst_129 = arith.constant 0.000000e+00 : f32
    %198 = vector.broadcast %cst_129 : f32 to vector<32x256xf32>
    %199 = arith.maximumf %197, %198 : vector<32x256xf32>
    %c32_130 = arith.constant 32 : index
    %c0_131 = arith.constant 0 : index
    %200 = vector.load %arg3[%c32_130, %c0_131] : memref<224x32xf32, #tpu.memory_space<vmem>>, vector<32x32xf32>
    %cst_132 = arith.constant dense<0.000000e+00> : vector<32x256xf32>
    %201 = tpu.matmul %200, %199, %cst_132 {dimension_numbers = #tpu.dot_dimension_numbers<[1], [0], [0], [1], [0, 0, 1, 1], [], []>} : vector<32x32xf32>, vector<32x256xf32>, vector<32x256xf32> -> vector<32x256xf32>
    %c0_133 = arith.constant 0 : index
    %c2_134 = arith.constant 2 : index
    %202 = vector.load %arg4[%c0_133, %c2_134] : memref<32x7xf32, #tpu.memory_space<vmem>>, vector<32x1xf32>
    %203 = vector.broadcast %202 : vector<32x1xf32> to vector<32x256xf32>
    %204 = arith.addf %201, %203 : vector<32x256xf32>
    %cst_135 = arith.constant 0.000000e+00 : f32
    %205 = vector.broadcast %cst_135 : f32 to vector<32x256xf32>
    %206 = arith.maximumf %204, %205 : vector<32x256xf32>
    %c64_136 = arith.constant 64 : index
    %c0_137 = arith.constant 0 : index
    %207 = vector.load %arg3[%c64_136, %c0_137] : memref<224x32xf32, #tpu.memory_space<vmem>>, vector<32x32xf32>
    %cst_138 = arith.constant dense<0.000000e+00> : vector<32x256xf32>
    %208 = tpu.matmul %207, %206, %cst_138 {dimension_numbers = #tpu.dot_dimension_numbers<[1], [0], [0], [1], [0, 0, 1, 1], [], []>} : vector<32x32xf32>, vector<32x256xf32>, vector<32x256xf32> -> vector<32x256xf32>
    %c0_139 = arith.constant 0 : index
    %c3_140 = arith.constant 3 : index
    %209 = vector.load %arg4[%c0_139, %c3_140] : memref<32x7xf32, #tpu.memory_space<vmem>>, vector<32x1xf32>
    %210 = vector.broadcast %209 : vector<32x1xf32> to vector<32x256xf32>
    %211 = arith.addf %208, %210 : vector<32x256xf32>
    %cst_141 = arith.constant 0.000000e+00 : f32
    %212 = vector.broadcast %cst_141 : f32 to vector<32x256xf32>
    %213 = arith.maximumf %211, %212 : vector<32x256xf32>
    %214 = vector.extract_strided_slice %186 {offsets = [64, 0], sizes = [32, 256], strides = [1, 1]} : vector<96x256xf32> to vector<32x256xf32>
    %c96_142 = arith.constant 96 : index
    %c0_143 = arith.constant 0 : index
    %215 = vector.load %arg3[%c96_142, %c0_143] : memref<224x32xf32, #tpu.memory_space<vmem>>, vector<32x32xf32>
    %cst_144 = arith.constant dense<0.000000e+00> : vector<32x256xf32>
    %216 = tpu.matmul %215, %190, %cst_144 {dimension_numbers = #tpu.dot_dimension_numbers<[1], [0], [0], [1], [0, 0, 1, 1], [], []>} : vector<32x32xf32>, vector<32x256xf32>, vector<32x256xf32> -> vector<32x256xf32>
    %217 = arith.addf %214, %216 : vector<32x256xf32>
    %c128_145 = arith.constant 128 : index
    %c0_146 = arith.constant 0 : index
    %218 = vector.load %arg3[%c128_145, %c0_146] : memref<224x32xf32, #tpu.memory_space<vmem>>, vector<32x32xf32>
    %cst_147 = arith.constant dense<0.000000e+00> : vector<32x256xf32>
    %219 = tpu.matmul %218, %213, %cst_147 {dimension_numbers = #tpu.dot_dimension_numbers<[1], [0], [0], [1], [0, 0, 1, 1], [], []>} : vector<32x32xf32>, vector<32x256xf32>, vector<32x256xf32> -> vector<32x256xf32>
    %220 = arith.addf %217, %219 : vector<32x256xf32>
    %c0_148 = arith.constant 0 : index
    %c4_149 = arith.constant 4 : index
    %221 = vector.load %arg4[%c0_148, %c4_149] : memref<32x7xf32, #tpu.memory_space<vmem>>, vector<32x1xf32>
    %222 = vector.broadcast %221 : vector<32x1xf32> to vector<32x256xf32>
    %223 = arith.addf %220, %222 : vector<32x256xf32>
    %cst_150 = arith.constant 0.000000e+00 : f32
    %224 = vector.broadcast %cst_150 : f32 to vector<32x256xf32>
    %225 = arith.maximumf %223, %224 : vector<32x256xf32>
    %c160_151 = arith.constant 160 : index
    %c0_152 = arith.constant 0 : index
    %226 = vector.load %arg3[%c160_151, %c0_152] : memref<224x32xf32, #tpu.memory_space<vmem>>, vector<32x32xf32>
    %cst_153 = arith.constant dense<0.000000e+00> : vector<32x256xf32>
    %227 = tpu.matmul %226, %225, %cst_153 {dimension_numbers = #tpu.dot_dimension_numbers<[1], [0], [0], [1], [0, 0, 1, 1], [], []>} : vector<32x32xf32>, vector<32x256xf32>, vector<32x256xf32> -> vector<32x256xf32>
    %c0_154 = arith.constant 0 : index
    %c5_155 = arith.constant 5 : index
    %228 = vector.load %arg4[%c0_154, %c5_155] : memref<32x7xf32, #tpu.memory_space<vmem>>, vector<32x1xf32>
    %229 = vector.broadcast %228 : vector<32x1xf32> to vector<32x256xf32>
    %230 = arith.addf %227, %229 : vector<32x256xf32>
    %cst_156 = arith.constant 0.000000e+00 : f32
    %231 = vector.broadcast %cst_156 : f32 to vector<32x256xf32>
    %232 = arith.maximumf %230, %231 : vector<32x256xf32>
    %c192_157 = arith.constant 192 : index
    %c0_158 = arith.constant 0 : index
    %233 = vector.load %arg3[%c192_157, %c0_158] : memref<224x32xf32, #tpu.memory_space<vmem>>, vector<32x32xf32>
    %cst_159 = arith.constant dense<0.000000e+00> : vector<32x256xf32>
    %234 = tpu.matmul %233, %232, %cst_159 {dimension_numbers = #tpu.dot_dimension_numbers<[1], [0], [0], [1], [0, 0, 1, 1], [], []>} : vector<32x32xf32>, vector<32x256xf32>, vector<32x256xf32> -> vector<32x256xf32>
    %c0_160 = arith.constant 0 : index
    %c6_161 = arith.constant 6 : index
    %235 = vector.load %arg4[%c0_160, %c6_161] : memref<32x7xf32, #tpu.memory_space<vmem>>, vector<32x1xf32>
    %236 = vector.broadcast %235 : vector<32x1xf32> to vector<32x256xf32>
    %237 = arith.addf %234, %236 : vector<32x256xf32>
    %238 = vector.extract_strided_slice %237 {offsets = [0, 0], sizes = [3, 256], strides = [1, 1]} : vector<32x256xf32> to vector<3x256xf32>
    %c0_162 = arith.constant 0 : index
    %239 = arith.index_cast %182 : i32 to index
    %240 = vector.load %arg5[%c0_162, %239] : memref<3x1024xf32, #tpu.memory_space<vmem>>, vector<3x256xf32>
    tpu.vector_store %arg5[%c0_162, %239], %238 {strides = array<i32>} : memref<3x1024xf32, #tpu.memory_space<vmem>>, vector<3x256xf32>,
    %c4_i32 = arith.constant 4 : i32
    return
  }
  func.func @transform_0(%arg0: i32) -> (i32, i32) {
    %c0_i32 = arith.constant 0 : i32
    %c0_i32_0 = arith.constant 0 : i32
    return %c0_i32, %arg0 : i32, i32
  }
  func.func @transform_1(%arg0: i32) -> (i32, i32) {
    %c0_i32 = arith.constant 0 : i32
    %c0_i32_0 = arith.constant 0 : i32
    %c0_i32_1 = arith.constant 0 : i32
    return %c0_i32, %c0_i32_0 : i32, i32
  }
  func.func @transform_2(%arg0: i32) -> (i32, i32) {
    %c0_i32 = arith.constant 0 : i32
    %c0_i32_0 = arith.constant 0 : i32
    %c0_i32_1 = arith.constant 0 : i32
    return %c0_i32, %c0_i32_0 : i32, i32
  }
  func.func @transform_3(%arg0: i32) -> (i32, i32) {
    %c0_i32 = arith.constant 0 : i32
    %c0_i32_0 = arith.constant 0 : i32
    %c0_i32_1 = arith.constant 0 : i32
    return %c0_i32, %c0_i32_0 : i32, i32
  }
  func.func @transform_4(%arg0: i32) -> (i32, i32) {
    %c0_i32 = arith.constant 0 : i32
    %c0_i32_0 = arith.constant 0 : i32
    return %c0_i32, %arg0 : i32, i32
  }
}

</mosaic_0001>

<llo_original>
// kernel: tpu_custom_call.1
$region0: #{tpu_custom_call.1}
  #allocation0 [shape = 'u32[]', space=smem, size = 0x4, offset = 0x4, fixed_abs, tag = 'smem constant byte address 0x4 - core index']
  #allocation1 [shape = 'u32[144,128]{1,0:T(1,128)}', space=vmem, size = 0x12000, scoped, tag = 'internal scratch']
  %s0 = inlined_call_operand.vmem [shape: f32[4,4096], index: 0, kind: input, shape index: {}]
  %s1 = inlined_call_operand.vmem [shape: f32[96,4], index: 1, kind: input, shape index: {}]
  %s2 = inlined_call_operand.vmem [shape: f32[224,32], index: 2, kind: input, shape index: {}]
  %s3 = inlined_call_operand.vmem [shape: f32[32,7], index: 3, kind: input, shape index: {}]
  %s4 = inlined_call_operand.hbm [shape: f32[3,4096], index: 4, kind: output, shape index: {}]
  %s5 = sld [smem:[#allocation0]]
  $region49: #{tpu_custom_call.1} parent=0
    _
  %s7 = ssub.s32 1, %s5
  %s8 = scalar_select 0, %s7, %s5
  $region1: #{tpu_custom_call.1} parent=0
    #allocation2 [shape = 'u8[32768]{0}', space=vmem, size = 0x8000, scoped, tag = 'output window, operand 0']
    #allocation3 [shape = 's32[2]{0}', space=sflag, size = 0x8, scoped, tag = 'scoped memory for tpu_custom_call.1']
    %9 = vsyncpa [#allocation3], 0
    %s10 = scalar_lea.sflag [#allocation3], 1
    %11 = vsyncpa %s10, 0
    loop: start=0, step=1, limit=6
    $region2: #{tpu_custom_call.1} parent=1 // loop_pre_header
      _
    $region3: #{tpu_custom_call.1} parent=1 // loop_header
      %s13 = sphi 0, %s17
      %p14 = scmp.ge.s32.totalorder %s13, 6
      %s23 = sphi 0, %s25
      %s26 = sphi 0, %s23
      %s27 = sphi 0, %s26
      %s43 = sphi 0, %s27
      %s47 = sphi 0, %s47
      %s49 = sphi 0, %s47
      %s50 = sphi 0, %s49
      %s64 = sphi 0, %s50
      %s68 = sphi 0, %s68
      %s70 = sphi 0, %s68
      %s71 = sphi 0, %s70
      %s85 = sphi 0, %s71
      %s89 = sphi 0, %s89
      %s91 = sphi 0, %s89
      %s92 = sphi 0, %s91
      %s106 = sphi 0, %s92
      %s112 = sphi 0, %s114
      %s115 = sphi 0, %s112
      %s116 = sphi 0, %s115
      %s132 = sphi 0, %s116
    $region4: #{tpu_custom_call.1} parent=1 // loop_header_branch
      %16 = sbr.rel (%p14) target = $region8
    $region5: #{tpu_custom_call.1} parent=1 // loop_body
      %s18 = ssub.s32 %s13, 1
      %s19 = ssub.s32 %s13, 2
      %s20 = sadd.s32 %s13, 1
      %s21 = ssub.s32 %s13, %s20
      %p22 = scmp.eq.s32.totalorder %s21, 0
      %s24 = sadd.s32 %s23, 1
      %s25 = scalar_select %p22, %s23, %s24
      %p28 = pneg %p22
      %p29 = scmp.eq.s32.totalorder %s13, 3
      %p30 = por %p28, %p29
      %p31 = scmp.ne.s32.totalorder %s23, %s26
      %p32 = scmp.eq.s32.totalorder %s13, 0
      %p33 = por %p31, %p32
      %p34 = scmp.ne.s32.totalorder %s23, %s26
      %p35 = scmp.eq.s32.totalorder %s18, 3
      %p36 = por %p34, %p35
      %p37 = scmp.ne.s32.totalorder %s26, %s27
      %p38 = scmp.eq.s32.totalorder %s18, 0
      %p39 = por %p37, %p38
      %p40 = scmp.ne.s32.totalorder %s26, %s27
      %p41 = scmp.eq.s32.totalorder %s19, 3
      %p42 = por %p40, %p41
      %p44 = scmp.ne.s32.totalorder %s27, %s43
      %p45 = scmp.eq.s32.totalorder %s19, 0
      %p46 = por %p44, %p45
      %s48 = sadd.s32 %s47, 1
      %p51 = scmp.eq.s32.totalorder %s13, 3
      %p52 = scmp.ne.s32.totalorder %s47, %s49
      %p53 = scmp.eq.s32.totalorder %s13, 0
      %p54 = por %p52, %p53
      %p55 = scmp.ne.s32.totalorder %s47, %s49
      %p56 = scmp.eq.s32.totalorder %s18, 3
      %p57 = por %p55, %p56
      %p58 = scmp.ne.s32.totalorder %s49, %s50
      %p59 = scmp.eq.s32.totalorder %s18, 0
      %p60 = por %p58, %p59
      %p61 = scmp.ne.s32.totalorder %s49, %s50
      %p62 = scmp.eq.s32.totalorder %s19, 3
      %p63 = por %p61, %p62
      %p65 = scmp.ne.s32.totalorder %s50, %s64
      %p66 = scmp.eq.s32.totalorder %s19, 0
      %p67 = por %p65, %p66
      %s69 = sadd.s32 %s68, 1
      %p72 = scmp.eq.s32.totalorder %s13, 3
      %p73 = scmp.ne.s32.totalorder %s68, %s70
      %p74 = scmp.eq.s32.totalorder %s13, 0
      %p75 = por %p73, %p74
      %p76 = scmp.ne.s32.totalorder %s68, %s70
      %p77 = scmp.eq.s32.totalorder %s18, 3
      %p78 = por %p76, %p77
      %p79 = scmp.ne.s32.totalorder %s70, %s71
      %p80 = scmp.eq.s32.totalorder %s18, 0
      %p81 = por %p79, %p80
      %p82 = scmp.ne.s32.totalorder %s70, %s71
      %p83 = scmp.eq.s32.totalorder %s19, 3
      %p84 = por %p82, %p83
      %p86 = scmp.ne.s32.totalorder %s71, %s85
      %p87 = scmp.eq.s32.totalorder %s19, 0
      %p88 = por %p86, %p87
      %s90 = sadd.s32 %s89, 1
      %p93 = scmp.eq.s32.totalorder %s13, 3
      %p94 = scmp.ne.s32.totalorder %s89, %s91
      %p95 = scmp.eq.s32.totalorder %s13, 0
      %p96 = por %p94, %p95
      %p97 = scmp.ne.s32.totalorder %s89, %s91
      %p98 = scmp.eq.s32.totalorder %s18, 3
      %p99 = por %p97, %p98
      %p100 = scmp.ne.s32.totalorder %s91, %s92
      %p101 = scmp.eq.s32.totalorder %s18, 0
      %p102 = por %p100, %p101
      %p103 = scmp.ne.s32.totalorder %s91, %s92
      %p104 = scmp.eq.s32.totalorder %s19, 3
      %p105 = por %p103, %p104
      %p107 = scmp.ne.s32.totalorder %s92, %s106
      %p108 = scmp.eq.s32.totalorder %s19, 0
      %p109 = por %p107, %p108
      %s110 = ssub.s32 %s13, %s20
      %p111 = scmp.eq.s32.totalorder %s110, 0
      %s113 = sadd.s32 %s112, 1
      %s114 = scalar_select %p111, %s112, %s113
      %p117 = pneg %p111
      %p118 = scmp.eq.s32.totalorder %s13, 3
      %p119 = por %p117, %p118
      %p120 = scmp.ne.s32.totalorder %s112, %s115
      %p121 = scmp.eq.s32.totalorder %s13, 0
      %p122 = por %p120, %p121
      %p123 = scmp.ne.s32.totalorder %s112, %s115
      %p124 = scmp.eq.s32.totalorder %s18, 3
      %p125 = por %p123, %p124
      %p126 = scmp.ne.s32.totalorder %s115, %s116
      %p127 = scmp.eq.s32.totalorder %s18, 0
      %p128 = por %p126, %p127
      %p129 = scmp.ne.s32.totalorder %s115, %s116
      %p130 = scmp.eq.s32.totalorder %s19, 3
      %p131 = por %p129, %p130
      %p133 = scmp.ne.s32.totalorder %s116, %s132
      %p134 = scmp.eq.s32.totalorder %s19, 0
      %p135 = por %p133, %p134
      %p136 = scmp.le.s32.totalorder 1, %s13
      %p137 = scmp.lt.s32.totalorder %s13, 5
      %p138 = pnand %p136, %p137
      %p139 = pneg %p138
      // Predicated region
      $region9: #{tpu_custom_call.1} parent=5 // pred_check
        _
      $region10: #{tpu_custom_call.1} parent=5 // pred_check_branch
        %141 = sbr.rel (%p138) target = $region12
      $region11: #{tpu_custom_call.1} parent=5 // pred_region
        %s142 = ssub.s32 %s13, 1
        // Predicated region
        $region13: #{tpu_custom_call.1} parent=11 // pred_check
          %p143 = pneg %p60
        $region14: #{tpu_custom_call.1} parent=11 // pred_check_branch
          %145 = sbr.rel (%p143) target = $region16
        $region15: #{tpu_custom_call.1} parent=11 // pred_region
          _
        $region16: #{tpu_custom_call.1} parent=11 // pred_fallthru
          _
        // Predicated region
        $region17: #{tpu_custom_call.1} parent=11 // pred_check
          %p146 = pneg %p81
        $region18: #{tpu_custom_call.1} parent=11 // pred_check_branch
          %148 = sbr.rel (%p146) target = $region20
        $region19: #{tpu_custom_call.1} parent=11 // pred_region
          _
        $region20: #{tpu_custom_call.1} parent=11 // pred_fallthru
          _
        // Predicated region
        $region21: #{tpu_custom_call.1} parent=11 // pred_check
          %p149 = pneg %p102
        $region22: #{tpu_custom_call.1} parent=11 // pred_check_branch
          %151 = sbr.rel (%p149) target = $region24
        $region23: #{tpu_custom_call.1} parent=11 // pred_region
          _
        $region24: #{tpu_custom_call.1} parent=11 // pred_fallthru
          _
      $region12: #{tpu_custom_call.1} parent=5 // pred_fallthru
        _
      %p152 = scmp.lt.s32.totalorder %s13, 4
      // Predicated region
      $region25: #{tpu_custom_call.1} parent=5 // pred_check
        %p153 = pneg %p152
      $region26: #{tpu_custom_call.1} parent=5 // pred_check_branch
        %155 = sbr.rel (%p153) target = $region28
      $region27: #{tpu_custom_call.1} parent=5 // pred_region
        // Predicated region
        $region29: #{tpu_custom_call.1} parent=27 // pred_check
          %p156 = pneg %p33
        $region30: #{tpu_custom_call.1} parent=27 // pred_check_branch
          %158 = sbr.rel (%p156) target = $region32
        $region31: #{tpu_custom_call.1} parent=27 // pred_region
          %s159 = smul.u32 8, %s13
          %p160 = scmp.lt.s32.totalorder %s159, 31
          %s161 = scalar_select %p160, %s159, 31
          %s162 = smul.addr %s161, 4
          %s163 = scalar_lea.vmem %s0, %s162
          %s164 = smul.u32 8, %s13
        $region32: #{tpu_custom_call.1} parent=27 // pred_fallthru
          _
      $region28: #{tpu_custom_call.1} parent=5 // pred_fallthru
        _
      %p165 = scmp.le.s32.totalorder 1, %s13
      %p166 = scmp.lt.s32.totalorder %s13, 5
      %p167 = pnand %p165, %p166
      %p168 = pneg %p167
      // Predicated region
      $region33: #{tpu_custom_call.1} parent=5 // pred_check
        _
      $region34: #{tpu_custom_call.1} parent=5 // pred_check_branch
        %170 = sbr.rel (%p167) target = $region36
      $region35: #{tpu_custom_call.1} parent=5 // pred_region
        %s171 = ssub.s32 %s13, 1
        %s172 = smul.u32 8, %s18
        %p173 = scmp.lt.s32.totalorder %s172, 31
        %s174 = scalar_select %p173, %s172, 31
        %s175 = smul.addr %s174, 4
        %s176 = scalar_lea.vmem %s0, %s175
        %p177 = pneg %p39
        %p178 = pneg %p36
        %p179 = pneg %p60
        %p180 = pneg %p57
        %p181 = pneg %p81
        %p182 = pneg %p78
        %p183 = pneg %p102
        %p184 = pneg %p99
        %p185 = pneg %p128
        %p186 = pneg %p125
        %s187 = sand.u32 %s115, 1
        %s188 = scalar_lea.sflag [#allocation3], %s187
        %s189 = sand.u32 %s115, 1
        %s190 = smul.addr %s189, 32
        %s191 = scalar_lea.vmem [#allocation2], %s190
        %s192 = smul.u32 8, %s18
        %p193 = scmp.lt.s32.totalorder %s192, 31
        %s194 = scalar_select %p193, %s192, 31
        %s195 = smul.addr %s194, 4
        %s196 = scalar_lea.vmem %s0, %s195
        %s197 = smul.u32 8, %s18
        %s198 = smul.u32 8, %s18
        %v199 = vld [vmem:[%s3] sm:$0xff]
        %v200 = vld [vmem:[%s3 + $0x8] sm:$0xff]
        %v201 = vld [vmem:[%s3 + $0x10] sm:$0xff]
        %v202 = vld [vmem:[%s3 + $0x18] sm:$0xff]
        %v203 = vld [vmem:[%s196] sm:$0xff]
        %v204 = vld [vmem:[%s1] sm:$0xff]
        %v205 = vld [vmem:[%s1 + $0x8] sm:$0xff]
        %v206 = vld [vmem:[%s1 + $0x10] sm:$0xff]
        %v207 = vld [vmem:[%s1 + $0x18] sm:$0xff]
        %v208 = vld [vmem:[%s1 + $0x20] sm:$0xff]
        %v209 = vld [vmem:[%s1 + $0x28] sm:$0xff]
        %v210 = vld [vmem:[%s1 + $0x30] sm:$0xff]
        %v211 = vld [vmem:[%s1 + $0x38] sm:$0xff]
        %v212 = vld [vmem:[%s1 + $0x40] sm:$0xff]
        %v213 = vld [vmem:[%s1 + $0x48] sm:$0xff]
        %v214 = vld [vmem:[%s1 + $0x50] sm:$0xff]
        %v215 = vld [vmem:[%s1 + $0x58] sm:$0xff]
        %v217 = vcombine.high %v203, %v203
        %vm218 = vcmask 31744
        %v220 = vsel %vm218, %v204, 0
        %v223 = vsel %vm218, %v205, 0
        %v226 = vsel %vm218, %v206, 0
        %v229 = vsel %vm218, %v207, 0
        %v232 = vsel %vm218, %v208, 0
        %v235 = vsel %vm218, %v209, 0
        %v238 = vsel %vm218, %v210, 0
        %v241 = vsel %vm218, %v211, 0
        %v244 = vsel %vm218, %v212, 0
        %v247 = vsel %vm218, %v213, 0
        %v250 = vsel %vm218, %v214, 0
        %v253 = vsel %vm218, %v215, 0
        %vm255 = vcmask 1043456
        %v256 = vsel %vm255, %v203, 0
        %v258 = vsel %vm255, %v217, 0
        %260 = vmatprep.subr.mxu0 %v258
        %261 = vmatpush1.msra.mxu0 %v256
        %262 = vmatprep.subr.mxu0 0.0
        %263 = vmatpush1.msra.mxu0 0.0
        %264 = vmatprep.subr.mxu0 0.0
        %265 = vmatpush1.msra.mxu0 0.0
        %266 = vmatprep.subr.mxu0 0.0
        %267 = vmatpush1.msra.mxu0 0.0
        %268 = vmatprep.subr.mxu0 0.0
        %269 = vmatpush1.msra.mxu0 0.0
        %270 = vmatprep.subr.mxu0 0.0
        %271 = vmatpush1.msra.mxu0 0.0
        %272 = vmatprep.subr.mxu0 0.0
        %273 = vmatpush1.msra.mxu0 0.0
        %274 = vmatprep.subr.mxu0 0.0
        %275 = vmatpush1.msra.mxu0 0.0
        %276 = vmatprep.subr.mxu0 0.0
        %277 = vmatpush1.msra.mxu0 0.0
        %278 = vmatprep.subr.mxu0 0.0
        %279 = vmatpush1.msra.mxu0 0.0
        %280 = vmatprep.subr.mxu0 0.0
        %281 = vmatpush1.msra.mxu0 0.0
        %282 = vmatprep.subr.mxu0 0.0
        %283 = vmatpush1.msra.mxu0 0.0
        %284 = vmatprep.subr.mxu0 0.0
        %285 = vmatpush1.msra.mxu0 0.0
        %286 = vmatprep.subr.mxu0 0.0
        %287 = vmatpush1.msra.mxu0 0.0
        %288 = vmatprep.subr.mxu0 0.0
        %289 = vmatpush1.msra.mxu0 0.0
        %290 = vmatprep.subr.mxu0 0.0
        %291 = vmatpush1.msra.mxu0 0.0
        %292 = vmatprep.subr.mxu0 0.0
        %293 = vmatpush1.msra.mxu0 0.0
        %294 = vmatprep.subr.mxu0 0.0
        %295 = vmatpush1.msra.mxu0 0.0
        %296 = vmatprep.subr.mxu0 0.0
        %297 = vmatpush1.msra.mxu0 0.0
        %298 = vmatprep.subr.mxu0 0.0
        %299 = vmatpush1.msra.mxu0 0.0
        %300 = vmatprep.subr.mxu0 0.0
        %301 = vmatpush1.msra.mxu0 0.0
        %302 = vmatprep.subr.mxu0 0.0
        %303 = vmatpush1.msra.mxu0 0.0
        %304 = vmatprep.subr.mxu0 0.0
        %305 = vmatpush1.msra.mxu0 0.0
        %306 = vmatprep.subr.mxu0 0.0
        %307 = vmatpush1.msra.mxu0 0.0
        %308 = vmatprep.subr.mxu0 0.0
        %309 = vmatpush1.msra.mxu0 0.0
        %310 = vmatprep.subr.mxu0 0.0
        %311 = vmatpush1.msra.mxu0 0.0
        %312 = vmatprep.subr.mxu0 0.0
        %313 = vmatpush1.msra.mxu0 0.0
        %314 = vmatprep.subr.mxu0 0.0
        %315 = vmatpush1.msra.mxu0 0.0
        %316 = vmatprep.subr.mxu0 0.0
        %317 = vmatpush1.msra.mxu0 0.0
        %318 = vmatprep.subr.mxu0 0.0
        %319 = vmatpush1.msra.mxu0 0.0
        %320 = vmatprep.subr.mxu0 0.0
        %321 = vmatpush1.msra.mxu0 0.0
        %322 = vmatprep.subr.mxu0 0.0
        %323 = vmatpush1.msra.mxu0 0.0
        %324 = vmatprep.mubr.f32.mxu0 0.0
        %325 = vmatmul.mubr.f32.gmra.mrb[0].mxu0 %v220
        %v326 = vpop.f32.mrb[0].mxu0
        %v327 = vadd.f32 0.0, %v326
        %v328 = vpop.f32.mrb[0].mxu0
        %v329 = vadd.f32 0.0, %v328
        %330 = vmatprep.mubr.f32.mxu0 0.0
        %331 = vmatmul.mubr.f32.gmra.mrb[0].mxu0 %v223
        %v332 = vpop.f32.mrb[0].mxu0
        %v333 = vadd.f32 0.0, %v332
        %v334 = vpop.f32.mrb[0].mxu0
        %v335 = vadd.f32 0.0, %v334
        %336 = vmatprep.mubr.f32.mxu0 0.0
        %337 = vmatmul.mubr.f32.gmra.mrb[0].mxu0 %v226
        %v338 = vpop.f32.mrb[0].mxu0
        %v339 = vadd.f32 0.0, %v338
        %v340 = vpop.f32.mrb[0].mxu0
        %v341 = vadd.f32 0.0, %v340
        %342 = vmatprep.mubr.f32.mxu0 0.0
        %343 = vmatmul.mubr.f32.gmra.mrb[0].mxu0 %v229
        %v344 = vpop.f32.mrb[0].mxu0
        %v345 = vadd.f32 0.0, %v344
        %v346 = vpop.f32.mrb[0].mxu0
        %v347 = vadd.f32 0.0, %v346
        %348 = vmatprep.mubr.f32.mxu0 0.0
        %349 = vmatmul.mubr.f32.gmra.mrb[0].mxu0 %v232
        %v350 = vpop.f32.mrb[0].mxu0
        %v351 = vadd.f32 0.0, %v350
        %v352 = vpop.f32.mrb[0].mxu0
        %v353 = vadd.f32 0.0, %v352
        %354 = vmatprep.mubr.f32.mxu0 0.0
        %355 = vmatmul.mubr.f32.gmra.mrb[0].mxu0 %v235
        %v356 = vpop.f32.mrb[0].mxu0
        %v357 = vadd.f32 0.0, %v356
        %v358 = vpop.f32.mrb[0].mxu0
        %v359 = vadd.f32 0.0, %v358
        %360 = vmatprep.mubr.f32.mxu0 0.0
        %361 = vmatmul.mubr.f32.gmra.mrb[0].mxu0 %v238
        %v362 = vpop.f32.mrb[0].mxu0
        %v363 = vadd.f32 0.0, %v362
        %v364 = vpop.f32.mrb[0].mxu0
        %v365 = vadd.f32 0.0, %v364
        %366 = vmatprep.mubr.f32.mxu0 0.0
        %367 = vmatmul.mubr.f32.gmra.mrb[0].mxu0 %v241
        %v368 = vpop.f32.mrb[0].mxu0
        %v369 = vadd.f32 0.0, %v368
        %v370 = vpop.f32.mrb[0].mxu0
        %v371 = vadd.f32 0.0, %v370
        %372 = vmatprep.mubr.f32.mxu0 0.0
        %373 = vmatmul.mubr.f32.gmra.mrb[0].mxu0 %v244
        %v374 = vpop.f32.mrb[0].mxu0
        %v375 = vadd.f32 0.0, %v374
        %v376 = vpop.f32.mrb[0].mxu0
        %v377 = vadd.f32 0.0, %v376
        %378 = vmatprep.mubr.f32.mxu0 0.0
        %379 = vmatmul.mubr.f32.gmra.mrb[0].mxu0 %v247
        %v380 = vpop.f32.mrb[0].mxu0
        %v381 = vadd.f32 0.0, %v380
        %v382 = vpop.f32.mrb[0].mxu0
        %v383 = vadd.f32 0.0, %v382
        %384 = vmatprep.mubr.f32.mxu0 0.0
        %385 = vmatmul.mubr.f32.gmra.mrb[0].mxu0 %v250
        %v386 = vpop.f32.mrb[0].mxu0
        %v387 = vadd.f32 0.0, %v386
        %v388 = vpop.f32.mrb[0].mxu0
        %v389 = vadd.f32 0.0, %v388
        %390 = vmatprep.mubr.f32.mxu0 0.0
        %391 = vmatmul.mubr.f32.gmra.mrb[0].mxu0 %v253
        %v392 = vpop.f32.mrb[0].mxu0
        %v393 = vadd.f32 0.0, %v392
        %v394 = vpop.f32.mrb[0].mxu0
        %v395 = vadd.f32 0.0, %v394
        %396 = vdwg.mxu0
        %398 = vset.pattern.permute.xlu0 0
        %399 = vperm.xlu0 %398, %v199
        %v400 = vpop.permute.xlu0 %399
        %403 = vset.pattern.permute.xlu0 0
        %404 = vperm.xlu0 %403, %v200
        %v405 = vpop.permute.xlu0 %404
        %408 = vset.pattern.permute.xlu0 0
        %409 = vperm.xlu0 %408, %v201
        %v410 = vpop.permute.xlu0 %409
        %413 = vset.pattern.permute.xlu0 0
        %414 = vperm.xlu0 %413, %v202
        %v415 = vpop.permute.xlu0 %414
        %v417 = vadd.f32 %v327, %v400
        %v418 = vadd.f32 %v329, %v400
        %v419 = vadd.f32 %v333, %v405
        %v420 = vadd.f32 %v335, %v405
        %v421 = vadd.f32 %v339, %v410
        %v422 = vadd.f32 %v341, %v410
        %v423 = vadd.f32 %v345, %v415
        %v424 = vadd.f32 %v347, %v415
        %v425 = vand.u32 2147483647, %v417
        %vm426 = vcmp.le.f32.partialorder %v425, 0.7853982
        %vm427 = vcmp.lt.s32.totalorder %v417, 0
        %v428 = vand.u32 %v417, 2139095040
        %v429 = vshrl.u32 %v428, 23
        %v430 = vsub.s32 %v429, 127
        %v431 = vand.u32 2147483647, %v417
        %v432 = vand.u32 %v431, 8388607
        %v433 = vor.u32 %v432, 8388608
        %v434 = vsub.s32 0, %v433
        %v435 = vadd.s32 %v430, 1
        %vm436 = vcmp.gt.s32.totalorder %v435, 0
        %v437 = vsel %vm436, %v435, 0
        %v438 = vshrl.u32 %v437, 5
        %v439 = vand.u32 %v437, 31
        %v440 = vsub.s32 32, %v439
        %v441 = vshrl.u32 683565275, %v440
        %v442 = vshll.u32 683565275, %v439
        %v443 = vshrl.u32 2475754826, %v440
        %v444 = vor.u32 %v442, %v443
        %v445 = vshll.u32 2475754826, %v439
        %v446 = vshrl.u32 2131351028, %v440
        %v447 = vor.u32 %v445, %v446
        %v448 = vshll.u32 2131351028, %v439
        %v449 = vshrl.u32 2102212464, %v440
        %v450 = vor.u32 %v448, %v449
        %v451 = vshll.u32 2102212464, %v439
        %v452 = vshrl.u32 920167782, %v440
        %v453 = vor.u32 %v451, %v452
        %v454 = vshll.u32 920167782, %v439
        %v455 = vshrl.u32 1326507024, %v440
        %v456 = vor.u32 %v454, %v455
        %vm457 = vcmp.lt.s32.totalorder %v438, 1
        %vm458 = vcmp.lt.s32.totalorder %v438, 2
        %vm459 = vcmp.lt.s32.totalorder %v438, 3
        %vm460 = vcmp.lt.s32.totalorder %v438, 4
        %v461 = vsel %vm457, %v441, %v444
        %v462 = vsel %vm460, %v450, 2102212464
        %v463 = vsel %vm459, %v447, %v462
        %v464 = vsel %vm458, %v461, %v463
        %v465 = vsel %vm457, %v444, %v447
        %v466 = vsel %vm460, %v453, 920167782
        %v467 = vsel %vm459, %v450, %v466
        %v468 = vsel %vm458, %v465, %v467
        %v469 = vsel %vm457, %v447, %v450
        %v470 = vsel %vm460, %v456, 1326507024
        %v471 = vsel %vm459, %v453, %v470
        %v472 = vsel %vm458, %v469, %v471
        %v473 = vshll.u32 %v433, 8
        %v474 = vmul.u32.u64.compose %v473, %v472
        %v475 = vextract.low.u32 %v474
        %v476 = vextract.high.u32 %v474
        %v477 = vmul.u32.u64.compose %v473, %v468
        %v478 = vextract.low.u32 %v477
        %v479 = vextract.high.u32 %v477
        %v480 = vmul.u32 %v473, %v464
        %v481 = vadd.s32 %v476, %v478
        %vm482 = vc.u32 %v476, %v478
        %v483 = vadd.s32 %v479, 1
        %v484 = vsel %vm482, %v483, %v479
        %v485 = vadd.s32 %v480, %v484
        %v486 = vadd.s32 %v485, 536870912
        %v487 = vshrl.u32 %v486, 30
        %v488 = vshll.u32 %v487, 30
        %v489 = vsub.s32 %v485, %v488
        %vm490 = vcmp.lt.s32.totalorder %v489, 0
        %v491 = vsub.s32 0, %v489
        %v492 = vsel %vm490, %v491, %v489
        %v493 = vclz %v492
        %v494 = vsub.s32 %v493, 2
        %vm495 = vcmp.gt.s32.totalorder 0, %v494
        %v496 = vsel %vm495, 0, %v494
        %v497 = vsub.s32 32, %v496
        %v498 = vshll.u32 %v489, %v496
        %v499 = vshrl.u32 %v481, %v497
        %v500 = vor.u32 %v498, %v499
        %v501 = vsub.s32 4294967266, %v496
        %v502 = vadd.s32 %v501, 127
        %v503 = vshll.u32 %v502, 23
        %v504 = vor.u32 4788187, %v503
        %v505 = vand.u32 2147483647, %v504
        %v507 = vcvt.s32.f32 %v500
        %v508 = vmul.f32 %v507, %v505
        %v509 = vxor.u32 %v508, 2147483648
        %v510 = vsel %vm427, %v509, %v508
        %v511 = vsub.s32 4, %v487
        %v512 = vsel %vm427, %v511, %v487
        %v513 = vsel %vm426, %v417, %v510
        %v514 = vsel %vm426, 0, %v512
        %v515 = vcosq.f32.pop %v513
        %v516 = vsinq.f32.pop %v513
        %vm517 = vweird.f32 %v417
        %v518 = vadd.s32 %v514, 3
        %v519 = vand.u32 %v518, 3
        %vm520 = vcmp.lt.s32.totalorder %v519, 2
        %vm521 = vcmp.eq.s32.totalorder %v519, 0
        %v522 = vxor.u32 %v516, 2147483648
        %v523 = vsel %vm521, %v515, %v522
        %vm524 = vcmp.eq.s32.totalorder %v519, 2
        %v525 = vxor.u32 %v515, 2147483648
        %v526 = vsel %vm524, %v525, %v516
        %v527 = vsel %vm520, %v523, %v526
        %v528 = vsel %vm517, nan, %v527
        %v529 = vand.u32 2147483647, %v418
        %vm530 = vcmp.le.f32.partialorder %v529, 0.7853982
        %vm531 = vcmp.lt.s32.totalorder %v418, 0
        %v532 = vand.u32 %v418, 2139095040
        %v533 = vshrl.u32 %v532, 23
        %v534 = vsub.s32 %v533, 127
        %v535 = vand.u32 2147483647, %v418
        %v536 = vand.u32 %v535, 8388607
        %v537 = vor.u32 %v536, 8388608
        %v538 = vsub.s32 0, %v537
        %v539 = vadd.s32 %v534, 1
        %vm540 = vcmp.gt.s32.totalorder %v539, 0
        %v541 = vsel %vm540, %v539, 0
        %v542 = vshrl.u32 %v541, 5
        %v543 = vand.u32 %v541, 31
        %v544 = vsub.s32 32, %v543
        %v545 = vshrl.u32 683565275, %v544
        %v546 = vshll.u32 683565275, %v543
        %v547 = vshrl.u32 2475754826, %v544
        %v548 = vor.u32 %v546, %v547
        %v549 = vshll.u32 2475754826, %v543
        %v550 = vshrl.u32 2131351028, %v544
        %v551 = vor.u32 %v549, %v550
        %v552 = vshll.u32 2131351028, %v543
        %v553 = vshrl.u32 2102212464, %v544
        %v554 = vor.u32 %v552, %v553
        %v555 = vshll.u32 2102212464, %v543
        %v556 = vshrl.u32 920167782, %v544
        %v557 = vor.u32 %v555, %v556
        %v558 = vshll.u32 920167782, %v543
        %v559 = vshrl.u32 1326507024, %v544
        %v560 = vor.u32 %v558, %v559
        %vm561 = vcmp.lt.s32.totalorder %v542, 1
        %vm562 = vcmp.lt.s32.totalorder %v542, 2
        %vm563 = vcmp.lt.s32.totalorder %v542, 3
        %vm564 = vcmp.lt.s32.totalorder %v542, 4
        %v565 = vsel %vm561, %v545, %v548
        %v566 = vsel %vm564, %v554, 2102212464
        %v567 = vsel %vm563, %v551, %v566
        %v568 = vsel %vm562, %v565, %v567
        %v569 = vsel %vm561, %v548, %v551
        %v570 = vsel %vm564, %v557, 920167782
        %v571 = vsel %vm563, %v554, %v570
        %v572 = vsel %vm562, %v569, %v571
        %v573 = vsel %vm561, %v551, %v554
        %v574 = vsel %vm564, %v560, 1326507024
        %v575 = vsel %vm563, %v557, %v574
        %v576 = vsel %vm562, %v573, %v575
        %v577 = vshll.u32 %v537, 8
        %v578 = vmul.u32.u64.compose %v577, %v576
        %v579 = vextract.low.u32 %v578
        %v580 = vextract.high.u32 %v578
        %v581 = vmul.u32.u64.compose %v577, %v572
        %v582 = vextract.low.u32 %v581
        %v583 = vextract.high.u32 %v581
        %v584 = vmul.u32 %v577, %v568
        %v585 = vadd.s32 %v580, %v582
        %vm586 = vc.u32 %v580, %v582
        %v587 = vadd.s32 %v583, 1
        %v588 = vsel %vm586, %v587, %v583
        %v589 = vadd.s32 %v584, %v588
        %v590 = vadd.s32 %v589, 536870912
        %v591 = vshrl.u32 %v590, 30
        %v592 = vshll.u32 %v591, 30
        %v593 = vsub.s32 %v589, %v592
        %vm594 = vcmp.lt.s32.totalorder %v593, 0
        %v595 = vsub.s32 0, %v593
        %v596 = vsel %vm594, %v595, %v593
        %v597 = vclz %v596
        %v598 = vsub.s32 %v597, 2
        %vm599 = vcmp.gt.s32.totalorder 0, %v598
        %v600 = vsel %vm599, 0, %v598
        %v601 = vsub.s32 32, %v600
        %v602 = vshll.u32 %v593, %v600
        %v603 = vshrl.u32 %v585, %v601
        %v604 = vor.u32 %v602, %v603
        %v605 = vsub.s32 4294967266, %v600
        %v606 = vadd.s32 %v605, 127
        %v607 = vshll.u32 %v606, 23
        %v608 = vor.u32 4788187, %v607
        %v609 = vand.u32 2147483647, %v608
        %v611 = vcvt.s32.f32 %v604
        %v612 = vmul.f32 %v611, %v609
        %v613 = vxor.u32 %v612, 2147483648
        %v614 = vsel %vm531, %v613, %v612
        %v615 = vsub.s32 4, %v591
        %v616 = vsel %vm531, %v615, %v591
        %v617 = vsel %vm530, %v418, %v614
        %v618 = vsel %vm530, 0, %v616
        %v619 = vcosq.f32.pop %v617
        %v620 = vsinq.f32.pop %v617
        %vm621 = vweird.f32 %v418
        %v622 = vadd.s32 %v618, 3
        %v623 = vand.u32 %v622, 3
        %vm624 = vcmp.lt.s32.totalorder %v623, 2
        %vm625 = vcmp.eq.s32.totalorder %v623, 0
        %v626 = vxor.u32 %v620, 2147483648
        %v627 = vsel %vm625, %v619, %v626
        %vm628 = vcmp.eq.s32.totalorder %v623, 2
        %v629 = vxor.u32 %v619, 2147483648
        %v630 = vsel %vm628, %v629, %v620
        %v631 = vsel %vm624, %v627, %v630
        %v632 = vsel %vm621, nan, %v631
        %v633 = vand.u32 2147483647, %v419
        %vm634 = vcmp.le.f32.partialorder %v633, 0.7853982
        %vm635 = vcmp.lt.s32.totalorder %v419, 0
        %v636 = vand.u32 %v419, 2139095040
        %v637 = vshrl.u32 %v636, 23
        %v638 = vsub.s32 %v637, 127
        %v639 = vand.u32 2147483647, %v419
        %v640 = vand.u32 %v639, 8388607
        %v641 = vor.u32 %v640, 8388608
        %v642 = vsub.s32 0, %v641
        %v643 = vadd.s32 %v638, 1
        %vm644 = vcmp.gt.s32.totalorder %v643, 0
        %v645 = vsel %vm644, %v643, 0
        %v646 = vshrl.u32 %v645, 5
        %v647 = vand.u32 %v645, 31
        %v648 = vsub.s32 32, %v647
        %v649 = vshrl.u32 683565275, %v648
        %v650 = vshll.u32 683565275, %v647
        %v651 = vshrl.u32 2475754826, %v648
        %v652 = vor.u32 %v650, %v651
        %v653 = vshll.u32 2475754826, %v647
        %v654 = vshrl.u32 2131351028, %v648
        %v655 = vor.u32 %v653, %v654
        %v656 = vshll.u32 2131351028, %v647
        %v657 = vshrl.u32 2102212464, %v648
        %v658 = vor.u32 %v656, %v657
        %v659 = vshll.u32 2102212464, %v647
        %v660 = vshrl.u32 920167782, %v648
        %v661 = vor.u32 %v659, %v660
        %v662 = vshll.u32 920167782, %v647
        %v663 = vshrl.u32 1326507024, %v648
        %v664 = vor.u32 %v662, %v663
        %vm665 = vcmp.lt.s32.totalorder %v646, 1
        %vm666 = vcmp.lt.s32.totalorder %v646, 2
        %vm667 = vcmp.lt.s32.totalorder %v646, 3
        %vm668 = vcmp.lt.s32.totalorder %v646, 4
        %v669 = vsel %vm665, %v649, %v652
        %v670 = vsel %vm668, %v658, 2102212464
        %v671 = vsel %vm667, %v655, %v670
        %v672 = vsel %vm666, %v669, %v671
        %v673 = vsel %vm665, %v652, %v655
        %v674 = vsel %vm668, %v661, 920167782
        %v675 = vsel %vm667, %v658, %v674
        %v676 = vsel %vm666, %v673, %v675
        %v677 = vsel %vm665, %v655, %v658
        %v678 = vsel %vm668, %v664, 1326507024
        %v679 = vsel %vm667, %v661, %v678
        %v680 = vsel %vm666, %v677, %v679
        %v681 = vshll.u32 %v641, 8
        %v682 = vmul.u32.u64.compose %v681, %v680
        %v683 = vextract.low.u32 %v682
        %v684 = vextract.high.u32 %v682
        %v685 = vmul.u32.u64.compose %v681, %v676
        %v686 = vextract.low.u32 %v685
        %v687 = vextract.high.u32 %v685
        %v688 = vmul.u32 %v681, %v672
        %v689 = vadd.s32 %v684, %v686
        %vm690 = vc.u32 %v684, %v686
        %v691 = vadd.s32 %v687, 1
        %v692 = vsel %vm690, %v691, %v687
        %v693 = vadd.s32 %v688, %v692
        %v694 = vadd.s32 %v693, 536870912
        %v695 = vshrl.u32 %v694, 30
        %v696 = vshll.u32 %v695, 30
        %v697 = vsub.s32 %v693, %v696
        %vm698 = vcmp.lt.s32.totalorder %v697, 0
        %v699 = vsub.s32 0, %v697
        %v700 = vsel %vm698, %v699, %v697
        %v701 = vclz %v700
        %v702 = vsub.s32 %v701, 2
        %vm703 = vcmp.gt.s32.totalorder 0, %v702
        %v704 = vsel %vm703, 0, %v702
        %v705 = vsub.s32 32, %v704
        %v706 = vshll.u32 %v697, %v704
        %v707 = vshrl.u32 %v689, %v705
        %v708 = vor.u32 %v706, %v707
        %v709 = vsub.s32 4294967266, %v704
        %v710 = vadd.s32 %v709, 127
        %v711 = vshll.u32 %v710, 23
        %v712 = vor.u32 4788187, %v711
        %v713 = vand.u32 2147483647, %v712
        %v715 = vcvt.s32.f32 %v708
        %v716 = vmul.f32 %v715, %v713
        %v717 = vxor.u32 %v716, 2147483648
        %v718 = vsel %vm635, %v717, %v716
        %v719 = vsub.s32 4, %v695
        %v720 = vsel %vm635, %v719, %v695
        %v721 = vsel %vm634, %v419, %v718
        %v722 = vsel %vm634, 0, %v720
        %v723 = vcosq.f32.pop %v721
        %v724 = vsinq.f32.pop %v721
        %vm725 = vweird.f32 %v419
        %v726 = vadd.s32 %v722, 3
        %v727 = vand.u32 %v726, 3
        %vm728 = vcmp.lt.s32.totalorder %v727, 2
        %vm729 = vcmp.eq.s32.totalorder %v727, 0
        %v730 = vxor.u32 %v724, 2147483648
        %v731 = vsel %vm729, %v723, %v730
        %vm732 = vcmp.eq.s32.totalorder %v727, 2
        %v733 = vxor.u32 %v723, 2147483648
        %v734 = vsel %vm732, %v733, %v724
        %v735 = vsel %vm728, %v731, %v734
        %v736 = vsel %vm725, nan, %v735
        %v737 = vand.u32 2147483647, %v420
        %vm738 = vcmp.le.f32.partialorder %v737, 0.7853982
        %vm739 = vcmp.lt.s32.totalorder %v420, 0
        %v740 = vand.u32 %v420, 2139095040
        %v741 = vshrl.u32 %v740, 23
        %v742 = vsub.s32 %v741, 127
        %v743 = vand.u32 2147483647, %v420
        %v744 = vand.u32 %v743, 8388607
        %v745 = vor.u32 %v744, 8388608
        %v746 = vsub.s32 0, %v745
        %v747 = vadd.s32 %v742, 1
        %vm748 = vcmp.gt.s32.totalorder %v747, 0
        %v749 = vsel %vm748, %v747, 0
        %v750 = vshrl.u32 %v749, 5
        %v751 = vand.u32 %v749, 31
        %v752 = vsub.s32 32, %v751
        %v753 = vshrl.u32 683565275, %v752
        %v754 = vshll.u32 683565275, %v751
        %v755 = vshrl.u32 2475754826, %v752
        %v756 = vor.u32 %v754, %v755
        %v757 = vshll.u32 2475754826, %v751
        %v758 = vshrl.u32 2131351028, %v752
        %v759 = vor.u32 %v757, %v758
        %v760 = vshll.u32 2131351028, %v751
        %v761 = vshrl.u32 2102212464, %v752
        %v762 = vor.u32 %v760, %v761
        %v763 = vshll.u32 2102212464, %v751
        %v764 = vshrl.u32 920167782, %v752
        %v765 = vor.u32 %v763, %v764
        %v766 = vshll.u32 920167782, %v751
        %v767 = vshrl.u32 1326507024, %v752
        %v768 = vor.u32 %v766, %v767
        %vm769 = vcmp.lt.s32.totalorder %v750, 1
        %vm770 = vcmp.lt.s32.totalorder %v750, 2
        %vm771 = vcmp.lt.s32.totalorder %v750, 3
        %vm772 = vcmp.lt.s32.totalorder %v750, 4
        %v773 = vsel %vm769, %v753, %v756
        %v774 = vsel %vm772, %v762, 2102212464
        %v775 = vsel %vm771, %v759, %v774
        %v776 = vsel %vm770, %v773, %v775
        %v777 = vsel %vm769, %v756, %v759
        %v778 = vsel %vm772, %v765, 920167782
        %v779 = vsel %vm771, %v762, %v778
        %v780 = vsel %vm770, %v777, %v779
        %v781 = vsel %vm769, %v759, %v762
        %v782 = vsel %vm772, %v768, 1326507024
        %v783 = vsel %vm771, %v765, %v782
        %v784 = vsel %vm770, %v781, %v783
        %v785 = vshll.u32 %v745, 8
        %v786 = vmul.u32.u64.compose %v785, %v784
        %v787 = vextract.low.u32 %v786
        %v788 = vextract.high.u32 %v786
        %v789 = vmul.u32.u64.compose %v785, %v780
        %v790 = vextract.low.u32 %v789
        %v791 = vextract.high.u32 %v789
        %v792 = vmul.u32 %v785, %v776
        %v793 = vadd.s32 %v788, %v790
        %vm794 = vc.u32 %v788, %v790
        %v795 = vadd.s32 %v791, 1
        %v796 = vsel %vm794, %v795, %v791
        %v797 = vadd.s32 %v792, %v796
        %v798 = vadd.s32 %v797, 536870912
        %v799 = vshrl.u32 %v798, 30
        %v800 = vshll.u32 %v799, 30
        %v801 = vsub.s32 %v797, %v800
        %vm802 = vcmp.lt.s32.totalorder %v801, 0
        %v803 = vsub.s32 0, %v801
        %v804 = vsel %vm802, %v803, %v801
        %v805 = vclz %v804
        %v806 = vsub.s32 %v805, 2
        %vm807 = vcmp.gt.s32.totalorder 0, %v806
        %v808 = vsel %vm807, 0, %v806
        %v809 = vsub.s32 32, %v808
        %v810 = vshll.u32 %v801, %v808
        %v811 = vshrl.u32 %v793, %v809
        %v812 = vor.u32 %v810, %v811
        %v813 = vsub.s32 4294967266, %v808
        %v814 = vadd.s32 %v813, 127
        %v815 = vshll.u32 %v814, 23
        %v816 = vor.u32 4788187, %v815
        %v817 = vand.u32 2147483647, %v816
        %v819 = vcvt.s32.f32 %v812
        %v820 = vmul.f32 %v819, %v817
        %v821 = vxor.u32 %v820, 2147483648
        %v822 = vsel %vm739, %v821, %v820
        %v823 = vsub.s32 4, %v799
        %v824 = vsel %vm739, %v823, %v799
        %v825 = vsel %vm738, %v420, %v822
        %v826 = vsel %vm738, 0, %v824
        %v827 = vcosq.f32.pop %v825
        %v828 = vsinq.f32.pop %v825
        %vm829 = vweird.f32 %v420
        %v830 = vadd.s32 %v826, 3
        %v831 = vand.u32 %v830, 3
        %vm832 = vcmp.lt.s32.totalorder %v831, 2
        %vm833 = vcmp.eq.s32.totalorder %v831, 0
        %v834 = vxor.u32 %v828, 2147483648
        %v835 = vsel %vm833, %v827, %v834
        %vm836 = vcmp.eq.s32.totalorder %v831, 2
        %v837 = vxor.u32 %v827, 2147483648
        %v838 = vsel %vm836, %v837, %v828
        %v839 = vsel %vm832, %v835, %v838
        %v840 = vsel %vm829, nan, %v839
        %v841 = vand.u32 2147483647, %v421
        %vm842 = vcmp.le.f32.partialorder %v841, 0.7853982
        %vm843 = vcmp.lt.s32.totalorder %v421, 0
        %v844 = vand.u32 %v421, 2139095040
        %v845 = vshrl.u32 %v844, 23
        %v846 = vsub.s32 %v845, 127
        %v847 = vand.u32 2147483647, %v421
        %v848 = vand.u32 %v847, 8388607
        %v849 = vor.u32 %v848, 8388608
        %v850 = vsub.s32 0, %v849
        %v851 = vadd.s32 %v846, 1
        %vm852 = vcmp.gt.s32.totalorder %v851, 0
        %v853 = vsel %vm852, %v851, 0
        %v854 = vshrl.u32 %v853, 5
        %v855 = vand.u32 %v853, 31
        %v856 = vsub.s32 32, %v855
        %v857 = vshrl.u32 683565275, %v856
        %v858 = vshll.u32 683565275, %v855
        %v859 = vshrl.u32 2475754826, %v856
        %v860 = vor.u32 %v858, %v859
        %v861 = vshll.u32 2475754826, %v855
        %v862 = vshrl.u32 2131351028, %v856
        %v863 = vor.u32 %v861, %v862
        %v864 = vshll.u32 2131351028, %v855
        %v865 = vshrl.u32 2102212464, %v856
        %v866 = vor.u32 %v864, %v865
        %v867 = vshll.u32 2102212464, %v855
        %v868 = vshrl.u32 920167782, %v856
        %v869 = vor.u32 %v867, %v868
        %v870 = vshll.u32 920167782, %v855
        %v871 = vshrl.u32 1326507024, %v856
        %v872 = vor.u32 %v870, %v871
        %vm873 = vcmp.lt.s32.totalorder %v854, 1
        %vm874 = vcmp.lt.s32.totalorder %v854, 2
        %vm875 = vcmp.lt.s32.totalorder %v854, 3
        %vm876 = vcmp.lt.s32.totalorder %v854, 4
        %v877 = vsel %vm873, %v857, %v860
        %v878 = vsel %vm876, %v866, 2102212464
        %v879 = vsel %vm875, %v863, %v878
        %v880 = vsel %vm874, %v877, %v879
        %v881 = vsel %vm873, %v860, %v863
        %v882 = vsel %vm876, %v869, 920167782
        %v883 = vsel %vm875, %v866, %v882
        %v884 = vsel %vm874, %v881, %v883
        %v885 = vsel %vm873, %v863, %v866
        %v886 = vsel %vm876, %v872, 1326507024
        %v887 = vsel %vm875, %v869, %v886
        %v888 = vsel %vm874, %v885, %v887
        %v889 = vshll.u32 %v849, 8
        %v890 = vmul.u32.u64.compose %v889, %v888
        %v891 = vextract.low.u32 %v890
        %v892 = vextract.high.u32 %v890
        %v893 = vmul.u32.u64.compose %v889, %v884
        %v894 = vextract.low.u32 %v893
        %v895 = vextract.high.u32 %v893
        %v896 = vmul.u32 %v889, %v880
        %v897 = vadd.s32 %v892, %v894
        %vm898 = vc.u32 %v892, %v894
        %v899 = vadd.s32 %v895, 1
        %v900 = vsel %vm898, %v899, %v895
        %v901 = vadd.s32 %v896, %v900
        %v902 = vadd.s32 %v901, 536870912
        %v903 = vshrl.u32 %v902, 30
        %v904 = vshll.u32 %v903, 30
        %v905 = vsub.s32 %v901, %v904
        %vm906 = vcmp.lt.s32.totalorder %v905, 0
        %v907 = vsub.s32 0, %v905
        %v908 = vsel %vm906, %v907, %v905
        %v909 = vclz %v908
        %v910 = vsub.s32 %v909, 2
        %vm911 = vcmp.gt.s32.totalorder 0, %v910
        %v912 = vsel %vm911, 0, %v910
        %v913 = vsub.s32 32, %v912
        %v914 = vshll.u32 %v905, %v912
        %v915 = vshrl.u32 %v897, %v913
        %v916 = vor.u32 %v914, %v915
        %v917 = vsub.s32 4294967266, %v912
        %v918 = vadd.s32 %v917, 127
        %v919 = vshll.u32 %v918, 23
        %v920 = vor.u32 4788187, %v919
        %v921 = vand.u32 2147483647, %v920
        %v923 = vcvt.s32.f32 %v916
        %v924 = vmul.f32 %v923, %v921
        %v925 = vxor.u32 %v924, 2147483648
        %v926 = vsel %vm843, %v925, %v924
        %v927 = vsub.s32 4, %v903
        %v928 = vsel %vm843, %v927, %v903
        %v929 = vsel %vm842, %v421, %v926
        %v930 = vsel %vm842, 0, %v928
        %v931 = vcosq.f32.pop %v929
        %v932 = vsinq.f32.pop %v929
        %vm933 = vweird.f32 %v421
        %v934 = vadd.s32 %v930, 3
        %v935 = vand.u32 %v934, 3
        %vm936 = vcmp.lt.s32.totalorder %v935, 2
        %vm937 = vcmp.eq.s32.totalorder %v935, 0
        %v938 = vxor.u32 %v932, 2147483648
        %v939 = vsel %vm937, %v931, %v938
        %vm940 = vcmp.eq.s32.totalorder %v935, 2
        %v941 = vxor.u32 %v931, 2147483648
        %v942 = vsel %vm940, %v941, %v932
        %v943 = vsel %vm936, %v939, %v942
        %v944 = vsel %vm933, nan, %v943
        %v945 = vand.u32 2147483647, %v422
        %vm946 = vcmp.le.f32.partialorder %v945, 0.7853982
        %vm947 = vcmp.lt.s32.totalorder %v422, 0
        %v948 = vand.u32 %v422, 2139095040
        %v949 = vshrl.u32 %v948, 23
        %v950 = vsub.s32 %v949, 127
        %v951 = vand.u32 2147483647, %v422
        %v952 = vand.u32 %v951, 8388607
        %v953 = vor.u32 %v952, 8388608
        %v954 = vsub.s32 0, %v953
        %v955 = vadd.s32 %v950, 1
        %vm956 = vcmp.gt.s32.totalorder %v955, 0
        %v957 = vsel %vm956, %v955, 0
        %v958 = vshrl.u32 %v957, 5
        %v959 = vand.u32 %v957, 31
        %v960 = vsub.s32 32, %v959
        %v961 = vshrl.u32 683565275, %v960
        %v962 = vshll.u32 683565275, %v959
        %v963 = vshrl.u32 2475754826, %v960
        %v964 = vor.u32 %v962, %v963
        %v965 = vshll.u32 2475754826, %v959
        %v966 = vshrl.u32 2131351028, %v960
        %v967 = vor.u32 %v965, %v966
        %v968 = vshll.u32 2131351028, %v959
        %v969 = vshrl.u32 2102212464, %v960
        %v970 = vor.u32 %v968, %v969
        %v971 = vshll.u32 2102212464, %v959
        %v972 = vshrl.u32 920167782, %v960
        %v973 = vor.u32 %v971, %v972
        %v974 = vshll.u32 920167782, %v959
        %v975 = vshrl.u32 1326507024, %v960
        %v976 = vor.u32 %v974, %v975
        %vm977 = vcmp.lt.s32.totalorder %v958, 1
        %vm978 = vcmp.lt.s32.totalorder %v958, 2
        %vm979 = vcmp.lt.s32.totalorder %v958, 3
        %vm980 = vcmp.lt.s32.totalorder %v958, 4
        %v981 = vsel %vm977, %v961, %v964
        %v982 = vsel %vm980, %v970, 2102212464
        %v983 = vsel %vm979, %v967, %v982
        %v984 = vsel %vm978, %v981, %v983
        %v985 = vsel %vm977, %v964, %v967
        %v986 = vsel %vm980, %v973, 920167782
        %v987 = vsel %vm979, %v970, %v986
        %v988 = vsel %vm978, %v985, %v987
        %v989 = vsel %vm977, %v967, %v970
        %v990 = vsel %vm980, %v976, 1326507024
        %v991 = vsel %vm979, %v973, %v990
        %v992 = vsel %vm978, %v989, %v991
        %v993 = vshll.u32 %v953, 8
        %v994 = vmul.u32.u64.compose %v993, %v992
        %v995 = vextract.low.u32 %v994
        %v996 = vextract.high.u32 %v994
        %v997 = vmul.u32.u64.compose %v993, %v988
        %v998 = vextract.low.u32 %v997
        %v999 = vextract.high.u32 %v997
        %v1000 = vmul.u32 %v993, %v984
        %v1001 = vadd.s32 %v996, %v998
        %vm1002 = vc.u32 %v996, %v998
        %v1003 = vadd.s32 %v999, 1
        %v1004 = vsel %vm1002, %v1003, %v999
        %v1005 = vadd.s32 %v1000, %v1004
        %v1006 = vadd.s32 %v1005, 536870912
        %v1007 = vshrl.u32 %v1006, 30
        %v1008 = vshll.u32 %v1007, 30
        %v1009 = vsub.s32 %v1005, %v1008
        %vm1010 = vcmp.lt.s32.totalorder %v1009, 0
        %v1011 = vsub.s32 0, %v1009
        %v1012 = vsel %vm1010, %v1011, %v1009
        %v1013 = vclz %v1012
        %v1014 = vsub.s32 %v1013, 2
        %vm1015 = vcmp.gt.s32.totalorder 0, %v1014
        %v1016 = vsel %vm1015, 0, %v1014
        %v1017 = vsub.s32 32, %v1016
        %v1018 = vshll.u32 %v1009, %v1016
        %v1019 = vshrl.u32 %v1001, %v1017
        %v1020 = vor.u32 %v1018, %v1019
        %v1021 = vsub.s32 4294967266, %v1016
        %v1022 = vadd.s32 %v1021, 127
        %v1023 = vshll.u32 %v1022, 23
        %v1024 = vor.u32 4788187, %v1023
        %v1025 = vand.u32 2147483647, %v1024
        %v1027 = vcvt.s32.f32 %v1020
        %v1028 = vmul.f32 %v1027, %v1025
        %v1029 = vxor.u32 %v1028, 2147483648
        %v1030 = vsel %vm947, %v1029, %v1028
        %v1031 = vsub.s32 4, %v1007
        %v1032 = vsel %vm947, %v1031, %v1007
        %v1033 = vsel %vm946, %v422, %v1030
        %v1034 = vsel %vm946, 0, %v1032
        %v1035 = vcosq.f32.pop %v1033
        %v1036 = vsinq.f32.pop %v1033
        %vm1037 = vweird.f32 %v422
        %v1038 = vadd.s32 %v1034, 3
        %v1039 = vand.u32 %v1038, 3
        %vm1040 = vcmp.lt.s32.totalorder %v1039, 2
        %vm1041 = vcmp.eq.s32.totalorder %v1039, 0
        %v1042 = vxor.u32 %v1036, 2147483648
        %v1043 = vsel %vm1041, %v1035, %v1042
        %vm1044 = vcmp.eq.s32.totalorder %v1039, 2
        %v1045 = vxor.u32 %v1035, 2147483648
        %v1046 = vsel %vm1044, %v1045, %v1036
        %v1047 = vsel %vm1040, %v1043, %v1046
        %v1048 = vsel %vm1037, nan, %v1047
        %v1049 = vand.u32 2147483647, %v423
        %vm1050 = vcmp.le.f32.partialorder %v1049, 0.7853982
        %vm1051 = vcmp.lt.s32.totalorder %v423, 0
        %v1052 = vand.u32 %v423, 2139095040
        %v1053 = vshrl.u32 %v1052, 23
        %v1054 = vsub.s32 %v1053, 127
        %v1055 = vand.u32 2147483647, %v423
        %v1056 = vand.u32 %v1055, 8388607
        %v1057 = vor.u32 %v1056, 8388608
        %v1058 = vsub.s32 0, %v1057
        %v1059 = vadd.s32 %v1054, 1
        %vm1060 = vcmp.gt.s32.totalorder %v1059, 0
        %v1061 = vsel %vm1060, %v1059, 0
        %v1062 = vshrl.u32 %v1061, 5
        %v1063 = vand.u32 %v1061, 31
        %v1064 = vsub.s32 32, %v1063
        %v1065 = vshrl.u32 683565275, %v1064
        %v1066 = vshll.u32 683565275, %v1063
        %v1067 = vshrl.u32 2475754826, %v1064
        %v1068 = vor.u32 %v1066, %v1067
        %v1069 = vshll.u32 2475754826, %v1063
        %v1070 = vshrl.u32 2131351028, %v1064
        %v1071 = vor.u32 %v1069, %v1070
        %v1072 = vshll.u32 2131351028, %v1063
        %v1073 = vshrl.u32 2102212464, %v1064
        %v1074 = vor.u32 %v1072, %v1073
        %v1075 = vshll.u32 2102212464, %v1063
        %v1076 = vshrl.u32 920167782, %v1064
        %v1077 = vor.u32 %v1075, %v1076
        %v1078 = vshll.u32 920167782, %v1063
        %v1079 = vshrl.u32 1326507024, %v1064
        %v1080 = vor.u32 %v1078, %v1079
        %vm1081 = vcmp.lt.s32.totalorder %v1062, 1
        %vm1082 = vcmp.lt.s32.totalorder %v1062, 2
        %vm1083 = vcmp.lt.s32.totalorder %v1062, 3
        %vm1084 = vcmp.lt.s32.totalorder %v1062, 4
        %v1085 = vsel %vm1081, %v1065, %v1068
        %v1086 = vsel %vm1084, %v1074, 2102212464
        %v1087 = vsel %vm1083, %v1071, %v1086
        %v1088 = vsel %vm1082, %v1085, %v1087
        %v1089 = vsel %vm1081, %v1068, %v1071
        %v1090 = vsel %vm1084, %v1077, 920167782
        %v1091 = vsel %vm1083, %v1074, %v1090
        %v1092 = vsel %vm1082, %v1089, %v1091
        %v1093 = vsel %vm1081, %v1071, %v1074
        %v1094 = vsel %vm1084, %v1080, 1326507024
        %v1095 = vsel %vm1083, %v1077, %v1094
        %v1096 = vsel %vm1082, %v1093, %v1095
        %v1097 = vshll.u32 %v1057, 8
        %v1098 = vmul.u32.u64.compose %v1097, %v1096
        %v1099 = vextract.low.u32 %v1098
        %v1100 = vextract.high.u32 %v1098
        %v1101 = vmul.u32.u64.compose %v1097, %v1092
        %v1102 = vextract.low.u32 %v1101
        %v1103 = vextract.high.u32 %v1101
        %v1104 = vmul.u32 %v1097, %v1088
        %v1105 = vadd.s32 %v1100, %v1102
        %vm1106 = vc.u32 %v1100, %v1102
        %v1107 = vadd.s32 %v1103, 1
        %v1108 = vsel %vm1106, %v1107, %v1103
        %v1109 = vadd.s32 %v1104, %v1108
        %v1110 = vadd.s32 %v1109, 536870912
        %v1111 = vshrl.u32 %v1110, 30
        %v1112 = vshll.u32 %v1111, 30
        %v1113 = vsub.s32 %v1109, %v1112
        %vm1114 = vcmp.lt.s32.totalorder %v1113, 0
        %v1115 = vsub.s32 0, %v1113
        %v1116 = vsel %vm1114, %v1115, %v1113
        %v1117 = vclz %v1116
        %v1118 = vsub.s32 %v1117, 2
        %vm1119 = vcmp.gt.s32.totalorder 0, %v1118
        %v1120 = vsel %vm1119, 0, %v1118
        %v1121 = vsub.s32 32, %v1120
        %v1122 = vshll.u32 %v1113, %v1120
        %v1123 = vshrl.u32 %v1105, %v1121
        %v1124 = vor.u32 %v1122, %v1123
        %v1125 = vsub.s32 4294967266, %v1120
        %v1126 = vadd.s32 %v1125, 127
        %v1127 = vshll.u32 %v1126, 23
        %v1128 = vor.u32 4788187, %v1127
        %v1129 = vand.u32 2147483647, %v1128
        %v1131 = vcvt.s32.f32 %v1124
        %v1132 = vmul.f32 %v1131, %v1129
        %v1133 = vxor.u32 %v1132, 2147483648
        %v1134 = vsel %vm1051, %v1133, %v1132
        %v1135 = vsub.s32 4, %v1111
        %v1136 = vsel %vm1051, %v1135, %v1111
        %v1137 = vsel %vm1050, %v423, %v1134
        %v1138 = vsel %vm1050, 0, %v1136
        %v1139 = vcosq.f32.pop %v1137
        %v1140 = vsinq.f32.pop %v1137
        %vm1141 = vweird.f32 %v423
        %v1142 = vadd.s32 %v1138, 3
        %v1143 = vand.u32 %v1142, 3
        %vm1144 = vcmp.lt.s32.totalorder %v1143, 2
        %vm1145 = vcmp.eq.s32.totalorder %v1143, 0
        %v1146 = vxor.u32 %v1140, 2147483648
        %v1147 = vsel %vm1145, %v1139, %v1146
        %vm1148 = vcmp.eq.s32.totalorder %v1143, 2
        %v1149 = vxor.u32 %v1139, 2147483648
        %v1150 = vsel %vm1148, %v1149, %v1140
        %v1151 = vsel %vm1144, %v1147, %v1150
        %v1152 = vsel %vm1141, nan, %v1151
        %v1153 = vand.u32 2147483647, %v424
        %vm1154 = vcmp.le.f32.partialorder %v1153, 0.7853982
        %vm1155 = vcmp.lt.s32.totalorder %v424, 0
        %v1156 = vand.u32 %v424, 2139095040
        %v1157 = vshrl.u32 %v1156, 23
        %v1158 = vsub.s32 %v1157, 127
        %v1159 = vand.u32 2147483647, %v424
        %v1160 = vand.u32 %v1159, 8388607
        %v1161 = vor.u32 %v1160, 8388608
        %v1162 = vsub.s32 0, %v1161
        %v1163 = vadd.s32 %v1158, 1
        %vm1164 = vcmp.gt.s32.totalorder %v1163, 0
        %v1165 = vsel %vm1164, %v1163, 0
        %v1166 = vshrl.u32 %v1165, 5
        %v1167 = vand.u32 %v1165, 31
        %v1168 = vsub.s32 32, %v1167
        %v1169 = vshrl.u32 683565275, %v1168
        %v1170 = vshll.u32 683565275, %v1167
        %v1171 = vshrl.u32 2475754826, %v1168
        %v1172 = vor.u32 %v1170, %v1171
        %v1173 = vshll.u32 2475754826, %v1167
        %v1174 = vshrl.u32 2131351028, %v1168
        %v1175 = vor.u32 %v1173, %v1174
        %v1176 = vshll.u32 2131351028, %v1167
        %v1177 = vshrl.u32 2102212464, %v1168
        %v1178 = vor.u32 %v1176, %v1177
        %v1179 = vshll.u32 2102212464, %v1167
        %v1180 = vshrl.u32 920167782, %v1168
        %v1181 = vor.u32 %v1179, %v1180
        %v1182 = vshll.u32 920167782, %v1167
        %v1183 = vshrl.u32 1326507024, %v1168
        %v1184 = vor.u32 %v1182, %v1183
        %vm1185 = vcmp.lt.s32.totalorder %v1166, 1
        %vm1186 = vcmp.lt.s32.totalorder %v1166, 2
        %vm1187 = vcmp.lt.s32.totalorder %v1166, 3
        %vm1188 = vcmp.lt.s32.totalorder %v1166, 4
        %v1189 = vsel %vm1185, %v1169, %v1172
        %v1190 = vsel %vm1188, %v1178, 2102212464
        %v1191 = vsel %vm1187, %v1175, %v1190
        %v1192 = vsel %vm1186, %v1189, %v1191
        %v1193 = vsel %vm1185, %v1172, %v1175
        %v1194 = vsel %vm1188, %v1181, 920167782
        %v1195 = vsel %vm1187, %v1178, %v1194
        %v1196 = vsel %vm1186, %v1193, %v1195
        %v1197 = vsel %vm1185, %v1175, %v1178
        %v1198 = vsel %vm1188, %v1184, 1326507024
        %v1199 = vsel %vm1187, %v1181, %v1198
        %v1200 = vsel %vm1186, %v1197, %v1199
        %v1201 = vshll.u32 %v1161, 8
        %v1202 = vmul.u32.u64.compose %v1201, %v1200
        %v1203 = vextract.low.u32 %v1202
        %v1204 = vextract.high.u32 %v1202
        %v1205 = vmul.u32.u64.compose %v1201, %v1196
        %v1206 = vextract.low.u32 %v1205
        %v1207 = vextract.high.u32 %v1205
        %v1208 = vmul.u32 %v1201, %v1192
        %v1209 = vadd.s32 %v1204, %v1206
        %vm1210 = vc.u32 %v1204, %v1206
        %v1211 = vadd.s32 %v1207, 1
        %v1212 = vsel %vm1210, %v1211, %v1207
        %v1213 = vadd.s32 %v1208, %v1212
        %v1214 = vadd.s32 %v1213, 536870912
        %v1215 = vshrl.u32 %v1214, 30
        %v1216 = vshll.u32 %v1215, 30
        %v1217 = vsub.s32 %v1213, %v1216
        %vm1218 = vcmp.lt.s32.totalorder %v1217, 0
        %v1219 = vsub.s32 0, %v1217
        %v1220 = vsel %vm1218, %v1219, %v1217
        %v1221 = vclz %v1220
        %v1222 = vsub.s32 %v1221, 2
        %vm1223 = vcmp.gt.s32.totalorder 0, %v1222
        %v1224 = vsel %vm1223, 0, %v1222
        %v1225 = vsub.s32 32, %v1224
        %v1226 = vshll.u32 %v1217, %v1224
        %v1227 = vshrl.u32 %v1209, %v1225
        %v1228 = vor.u32 %v1226, %v1227
        %v1229 = vsub.s32 4294967266, %v1224
        %v1230 = vadd.s32 %v1229, 127
        %v1231 = vshll.u32 %v1230, 23
        %v1232 = vor.u32 4788187, %v1231
        %v1233 = vand.u32 2147483647, %v1232
        %v1235 = vcvt.s32.f32 %v1228
        %v1236 = vmul.f32 %v1235, %v1233
        %v1237 = vxor.u32 %v1236, 2147483648
        %v1238 = vsel %vm1155, %v1237, %v1236
        %v1239 = vsub.s32 4, %v1215
        %v1240 = vsel %vm1155, %v1239, %v1215
        %v1241 = vsel %vm1154, %v424, %v1238
        %v1242 = vsel %vm1154, 0, %v1240
        %v1243 = vcosq.f32.pop %v1241
        %v1244 = vsinq.f32.pop %v1241
        %vm1245 = vweird.f32 %v424
        %v1246 = vadd.s32 %v1242, 3
        %v1247 = vand.u32 %v1246, 3
        %vm1248 = vcmp.lt.s32.totalorder %v1247, 2
        %vm1249 = vcmp.eq.s32.totalorder %v1247, 0
        %v1250 = vxor.u32 %v1244, 2147483648
        %v1251 = vsel %vm1249, %v1243, %v1250
        %vm1252 = vcmp.eq.s32.totalorder %v1247, 2
        %v1253 = vxor.u32 %v1243, 2147483648
        %v1254 = vsel %vm1252, %v1253, %v1244
        %v1255 = vsel %vm1248, %v1251, %v1254
        %v1256 = vsel %vm1245, nan, %v1255
        %v1257 = vld [vmem:[%s2] sm:$0xff]
        %v1258 = vld [vmem:[%s2 + $0x8] sm:$0xff]
        %v1259 = vld [vmem:[%s2 + $0x10] sm:$0xff]
        %v1260 = vld [vmem:[%s2 + $0x18] sm:$0xff]
        %vm1261 = vcmask 261120
        %v1263 = vsel %vm1261, %v1257, 0
        %v1266 = vsel %vm1261, %v1258, 0
        %v1269 = vsel %vm1261, %v1259, 0
        %v1272 = vsel %vm1261, %v1260, 0
        %1274 = vmatprep.subr.mxu0 %v632
        %1275 = vmatpush1.msra.mxu0 %v528
        %1276 = vmatprep.subr.mxu0 %v840
        %1277 = vmatpush1.msra.mxu0 %v736
        %1278 = vmatprep.subr.mxu0 %v1048
        %1279 = vmatpush1.msra.mxu0 %v944
        %1280 = vmatprep.subr.mxu0 %v1256
        %1281 = vmatpush1.msra.mxu0 %v1152
        %1282 = vmatprep.subr.mxu0 0.0
        %1283 = vmatpush1.msra.mxu0 0.0
        %1284 = vmatprep.subr.mxu0 0.0
        %1285 = vmatpush1.msra.mxu0 0.0
        %1286 = vmatprep.subr.mxu0 0.0
        %1287 = vmatpush1.msra.mxu0 0.0
        %1288 = vmatprep.subr.mxu0 0.0
        %1289 = vmatpush1.msra.mxu0 0.0
        %1290 = vmatprep.subr.mxu0 0.0
        %1291 = vmatpush1.msra.mxu0 0.0
        %1292 = vmatprep.subr.mxu0 0.0
        %1293 = vmatpush1.msra.mxu0 0.0
        %1294 = vmatprep.subr.mxu0 0.0
        %1295 = vmatpush1.msra.mxu0 0.0
        %1296 = vmatprep.subr.mxu0 0.0
        %1297 = vmatpush1.msra.mxu0 0.0
        %1298 = vmatprep.subr.mxu0 0.0
        %1299 = vmatpush1.msra.mxu0 0.0
        %1300 = vmatprep.subr.mxu0 0.0
        %1301 = vmatpush1.msra.mxu0 0.0
        %1302 = vmatprep.subr.mxu0 0.0
        %1303 = vmatpush1.msra.mxu0 0.0
        %1304 = vmatprep.subr.mxu0 0.0
        %1305 = vmatpush1.msra.mxu0 0.0
        %1306 = vmatprep.subr.mxu0 0.0
        %1307 = vmatpush1.msra.mxu0 0.0
        %1308 = vmatprep.subr.mxu0 0.0
        %1309 = vmatpush1.msra.mxu0 0.0
        %1310 = vmatprep.subr.mxu0 0.0
        %1311 = vmatpush1.msra.mxu0 0.0
        %1312 = vmatprep.subr.mxu0 0.0
        %1313 = vmatpush1.msra.mxu0 0.0
        %1314 = vmatprep.subr.mxu0 0.0
        %1315 = vmatpush1.msra.mxu0 0.0
        %1316 = vmatprep.subr.mxu0 0.0
        %1317 = vmatpush1.msra.mxu0 0.0
        %1318 = vmatprep.subr.mxu0 0.0
        %1319 = vmatpush1.msra.mxu0 0.0
        %1320 = vmatprep.subr.mxu0 0.0
        %1321 = vmatpush1.msra.mxu0 0.0
        %1322 = vmatprep.subr.mxu0 0.0
        %1323 = vmatpush1.msra.mxu0 0.0
        %1324 = vmatprep.subr.mxu0 0.0
        %1325 = vmatpush1.msra.mxu0 0.0
        %1326 = vmatprep.subr.mxu0 0.0
        %1327 = vmatpush1.msra.mxu0 0.0
        %1328 = vmatprep.subr.mxu0 0.0
        %1329 = vmatpush1.msra.mxu0 0.0
        %1330 = vmatprep.subr.mxu0 0.0
        %1331 = vmatpush1.msra.mxu0 0.0
        %1332 = vmatprep.subr.mxu0 0.0
        %1333 = vmatpush1.msra.mxu0 0.0
        %1334 = vmatprep.subr.mxu0 0.0
        %1335 = vmatpush1.msra.mxu0 0.0
        %1336 = vmatprep.subr.mxu0 0.0
        %1337 = vmatpush1.msra.mxu0 0.0
        %1338 = vmatprep.mubr.f32.mxu0 0.0
        %1339 = vmatmul.mubr.f32.gmra.mrb[0].mxu0 %v1263
        %v1340 = vpop.f32.mrb[0].mxu0
        %v1341 = vadd.f32 0.0, %v1340
        %v1342 = vpop.f32.mrb[0].mxu0
        %v1343 = vadd.f32 0.0, %v1342
        %1344 = vmatprep.mubr.f32.mxu0 0.0
        %1345 = vmatmul.mubr.f32.gmra.mrb[0].mxu0 %v1266
        %v1346 = vpop.f32.mrb[0].mxu0
        %v1347 = vadd.f32 0.0, %v1346
        %v1348 = vpop.f32.mrb[0].mxu0
        %v1349 = vadd.f32 0.0, %v1348
        %1350 = vmatprep.mubr.f32.mxu0 0.0
        %1351 = vmatmul.mubr.f32.gmra.mrb[0].mxu0 %v1269
        %v1352 = vpop.f32.mrb[0].mxu0
        %v1353 = vadd.f32 0.0, %v1352
        %v1354 = vpop.f32.mrb[0].mxu0
        %v1355 = vadd.f32 0.0, %v1354
        %1356 = vmatprep.mubr.f32.mxu0 0.0
        %1357 = vmatmul.mubr.f32.gmra.mrb[0].mxu0 %v1272
        %v1358 = vpop.f32.mrb[0].mxu0
        %v1359 = vadd.f32 0.0, %v1358
        %v1360 = vpop.f32.mrb[0].mxu0
        %v1361 = vadd.f32 0.0, %v1360
        %1362 = vdwg.mxu0
        %v1363 = vadd.f32 %v351, %v1341
        %v1364 = vadd.f32 %v353, %v1343
        %v1365 = vadd.f32 %v357, %v1347
        %v1366 = vadd.f32 %v359, %v1349
        %v1367 = vadd.f32 %v363, %v1353
        %v1368 = vadd.f32 %v365, %v1355
        %v1369 = vadd.f32 %v369, %v1359
        %v1370 = vadd.f32 %v371, %v1361
        %v1371 = vld [vmem:[%s3] sm:$0xff]
        %v1372 = vld [vmem:[%s3 + $0x8] sm:$0xff]
        %v1373 = vld [vmem:[%s3 + $0x10] sm:$0xff]
        %v1374 = vld [vmem:[%s3 + $0x18] sm:$0xff]
        %1376 = vset.pattern.permute.xlu0 1
        %1377 = vperm.xlu0 %1376, %v1371
        %v1378 = vpop.permute.xlu0 %1377
        %1381 = vset.pattern.permute.xlu0 1
        %1382 = vperm.xlu0 %1381, %v1372
        %v1383 = vpop.permute.xlu0 %1382
        %1386 = vset.pattern.permute.xlu0 1
        %1387 = vperm.xlu0 %1386, %v1373
        %v1388 = vpop.permute.xlu0 %1387
        %1391 = vset.pattern.permute.xlu0 1
        %1392 = vperm.xlu0 %1391, %v1374
        %v1393 = vpop.permute.xlu0 %1392
        %v1395 = vadd.f32 %v1363, %v1378
        %v1396 = vadd.f32 %v1364, %v1378
        %v1397 = vadd.f32 %v1365, %v1383
        %v1398 = vadd.f32 %v1366, %v1383
        %v1399 = vadd.f32 %v1367, %v1388
        %v1400 = vadd.f32 %v1368, %v1388
        %v1401 = vadd.f32 %v1369, %v1393
        %v1402 = vadd.f32 %v1370, %v1393
        %v1403 = vmax.f32 %v1395, 0.0
        %v1404 = vmax.f32 %v1396, 0.0
        %v1405 = vmax.f32 %v1397, 0.0
        %v1406 = vmax.f32 %v1398, 0.0
        %v1407 = vmax.f32 %v1399, 0.0
        %v1408 = vmax.f32 %v1400, 0.0
        %v1409 = vmax.f32 %v1401, 0.0
        %v1410 = vmax.f32 %v1402, 0.0
        %v1411 = vld [vmem:[%s2 + $0x20] sm:$0xff]
        %v1412 = vld [vmem:[%s2 + $0x28] sm:$0xff]
        %v1413 = vld [vmem:[%s2 + $0x30] sm:$0xff]
        %v1414 = vld [vmem:[%s2 + $0x38] sm:$0xff]
        %1415 = vset.pattern.permute.xlu0 2
        %1416 = vperm.xlu0 %1415, %v1371
        %v1417 = vpop.permute.xlu0 %1416
        %1419 = vset.pattern.permute.xlu0 2
        %1420 = vperm.xlu0 %1419, %v1372
        %v1421 = vpop.permute.xlu0 %1420
        %1423 = vset.pattern.permute.xlu0 2
        %1424 = vperm.xlu0 %1423, %v1373
        %v1425 = vpop.permute.xlu0 %1424
        %1427 = vset.pattern.permute.xlu0 2
        %1428 = vperm.xlu0 %1427, %v1374
        %v1429 = vpop.permute.xlu0 %1428
        %v1432 = vsel %vm1261, %v1411, 0
        %v1435 = vsel %vm1261, %v1412, 0
        %v1438 = vsel %vm1261, %v1413, 0
        %v1441 = vsel %vm1261, %v1414, 0
        %1443 = vmatprep.subr.mxu0 %v1404
        %1444 = vmatpush1.msra.mxu0 %v1403
        %1445 = vmatprep.subr.mxu0 %v1406
        %1446 = vmatpush1.msra.mxu0 %v1405
        %1447 = vmatprep.subr.mxu0 %v1408
        %1448 = vmatpush1.msra.mxu0 %v1407
        %1449 = vmatprep.subr.mxu0 %v1410
        %1450 = vmatpush1.msra.mxu0 %v1409
        %1451 = vmatprep.subr.mxu0 0.0
        %1452 = vmatpush1.msra.mxu0 0.0
        %1453 = vmatprep.subr.mxu0 0.0
        %1454 = vmatpush1.msra.mxu0 0.0
        %1455 = vmatprep.subr.mxu0 0.0
        %1456 = vmatpush1.msra.mxu0 0.0
        %1457 = vmatprep.subr.mxu0 0.0
        %1458 = vmatpush1.msra.mxu0 0.0
        %1459 = vmatprep.subr.mxu0 0.0
        %1460 = vmatpush1.msra.mxu0 0.0
        %1461 = vmatprep.subr.mxu0 0.0
        %1462 = vmatpush1.msra.mxu0 0.0
        %1463 = vmatprep.subr.mxu0 0.0
        %1464 = vmatpush1.msra.mxu0 0.0
        %1465 = vmatprep.subr.mxu0 0.0
        %1466 = vmatpush1.msra.mxu0 0.0
        %1467 = vmatprep.subr.mxu0 0.0
        %1468 = vmatpush1.msra.mxu0 0.0
        %1469 = vmatprep.subr.mxu0 0.0
        %1470 = vmatpush1.msra.mxu0 0.0
        %1471 = vmatprep.subr.mxu0 0.0
        %1472 = vmatpush1.msra.mxu0 0.0
        %1473 = vmatprep.subr.mxu0 0.0
        %1474 = vmatpush1.msra.mxu0 0.0
        %1475 = vmatprep.subr.mxu0 0.0
        %1476 = vmatpush1.msra.mxu0 0.0
        %1477 = vmatprep.subr.mxu0 0.0
        %1478 = vmatpush1.msra.mxu0 0.0
        %1479 = vmatprep.subr.mxu0 0.0
        %1480 = vmatpush1.msra.mxu0 0.0
        %1481 = vmatprep.subr.mxu0 0.0
        %1482 = vmatpush1.msra.mxu0 0.0
        %1483 = vmatprep.subr.mxu0 0.0
        %1484 = vmatpush1.msra.mxu0 0.0
        %1485 = vmatprep.subr.mxu0 0.0
        %1486 = vmatpush1.msra.mxu0 0.0
        %1487 = vmatprep.subr.mxu0 0.0
        %1488 = vmatpush1.msra.mxu0 0.0
        %1489 = vmatprep.subr.mxu0 0.0
        %1490 = vmatpush1.msra.mxu0 0.0
        %1491 = vmatprep.subr.mxu0 0.0
        %1492 = vmatpush1.msra.mxu0 0.0
        %1493 = vmatprep.subr.mxu0 0.0
        %1494 = vmatpush1.msra.mxu0 0.0
        %1495 = vmatprep.subr.mxu0 0.0
        %1496 = vmatpush1.msra.mxu0 0.0
        %1497 = vmatprep.subr.mxu0 0.0
        %1498 = vmatpush1.msra.mxu0 0.0
        %1499 = vmatprep.subr.mxu0 0.0
        %1500 = vmatpush1.msra.mxu0 0.0
        %1501 = vmatprep.subr.mxu0 0.0
        %1502 = vmatpush1.msra.mxu0 0.0
        %1503 = vmatprep.subr.mxu0 0.0
        %1504 = vmatpush1.msra.mxu0 0.0
        %1505 = vmatprep.subr.mxu0 0.0
        %1506 = vmatpush1.msra.mxu0 0.0
        %1507 = vmatprep.mubr.f32.mxu0 0.0
        %1508 = vmatmul.mubr.f32.gmra.mrb[0].mxu0 %v1432
        %v1509 = vpop.f32.mrb[0].mxu0
        %v1510 = vadd.f32 %v1417, %v1509
        %v1511 = vpop.f32.mrb[0].mxu0
        %v1512 = vadd.f32 %v1417, %v1511
        %1513 = vmatprep.mubr.f32.mxu0 0.0
        %1514 = vmatmul.mubr.f32.gmra.mrb[0].mxu0 %v1435
        %v1515 = vpop.f32.mrb[0].mxu0
        %v1516 = vadd.f32 %v1421, %v1515
        %v1517 = vpop.f32.mrb[0].mxu0
        %v1518 = vadd.f32 %v1421, %v1517
        %1519 = vmatprep.mubr.f32.mxu0 0.0
        %1520 = vmatmul.mubr.f32.gmra.mrb[0].mxu0 %v1438
        %v1521 = vpop.f32.mrb[0].mxu0
        %v1522 = vadd.f32 %v1425, %v1521
        %v1523 = vpop.f32.mrb[0].mxu0
        %v1524 = vadd.f32 %v1425, %v1523
        %1525 = vmatprep.mubr.f32.mxu0 0.0
        %1526 = vmatmul.mubr.f32.gmra.mrb[0].mxu0 %v1441
        %v1527 = vpop.f32.mrb[0].mxu0
        %v1528 = vadd.f32 %v1429, %v1527
        %v1529 = vpop.f32.mrb[0].mxu0
        %v1530 = vadd.f32 %v1429, %v1529
        %1531 = vdwg.mxu0
        %v1532 = vmax.f32 %v1510, 0.0
        %v1533 = vmax.f32 %v1512, 0.0
        %v1534 = vmax.f32 %v1516, 0.0
        %v1535 = vmax.f32 %v1518, 0.0
        %v1536 = vmax.f32 %v1522, 0.0
        %v1537 = vmax.f32 %v1524, 0.0
        %v1538 = vmax.f32 %v1528, 0.0
        %v1539 = vmax.f32 %v1530, 0.0
        %v1540 = vld [vmem:[%s2 + $0x40] sm:$0xff]
        %v1541 = vld [vmem:[%s2 + $0x48] sm:$0xff]
        %v1542 = vld [vmem:[%s2 + $0x50] sm:$0xff]
        %v1543 = vld [vmem:[%s2 + $0x58] sm:$0xff]
        %1544 = vset.pattern.permute.xlu0 3
        %1545 = vperm.xlu0 %1544, %v1371
        %v1546 = vpop.permute.xlu0 %1545
        %1548 = vset.pattern.permute.xlu0 3
        %1549 = vperm.xlu0 %1548, %v1372
        %v1550 = vpop.permute.xlu0 %1549
        %1552 = vset.pattern.permute.xlu0 3
        %1553 = vperm.xlu0 %1552, %v1373
        %v1554 = vpop.permute.xlu0 %1553
        %1556 = vset.pattern.permute.xlu0 3
        %1557 = vperm.xlu0 %1556, %v1374
        %v1558 = vpop.permute.xlu0 %1557
        %v1561 = vsel %vm1261, %v1540, 0
        %v1564 = vsel %vm1261, %v1541, 0
        %v1567 = vsel %vm1261, %v1542, 0
        %v1570 = vsel %vm1261, %v1543, 0
        %1572 = vmatprep.subr.mxu0 %v1533
        %1573 = vmatpush1.msra.mxu0 %v1532
        %1574 = vmatprep.subr.mxu0 %v1535
        %1575 = vmatpush1.msra.mxu0 %v1534
        %1576 = vmatprep.subr.mxu0 %v1537
        %1577 = vmatpush1.msra.mxu0 %v1536
        %1578 = vmatprep.subr.mxu0 %v1539
        %1579 = vmatpush1.msra.mxu0 %v1538
        %1580 = vmatprep.subr.mxu0 0.0
        %1581 = vmatpush1.msra.mxu0 0.0
        %1582 = vmatprep.subr.mxu0 0.0
        %1583 = vmatpush1.msra.mxu0 0.0
        %1584 = vmatprep.subr.mxu0 0.0
        %1585 = vmatpush1.msra.mxu0 0.0
        %1586 = vmatprep.subr.mxu0 0.0
        %1587 = vmatpush1.msra.mxu0 0.0
        %1588 = vmatprep.subr.mxu0 0.0
        %1589 = vmatpush1.msra.mxu0 0.0
        %1590 = vmatprep.subr.mxu0 0.0
        %1591 = vmatpush1.msra.mxu0 0.0
        %1592 = vmatprep.subr.mxu0 0.0
        %1593 = vmatpush1.msra.mxu0 0.0
        %1594 = vmatprep.subr.mxu0 0.0
        %1595 = vmatpush1.msra.mxu0 0.0
        %1596 = vmatprep.subr.mxu0 0.0
        %1597 = vmatpush1.msra.mxu0 0.0
        %1598 = vmatprep.subr.mxu0 0.0
        %1599 = vmatpush1.msra.mxu0 0.0
        %1600 = vmatprep.subr.mxu0 0.0
        %1601 = vmatpush1.msra.mxu0 0.0
        %1602 = vmatprep.subr.mxu0 0.0
        %1603 = vmatpush1.msra.mxu0 0.0
        %1604 = vmatprep.subr.mxu0 0.0
        %1605 = vmatpush1.msra.mxu0 0.0
        %1606 = vmatprep.subr.mxu0 0.0
        %1607 = vmatpush1.msra.mxu0 0.0
        %1608 = vmatprep.subr.mxu0 0.0
        %1609 = vmatpush1.msra.mxu0 0.0
        %1610 = vmatprep.subr.mxu0 0.0
        %1611 = vmatpush1.msra.mxu0 0.0
        %1612 = vmatprep.subr.mxu0 0.0
        %1613 = vmatpush1.msra.mxu0 0.0
        %1614 = vmatprep.subr.mxu0 0.0
        %1615 = vmatpush1.msra.mxu0 0.0
        %1616 = vmatprep.subr.mxu0 0.0
        %1617 = vmatpush1.msra.mxu0 0.0
        %1618 = vmatprep.subr.mxu0 0.0
        %1619 = vmatpush1.msra.mxu0 0.0
        %1620 = vmatprep.subr.mxu0 0.0
        %1621 = vmatpush1.msra.mxu0 0.0
        %1622 = vmatprep.subr.mxu0 0.0
        %1623 = vmatpush1.msra.mxu0 0.0
        %1624 = vmatprep.subr.mxu0 0.0
        %1625 = vmatpush1.msra.mxu0 0.0
        %1626 = vmatprep.subr.mxu0 0.0
        %1627 = vmatpush1.msra.mxu0 0.0
        %1628 = vmatprep.subr.mxu0 0.0
        %1629 = vmatpush1.msra.mxu0 0.0
        %1630 = vmatprep.subr.mxu0 0.0
        %1631 = vmatpush1.msra.mxu0 0.0
        %1632 = vmatprep.subr.mxu0 0.0
        %1633 = vmatpush1.msra.mxu0 0.0
        %1634 = vmatprep.subr.mxu0 0.0
        %1635 = vmatpush1.msra.mxu0 0.0
        %1636 = vmatprep.mubr.f32.mxu0 0.0
        %1637 = vmatmul.mubr.f32.gmra.mrb[0].mxu0 %v1561
        %v1638 = vpop.f32.mrb[0].mxu0
        %v1639 = vadd.f32 %v1546, %v1638
        %v1640 = vpop.f32.mrb[0].mxu0
        %v1641 = vadd.f32 %v1546, %v1640
        %1642 = vmatprep.mubr.f32.mxu0 0.0
        %1643 = vmatmul.mubr.f32.gmra.mrb[0].mxu0 %v1564
        %v1644 = vpop.f32.mrb[0].mxu0
        %v1645 = vadd.f32 %v1550, %v1644
        %v1646 = vpop.f32.mrb[0].mxu0
        %v1647 = vadd.f32 %v1550, %v1646
        %1648 = vmatprep.mubr.f32.mxu0 0.0
        %1649 = vmatmul.mubr.f32.gmra.mrb[0].mxu0 %v1567
        %v1650 = vpop.f32.mrb[0].mxu0
        %v1651 = vadd.f32 %v1554, %v1650
        %v1652 = vpop.f32.mrb[0].mxu0
        %v1653 = vadd.f32 %v1554, %v1652
        %1654 = vmatprep.mubr.f32.mxu0 0.0
        %1655 = vmatmul.mubr.f32.gmra.mrb[0].mxu0 %v1570
        %v1656 = vpop.f32.mrb[0].mxu0
        %v1657 = vadd.f32 %v1558, %v1656
        %v1658 = vpop.f32.mrb[0].mxu0
        %v1659 = vadd.f32 %v1558, %v1658
        %1660 = vdwg.mxu0
        %v1661 = vmax.f32 %v1639, 0.0
        %v1662 = vmax.f32 %v1641, 0.0
        %v1663 = vmax.f32 %v1645, 0.0
        %v1664 = vmax.f32 %v1647, 0.0
        %v1665 = vmax.f32 %v1651, 0.0
        %v1666 = vmax.f32 %v1653, 0.0
        %v1667 = vmax.f32 %v1657, 0.0
        %v1668 = vmax.f32 %v1659, 0.0
        %v1669 = vld [vmem:[%s2 + $0x60] sm:$0xff]
        %v1670 = vld [vmem:[%s2 + $0x68] sm:$0xff]
        %v1671 = vld [vmem:[%s2 + $0x70] sm:$0xff]
        %v1672 = vld [vmem:[%s2 + $0x78] sm:$0xff]
        %v1674 = vsel %vm1261, %v1669, 0
        %v1677 = vsel %vm1261, %v1670, 0
        %v1680 = vsel %vm1261, %v1671, 0
        %v1683 = vsel %vm1261, %v1672, 0
        %1685 = vmatprep.subr.mxu0 %v632
        %1686 = vmatpush1.msra.mxu0 %v528
        %1687 = vmatprep.subr.mxu0 %v840
        %1688 = vmatpush1.msra.mxu0 %v736
        %1689 = vmatprep.subr.mxu0 %v1048
        %1690 = vmatpush1.msra.mxu0 %v944
        %1691 = vmatprep.subr.mxu0 %v1256
        %1692 = vmatpush1.msra.mxu0 %v1152
        %1693 = vmatprep.subr.mxu0 0.0
        %1694 = vmatpush1.msra.mxu0 0.0
        %1695 = vmatprep.subr.mxu0 0.0
        %1696 = vmatpush1.msra.mxu0 0.0
        %1697 = vmatprep.subr.mxu0 0.0
        %1698 = vmatpush1.msra.mxu0 0.0
        %1699 = vmatprep.subr.mxu0 0.0
        %1700 = vmatpush1.msra.mxu0 0.0
        %1701 = vmatprep.subr.mxu0 0.0
        %1702 = vmatpush1.msra.mxu0 0.0
        %1703 = vmatprep.subr.mxu0 0.0
        %1704 = vmatpush1.msra.mxu0 0.0
        %1705 = vmatprep.subr.mxu0 0.0
        %1706 = vmatpush1.msra.mxu0 0.0
        %1707 = vmatprep.subr.mxu0 0.0
        %1708 = vmatpush1.msra.mxu0 0.0
        %1709 = vmatprep.subr.mxu0 0.0
        %1710 = vmatpush1.msra.mxu0 0.0
        %1711 = vmatprep.subr.mxu0 0.0
        %1712 = vmatpush1.msra.mxu0 0.0
        %1713 = vmatprep.subr.mxu0 0.0
        %1714 = vmatpush1.msra.mxu0 0.0
        %1715 = vmatprep.subr.mxu0 0.0
        %1716 = vmatpush1.msra.mxu0 0.0
        %1717 = vmatprep.subr.mxu0 0.0
        %1718 = vmatpush1.msra.mxu0 0.0
        %1719 = vmatprep.subr.mxu0 0.0
        %1720 = vmatpush1.msra.mxu0 0.0
        %1721 = vmatprep.subr.mxu0 0.0
        %1722 = vmatpush1.msra.mxu0 0.0
        %1723 = vmatprep.subr.mxu0 0.0
        %1724 = vmatpush1.msra.mxu0 0.0
        %1725 = vmatprep.subr.mxu0 0.0
        %1726 = vmatpush1.msra.mxu0 0.0
        %1727 = vmatprep.subr.mxu0 0.0
        %1728 = vmatpush1.msra.mxu0 0.0
        %1729 = vmatprep.subr.mxu0 0.0
        %1730 = vmatpush1.msra.mxu0 0.0
        %1731 = vmatprep.subr.mxu0 0.0
        %1732 = vmatpush1.msra.mxu0 0.0
        %1733 = vmatprep.subr.mxu0 0.0
        %1734 = vmatpush1.msra.mxu0 0.0
        %1735 = vmatprep.subr.mxu0 0.0
        %1736 = vmatpush1.msra.mxu0 0.0
        %1737 = vmatprep.subr.mxu0 0.0
        %1738 = vmatpush1.msra.mxu0 0.0
        %1739 = vmatprep.subr.mxu0 0.0
        %1740 = vmatpush1.msra.mxu0 0.0
        %1741 = vmatprep.subr.mxu0 0.0
        %1742 = vmatpush1.msra.mxu0 0.0
        %1743 = vmatprep.subr.mxu0 0.0
        %1744 = vmatpush1.msra.mxu0 0.0
        %1745 = vmatprep.subr.mxu0 0.0
        %1746 = vmatpush1.msra.mxu0 0.0
        %1747 = vmatprep.subr.mxu0 0.0
        %1748 = vmatpush1.msra.mxu0 0.0
        %1749 = vmatprep.mubr.f32.mxu0 0.0
        %1750 = vmatmul.mubr.f32.gmra.mrb[0].mxu0 %v1674
        %v1751 = vpop.f32.mrb[0].mxu0
        %v1752 = vadd.f32 0.0, %v1751
        %v1753 = vpop.f32.mrb[0].mxu0
        %v1754 = vadd.f32 0.0, %v1753
        %1755 = vmatprep.mubr.f32.mxu0 0.0
        %1756 = vmatmul.mubr.f32.gmra.mrb[0].mxu0 %v1677
        %v1757 = vpop.f32.mrb[0].mxu0
        %v1758 = vadd.f32 0.0, %v1757
        %v1759 = vpop.f32.mrb[0].mxu0
        %v1760 = vadd.f32 0.0, %v1759
        %1761 = vmatprep.mubr.f32.mxu0 0.0
        %1762 = vmatmul.mubr.f32.gmra.mrb[0].mxu0 %v1680
        %v1763 = vpop.f32.mrb[0].mxu0
        %v1764 = vadd.f32 0.0, %v1763
        %v1765 = vpop.f32.mrb[0].mxu0
        %v1766 = vadd.f32 0.0, %v1765
        %1767 = vmatprep.mubr.f32.mxu0 0.0
        %1768 = vmatmul.mubr.f32.gmra.mrb[0].mxu0 %v1683
        %v1769 = vpop.f32.mrb[0].mxu0
        %v1770 = vadd.f32 0.0, %v1769
        %v1771 = vpop.f32.mrb[0].mxu0
        %v1772 = vadd.f32 0.0, %v1771
        %1773 = vdwg.mxu0
        %v1774 = vadd.f32 %v375, %v1752
        %v1775 = vadd.f32 %v377, %v1754
        %v1776 = vadd.f32 %v381, %v1758
        %v1777 = vadd.f32 %v383, %v1760
        %v1778 = vadd.f32 %v387, %v1764
        %v1779 = vadd.f32 %v389, %v1766
        %v1780 = vadd.f32 %v393, %v1770
        %v1781 = vadd.f32 %v395, %v1772
        %v1782 = vld [vmem:[%s2 + $0x80] sm:$0xff]
        %v1783 = vld [vmem:[%s2 + $0x88] sm:$0xff]
        %v1784 = vld [vmem:[%s2 + $0x90] sm:$0xff]
        %v1785 = vld [vmem:[%s2 + $0x98] sm:$0xff]
        %v1787 = vsel %vm1261, %v1782, 0
        %v1790 = vsel %vm1261, %v1783, 0
        %v1793 = vsel %vm1261, %v1784, 0
        %v1796 = vsel %vm1261, %v1785, 0
        %1798 = vmatprep.subr.mxu0 %v1662
        %1799 = vmatpush1.msra.mxu0 %v1661
        %1800 = vmatprep.subr.mxu0 %v1664
        %1801 = vmatpush1.msra.mxu0 %v1663
        %1802 = vmatprep.subr.mxu0 %v1666
        %1803 = vmatpush1.msra.mxu0 %v1665
        %1804 = vmatprep.subr.mxu0 %v1668
        %1805 = vmatpush1.msra.mxu0 %v1667
        %1806 = vmatprep.subr.mxu0 0.0
        %1807 = vmatpush1.msra.mxu0 0.0
        %1808 = vmatprep.subr.mxu0 0.0
        %1809 = vmatpush1.msra.mxu0 0.0
        %1810 = vmatprep.subr.mxu0 0.0
        %1811 = vmatpush1.msra.mxu0 0.0
        %1812 = vmatprep.subr.mxu0 0.0
        %1813 = vmatpush1.msra.mxu0 0.0
        %1814 = vmatprep.subr.mxu0 0.0
        %1815 = vmatpush1.msra.mxu0 0.0
        %1816 = vmatprep.subr.mxu0 0.0
        %1817 = vmatpush1.msra.mxu0 0.0
        %1818 = vmatprep.subr.mxu0 0.0
        %1819 = vmatpush1.msra.mxu0 0.0
        %1820 = vmatprep.subr.mxu0 0.0
        %1821 = vmatpush1.msra.mxu0 0.0
        %1822 = vmatprep.subr.mxu0 0.0
        %1823 = vmatpush1.msra.mxu0 0.0
        %1824 = vmatprep.subr.mxu0 0.0
        %1825 = vmatpush1.msra.mxu0 0.0
        %1826 = vmatprep.subr.mxu0 0.0
        %1827 = vmatpush1.msra.mxu0 0.0
        %1828 = vmatprep.subr.mxu0 0.0
        %1829 = vmatpush1.msra.mxu0 0.0
        %1830 = vmatprep.subr.mxu0 0.0
        %1831 = vmatpush1.msra.mxu0 0.0
        %1832 = vmatprep.subr.mxu0 0.0
        %1833 = vmatpush1.msra.mxu0 0.0
        %1834 = vmatprep.subr.mxu0 0.0
        %1835 = vmatpush1.msra.mxu0 0.0
        %1836 = vmatprep.subr.mxu0 0.0
        %1837 = vmatpush1.msra.mxu0 0.0
        %1838 = vmatprep.subr.mxu0 0.0
        %1839 = vmatpush1.msra.mxu0 0.0
        %1840 = vmatprep.subr.mxu0 0.0
        %1841 = vmatpush1.msra.mxu0 0.0
        %1842 = vmatprep.subr.mxu0 0.0
        %1843 = vmatpush1.msra.mxu0 0.0
        %1844 = vmatprep.subr.mxu0 0.0
        %1845 = vmatpush1.msra.mxu0 0.0
        %1846 = vmatprep.subr.mxu0 0.0
        %1847 = vmatpush1.msra.mxu0 0.0
        %1848 = vmatprep.subr.mxu0 0.0
        %1849 = vmatpush1.msra.mxu0 0.0
        %1850 = vmatprep.subr.mxu0 0.0
        %1851 = vmatpush1.msra.mxu0 0.0
        %1852 = vmatprep.subr.mxu0 0.0
        %1853 = vmatpush1.msra.mxu0 0.0
        %1854 = vmatprep.subr.mxu0 0.0
        %1855 = vmatpush1.msra.mxu0 0.0
        %1856 = vmatprep.subr.mxu0 0.0
        %1857 = vmatpush1.msra.mxu0 0.0
        %1858 = vmatprep.subr.mxu0 0.0
        %1859 = vmatpush1.msra.mxu0 0.0
        %1860 = vmatprep.subr.mxu0 0.0
        %1861 = vmatpush1.msra.mxu0 0.0
        %1862 = vmatprep.mubr.f32.mxu0 0.0
        %1863 = vmatmul.mubr.f32.gmra.mrb[0].mxu0 %v1787
        %v1864 = vpop.f32.mrb[0].mxu0
        %v1865 = vadd.f32 0.0, %v1864
        %v1866 = vpop.f32.mrb[0].mxu0
        %v1867 = vadd.f32 0.0, %v1866
        %1868 = vmatprep.mubr.f32.mxu0 0.0
        %1869 = vmatmul.mubr.f32.gmra.mrb[0].mxu0 %v1790
        %v1870 = vpop.f32.mrb[0].mxu0
        %v1871 = vadd.f32 0.0, %v1870
        %v1872 = vpop.f32.mrb[0].mxu0
        %v1873 = vadd.f32 0.0, %v1872
        %1874 = vmatprep.mubr.f32.mxu0 0.0
        %1875 = vmatmul.mubr.f32.gmra.mrb[0].mxu0 %v1793
        %v1876 = vpop.f32.mrb[0].mxu0
        %v1877 = vadd.f32 0.0, %v1876
        %v1878 = vpop.f32.mrb[0].mxu0
        %v1879 = vadd.f32 0.0, %v1878
        %1880 = vmatprep.mubr.f32.mxu0 0.0
        %1881 = vmatmul.mubr.f32.gmra.mrb[0].mxu0 %v1796
        %v1882 = vpop.f32.mrb[0].mxu0
        %v1883 = vadd.f32 0.0, %v1882
        %v1884 = vpop.f32.mrb[0].mxu0
        %v1885 = vadd.f32 0.0, %v1884
        %1886 = vdwg.mxu0
        %v1887 = vadd.f32 %v1774, %v1865
        %v1888 = vadd.f32 %v1775, %v1867
        %v1889 = vadd.f32 %v1776, %v1871
        %v1890 = vadd.f32 %v1777, %v1873
        %v1891 = vadd.f32 %v1778, %v1877
        %v1892 = vadd.f32 %v1779, %v1879
        %v1893 = vadd.f32 %v1780, %v1883
        %v1894 = vadd.f32 %v1781, %v1885
        %1895 = vset.pattern.permute.xlu0 4
        %1896 = vperm.xlu0 %1895, %v1371
        %v1897 = vpop.permute.xlu0 %1896
        %1899 = vset.pattern.permute.xlu0 4
        %1900 = vperm.xlu0 %1899, %v1372
        %v1901 = vpop.permute.xlu0 %1900
        %1903 = vset.pattern.permute.xlu0 4
        %1904 = vperm.xlu0 %1903, %v1373
        %v1905 = vpop.permute.xlu0 %1904
        %1907 = vset.pattern.permute.xlu0 4
        %1908 = vperm.xlu0 %1907, %v1374
        %v1909 = vpop.permute.xlu0 %1908
        %v1911 = vadd.f32 %v1887, %v1897
        %v1912 = vadd.f32 %v1888, %v1897
        %v1913 = vadd.f32 %v1889, %v1901
        %v1914 = vadd.f32 %v1890, %v1901
        %v1915 = vadd.f32 %v1891, %v1905
        %v1916 = vadd.f32 %v1892, %v1905
        %v1917 = vadd.f32 %v1893, %v1909
        %v1918 = vadd.f32 %v1894, %v1909
        %v1919 = vmax.f32 %v1911, 0.0
        %v1920 = vmax.f32 %v1912, 0.0
        %v1921 = vmax.f32 %v1913, 0.0
        %v1922 = vmax.f32 %v1914, 0.0
        %v1923 = vmax.f32 %v1915, 0.0
        %v1924 = vmax.f32 %v1916, 0.0
        %v1925 = vmax.f32 %v1917, 0.0
        %v1926 = vmax.f32 %v1918, 0.0
        %v1927 = vld [vmem:[%s2 + $0xa0] sm:$0xff]
        %v1928 = vld [vmem:[%s2 + $0xa8] sm:$0xff]
        %v1929 = vld [vmem:[%s2 + $0xb0] sm:$0xff]
        %v1930 = vld [vmem:[%s2 + $0xb8] sm:$0xff]
        %1931 = vset.pattern.permute.xlu0 5
        %1932 = vperm.xlu0 %1931, %v1371
        %v1933 = vpop.permute.xlu0 %1932
        %1935 = vset.pattern.permute.xlu0 5
        %1936 = vperm.xlu0 %1935, %v1372
        %v1937 = vpop.permute.xlu0 %1936
        %1939 = vset.pattern.permute.xlu0 5
        %1940 = vperm.xlu0 %1939, %v1373
        %v1941 = vpop.permute.xlu0 %1940
        %1943 = vset.pattern.permute.xlu0 5
        %1944 = vperm.xlu0 %1943, %v1374
        %v1945 = vpop.permute.xlu0 %1944
        %v1948 = vsel %vm1261, %v1927, 0
        %v1951 = vsel %vm1261, %v1928, 0
        %v1954 = vsel %vm1261, %v1929, 0
        %v1957 = vsel %vm1261, %v1930, 0
        %1959 = vmatprep.subr.mxu0 %v1920
        %1960 = vmatpush1.msra.mxu0 %v1919
        %1961 = vmatprep.subr.mxu0 %v1922
        %1962 = vmatpush1.msra.mxu0 %v1921
        %1963 = vmatprep.subr.mxu0 %v1924
        %1964 = vmatpush1.msra.mxu0 %v1923
        %1965 = vmatprep.subr.mxu0 %v1926
        %1966 = vmatpush1.msra.mxu0 %v1925
        %1967 = vmatprep.subr.mxu0 0.0
        %1968 = vmatpush1.msra.mxu0 0.0
        %1969 = vmatprep.subr.mxu0 0.0
        %1970 = vmatpush1.msra.mxu0 0.0
        %1971 = vmatprep.subr.mxu0 0.0
        %1972 = vmatpush1.msra.mxu0 0.0
        %1973 = vmatprep.subr.mxu0 0.0
        %1974 = vmatpush1.msra.mxu0 0.0
        %1975 = vmatprep.subr.mxu0 0.0
        %1976 = vmatpush1.msra.mxu0 0.0
        %1977 = vmatprep.subr.mxu0 0.0
        %1978 = vmatpush1.msra.mxu0 0.0
        %1979 = vmatprep.subr.mxu0 0.0
        %1980 = vmatpush1.msra.mxu0 0.0
        %1981 = vmatprep.subr.mxu0 0.0
        %1982 = vmatpush1.msra.mxu0 0.0
        %1983 = vmatprep.subr.mxu0 0.0
        %1984 = vmatpush1.msra.mxu0 0.0
        %1985 = vmatprep.subr.mxu0 0.0
        %1986 = vmatpush1.msra.mxu0 0.0
        %1987 = vmatprep.subr.mxu0 0.0
        %1988 = vmatpush1.msra.mxu0 0.0
        %1989 = vmatprep.subr.mxu0 0.0
        %1990 = vmatpush1.msra.mxu0 0.0
        %1991 = vmatprep.subr.mxu0 0.0
        %1992 = vmatpush1.msra.mxu0 0.0
        %1993 = vmatprep.subr.mxu0 0.0
        %1994 = vmatpush1.msra.mxu0 0.0
        %1995 = vmatprep.subr.mxu0 0.0
        %1996 = vmatpush1.msra.mxu0 0.0
        %1997 = vmatprep.subr.mxu0 0.0
        %1998 = vmatpush1.msra.mxu0 0.0
        %1999 = vmatprep.subr.mxu0 0.0
        %2000 = vmatpush1.msra.mxu0 0.0
        %2001 = vmatprep.subr.mxu0 0.0
        %2002 = vmatpush1.msra.mxu0 0.0
        %2003 = vmatprep.subr.mxu0 0.0
        %2004 = vmatpush1.msra.mxu0 0.0
        %2005 = vmatprep.subr.mxu0 0.0
        %2006 = vmatpush1.msra.mxu0 0.0
        %2007 = vmatprep.subr.mxu0 0.0
        %2008 = vmatpush1.msra.mxu0 0.0
        %2009 = vmatprep.subr.mxu0 0.0
        %2010 = vmatpush1.msra.mxu0 0.0
        %2011 = vmatprep.subr.mxu0 0.0
        %2012 = vmatpush1.msra.mxu0 0.0
        %2013 = vmatprep.subr.mxu0 0.0
        %2014 = vmatpush1.msra.mxu0 0.0
        %2015 = vmatprep.subr.mxu0 0.0
        %2016 = vmatpush1.msra.mxu0 0.0
        %2017 = vmatprep.subr.mxu0 0.0
        %2018 = vmatpush1.msra.mxu0 0.0
        %2019 = vmatprep.subr.mxu0 0.0
        %2020 = vmatpush1.msra.mxu0 0.0
        %2021 = vmatprep.subr.mxu0 0.0
        %2022 = vmatpush1.msra.mxu0 0.0
        %2023 = vmatprep.mubr.f32.mxu0 0.0
        %2024 = vmatmul.mubr.f32.gmra.mrb[0].mxu0 %v1948
        %v2025 = vpop.f32.mrb[0].mxu0
        %v2026 = vadd.f32 %v1933, %v2025
        %v2027 = vpop.f32.mrb[0].mxu0
        %v2028 = vadd.f32 %v1933, %v2027
        %2029 = vmatprep.mubr.f32.mxu0 0.0
        %2030 = vmatmul.mubr.f32.gmra.mrb[0].mxu0 %v1951
        %v2031 = vpop.f32.mrb[0].mxu0
        %v2032 = vadd.f32 %v1937, %v2031
        %v2033 = vpop.f32.mrb[0].mxu0
        %v2034 = vadd.f32 %v1937, %v2033
        %2035 = vmatprep.mubr.f32.mxu0 0.0
        %2036 = vmatmul.mubr.f32.gmra.mrb[0].mxu0 %v1954
        %v2037 = vpop.f32.mrb[0].mxu0
        %v2038 = vadd.f32 %v1941, %v2037
        %v2039 = vpop.f32.mrb[0].mxu0
        %v2040 = vadd.f32 %v1941, %v2039
        %2041 = vmatprep.mubr.f32.mxu0 0.0
        %2042 = vmatmul.mubr.f32.gmra.mrb[0].mxu0 %v1957
        %v2043 = vpop.f32.mrb[0].mxu0
        %v2044 = vadd.f32 %v1945, %v2043
        %v2045 = vpop.f32.mrb[0].mxu0
        %v2046 = vadd.f32 %v1945, %v2045
        %2047 = vdwg.mxu0
        %v2048 = vmax.f32 %v2026, 0.0
        %v2049 = vmax.f32 %v2028, 0.0
        %v2050 = vmax.f32 %v2032, 0.0
        %v2051 = vmax.f32 %v2034, 0.0
        %v2052 = vmax.f32 %v2038, 0.0
        %v2053 = vmax.f32 %v2040, 0.0
        %v2054 = vmax.f32 %v2044, 0.0
        %v2055 = vmax.f32 %v2046, 0.0
        %v2056 = vld [vmem:[%s2 + $0xc0] sm:$0xff]
        %v2057 = vld [vmem:[%s2 + $0xc8] sm:$0xff]
        %v2058 = vld [vmem:[%s2 + $0xd0] sm:$0xff]
        %v2059 = vld [vmem:[%s2 + $0xd8] sm:$0xff]
        %2060 = vset.pattern.permute.xlu0 6
        %2061 = vperm.xlu0 %2060, %v1371
        %v2062 = vpop.permute.xlu0 %2061
        %2064 = vset.pattern.permute.xlu0 6
        %2065 = vperm.xlu0 %2064, %v1372
        %v2066 = vpop.permute.xlu0 %2065
        %2067 = vset.pattern.permute.xlu0 6
        %2068 = vperm.xlu0 %2067, %v1373
        %v2069 = vpop.permute.xlu0 %2068
        %2070 = vset.pattern.permute.xlu0 6
        %2071 = vperm.xlu0 %2070, %v1374
        %v2072 = vpop.permute.xlu0 %2071
        %v2074 = vsel %vm1261, %v2056, 0
        %v2077 = vsel %vm1261, %v2057, 0
        %v2080 = vsel %vm1261, %v2058, 0
        %v2083 = vsel %vm1261, %v2059, 0
        %2085 = vmatprep.subr.mxu0 %v2049
        %2086 = vmatpush1.msra.mxu0 %v2048
        %2087 = vmatprep.subr.mxu0 %v2051
        %2088 = vmatpush1.msra.mxu0 %v2050
        %2089 = vmatprep.subr.mxu0 %v2053
        %2090 = vmatpush1.msra.mxu0 %v2052
        %2091 = vmatprep.subr.mxu0 %v2055
        %2092 = vmatpush1.msra.mxu0 %v2054
        %2093 = vmatprep.subr.mxu0 0.0
        %2094 = vmatpush1.msra.mxu0 0.0
        %2095 = vmatprep.subr.mxu0 0.0
        %2096 = vmatpush1.msra.mxu0 0.0
        %2097 = vmatprep.subr.mxu0 0.0
        %2098 = vmatpush1.msra.mxu0 0.0
        %2099 = vmatprep.subr.mxu0 0.0
        %2100 = vmatpush1.msra.mxu0 0.0
        %2101 = vmatprep.subr.mxu0 0.0
        %2102 = vmatpush1.msra.mxu0 0.0
        %2103 = vmatprep.subr.mxu0 0.0
        %2104 = vmatpush1.msra.mxu0 0.0
        %2105 = vmatprep.subr.mxu0 0.0
        %2106 = vmatpush1.msra.mxu0 0.0
        %2107 = vmatprep.subr.mxu0 0.0
        %2108 = vmatpush1.msra.mxu0 0.0
        %2109 = vmatprep.subr.mxu0 0.0
        %2110 = vmatpush1.msra.mxu0 0.0
        %2111 = vmatprep.subr.mxu0 0.0
        %2112 = vmatpush1.msra.mxu0 0.0
        %2113 = vmatprep.subr.mxu0 0.0
        %2114 = vmatpush1.msra.mxu0 0.0
        %2115 = vmatprep.subr.mxu0 0.0
        %2116 = vmatpush1.msra.mxu0 0.0
        %2117 = vmatprep.subr.mxu0 0.0
        %2118 = vmatpush1.msra.mxu0 0.0
        %2119 = vmatprep.subr.mxu0 0.0
        %2120 = vmatpush1.msra.mxu0 0.0
        %2121 = vmatprep.subr.mxu0 0.0
        %2122 = vmatpush1.msra.mxu0 0.0
        %2123 = vmatprep.subr.mxu0 0.0
        %2124 = vmatpush1.msra.mxu0 0.0
        %2125 = vmatprep.subr.mxu0 0.0
        %2126 = vmatpush1.msra.mxu0 0.0
        %2127 = vmatprep.subr.mxu0 0.0
        %2128 = vmatpush1.msra.mxu0 0.0
        %2129 = vmatprep.subr.mxu0 0.0
        %2130 = vmatpush1.msra.mxu0 0.0
        %2131 = vmatprep.subr.mxu0 0.0
        %2132 = vmatpush1.msra.mxu0 0.0
        %2133 = vmatprep.subr.mxu0 0.0
        %2134 = vmatpush1.msra.mxu0 0.0
        %2135 = vmatprep.subr.mxu0 0.0
        %2136 = vmatpush1.msra.mxu0 0.0
        %2137 = vmatprep.subr.mxu0 0.0
        %2138 = vmatpush1.msra.mxu0 0.0
        %2139 = vmatprep.subr.mxu0 0.0
        %2140 = vmatpush1.msra.mxu0 0.0
        %2141 = vmatprep.subr.mxu0 0.0
        %2142 = vmatpush1.msra.mxu0 0.0
        %2143 = vmatprep.subr.mxu0 0.0
        %2144 = vmatpush1.msra.mxu0 0.0
        %2145 = vmatprep.subr.mxu0 0.0
        %2146 = vmatpush1.msra.mxu0 0.0
        %2147 = vmatprep.subr.mxu0 0.0
        %2148 = vmatpush1.msra.mxu0 0.0
        %2149 = vmatprep.mubr.f32.mxu0 0.0
        %2150 = vmatmul.mubr.f32.gmra.mrb[0].mxu0 %v2074
        %v2151 = vpop.f32.mrb[0].mxu0
        %v2152 = vadd.f32 %v2062, %v2151
        %v2153 = vpop.f32.mrb[0].mxu0
        %v2154 = vadd.f32 %v2062, %v2153
        %2155 = vmatprep.mubr.f32.mxu0 0.0
        %2156 = vmatmul.mubr.f32.gmra.mrb[0].mxu0 %v2077
        %v2157 = vpop.f32.mrb[0].mxu0
        %v2158 = vpop.f32.mrb[0].mxu0
        %2159 = vmatprep.mubr.f32.mxu0 0.0
        %2160 = vmatmul.mubr.f32.gmra.mrb[0].mxu0 %v2080
        %v2161 = vpop.f32.mrb[0].mxu0
        %v2162 = vpop.f32.mrb[0].mxu0
        %2163 = vmatprep.mubr.f32.mxu0 0.0
        %2164 = vmatmul.mubr.f32.gmra.mrb[0].mxu0 %v2083
        %v2165 = vpop.f32.mrb[0].mxu0
        %v2166 = vpop.f32.mrb[0].mxu0
        %2167 = vdwg.mxu0
        %v2170 = vcombine.low %v2152, %v2154
        %2172 = vst [vmem:[%s191] sm:$0x77] %v2170
        %s2173 = scalar_lea.vmem %s196, 8
        %v2174 = vld [vmem:[%s2173] sm:$0xff]
        %v2175 = vld [vmem:[%s1] sm:$0xff]
        %v2176 = vld [vmem:[%s1 + $0x8] sm:$0xff]
        %v2177 = vld [vmem:[%s1 + $0x10] sm:$0xff]
        %v2178 = vld [vmem:[%s1 + $0x18] sm:$0xff]
        %v2179 = vld [vmem:[%s1 + $0x20] sm:$0xff]
        %v2180 = vld [vmem:[%s1 + $0x28] sm:$0xff]
        %v2181 = vld [vmem:[%s1 + $0x30] sm:$0xff]
        %v2182 = vld [vmem:[%s1 + $0x38] sm:$0xff]
        %v2183 = vld [vmem:[%s1 + $0x40] sm:$0xff]
        %v2184 = vld [vmem:[%s1 + $0x48] sm:$0xff]
        %v2185 = vld [vmem:[%s1 + $0x50] sm:$0xff]
        %v2186 = vld [vmem:[%s1 + $0x58] sm:$0xff]
        %v2188 = vcombine.high %v2174, %v2174
        %v2190 = vsel %vm218, %v2175, 0
        %v2193 = vsel %vm218, %v2176, 0
        %v2196 = vsel %vm218, %v2177, 0
        %v2199 = vsel %vm218, %v2178, 0
        %v2202 = vsel %vm218, %v2179, 0
        %v2205 = vsel %vm218, %v2180, 0
        %v2208 = vsel %vm218, %v2181, 0
        %v2211 = vsel %vm218, %v2182, 0
        %v2214 = vsel %vm218, %v2183, 0
        %v2217 = vsel %vm218, %v2184, 0
        %v2220 = vsel %vm218, %v2185, 0
        %v2223 = vsel %vm218, %v2186, 0
        %v2225 = vsel %vm255, %v2174, 0
        %v2227 = vsel %vm255, %v2188, 0
        %2229 = vmatprep.subr.mxu0 %v2227
        %2230 = vmatpush1.msra.mxu0 %v2225
        %2231 = vmatprep.subr.mxu0 0.0
        %2232 = vmatpush1.msra.mxu0 0.0
        %2233 = vmatprep.subr.mxu0 0.0
        %2234 = vmatpush1.msra.mxu0 0.0
        %2235 = vmatprep.subr.mxu0 0.0
        %2236 = vmatpush1.msra.mxu0 0.0
        %2237 = vmatprep.subr.mxu0 0.0
        %2238 = vmatpush1.msra.mxu0 0.0
        %2239 = vmatprep.subr.mxu0 0.0
        %2240 = vmatpush1.msra.mxu0 0.0
        %2241 = vmatprep.subr.mxu0 0.0
        %2242 = vmatpush1.msra.mxu0 0.0
        %2243 = vmatprep.subr.mxu0 0.0
        %2244 = vmatpush1.msra.mxu0 0.0
        %2245 = vmatprep.subr.mxu0 0.0
        %2246 = vmatpush1.msra.mxu0 0.0
        %2247 = vmatprep.subr.mxu0 0.0
        %2248 = vmatpush1.msra.mxu0 0.0
        %2249 = vmatprep.subr.mxu0 0.0
        %2250 = vmatpush1.msra.mxu0 0.0
        %2251 = vmatprep.subr.mxu0 0.0
        %2252 = vmatpush1.msra.mxu0 0.0
        %2253 = vmatprep.subr.mxu0 0.0
        %2254 = vmatpush1.msra.mxu0 0.0
        %2255 = vmatprep.subr.mxu0 0.0
        %2256 = vmatpush1.msra.mxu0 0.0
        %2257 = vmatprep.subr.mxu0 0.0
        %2258 = vmatpush1.msra.mxu0 0.0
        %2259 = vmatprep.subr.mxu0 0.0
        %2260 = vmatpush1.msra.mxu0 0.0
        %2261 = vmatprep.subr.mxu0 0.0
        %2262 = vmatpush1.msra.mxu0 0.0
        %2263 = vmatprep.subr.mxu0 0.0
        %2264 = vmatpush1.msra.mxu0 0.0
        %2265 = vmatprep.subr.mxu0 0.0
        %2266 = vmatpush1.msra.mxu0 0.0
        %2267 = vmatprep.subr.mxu0 0.0
        %2268 = vmatpush1.msra.mxu0 0.0
        %2269 = vmatprep.subr.mxu0 0.0
        %2270 = vmatpush1.msra.mxu0 0.0
        %2271 = vmatprep.subr.mxu0 0.0
        %2272 = vmatpush1.msra.mxu0 0.0
        %2273 = vmatprep.subr.mxu0 0.0
        %2274 = vmatpush1.msra.mxu0 0.0
        %2275 = vmatprep.subr.mxu0 0.0
        %2276 = vmatpush1.msra.mxu0 0.0
        %2277 = vmatprep.subr.mxu0 0.0
        %2278 = vmatpush1.msra.mxu0 0.0
        %2279 = vmatprep.subr.mxu0 0.0
        %2280 = vmatpush1.msra.mxu0 0.0
        %2281 = vmatprep.subr.mxu0 0.0
        %2282 = vmatpush1.msra.mxu0 0.0
        %2283 = vmatprep.subr.mxu0 0.0
        %2284 = vmatpush1.msra.mxu0 0.0
        %2285 = vmatprep.subr.mxu0 0.0
        %2286 = vmatpush1.msra.mxu0 0.0
        %2287 = vmatprep.subr.mxu0 0.0
        %2288 = vmatpush1.msra.mxu0 0.0
        %2289 = vmatprep.subr.mxu0 0.0
        %2290 = vmatpush1.msra.mxu0 0.0
        %2291 = vmatprep.subr.mxu0 0.0
        %2292 = vmatpush1.msra.mxu0 0.0
        %2293 = vmatprep.mubr.f32.mxu0 0.0
        %2294 = vmatmul.mubr.f32.gmra.mrb[0].mxu0 %v2190
        %v2295 = vpop.f32.mrb[0].mxu0
        %v2296 = vadd.f32 0.0, %v2295
        %v2297 = vpop.f32.mrb[0].mxu0
        %v2298 = vadd.f32 0.0, %v2297
        %2299 = vmatprep.mubr.f32.mxu0 0.0
        %2300 = vmatmul.mubr.f32.gmra.mrb[0].mxu0 %v2193
        %v2301 = vpop.f32.mrb[0].mxu0
        %v2302 = vadd.f32 0.0, %v2301
        %v2303 = vpop.f32.mrb[0].mxu0
        %v2304 = vadd.f32 0.0, %v2303
        %2305 = vmatprep.mubr.f32.mxu0 0.0
        %2306 = vmatmul.mubr.f32.gmra.mrb[0].mxu0 %v2196
        %v2307 = vpop.f32.mrb[0].mxu0
        %v2308 = vadd.f32 0.0, %v2307
        %v2309 = vpop.f32.mrb[0].mxu0
        %v2310 = vadd.f32 0.0, %v2309
        %2311 = vmatprep.mubr.f32.mxu0 0.0
        %2312 = vmatmul.mubr.f32.gmra.mrb[0].mxu0 %v2199
        %v2313 = vpop.f32.mrb[0].mxu0
        %v2314 = vadd.f32 0.0, %v2313
        %v2315 = vpop.f32.mrb[0].mxu0
        %v2316 = vadd.f32 0.0, %v2315
        %2317 = vmatprep.mubr.f32.mxu0 0.0
        %2318 = vmatmul.mubr.f32.gmra.mrb[0].mxu0 %v2202
        %v2319 = vpop.f32.mrb[0].mxu0
        %v2320 = vadd.f32 0.0, %v2319
        %v2321 = vpop.f32.mrb[0].mxu0
        %v2322 = vadd.f32 0.0, %v2321
        %2323 = vmatprep.mubr.f32.mxu0 0.0
        %2324 = vmatmul.mubr.f32.gmra.mrb[0].mxu0 %v2205
        %v2325 = vpop.f32.mrb[0].mxu0
        %v2326 = vadd.f32 0.0, %v2325
        %v2327 = vpop.f32.mrb[0].mxu0
        %v2328 = vadd.f32 0.0, %v2327
        %2329 = vmatprep.mubr.f32.mxu0 0.0
        %2330 = vmatmul.mubr.f32.gmra.mrb[0].mxu0 %v2208
        %v2331 = vpop.f32.mrb[0].mxu0
        %v2332 = vadd.f32 0.0, %v2331
        %v2333 = vpop.f32.mrb[0].mxu0
        %v2334 = vadd.f32 0.0, %v2333
        %2335 = vmatprep.mubr.f32.mxu0 0.0
        %2336 = vmatmul.mubr.f32.gmra.mrb[0].mxu0 %v2211
        %v2337 = vpop.f32.mrb[0].mxu0
        %v2338 = vadd.f32 0.0, %v2337
        %v2339 = vpop.f32.mrb[0].mxu0
        %v2340 = vadd.f32 0.0, %v2339
        %2341 = vmatprep.mubr.f32.mxu0 0.0
        %2342 = vmatmul.mubr.f32.gmra.mrb[0].mxu0 %v2214
        %v2343 = vpop.f32.mrb[0].mxu0
        %v2344 = vadd.f32 0.0, %v2343
        %v2345 = vpop.f32.mrb[0].mxu0
        %v2346 = vadd.f32 0.0, %v2345
        %2347 = vmatprep.mubr.f32.mxu0 0.0
        %2348 = vmatmul.mubr.f32.gmra.mrb[0].mxu0 %v2217
        %v2349 = vpop.f32.mrb[0].mxu0
        %v2350 = vadd.f32 0.0, %v2349
        %v2351 = vpop.f32.mrb[0].mxu0
        %v2352 = vadd.f32 0.0, %v2351
        %2353 = vmatprep.mubr.f32.mxu0 0.0
        %2354 = vmatmul.mubr.f32.gmra.mrb[0].mxu0 %v2220
        %v2355 = vpop.f32.mrb[0].mxu0
        %v2356 = vadd.f32 0.0, %v2355
        %v2357 = vpop.f32.mrb[0].mxu0
        %v2358 = vadd.f32 0.0, %v2357
        %2359 = vmatprep.mubr.f32.mxu0 0.0
        %2360 = vmatmul.mubr.f32.gmra.mrb[0].mxu0 %v2223
        %v2361 = vpop.f32.mrb[0].mxu0
        %v2362 = vadd.f32 0.0, %v2361
        %v2363 = vpop.f32.mrb[0].mxu0
        %v2364 = vadd.f32 0.0, %v2363
        %2365 = vdwg.mxu0
        %v2366 = vadd.f32 %v2296, %v400
        %v2367 = vadd.f32 %v2298, %v400
        %v2368 = vadd.f32 %v2302, %v405
        %v2369 = vadd.f32 %v2304, %v405
        %v2370 = vadd.f32 %v2308, %v410
        %v2371 = vadd.f32 %v2310, %v410
        %v2372 = vadd.f32 %v2314, %v415
        %v2373 = vadd.f32 %v2316, %v415
        %v2374 = vand.u32 2147483647, %v2366
        %vm2375 = vcmp.le.f32.partialorder %v2374, 0.7853982
        %vm2376 = vcmp.lt.s32.totalorder %v2366, 0
        %v2377 = vand.u32 %v2366, 2139095040
        %v2378 = vshrl.u32 %v2377, 23
        %v2379 = vsub.s32 %v2378, 127
        %v2380 = vand.u32 2147483647, %v2366
        %v2381 = vand.u32 %v2380, 8388607
        %v2382 = vor.u32 %v2381, 8388608
        %v2383 = vsub.s32 0, %v2382
        %v2384 = vadd.s32 %v2379, 1
        %vm2385 = vcmp.gt.s32.totalorder %v2384, 0
        %v2386 = vsel %vm2385, %v2384, 0
        %v2387 = vshrl.u32 %v2386, 5
        %v2388 = vand.u32 %v2386, 31
        %v2389 = vsub.s32 32, %v2388
        %v2390 = vshrl.u32 683565275, %v2389
        %v2391 = vshll.u32 683565275, %v2388
        %v2392 = vshrl.u32 2475754826, %v2389
        %v2393 = vor.u32 %v2391, %v2392
        %v2394 = vshll.u32 2475754826, %v2388
        %v2395 = vshrl.u32 2131351028, %v2389
        %v2396 = vor.u32 %v2394, %v2395
        %v2397 = vshll.u32 2131351028, %v2388
        %v2398 = vshrl.u32 2102212464, %v2389
        %v2399 = vor.u32 %v2397, %v2398
        %v2400 = vshll.u32 2102212464, %v2388
        %v2401 = vshrl.u32 920167782, %v2389
        %v2402 = vor.u32 %v2400, %v2401
        %v2403 = vshll.u32 920167782, %v2388
        %v2404 = vshrl.u32 1326507024, %v2389
        %v2405 = vor.u32 %v2403, %v2404
        %vm2406 = vcmp.lt.s32.totalorder %v2387, 1
        %vm2407 = vcmp.lt.s32.totalorder %v2387, 2
        %vm2408 = vcmp.lt.s32.totalorder %v2387, 3
        %vm2409 = vcmp.lt.s32.totalorder %v2387, 4
        %v2410 = vsel %vm2406, %v2390, %v2393
        %v2411 = vsel %vm2409, %v2399, 2102212464
        %v2412 = vsel %vm2408, %v2396, %v2411
        %v2413 = vsel %vm2407, %v2410, %v2412
        %v2414 = vsel %vm2406, %v2393, %v2396
        %v2415 = vsel %vm2409, %v2402, 920167782
        %v2416 = vsel %vm2408, %v2399, %v2415
        %v2417 = vsel %vm2407, %v2414, %v2416
        %v2418 = vsel %vm2406, %v2396, %v2399
        %v2419 = vsel %vm2409, %v2405, 1326507024
        %v2420 = vsel %vm2408, %v2402, %v2419
        %v2421 = vsel %vm2407, %v2418, %v2420
        %v2422 = vshll.u32 %v2382, 8
        %v2423 = vmul.u32.u64.compose %v2422, %v2421
        %v2424 = vextract.low.u32 %v2423
        %v2425 = vextract.high.u32 %v2423
        %v2426 = vmul.u32.u64.compose %v2422, %v2417
        %v2427 = vextract.low.u32 %v2426
        %v2428 = vextract.high.u32 %v2426
        %v2429 = vmul.u32 %v2422, %v2413
        %v2430 = vadd.s32 %v2425, %v2427
        %vm2431 = vc.u32 %v2425, %v2427
        %v2432 = vadd.s32 %v2428, 1
        %v2433 = vsel %vm2431, %v2432, %v2428
        %v2434 = vadd.s32 %v2429, %v2433
        %v2435 = vadd.s32 %v2434, 536870912
        %v2436 = vshrl.u32 %v2435, 30
        %v2437 = vshll.u32 %v2436, 30
        %v2438 = vsub.s32 %v2434, %v2437
        %vm2439 = vcmp.lt.s32.totalorder %v2438, 0
        %v2440 = vsub.s32 0, %v2438
        %v2441 = vsel %vm2439, %v2440, %v2438
        %v2442 = vclz %v2441
        %v2443 = vsub.s32 %v2442, 2
        %vm2444 = vcmp.gt.s32.totalorder 0, %v2443
        %v2445 = vsel %vm2444, 0, %v2443
        %v2446 = vsub.s32 32, %v2445
        %v2447 = vshll.u32 %v2438, %v2445
        %v2448 = vshrl.u32 %v2430, %v2446
        %v2449 = vor.u32 %v2447, %v2448
        %v2450 = vsub.s32 4294967266, %v2445
        %v2451 = vadd.s32 %v2450, 127
        %v2452 = vshll.u32 %v2451, 23
        %v2453 = vor.u32 4788187, %v2452
        %v2454 = vand.u32 2147483647, %v2453
        %v2456 = vcvt.s32.f32 %v2449
        %v2457 = vmul.f32 %v2456, %v2454
        %v2458 = vxor.u32 %v2457, 2147483648
        %v2459 = vsel %vm2376, %v2458, %v2457
        %v2460 = vsub.s32 4, %v2436
        %v2461 = vsel %vm2376, %v2460, %v2436
        %v2462 = vsel %vm2375, %v2366, %v2459
        %v2463 = vsel %vm2375, 0, %v2461
        %v2464 = vcosq.f32.pop %v2462
        %v2465 = vsinq.f32.pop %v2462
        %vm2466 = vweird.f32 %v2366
        %v2467 = vadd.s32 %v2463, 3
        %v2468 = vand.u32 %v2467, 3
        %vm2469 = vcmp.lt.s32.totalorder %v2468, 2
        %vm2470 = vcmp.eq.s32.totalorder %v2468, 0
        %v2471 = vxor.u32 %v2465, 2147483648
        %v2472 = vsel %vm2470, %v2464, %v2471
        %vm2473 = vcmp.eq.s32.totalorder %v2468, 2
        %v2474 = vxor.u32 %v2464, 2147483648
        %v2475 = vsel %vm2473, %v2474, %v2465
        %v2476 = vsel %vm2469, %v2472, %v2475
        %v2477 = vsel %vm2466, nan, %v2476
        %v2478 = vand.u32 2147483647, %v2367
        %vm2479 = vcmp.le.f32.partialorder %v2478, 0.7853982
        %vm2480 = vcmp.lt.s32.totalorder %v2367, 0
        %v2481 = vand.u32 %v2367, 2139095040
        %v2482 = vshrl.u32 %v2481, 23
        %v2483 = vsub.s32 %v2482, 127
        %v2484 = vand.u32 2147483647, %v2367
        %v2485 = vand.u32 %v2484, 8388607
        %v2486 = vor.u32 %v2485, 8388608
        %v2487 = vsub.s32 0, %v2486
        %v2488 = vadd.s32 %v2483, 1
        %vm2489 = vcmp.gt.s32.totalorder %v2488, 0
        %v2490 = vsel %vm2489, %v2488, 0
        %v2491 = vshrl.u32 %v2490, 5
        %v2492 = vand.u32 %v2490, 31
        %v2493 = vsub.s32 32, %v2492
        %v2494 = vshrl.u32 683565275, %v2493
        %v2495 = vshll.u32 683565275, %v2492
        %v2496 = vshrl.u32 2475754826, %v2493
        %v2497 = vor.u32 %v2495, %v2496
        %v2498 = vshll.u32 2475754826, %v2492
        %v2499 = vshrl.u32 2131351028, %v2493
        %v2500 = vor.u32 %v2498, %v2499
        %v2501 = vshll.u32 2131351028, %v2492
        %v2502 = vshrl.u32 2102212464, %v2493
        %v2503 = vor.u32 %v2501, %v2502
        %v2504 = vshll.u32 2102212464, %v2492
        %v2505 = vshrl.u32 920167782, %v2493
        %v2506 = vor.u32 %v2504, %v2505
        %v2507 = vshll.u32 920167782, %v2492
        %v2508 = vshrl.u32 1326507024, %v2493
        %v2509 = vor.u32 %v2507, %v2508
        %vm2510 = vcmp.lt.s32.totalorder %v2491, 1
        %vm2511 = vcmp.lt.s32.totalorder %v2491, 2
        %vm2512 = vcmp.lt.s32.totalorder %v2491, 3
        %vm2513 = vcmp.lt.s32.totalorder %v2491, 4
        %v2514 = vsel %vm2510, %v2494, %v2497
        %v2515 = vsel %vm2513, %v2503, 2102212464
        %v2516 = vsel %vm2512, %v2500, %v2515
        %v2517 = vsel %vm2511, %v2514, %v2516
        %v2518 = vsel %vm2510, %v2497, %v2500
        %v2519 = vsel %vm2513, %v2506, 920167782
        %v2520 = vsel %vm2512, %v2503, %v2519
        %v2521 = vsel %vm2511, %v2518, %v2520
        %v2522 = vsel %vm2510, %v2500, %v2503
        %v2523 = vsel %vm2513, %v2509, 1326507024
        %v2524 = vsel %vm2512, %v2506, %v2523
        %v2525 = vsel %vm2511, %v2522, %v2524
        %v2526 = vshll.u32 %v2486, 8
        %v2527 = vmul.u32.u64.compose %v2526, %v2525
        %v2528 = vextract.low.u32 %v2527
        %v2529 = vextract.high.u32 %v2527
        %v2530 = vmul.u32.u64.compose %v2526, %v2521
        %v2531 = vextract.low.u32 %v2530
        %v2532 = vextract.high.u32 %v2530
        %v2533 = vmul.u32 %v2526, %v2517
        %v2534 = vadd.s32 %v2529, %v2531
        %vm2535 = vc.u32 %v2529, %v2531
        %v2536 = vadd.s32 %v2532, 1
        %v2537 = vsel %vm2535, %v2536, %v2532
        %v2538 = vadd.s32 %v2533, %v2537
        %v2539 = vadd.s32 %v2538, 536870912
        %v2540 = vshrl.u32 %v2539, 30
        %v2541 = vshll.u32 %v2540, 30
        %v2542 = vsub.s32 %v2538, %v2541
        %vm2543 = vcmp.lt.s32.totalorder %v2542, 0
        %v2544 = vsub.s32 0, %v2542
        %v2545 = vsel %vm2543, %v2544, %v2542
        %v2546 = vclz %v2545
        %v2547 = vsub.s32 %v2546, 2
        %vm2548 = vcmp.gt.s32.totalorder 0, %v2547
        %v2549 = vsel %vm2548, 0, %v2547
        %v2550 = vsub.s32 32, %v2549
        %v2551 = vshll.u32 %v2542, %v2549
        %v2552 = vshrl.u32 %v2534, %v2550
        %v2553 = vor.u32 %v2551, %v2552
        %v2554 = vsub.s32 4294967266, %v2549
        %v2555 = vadd.s32 %v2554, 127
        %v2556 = vshll.u32 %v2555, 23
        %v2557 = vor.u32 4788187, %v2556
        %v2558 = vand.u32 2147483647, %v2557
        %v2560 = vcvt.s32.f32 %v2553
        %v2561 = vmul.f32 %v2560, %v2558
        %v2562 = vxor.u32 %v2561, 2147483648
        %v2563 = vsel %vm2480, %v2562, %v2561
        %v2564 = vsub.s32 4, %v2540
        %v2565 = vsel %vm2480, %v2564, %v2540
        %v2566 = vsel %vm2479, %v2367, %v2563
        %v2567 = vsel %vm2479, 0, %v2565
        %v2568 = vcosq.f32.pop %v2566
        %v2569 = vsinq.f32.pop %v2566
        %vm2570 = vweird.f32 %v2367
        %v2571 = vadd.s32 %v2567, 3
        %v2572 = vand.u32 %v2571, 3
        %vm2573 = vcmp.lt.s32.totalorder %v2572, 2
        %vm2574 = vcmp.eq.s32.totalorder %v2572, 0
        %v2575 = vxor.u32 %v2569, 2147483648
        %v2576 = vsel %vm2574, %v2568, %v2575
        %vm2577 = vcmp.eq.s32.totalorder %v2572, 2
        %v2578 = vxor.u32 %v2568, 2147483648
        %v2579 = vsel %vm2577, %v2578, %v2569
        %v2580 = vsel %vm2573, %v2576, %v2579
        %v2581 = vsel %vm2570, nan, %v2580
        %v2582 = vand.u32 2147483647, %v2368
        %vm2583 = vcmp.le.f32.partialorder %v2582, 0.7853982
        %vm2584 = vcmp.lt.s32.totalorder %v2368, 0
        %v2585 = vand.u32 %v2368, 2139095040
        %v2586 = vshrl.u32 %v2585, 23
        %v2587 = vsub.s32 %v2586, 127
        %v2588 = vand.u32 2147483647, %v2368
        %v2589 = vand.u32 %v2588, 8388607
        %v2590 = vor.u32 %v2589, 8388608
        %v2591 = vsub.s32 0, %v2590
        %v2592 = vadd.s32 %v2587, 1
        %vm2593 = vcmp.gt.s32.totalorder %v2592, 0
        %v2594 = vsel %vm2593, %v2592, 0
        %v2595 = vshrl.u32 %v2594, 5
        %v2596 = vand.u32 %v2594, 31
        %v2597 = vsub.s32 32, %v2596
        %v2598 = vshrl.u32 683565275, %v2597
        %v2599 = vshll.u32 683565275, %v2596
        %v2600 = vshrl.u32 2475754826, %v2597
        %v2601 = vor.u32 %v2599, %v2600
        %v2602 = vshll.u32 2475754826, %v2596
        %v2603 = vshrl.u32 2131351028, %v2597
        %v2604 = vor.u32 %v2602, %v2603
        %v2605 = vshll.u32 2131351028, %v2596
        %v2606 = vshrl.u32 2102212464, %v2597
        %v2607 = vor.u32 %v2605, %v2606
        %v2608 = vshll.u32 2102212464, %v2596
        %v2609 = vshrl.u32 920167782, %v2597
        %v2610 = vor.u32 %v2608, %v2609
        %v2611 = vshll.u32 920167782, %v2596
        %v2612 = vshrl.u32 1326507024, %v2597
        %v2613 = vor.u32 %v2611, %v2612
        %vm2614 = vcmp.lt.s32.totalorder %v2595, 1
        %vm2615 = vcmp.lt.s32.totalorder %v2595, 2
        %vm2616 = vcmp.lt.s32.totalorder %v2595, 3
        %vm2617 = vcmp.lt.s32.totalorder %v2595, 4
        %v2618 = vsel %vm2614, %v2598, %v2601
        %v2619 = vsel %vm2617, %v2607, 2102212464
        %v2620 = vsel %vm2616, %v2604, %v2619
        %v2621 = vsel %vm2615, %v2618, %v2620
        %v2622 = vsel %vm2614, %v2601, %v2604
        %v2623 = vsel %vm2617, %v2610, 920167782
        %v2624 = vsel %vm2616, %v2607, %v2623
        %v2625 = vsel %vm2615, %v2622, %v2624
        %v2626 = vsel %vm2614, %v2604, %v2607
        %v2627 = vsel %vm2617, %v2613, 1326507024
        %v2628 = vsel %vm2616, %v2610, %v2627
        %v2629 = vsel %vm2615, %v2626, %v2628
        %v2630 = vshll.u32 %v2590, 8
        %v2631 = vmul.u32.u64.compose %v2630, %v2629
        %v2632 = vextract.low.u32 %v2631
        %v2633 = vextract.high.u32 %v2631
        %v2634 = vmul.u32.u64.compose %v2630, %v2625
        %v2635 = vextract.low.u32 %v2634
        %v2636 = vextract.high.u32 %v2634
        %v2637 = vmul.u32 %v2630, %v2621
        %v2638 = vadd.s32 %v2633, %v2635
        %vm2639 = vc.u32 %v2633, %v2635
        %v2640 = vadd.s32 %v2636, 1
        %v2641 = vsel %vm2639, %v2640, %v2636
        %v2642 = vadd.s32 %v2637, %v2641
        %v2643 = vadd.s32 %v2642, 536870912
        %v2644 = vshrl.u32 %v2643, 30
        %v2645 = vshll.u32 %v2644, 30
        %v2646 = vsub.s32 %v2642, %v2645
        %vm2647 = vcmp.lt.s32.totalorder %v2646, 0
        %v2648 = vsub.s32 0, %v2646
        %v2649 = vsel %vm2647, %v2648, %v2646
        %v2650 = vclz %v2649
        %v2651 = vsub.s32 %v2650, 2
        %vm2652 = vcmp.gt.s32.totalorder 0, %v2651
        %v2653 = vsel %vm2652, 0, %v2651
        %v2654 = vsub.s32 32, %v2653
        %v2655 = vshll.u32 %v2646, %v2653
        %v2656 = vshrl.u32 %v2638, %v2654
        %v2657 = vor.u32 %v2655, %v2656
        %v2658 = vsub.s32 4294967266, %v2653
        %v2659 = vadd.s32 %v2658, 127
        %v2660 = vshll.u32 %v2659, 23
        %v2661 = vor.u32 4788187, %v2660
        %v2662 = vand.u32 2147483647, %v2661
        %v2664 = vcvt.s32.f32 %v2657
        %v2665 = vmul.f32 %v2664, %v2662
        %v2666 = vxor.u32 %v2665, 2147483648
        %v2667 = vsel %vm2584, %v2666, %v2665
        %v2668 = vsub.s32 4, %v2644
        %v2669 = vsel %vm2584, %v2668, %v2644
        %v2670 = vsel %vm2583, %v2368, %v2667
        %v2671 = vsel %vm2583, 0, %v2669
        %v2672 = vcosq.f32.pop %v2670
        %v2673 = vsinq.f32.pop %v2670
        %vm2674 = vweird.f32 %v2368
        %v2675 = vadd.s32 %v2671, 3
        %v2676 = vand.u32 %v2675, 3
        %vm2677 = vcmp.lt.s32.totalorder %v2676, 2
        %vm2678 = vcmp.eq.s32.totalorder %v2676, 0
        %v2679 = vxor.u32 %v2673, 2147483648
        %v2680 = vsel %vm2678, %v2672, %v2679
        %vm2681 = vcmp.eq.s32.totalorder %v2676, 2
        %v2682 = vxor.u32 %v2672, 2147483648
        %v2683 = vsel %vm2681, %v2682, %v2673
        %v2684 = vsel %vm2677, %v2680, %v2683
        %v2685 = vsel %vm2674, nan, %v2684
        %v2686 = vand.u32 2147483647, %v2369
        %vm2687 = vcmp.le.f32.partialorder %v2686, 0.7853982
        %vm2688 = vcmp.lt.s32.totalorder %v2369, 0
        %v2689 = vand.u32 %v2369, 2139095040
        %v2690 = vshrl.u32 %v2689, 23
        %v2691 = vsub.s32 %v2690, 127
        %v2692 = vand.u32 2147483647, %v2369
        %v2693 = vand.u32 %v2692, 8388607
        %v2694 = vor.u32 %v2693, 8388608
        %v2695 = vsub.s32 0, %v2694
        %v2696 = vadd.s32 %v2691, 1
        %vm2697 = vcmp.gt.s32.totalorder %v2696, 0
        %v2698 = vsel %vm2697, %v2696, 0
        %v2699 = vshrl.u32 %v2698, 5
        %v2700 = vand.u32 %v2698, 31
        %v2701 = vsub.s32 32, %v2700
        %v2702 = vshrl.u32 683565275, %v2701
        %v2703 = vshll.u32 683565275, %v2700
        %v2704 = vshrl.u32 2475754826, %v2701
        %v2705 = vor.u32 %v2703, %v2704
        %v2706 = vshll.u32 2475754826, %v2700
        %v2707 = vshrl.u32 2131351028, %v2701
        %v2708 = vor.u32 %v2706, %v2707
        %v2709 = vshll.u32 2131351028, %v2700
        %v2710 = vshrl.u32 2102212464, %v2701
        %v2711 = vor.u32 %v2709, %v2710
        %v2712 = vshll.u32 2102212464, %v2700
        %v2713 = vshrl.u32 920167782, %v2701
        %v2714 = vor.u32 %v2712, %v2713
        %v2715 = vshll.u32 920167782, %v2700
        %v2716 = vshrl.u32 1326507024, %v2701
        %v2717 = vor.u32 %v2715, %v2716
        %vm2718 = vcmp.lt.s32.totalorder %v2699, 1
        %vm2719 = vcmp.lt.s32.totalorder %v2699, 2
        %vm2720 = vcmp.lt.s32.totalorder %v2699, 3
        %vm2721 = vcmp.lt.s32.totalorder %v2699, 4
        %v2722 = vsel %vm2718, %v2702, %v2705
        %v2723 = vsel %vm2721, %v2711, 2102212464
        %v2724 = vsel %vm2720, %v2708, %v2723
        %v2725 = vsel %vm2719, %v2722, %v2724
        %v2726 = vsel %vm2718, %v2705, %v2708
        %v2727 = vsel %vm2721, %v2714, 920167782
        %v2728 = vsel %vm2720, %v2711, %v2727
        %v2729 = vsel %vm2719, %v2726, %v2728
        %v2730 = vsel %vm2718, %v2708, %v2711
        %v2731 = vsel %vm2721, %v2717, 1326507024
        %v2732 = vsel %vm2720, %v2714, %v2731
        %v2733 = vsel %vm2719, %v2730, %v2732
        %v2734 = vshll.u32 %v2694, 8
        %v2735 = vmul.u32.u64.compose %v2734, %v2733
        %v2736 = vextract.low.u32 %v2735
        %v2737 = vextract.high.u32 %v2735
        %v2738 = vmul.u32.u64.compose %v2734, %v2729
        %v2739 = vextract.low.u32 %v2738
        %v2740 = vextract.high.u32 %v2738
        %v2741 = vmul.u32 %v2734, %v2725
        %v2742 = vadd.s32 %v2737, %v2739
        %vm2743 = vc.u32 %v2737, %v2739
        %v2744 = vadd.s32 %v2740, 1
        %v2745 = vsel %vm2743, %v2744, %v2740
        %v2746 = vadd.s32 %v2741, %v2745
        %v2747 = vadd.s32 %v2746, 536870912
        %v2748 = vshrl.u32 %v2747, 30
        %v2749 = vshll.u32 %v2748, 30
        %v2750 = vsub.s32 %v2746, %v2749
        %vm2751 = vcmp.lt.s32.totalorder %v2750, 0
        %v2752 = vsub.s32 0, %v2750
        %v2753 = vsel %vm2751, %v2752, %v2750
        %v2754 = vclz %v2753
        %v2755 = vsub.s32 %v2754, 2
        %vm2756 = vcmp.gt.s32.totalorder 0, %v2755
        %v2757 = vsel %vm2756, 0, %v2755
        %v2758 = vsub.s32 32, %v2757
        %v2759 = vshll.u32 %v2750, %v2757
        %v2760 = vshrl.u32 %v2742, %v2758
        %v2761 = vor.u32 %v2759, %v2760
        %v2762 = vsub.s32 4294967266, %v2757
        %v2763 = vadd.s32 %v2762, 127
        %v2764 = vshll.u32 %v2763, 23
        %v2765 = vor.u32 4788187, %v2764
        %v2766 = vand.u32 2147483647, %v2765
        %v2768 = vcvt.s32.f32 %v2761
        %v2769 = vmul.f32 %v2768, %v2766
        %v2770 = vxor.u32 %v2769, 2147483648
        %v2771 = vsel %vm2688, %v2770, %v2769
        %v2772 = vsub.s32 4, %v2748
        %v2773 = vsel %vm2688, %v2772, %v2748
        %v2774 = vsel %vm2687, %v2369, %v2771
        %v2775 = vsel %vm2687, 0, %v2773
        %v2776 = vcosq.f32.pop %v2774
        %v2777 = vsinq.f32.pop %v2774
        %vm2778 = vweird.f32 %v2369
        %v2779 = vadd.s32 %v2775, 3
        %v2780 = vand.u32 %v2779, 3
        %vm2781 = vcmp.lt.s32.totalorder %v2780, 2
        %vm2782 = vcmp.eq.s32.totalorder %v2780, 0
        %v2783 = vxor.u32 %v2777, 2147483648
        %v2784 = vsel %vm2782, %v2776, %v2783
        %vm2785 = vcmp.eq.s32.totalorder %v2780, 2
        %v2786 = vxor.u32 %v2776, 2147483648
        %v2787 = vsel %vm2785, %v2786, %v2777
        %v2788 = vsel %vm2781, %v2784, %v2787
        %v2789 = vsel %vm2778, nan, %v2788
        %v2790 = vand.u32 2147483647, %v2370
        %vm2791 = vcmp.le.f32.partialorder %v2790, 0.7853982
        %vm2792 = vcmp.lt.s32.totalorder %v2370, 0
        %v2793 = vand.u32 %v2370, 2139095040
        %v2794 = vshrl.u32 %v2793, 23
        %v2795 = vsub.s32 %v2794, 127
        %v2796 = vand.u32 2147483647, %v2370
        %v2797 = vand.u32 %v2796, 8388607
        %v2798 = vor.u32 %v2797, 8388608
        %v2799 = vsub.s32 0, %v2798
        %v2800 = vadd.s32 %v2795, 1
        %vm2801 = vcmp.gt.s32.totalorder %v2800, 0
        %v2802 = vsel %vm2801, %v2800, 0
        %v2803 = vshrl.u32 %v2802, 5
        %v2804 = vand.u32 %v2802, 31
        %v2805 = vsub.s32 32, %v2804
        %v2806 = vshrl.u32 683565275, %v2805
        %v2807 = vshll.u32 683565275, %v2804
        %v2808 = vshrl.u32 2475754826, %v2805
        %v2809 = vor.u32 %v2807, %v2808
        %v2810 = vshll.u32 2475754826, %v2804
        %v2811 = vshrl.u32 2131351028, %v2805
        %v2812 = vor.u32 %v2810, %v2811
        %v2813 = vshll.u32 2131351028, %v2804
        %v2814 = vshrl.u32 2102212464, %v2805
        %v2815 = vor.u32 %v2813, %v2814
        %v2816 = vshll.u32 2102212464, %v2804
        %v2817 = vshrl.u32 920167782, %v2805
        %v2818 = vor.u32 %v2816, %v2817
        %v2819 = vshll.u32 920167782, %v2804
        %v2820 = vshrl.u32 1326507024, %v2805
        %v2821 = vor.u32 %v2819, %v2820
        %vm2822 = vcmp.lt.s32.totalorder %v2803, 1
        %vm2823 = vcmp.lt.s32.totalorder %v2803, 2
        %vm2824 = vcmp.lt.s32.totalorder %v2803, 3
        %vm2825 = vcmp.lt.s32.totalorder %v2803, 4
        %v2826 = vsel %vm2822, %v2806, %v2809
        %v2827 = vsel %vm2825, %v2815, 2102212464
        %v2828 = vsel %vm2824, %v2812, %v2827
        %v2829 = vsel %vm2823, %v2826, %v2828
        %v2830 = vsel %vm2822, %v2809, %v2812
        %v2831 = vsel %vm2825, %v2818, 920167782
        %v2832 = vsel %vm2824, %v2815, %v2831
        %v2833 = vsel %vm2823, %v2830, %v2832
        %v2834 = vsel %vm2822, %v2812, %v2815
        %v2835 = vsel %vm2825, %v2821, 1326507024
        %v2836 = vsel %vm2824, %v2818, %v2835
        %v2837 = vsel %vm2823, %v2834, %v2836
        %v2838 = vshll.u32 %v2798, 8
        %v2839 = vmul.u32.u64.compose %v2838, %v2837
        %v2840 = vextract.low.u32 %v2839
        %v2841 = vextract.high.u32 %v2839
        %v2842 = vmul.u32.u64.compose %v2838, %v2833
        %v2843 = vextract.low.u32 %v2842
        %v2844 = vextract.high.u32 %v2842
        %v2845 = vmul.u32 %v2838, %v2829
        %v2846 = vadd.s32 %v2841, %v2843
        %vm2847 = vc.u32 %v2841, %v2843
        %v2848 = vadd.s32 %v2844, 1
        %v2849 = vsel %vm2847, %v2848, %v2844
        %v2850 = vadd.s32 %v2845, %v2849
        %v2851 = vadd.s32 %v2850, 536870912
        %v2852 = vshrl.u32 %v2851, 30
        %v2853 = vshll.u32 %v2852, 30
        %v2854 = vsub.s32 %v2850, %v2853
        %vm2855 = vcmp.lt.s32.totalorder %v2854, 0
        %v2856 = vsub.s32 0, %v2854
        %v2857 = vsel %vm2855, %v2856, %v2854
        %v2858 = vclz %v2857
        %v2859 = vsub.s32 %v2858, 2
        %vm2860 = vcmp.gt.s32.totalorder 0, %v2859
        %v2861 = vsel %vm2860, 0, %v2859
        %v2862 = vsub.s32 32, %v2861
        %v2863 = vshll.u32 %v2854, %v2861
        %v2864 = vshrl.u32 %v2846, %v2862
        %v2865 = vor.u32 %v2863, %v2864
        %v2866 = vsub.s32 4294967266, %v2861
        %v2867 = vadd.s32 %v2866, 127
        %v2868 = vshll.u32 %v2867, 23
        %v2869 = vor.u32 4788187, %v2868
        %v2870 = vand.u32 2147483647, %v2869
        %v2872 = vcvt.s32.f32 %v2865
        %v2873 = vmul.f32 %v2872, %v2870
        %v2874 = vxor.u32 %v2873, 2147483648
        %v2875 = vsel %vm2792, %v2874, %v2873
        %v2876 = vsub.s32 4, %v2852
        %v2877 = vsel %vm2792, %v2876, %v2852
        %v2878 = vsel %vm2791, %v2370, %v2875
        %v2879 = vsel %vm2791, 0, %v2877
        %v2880 = vcosq.f32.pop %v2878
        %v2881 = vsinq.f32.pop %v2878
        %vm2882 = vweird.f32 %v2370
        %v2883 = vadd.s32 %v2879, 3
        %v2884 = vand.u32 %v2883, 3
        %vm2885 = vcmp.lt.s32.totalorder %v2884, 2
        %vm2886 = vcmp.eq.s32.totalorder %v2884, 0
        %v2887 = vxor.u32 %v2881, 2147483648
        %v2888 = vsel %vm2886, %v2880, %v2887
        %vm2889 = vcmp.eq.s32.totalorder %v2884, 2
        %v2890 = vxor.u32 %v2880, 2147483648
        %v2891 = vsel %vm2889, %v2890, %v2881
        %v2892 = vsel %vm2885, %v2888, %v2891
        %v2893 = vsel %vm2882, nan, %v2892
        %v2894 = vand.u32 2147483647, %v2371
        %vm2895 = vcmp.le.f32.partialorder %v2894, 0.7853982
        %vm2896 = vcmp.lt.s32.totalorder %v2371, 0
        %v2897 = vand.u32 %v2371, 2139095040
        %v2898 = vshrl.u32 %v2897, 23
        %v2899 = vsub.s32 %v2898, 127
        %v2900 = vand.u32 2147483647, %v2371
        %v2901 = vand.u32 %v2900, 8388607
        %v2902 = vor.u32 %v2901, 8388608
        %v2903 = vsub.s32 0, %v2902
        %v2904 = vadd.s32 %v2899, 1
        %vm2905 = vcmp.gt.s32.totalorder %v2904, 0
        %v2906 = vsel %vm2905, %v2904, 0
        %v2907 = vshrl.u32 %v2906, 5
        %v2908 = vand.u32 %v2906, 31
        %v2909 = vsub.s32 32, %v2908
        %v2910 = vshrl.u32 683565275, %v2909
        %v2911 = vshll.u32 683565275, %v2908
        %v2912 = vshrl.u32 2475754826, %v2909
        %v2913 = vor.u32 %v2911, %v2912
        %v2914 = vshll.u32 2475754826, %v2908
        %v2915 = vshrl.u32 2131351028, %v2909
        %v2916 = vor.u32 %v2914, %v2915
        %v2917 = vshll.u32 2131351028, %v2908
        %v2918 = vshrl.u32 2102212464, %v2909
        %v2919 = vor.u32 %v2917, %v2918
        %v2920 = vshll.u32 2102212464, %v2908
        %v2921 = vshrl.u32 920167782, %v2909
        %v2922 = vor.u32 %v2920, %v2921
        %v2923 = vshll.u32 920167782, %v2908
        %v2924 = vshrl.u32 1326507024, %v2909
        %v2925 = vor.u32 %v2923, %v2924
        %vm2926 = vcmp.lt.s32.totalorder %v2907, 1
        %vm2927 = vcmp.lt.s32.totalorder %v2907, 2
        %vm2928 = vcmp.lt.s32.totalorder %v2907, 3
        %vm2929 = vcmp.lt.s32.totalorder %v2907, 4
        %v2930 = vsel %vm2926, %v2910, %v2913
        %v2931 = vsel %vm2929, %v2919, 2102212464
        %v2932 = vsel %vm2928, %v2916, %v2931
        %v2933 = vsel %vm2927, %v2930, %v2932
        %v2934 = vsel %vm2926, %v2913, %v2916
        %v2935 = vsel %vm2929, %v2922, 920167782
        %v2936 = vsel %vm2928, %v2919, %v2935
        %v2937 = vsel %vm2927, %v2934, %v2936
        %v2938 = vsel %vm2926, %v2916, %v2919
        %v2939 = vsel %vm2929, %v2925, 1326507024
        %v2940 = vsel %vm2928, %v2922, %v2939
        %v2941 = vsel %vm2927, %v2938, %v2940
        %v2942 = vshll.u32 %v2902, 8
        %v2943 = vmul.u32.u64.compose %v2942, %v2941
        %v2944 = vextract.low.u32 %v2943
        %v2945 = vextract.high.u32 %v2943
        %v2946 = vmul.u32.u64.compose %v2942, %v2937
        %v2947 = vextract.low.u32 %v2946
        %v2948 = vextract.high.u32 %v2946
        %v2949 = vmul.u32 %v2942, %v2933
        %v2950 = vadd.s32 %v2945, %v2947
        %vm2951 = vc.u32 %v2945, %v2947
        %v2952 = vadd.s32 %v2948, 1
        %v2953 = vsel %vm2951, %v2952, %v2948
        %v2954 = vadd.s32 %v2949, %v2953
        %v2955 = vadd.s32 %v2954, 536870912
        %v2956 = vshrl.u32 %v2955, 30
        %v2957 = vshll.u32 %v2956, 30
        %v2958 = vsub.s32 %v2954, %v2957
        %vm2959 = vcmp.lt.s32.totalorder %v2958, 0
        %v2960 = vsub.s32 0, %v2958
        %v2961 = vsel %vm2959, %v2960, %v2958
        %v2962 = vclz %v2961
        %v2963 = vsub.s32 %v2962, 2
        %vm2964 = vcmp.gt.s32.totalorder 0, %v2963
        %v2965 = vsel %vm2964, 0, %v2963
        %v2966 = vsub.s32 32, %v2965
        %v2967 = vshll.u32 %v2958, %v2965
        %v2968 = vshrl.u32 %v2950, %v2966
        %v2969 = vor.u32 %v2967, %v2968
        %v2970 = vsub.s32 4294967266, %v2965
        %v2971 = vadd.s32 %v2970, 127
        %v2972 = vshll.u32 %v2971, 23
        %v2973 = vor.u32 4788187, %v2972
        %v2974 = vand.u32 2147483647, %v2973
        %v2976 = vcvt.s32.f32 %v2969
        %v2977 = vmul.f32 %v2976, %v2974
        %v2978 = vxor.u32 %v2977, 2147483648
        %v2979 = vsel %vm2896, %v2978, %v2977
        %v2980 = vsub.s32 4, %v2956
        %v2981 = vsel %vm2896, %v2980, %v2956
        %v2982 = vsel %vm2895, %v2371, %v2979
        %v2983 = vsel %vm2895, 0, %v2981
        %v2984 = vcosq.f32.pop %v2982
        %v2985 = vsinq.f32.pop %v2982
        %vm2986 = vweird.f32 %v2371
        %v2987 = vadd.s32 %v2983, 3
        %v2988 = vand.u32 %v2987, 3
        %vm2989 = vcmp.lt.s32.totalorder %v2988, 2
        %vm2990 = vcmp.eq.s32.totalorder %v2988, 0
        %v2991 = vxor.u32 %v2985, 2147483648
        %v2992 = vsel %vm2990, %v2984, %v2991
        %vm2993 = vcmp.eq.s32.totalorder %v2988, 2
        %v2994 = vxor.u32 %v2984, 2147483648
        %v2995 = vsel %vm2993, %v2994, %v2985
        %v2996 = vsel %vm2989, %v2992, %v2995
        %v2997 = vsel %vm2986, nan, %v2996
        %v2998 = vand.u32 2147483647, %v2372
        %vm2999 = vcmp.le.f32.partialorder %v2998, 0.7853982
        %vm3000 = vcmp.lt.s32.totalorder %v2372, 0
        %v3001 = vand.u32 %v2372, 2139095040
        %v3002 = vshrl.u32 %v3001, 23
        %v3003 = vsub.s32 %v3002, 127
        %v3004 = vand.u32 2147483647, %v2372
        %v3005 = vand.u32 %v3004, 8388607
        %v3006 = vor.u32 %v3005, 8388608
        %v3007 = vsub.s32 0, %v3006
        %v3008 = vadd.s32 %v3003, 1
        %vm3009 = vcmp.gt.s32.totalorder %v3008, 0
        %v3010 = vsel %vm3009, %v3008, 0
        %v3011 = vshrl.u32 %v3010, 5
        %v3012 = vand.u32 %v3010, 31
        %v3013 = vsub.s32 32, %v3012
        %v3014 = vshrl.u32 683565275, %v3013
        %v3015 = vshll.u32 683565275, %v3012
        %v3016 = vshrl.u32 2475754826, %v3013
        %v3017 = vor.u32 %v3015, %v3016
        %v3018 = vshll.u32 2475754826, %v3012
        %v3019 = vshrl.u32 2131351028, %v3013
        %v3020 = vor.u32 %v3018, %v3019
        %v3021 = vshll.u32 2131351028, %v3012
        %v3022 = vshrl.u32 2102212464, %v3013
        %v3023 = vor.u32 %v3021, %v3022
        %v3024 = vshll.u32 2102212464, %v3012
        %v3025 = vshrl.u32 920167782, %v3013
        %v3026 = vor.u32 %v3024, %v3025
        %v3027 = vshll.u32 920167782, %v3012
        %v3028 = vshrl.u32 1326507024, %v3013
        %v3029 = vor.u32 %v3027, %v3028
        %vm3030 = vcmp.lt.s32.totalorder %v3011, 1
        %vm3031 = vcmp.lt.s32.totalorder %v3011, 2
        %vm3032 = vcmp.lt.s32.totalorder %v3011, 3
        %vm3033 = vcmp.lt.s32.totalorder %v3011, 4
        %v3034 = vsel %vm3030, %v3014, %v3017
        %v3035 = vsel %vm3033, %v3023, 2102212464
        %v3036 = vsel %vm3032, %v3020, %v3035
        %v3037 = vsel %vm3031, %v3034, %v3036
        %v3038 = vsel %vm3030, %v3017, %v3020
        %v3039 = vsel %vm3033, %v3026, 920167782
        %v3040 = vsel %vm3032, %v3023, %v3039
        %v3041 = vsel %vm3031, %v3038, %v3040
        %v3042 = vsel %vm3030, %v3020, %v3023
        %v3043 = vsel %vm3033, %v3029, 1326507024
        %v3044 = vsel %vm3032, %v3026, %v3043
        %v3045 = vsel %vm3031, %v3042, %v3044
        %v3046 = vshll.u32 %v3006, 8
        %v3047 = vmul.u32.u64.compose %v3046, %v3045
        %v3048 = vextract.low.u32 %v3047
        %v3049 = vextract.high.u32 %v3047
        %v3050 = vmul.u32.u64.compose %v3046, %v3041
        %v3051 = vextract.low.u32 %v3050
        %v3052 = vextract.high.u32 %v3050
        %v3053 = vmul.u32 %v3046, %v3037
        %v3054 = vadd.s32 %v3049, %v3051
        %vm3055 = vc.u32 %v3049, %v3051
        %v3056 = vadd.s32 %v3052, 1
        %v3057 = vsel %vm3055, %v3056, %v3052
        %v3058 = vadd.s32 %v3053, %v3057
        %v3059 = vadd.s32 %v3058, 536870912
        %v3060 = vshrl.u32 %v3059, 30
        %v3061 = vshll.u32 %v3060, 30
        %v3062 = vsub.s32 %v3058, %v3061
        %vm3063 = vcmp.lt.s32.totalorder %v3062, 0
        %v3064 = vsub.s32 0, %v3062
        %v3065 = vsel %vm3063, %v3064, %v3062
        %v3066 = vclz %v3065
        %v3067 = vsub.s32 %v3066, 2
        %vm3068 = vcmp.gt.s32.totalorder 0, %v3067
        %v3069 = vsel %vm3068, 0, %v3067
        %v3070 = vsub.s32 32, %v3069
        %v3071 = vshll.u32 %v3062, %v3069
        %v3072 = vshrl.u32 %v3054, %v3070
        %v3073 = vor.u32 %v3071, %v3072
        %v3074 = vsub.s32 4294967266, %v3069
        %v3075 = vadd.s32 %v3074, 127
        %v3076 = vshll.u32 %v3075, 23
        %v3077 = vor.u32 4788187, %v3076
        %v3078 = vand.u32 2147483647, %v3077
        %v3080 = vcvt.s32.f32 %v3073
        %v3081 = vmul.f32 %v3080, %v3078
        %v3082 = vxor.u32 %v3081, 2147483648
        %v3083 = vsel %vm3000, %v3082, %v3081
        %v3084 = vsub.s32 4, %v3060
        %v3085 = vsel %vm3000, %v3084, %v3060
        %v3086 = vsel %vm2999, %v2372, %v3083
        %v3087 = vsel %vm2999, 0, %v3085
        %v3088 = vcosq.f32.pop %v3086
        %v3089 = vsinq.f32.pop %v3086
        %vm3090 = vweird.f32 %v2372
        %v3091 = vadd.s32 %v3087, 3
        %v3092 = vand.u32 %v3091, 3
        %vm3093 = vcmp.lt.s32.totalorder %v3092, 2
        %vm3094 = vcmp.eq.s32.totalorder %v3092, 0
        %v3095 = vxor.u32 %v3089, 2147483648
        %v3096 = vsel %vm3094, %v3088, %v3095
        %vm3097 = vcmp.eq.s32.totalorder %v3092, 2
        %v3098 = vxor.u32 %v3088, 2147483648
        %v3099 = vsel %vm3097, %v3098, %v3089
        %v3100 = vsel %vm3093, %v3096, %v3099
        %v3101 = vsel %vm3090, nan, %v3100
        %v3102 = vand.u32 2147483647, %v2373
        %vm3103 = vcmp.le.f32.partialorder %v3102, 0.7853982
        %vm3104 = vcmp.lt.s32.totalorder %v2373, 0
        %v3105 = vand.u32 %v2373, 2139095040
        %v3106 = vshrl.u32 %v3105, 23
        %v3107 = vsub.s32 %v3106, 127
        %v3108 = vand.u32 2147483647, %v2373
        %v3109 = vand.u32 %v3108, 8388607
        %v3110 = vor.u32 %v3109, 8388608
        %v3111 = vsub.s32 0, %v3110
        %v3112 = vadd.s32 %v3107, 1
        %vm3113 = vcmp.gt.s32.totalorder %v3112, 0
        %v3114 = vsel %vm3113, %v3112, 0
        %v3115 = vshrl.u32 %v3114, 5
        %v3116 = vand.u32 %v3114, 31
        %v3117 = vsub.s32 32, %v3116
        %v3118 = vshrl.u32 683565275, %v3117
        %v3119 = vshll.u32 683565275, %v3116
        %v3120 = vshrl.u32 2475754826, %v3117
        %v3121 = vor.u32 %v3119, %v3120
        %v3122 = vshll.u32 2475754826, %v3116
        %v3123 = vshrl.u32 2131351028, %v3117
        %v3124 = vor.u32 %v3122, %v3123
        %v3125 = vshll.u32 2131351028, %v3116
        %v3126 = vshrl.u32 2102212464, %v3117
        %v3127 = vor.u32 %v3125, %v3126
        %v3128 = vshll.u32 2102212464, %v3116
        %v3129 = vshrl.u32 920167782, %v3117
        %v3130 = vor.u32 %v3128, %v3129
        %v3131 = vshll.u32 920167782, %v3116
        %v3132 = vshrl.u32 1326507024, %v3117
        %v3133 = vor.u32 %v3131, %v3132
        %vm3134 = vcmp.lt.s32.totalorder %v3115, 1
        %vm3135 = vcmp.lt.s32.totalorder %v3115, 2
        %vm3136 = vcmp.lt.s32.totalorder %v3115, 3
        %vm3137 = vcmp.lt.s32.totalorder %v3115, 4
        %v3138 = vsel %vm3134, %v3118, %v3121
        %v3139 = vsel %vm3137, %v3127, 2102212464
        %v3140 = vsel %vm3136, %v3124, %v3139
        %v3141 = vsel %vm3135, %v3138, %v3140
        %v3142 = vsel %vm3134, %v3121, %v3124
        %v3143 = vsel %vm3137, %v3130, 920167782
        %v3144 = vsel %vm3136, %v3127, %v3143
        %v3145 = vsel %vm3135, %v3142, %v3144
        %v3146 = vsel %vm3134, %v3124, %v3127
        %v3147 = vsel %vm3137, %v3133, 1326507024
        %v3148 = vsel %vm3136, %v3130, %v3147
        %v3149 = vsel %vm3135, %v3146, %v3148
        %v3150 = vshll.u32 %v3110, 8
        %v3151 = vmul.u32.u64.compose %v3150, %v3149
        %v3152 = vextract.low.u32 %v3151
        %v3153 = vextract.high.u32 %v3151
        %v3154 = vmul.u32.u64.compose %v3150, %v3145
        %v3155 = vextract.low.u32 %v3154
        %v3156 = vextract.high.u32 %v3154
        %v3157 = vmul.u32 %v3150, %v3141
        %v3158 = vadd.s32 %v3153, %v3155
        %vm3159 = vc.u32 %v3153, %v3155
        %v3160 = vadd.s32 %v3156, 1
        %v3161 = vsel %vm3159, %v3160, %v3156
        %v3162 = vadd.s32 %v3157, %v3161
        %v3163 = vadd.s32 %v3162, 536870912
        %v3164 = vshrl.u32 %v3163, 30
        %v3165 = vshll.u32 %v3164, 30
        %v3166 = vsub.s32 %v3162, %v3165
        %vm3167 = vcmp.lt.s32.totalorder %v3166, 0
        %v3168 = vsub.s32 0, %v3166
        %v3169 = vsel %vm3167, %v3168, %v3166
        %v3170 = vclz %v3169
        %v3171 = vsub.s32 %v3170, 2
        %vm3172 = vcmp.gt.s32.totalorder 0, %v3171
        %v3173 = vsel %vm3172, 0, %v3171
        %v3174 = vsub.s32 32, %v3173
        %v3175 = vshll.u32 %v3166, %v3173
        %v3176 = vshrl.u32 %v3158, %v3174
        %v3177 = vor.u32 %v3175, %v3176
        %v3178 = vsub.s32 4294967266, %v3173
        %v3179 = vadd.s32 %v3178, 127
        %v3180 = vshll.u32 %v3179, 23
        %v3181 = vor.u32 4788187, %v3180
        %v3182 = vand.u32 2147483647, %v3181
        %v3184 = vcvt.s32.f32 %v3177
        %v3185 = vmul.f32 %v3184, %v3182
        %v3186 = vxor.u32 %v3185, 2147483648
        %v3187 = vsel %vm3104, %v3186, %v3185
        %v3188 = vsub.s32 4, %v3164
        %v3189 = vsel %vm3104, %v3188, %v3164
        %v3190 = vsel %vm3103, %v2373, %v3187
        %v3191 = vsel %vm3103, 0, %v3189
        %v3192 = vcosq.f32.pop %v3190
        %v3193 = vsinq.f32.pop %v3190
        %vm3194 = vweird.f32 %v2373
        %v3195 = vadd.s32 %v3191, 3
        %v3196 = vand.u32 %v3195, 3
        %vm3197 = vcmp.lt.s32.totalorder %v3196, 2
        %vm3198 = vcmp.eq.s32.totalorder %v3196, 0
        %v3199 = vxor.u32 %v3193, 2147483648
        %v3200 = vsel %vm3198, %v3192, %v3199
        %vm3201 = vcmp.eq.s32.totalorder %v3196, 2
        %v3202 = vxor.u32 %v3192, 2147483648
        %v3203 = vsel %vm3201, %v3202, %v3193
        %v3204 = vsel %vm3197, %v3200, %v3203
        %v3205 = vsel %vm3194, nan, %v3204
        %v3206 = vld [vmem:[%s2] sm:$0xff]
        %v3207 = vld [vmem:[%s2 + $0x8] sm:$0xff]
        %v3208 = vld [vmem:[%s2 + $0x10] sm:$0xff]
        %v3209 = vld [vmem:[%s2 + $0x18] sm:$0xff]
        %v3211 = vsel %vm1261, %v3206, 0
        %v3214 = vsel %vm1261, %v3207, 0
        %v3217 = vsel %vm1261, %v3208, 0
        %v3220 = vsel %vm1261, %v3209, 0
        %3222 = vmatprep.subr.mxu0 %v2581
        %3223 = vmatpush1.msra.mxu0 %v2477
        %3224 = vmatprep.subr.mxu0 %v2789
        %3225 = vmatpush1.msra.mxu0 %v2685
        %3226 = vmatprep.subr.mxu0 %v2997
        %3227 = vmatpush1.msra.mxu0 %v2893
        %3228 = vmatprep.subr.mxu0 %v3205
        %3229 = vmatpush1.msra.mxu0 %v3101
        %3230 = vmatprep.subr.mxu0 0.0
        %3231 = vmatpush1.msra.mxu0 0.0
        %3232 = vmatprep.subr.mxu0 0.0
        %3233 = vmatpush1.msra.mxu0 0.0
        %3234 = vmatprep.subr.mxu0 0.0
        %3235 = vmatpush1.msra.mxu0 0.0
        %3236 = vmatprep.subr.mxu0 0.0
        %3237 = vmatpush1.msra.mxu0 0.0
        %3238 = vmatprep.subr.mxu0 0.0
        %3239 = vmatpush1.msra.mxu0 0.0
        %3240 = vmatprep.subr.mxu0 0.0
        %3241 = vmatpush1.msra.mxu0 0.0
        %3242 = vmatprep.subr.mxu0 0.0
        %3243 = vmatpush1.msra.mxu0 0.0
        %3244 = vmatprep.subr.mxu0 0.0
        %3245 = vmatpush1.msra.mxu0 0.0
        %3246 = vmatprep.subr.mxu0 0.0
        %3247 = vmatpush1.msra.mxu0 0.0
        %3248 = vmatprep.subr.mxu0 0.0
        %3249 = vmatpush1.msra.mxu0 0.0
        %3250 = vmatprep.subr.mxu0 0.0
        %3251 = vmatpush1.msra.mxu0 0.0
        %3252 = vmatprep.subr.mxu0 0.0
        %3253 = vmatpush1.msra.mxu0 0.0
        %3254 = vmatprep.subr.mxu0 0.0
        %3255 = vmatpush1.msra.mxu0 0.0
        %3256 = vmatprep.subr.mxu0 0.0
        %3257 = vmatpush1.msra.mxu0 0.0
        %3258 = vmatprep.subr.mxu0 0.0
        %3259 = vmatpush1.msra.mxu0 0.0
        %3260 = vmatprep.subr.mxu0 0.0
        %3261 = vmatpush1.msra.mxu0 0.0
        %3262 = vmatprep.subr.mxu0 0.0
        %3263 = vmatpush1.msra.mxu0 0.0
        %3264 = vmatprep.subr.mxu0 0.0
        %3265 = vmatpush1.msra.mxu0 0.0
        %3266 = vmatprep.subr.mxu0 0.0
        %3267 = vmatpush1.msra.mxu0 0.0
        %3268 = vmatprep.subr.mxu0 0.0
        %3269 = vmatpush1.msra.mxu0 0.0
        %3270 = vmatprep.subr.mxu0 0.0
        %3271 = vmatpush1.msra.mxu0 0.0
        %3272 = vmatprep.subr.mxu0 0.0
        %3273 = vmatpush1.msra.mxu0 0.0
        %3274 = vmatprep.subr.mxu0 0.0
        %3275 = vmatpush1.msra.mxu0 0.0
        %3276 = vmatprep.subr.mxu0 0.0
        %3277 = vmatpush1.msra.mxu0 0.0
        %3278 = vmatprep.subr.mxu0 0.0
        %3279 = vmatpush1.msra.mxu0 0.0
        %3280 = vmatprep.subr.mxu0 0.0
        %3281 = vmatpush1.msra.mxu0 0.0
        %3282 = vmatprep.subr.mxu0 0.0
        %3283 = vmatpush1.msra.mxu0 0.0
        %3284 = vmatprep.subr.mxu0 0.0
        %3285 = vmatpush1.msra.mxu0 0.0
        %3286 = vmatprep.mubr.f32.mxu0 0.0
        %3287 = vmatmul.mubr.f32.gmra.mrb[0].mxu0 %v3211
        %v3288 = vpop.f32.mrb[0].mxu0
        %v3289 = vadd.f32 0.0, %v3288
        %v3290 = vpop.f32.mrb[0].mxu0
        %v3291 = vadd.f32 0.0, %v3290
        %3292 = vmatprep.mubr.f32.mxu0 0.0
        %3293 = vmatmul.mubr.f32.gmra.mrb[0].mxu0 %v3214
        %v3294 = vpop.f32.mrb[0].mxu0
        %v3295 = vadd.f32 0.0, %v3294
        %v3296 = vpop.f32.mrb[0].mxu0
        %v3297 = vadd.f32 0.0, %v3296
        %3298 = vmatprep.mubr.f32.mxu0 0.0
        %3299 = vmatmul.mubr.f32.gmra.mrb[0].mxu0 %v3217
        %v3300 = vpop.f32.mrb[0].mxu0
        %v3301 = vadd.f32 0.0, %v3300
        %v3302 = vpop.f32.mrb[0].mxu0
        %v3303 = vadd.f32 0.0, %v3302
        %3304 = vmatprep.mubr.f32.mxu0 0.0
        %3305 = vmatmul.mubr.f32.gmra.mrb[0].mxu0 %v3220
        %v3306 = vpop.f32.mrb[0].mxu0
        %v3307 = vadd.f32 0.0, %v3306
        %v3308 = vpop.f32.mrb[0].mxu0
        %v3309 = vadd.f32 0.0, %v3308
        %3310 = vdwg.mxu0
        %v3311 = vadd.f32 %v2320, %v3289
        %v3312 = vadd.f32 %v2322, %v3291
        %v3313 = vadd.f32 %v2326, %v3295
        %v3314 = vadd.f32 %v2328, %v3297
        %v3315 = vadd.f32 %v2332, %v3301
        %v3316 = vadd.f32 %v2334, %v3303
        %v3317 = vadd.f32 %v2338, %v3307
        %v3318 = vadd.f32 %v2340, %v3309
        %v3319 = vld [vmem:[%s3] sm:$0xff]
        %v3320 = vld [vmem:[%s3 + $0x8] sm:$0xff]
        %v3321 = vld [vmem:[%s3 + $0x10] sm:$0xff]
        %v3322 = vld [vmem:[%s3 + $0x18] sm:$0xff]
        %3324 = vset.pattern.permute.xlu0 1
        %3325 = vperm.xlu0 %3324, %v3319
        %v3326 = vpop.permute.xlu0 %3325
        %3329 = vset.pattern.permute.xlu0 1
        %3330 = vperm.xlu0 %3329, %v3320
        %v3331 = vpop.permute.xlu0 %3330
        %3334 = vset.pattern.permute.xlu0 1
        %3335 = vperm.xlu0 %3334, %v3321
        %v3336 = vpop.permute.xlu0 %3335
        %3339 = vset.pattern.permute.xlu0 1
        %3340 = vperm.xlu0 %3339, %v3322
        %v3341 = vpop.permute.xlu0 %3340
        %v3343 = vadd.f32 %v3311, %v3326
        %v3344 = vadd.f32 %v3312, %v3326
        %v3345 = vadd.f32 %v3313, %v3331
        %v3346 = vadd.f32 %v3314, %v3331
        %v3347 = vadd.f32 %v3315, %v3336
        %v3348 = vadd.f32 %v3316, %v3336
        %v3349 = vadd.f32 %v3317, %v3341
        %v3350 = vadd.f32 %v3318, %v3341
        %v3351 = vmax.f32 %v3343, 0.0
        %v3352 = vmax.f32 %v3344, 0.0
        %v3353 = vmax.f32 %v3345, 0.0
        %v3354 = vmax.f32 %v3346, 0.0
        %v3355 = vmax.f32 %v3347, 0.0
        %v3356 = vmax.f32 %v3348, 0.0
        %v3357 = vmax.f32 %v3349, 0.0
        %v3358 = vmax.f32 %v3350, 0.0
        %v3359 = vld [vmem:[%s2 + $0x20] sm:$0xff]
        %v3360 = vld [vmem:[%s2 + $0x28] sm:$0xff]
        %v3361 = vld [vmem:[%s2 + $0x30] sm:$0xff]
        %v3362 = vld [vmem:[%s2 + $0x38] sm:$0xff]
        %3363 = vset.pattern.permute.xlu0 2
        %3364 = vperm.xlu0 %3363, %v3319
        %v3365 = vpop.permute.xlu0 %3364
        %3367 = vset.pattern.permute.xlu0 2
        %3368 = vperm.xlu0 %3367, %v3320
        %v3369 = vpop.permute.xlu0 %3368
        %3371 = vset.pattern.permute.xlu0 2
        %3372 = vperm.xlu0 %3371, %v3321
        %v3373 = vpop.permute.xlu0 %3372
        %3375 = vset.pattern.permute.xlu0 2
        %3376 = vperm.xlu0 %3375, %v3322
        %v3377 = vpop.permute.xlu0 %3376
        %v3380 = vsel %vm1261, %v3359, 0
        %v3383 = vsel %vm1261, %v3360, 0
        %v3386 = vsel %vm1261, %v3361, 0
        %v3389 = vsel %vm1261, %v3362, 0
        %3391 = vmatprep.subr.mxu0 %v3352
        %3392 = vmatpush1.msra.mxu0 %v3351
        %3393 = vmatprep.subr.mxu0 %v3354
        %3394 = vmatpush1.msra.mxu0 %v3353
        %3395 = vmatprep.subr.mxu0 %v3356
        %3396 = vmatpush1.msra.mxu0 %v3355
        %3397 = vmatprep.subr.mxu0 %v3358
        %3398 = vmatpush1.msra.mxu0 %v3357
        %3399 = vmatprep.subr.mxu0 0.0
        %3400 = vmatpush1.msra.mxu0 0.0
        %3401 = vmatprep.subr.mxu0 0.0
        %3402 = vmatpush1.msra.mxu0 0.0
        %3403 = vmatprep.subr.mxu0 0.0
        %3404 = vmatpush1.msra.mxu0 0.0
        %3405 = vmatprep.subr.mxu0 0.0
        %3406 = vmatpush1.msra.mxu0 0.0
        %3407 = vmatprep.subr.mxu0 0.0
        %3408 = vmatpush1.msra.mxu0 0.0
        %3409 = vmatprep.subr.mxu0 0.0
        %3410 = vmatpush1.msra.mxu0 0.0
        %3411 = vmatprep.subr.mxu0 0.0
        %3412 = vmatpush1.msra.mxu0 0.0
        %3413 = vmatprep.subr.mxu0 0.0
        %3414 = vmatpush1.msra.mxu0 0.0
        %3415 = vmatprep.subr.mxu0 0.0
        %3416 = vmatpush1.msra.mxu0 0.0
        %3417 = vmatprep.subr.mxu0 0.0
        %3418 = vmatpush1.msra.mxu0 0.0
        %3419 = vmatprep.subr.mxu0 0.0
        %3420 = vmatpush1.msra.mxu0 0.0
        %3421 = vmatprep.subr.mxu0 0.0
        %3422 = vmatpush1.msra.mxu0 0.0
        %3423 = vmatprep.subr.mxu0 0.0
        %3424 = vmatpush1.msra.mxu0 0.0
        %3425 = vmatprep.subr.mxu0 0.0
        %3426 = vmatpush1.msra.mxu0 0.0
        %3427 = vmatprep.subr.mxu0 0.0
        %3428 = vmatpush1.msra.mxu0 0.0
        %3429 = vmatprep.subr.mxu0 0.0
        %3430 = vmatpush1.msra.mxu0 0.0
        %3431 = vmatprep.subr.mxu0 0.0
        %3432 = vmatpush1.msra.mxu0 0.0
        %3433 = vmatprep.subr.mxu0 0.0
        %3434 = vmatpush1.msra.mxu0 0.0
        %3435 = vmatprep.subr.mxu0 0.0
        %3436 = vmatpush1.msra.mxu0 0.0
        %3437 = vmatprep.subr.mxu0 0.0
        %3438 = vmatpush1.msra.mxu0 0.0
        %3439 = vmatprep.subr.mxu0 0.0
        %3440 = vmatpush1.msra.mxu0 0.0
        %3441 = vmatprep.subr.mxu0 0.0
        %3442 = vmatpush1.msra.mxu0 0.0
        %3443 = vmatprep.subr.mxu0 0.0
        %3444 = vmatpush1.msra.mxu0 0.0
        %3445 = vmatprep.subr.mxu0 0.0
        %3446 = vmatpush1.msra.mxu0 0.0
        %3447 = vmatprep.subr.mxu0 0.0
        %3448 = vmatpush1.msra.mxu0 0.0
        %3449 = vmatprep.subr.mxu0 0.0
        %3450 = vmatpush1.msra.mxu0 0.0
        %3451 = vmatprep.subr.mxu0 0.0
        %3452 = vmatpush1.msra.mxu0 0.0
        %3453 = vmatprep.subr.mxu0 0.0
        %3454 = vmatpush1.msra.mxu0 0.0
        %3455 = vmatprep.mubr.f32.mxu0 0.0
        %3456 = vmatmul.mubr.f32.gmra.mrb[0].mxu0 %v3380
        %v3457 = vpop.f32.mrb[0].mxu0
        %v3458 = vadd.f32 %v3365, %v3457
        %v3459 = vpop.f32.mrb[0].mxu0
        %v3460 = vadd.f32 %v3365, %v3459
        %3461 = vmatprep.mubr.f32.mxu0 0.0
        %3462 = vmatmul.mubr.f32.gmra.mrb[0].mxu0 %v3383
        %v3463 = vpop.f32.mrb[0].mxu0
        %v3464 = vadd.f32 %v3369, %v3463
        %v3465 = vpop.f32.mrb[0].mxu0
        %v3466 = vadd.f32 %v3369, %v3465
        %3467 = vmatprep.mubr.f32.mxu0 0.0
        %3468 = vmatmul.mubr.f32.gmra.mrb[0].mxu0 %v3386
        %v3469 = vpop.f32.mrb[0].mxu0
        %v3470 = vadd.f32 %v3373, %v3469
        %v3471 = vpop.f32.mrb[0].mxu0
        %v3472 = vadd.f32 %v3373, %v3471
        %3473 = vmatprep.mubr.f32.mxu0 0.0
        %3474 = vmatmul.mubr.f32.gmra.mrb[0].mxu0 %v3389
        %v3475 = vpop.f32.mrb[0].mxu0
        %v3476 = vadd.f32 %v3377, %v3475
        %v3477 = vpop.f32.mrb[0].mxu0
        %v3478 = vadd.f32 %v3377, %v3477
        %3479 = vdwg.mxu0
        %v3480 = vmax.f32 %v3458, 0.0
        %v3481 = vmax.f32 %v3460, 0.0
        %v3482 = vmax.f32 %v3464, 0.0
        %v3483 = vmax.f32 %v3466, 0.0
        %v3484 = vmax.f32 %v3470, 0.0
        %v3485 = vmax.f32 %v3472, 0.0
        %v3486 = vmax.f32 %v3476, 0.0
        %v3487 = vmax.f32 %v3478, 0.0
        %v3488 = vld [vmem:[%s2 + $0x40] sm:$0xff]
        %v3489 = vld [vmem:[%s2 + $0x48] sm:$0xff]
        %v3490 = vld [vmem:[%s2 + $0x50] sm:$0xff]
        %v3491 = vld [vmem:[%s2 + $0x58] sm:$0xff]
        %3492 = vset.pattern.permute.xlu0 3
        %3493 = vperm.xlu0 %3492, %v3319
        %v3494 = vpop.permute.xlu0 %3493
        %3496 = vset.pattern.permute.xlu0 3
        %3497 = vperm.xlu0 %3496, %v3320
        %v3498 = vpop.permute.xlu0 %3497
        %3500 = vset.pattern.permute.xlu0 3
        %3501 = vperm.xlu0 %3500, %v3321
        %v3502 = vpop.permute.xlu0 %3501
        %3504 = vset.pattern.permute.xlu0 3
        %3505 = vperm.xlu0 %3504, %v3322
        %v3506 = vpop.permute.xlu0 %3505
        %v3509 = vsel %vm1261, %v3488, 0
        %v3512 = vsel %vm1261, %v3489, 0
        %v3515 = vsel %vm1261, %v3490, 0
        %v3518 = vsel %vm1261, %v3491, 0
        %3520 = vmatprep.subr.mxu0 %v3481
        %3521 = vmatpush1.msra.mxu0 %v3480
        %3522 = vmatprep.subr.mxu0 %v3483
        %3523 = vmatpush1.msra.mxu0 %v3482
        %3524 = vmatprep.subr.mxu0 %v3485
        %3525 = vmatpush1.msra.mxu0 %v3484
        %3526 = vmatprep.subr.mxu0 %v3487
        %3527 = vmatpush1.msra.mxu0 %v3486
        %3528 = vmatprep.subr.mxu0 0.0
        %3529 = vmatpush1.msra.mxu0 0.0
        %3530 = vmatprep.subr.mxu0 0.0
        %3531 = vmatpush1.msra.mxu0 0.0
        %3532 = vmatprep.subr.mxu0 0.0
        %3533 = vmatpush1.msra.mxu0 0.0
        %3534 = vmatprep.subr.mxu0 0.0
        %3535 = vmatpush1.msra.mxu0 0.0
        %3536 = vmatprep.subr.mxu0 0.0
        %3537 = vmatpush1.msra.mxu0 0.0
        %3538 = vmatprep.subr.mxu0 0.0
        %3539 = vmatpush1.msra.mxu0 0.0
        %3540 = vmatprep.subr.mxu0 0.0
        %3541 = vmatpush1.msra.mxu0 0.0
        %3542 = vmatprep.subr.mxu0 0.0
        %3543 = vmatpush1.msra.mxu0 0.0
        %3544 = vmatprep.subr.mxu0 0.0
        %3545 = vmatpush1.msra.mxu0 0.0
        %3546 = vmatprep.subr.mxu0 0.0
        %3547 = vmatpush1.msra.mxu0 0.0
        %3548 = vmatprep.subr.mxu0 0.0
        %3549 = vmatpush1.msra.mxu0 0.0
        %3550 = vmatprep.subr.mxu0 0.0
        %3551 = vmatpush1.msra.mxu0 0.0
        %3552 = vmatprep.subr.mxu0 0.0
        %3553 = vmatpush1.msra.mxu0 0.0
        %3554 = vmatprep.subr.mxu0 0.0
        %3555 = vmatpush1.msra.mxu0 0.0
        %3556 = vmatprep.subr.mxu0 0.0
        %3557 = vmatpush1.msra.mxu0 0.0
        %3558 = vmatprep.subr.mxu0 0.0
        %3559 = vmatpush1.msra.mxu0 0.0
        %3560 = vmatprep.subr.mxu0 0.0
        %3561 = vmatpush1.msra.mxu0 0.0
        %3562 = vmatprep.subr.mxu0 0.0
        %3563 = vmatpush1.msra.mxu0 0.0
        %3564 = vmatprep.subr.mxu0 0.0
        %3565 = vmatpush1.msra.mxu0 0.0
        %3566 = vmatprep.subr.mxu0 0.0
        %3567 = vmatpush1.msra.mxu0 0.0
        %3568 = vmatprep.subr.mxu0 0.0
        %3569 = vmatpush1.msra.mxu0 0.0
        %3570 = vmatprep.subr.mxu0 0.0
        %3571 = vmatpush1.msra.mxu0 0.0
        %3572 = vmatprep.subr.mxu0 0.0
        %3573 = vmatpush1.msra.mxu0 0.0
        %3574 = vmatprep.subr.mxu0 0.0
        %3575 = vmatpush1.msra.mxu0 0.0
        %3576 = vmatprep.subr.mxu0 0.0
        %3577 = vmatpush1.msra.mxu0 0.0
        %3578 = vmatprep.subr.mxu0 0.0
        %3579 = vmatpush1.msra.mxu0 0.0
        %3580 = vmatprep.subr.mxu0 0.0
        %3581 = vmatpush1.msra.mxu0 0.0
        %3582 = vmatprep.subr.mxu0 0.0
        %3583 = vmatpush1.msra.mxu0 0.0
        %3584 = vmatprep.mubr.f32.mxu0 0.0
        %3585 = vmatmul.mubr.f32.gmra.mrb[0].mxu0 %v3509
        %v3586 = vpop.f32.mrb[0].mxu0
        %v3587 = vadd.f32 %v3494, %v3586
        %v3588 = vpop.f32.mrb[0].mxu0
        %v3589 = vadd.f32 %v3494, %v3588
        %3590 = vmatprep.mubr.f32.mxu0 0.0
        %3591 = vmatmul.mubr.f32.gmra.mrb[0].mxu0 %v3512
        %v3592 = vpop.f32.mrb[0].mxu0
        %v3593 = vadd.f32 %v3498, %v3592
        %v3594 = vpop.f32.mrb[0].mxu0
        %v3595 = vadd.f32 %v3498, %v3594
        %3596 = vmatprep.mubr.f32.mxu0 0.0
        %3597 = vmatmul.mubr.f32.gmra.mrb[0].mxu0 %v3515
        %v3598 = vpop.f32.mrb[0].mxu0
        %v3599 = vadd.f32 %v3502, %v3598
        %v3600 = vpop.f32.mrb[0].mxu0
        %v3601 = vadd.f32 %v3502, %v3600
        %3602 = vmatprep.mubr.f32.mxu0 0.0
        %3603 = vmatmul.mubr.f32.gmra.mrb[0].mxu0 %v3518
        %v3604 = vpop.f32.mrb[0].mxu0
        %v3605 = vadd.f32 %v3506, %v3604
        %v3606 = vpop.f32.mrb[0].mxu0
        %v3607 = vadd.f32 %v3506, %v3606
        %3608 = vdwg.mxu0
        %v3609 = vmax.f32 %v3587, 0.0
        %v3610 = vmax.f32 %v3589, 0.0
        %v3611 = vmax.f32 %v3593, 0.0
        %v3612 = vmax.f32 %v3595, 0.0
        %v3613 = vmax.f32 %v3599, 0.0
        %v3614 = vmax.f32 %v3601, 0.0
        %v3615 = vmax.f32 %v3605, 0.0
        %v3616 = vmax.f32 %v3607, 0.0
        %v3617 = vld [vmem:[%s2 + $0x60] sm:$0xff]
        %v3618 = vld [vmem:[%s2 + $0x68] sm:$0xff]
        %v3619 = vld [vmem:[%s2 + $0x70] sm:$0xff]
        %v3620 = vld [vmem:[%s2 + $0x78] sm:$0xff]
        %v3622 = vsel %vm1261, %v3617, 0
        %v3625 = vsel %vm1261, %v3618, 0
        %v3628 = vsel %vm1261, %v3619, 0
        %v3631 = vsel %vm1261, %v3620, 0
        %3633 = vmatprep.subr.mxu0 %v2581
        %3634 = vmatpush1.msra.mxu0 %v2477
        %3635 = vmatprep.subr.mxu0 %v2789
        %3636 = vmatpush1.msra.mxu0 %v2685
        %3637 = vmatprep.subr.mxu0 %v2997
        %3638 = vmatpush1.msra.mxu0 %v2893
        %3639 = vmatprep.subr.mxu0 %v3205
        %3640 = vmatpush1.msra.mxu0 %v3101
        %3641 = vmatprep.subr.mxu0 0.0
        %3642 = vmatpush1.msra.mxu0 0.0
        %3643 = vmatprep.subr.mxu0 0.0
        %3644 = vmatpush1.msra.mxu0 0.0
        %3645 = vmatprep.subr.mxu0 0.0
        %3646 = vmatpush1.msra.mxu0 0.0
        %3647 = vmatprep.subr.mxu0 0.0
        %3648 = vmatpush1.msra.mxu0 0.0
        %3649 = vmatprep.subr.mxu0 0.0
        %3650 = vmatpush1.msra.mxu0 0.0
        %3651 = vmatprep.subr.mxu0 0.0
        %3652 = vmatpush1.msra.mxu0 0.0
        %3653 = vmatprep.subr.mxu0 0.0
        %3654 = vmatpush1.msra.mxu0 0.0
        %3655 = vmatprep.subr.mxu0 0.0
        %3656 = vmatpush1.msra.mxu0 0.0
        %3657 = vmatprep.subr.mxu0 0.0
        %3658 = vmatpush1.msra.mxu0 0.0
        %3659 = vmatprep.subr.mxu0 0.0
        %3660 = vmatpush1.msra.mxu0 0.0
        %3661 = vmatprep.subr.mxu0 0.0
        %3662 = vmatpush1.msra.mxu0 0.0
        %3663 = vmatprep.subr.mxu0 0.0
        %3664 = vmatpush1.msra.mxu0 0.0
        %3665 = vmatprep.subr.mxu0 0.0
        %3666 = vmatpush1.msra.mxu0 0.0
        %3667 = vmatprep.subr.mxu0 0.0
        %3668 = vmatpush1.msra.mxu0 0.0
        %3669 = vmatprep.subr.mxu0 0.0
        %3670 = vmatpush1.msra.mxu0 0.0
        %3671 = vmatprep.subr.mxu0 0.0
        %3672 = vmatpush1.msra.mxu0 0.0
        %3673 = vmatprep.subr.mxu0 0.0
        %3674 = vmatpush1.msra.mxu0 0.0
        %3675 = vmatprep.subr.mxu0 0.0
        %3676 = vmatpush1.msra.mxu0 0.0
        %3677 = vmatprep.subr.mxu0 0.0
        %3678 = vmatpush1.msra.mxu0 0.0
        %3679 = vmatprep.subr.mxu0 0.0
        %3680 = vmatpush1.msra.mxu0 0.0
        %3681 = vmatprep.subr.mxu0 0.0
        %3682 = vmatpush1.msra.mxu0 0.0
        %3683 = vmatprep.subr.mxu0 0.0
        %3684 = vmatpush1.msra.mxu0 0.0
        %3685 = vmatprep.subr.mxu0 0.0
        %3686 = vmatpush1.msra.mxu0 0.0
        %3687 = vmatprep.subr.mxu0 0.0
        %3688 = vmatpush1.msra.mxu0 0.0
        %3689 = vmatprep.subr.mxu0 0.0
        %3690 = vmatpush1.msra.mxu0 0.0
        %3691 = vmatprep.subr.mxu0 0.0
        %3692 = vmatpush1.msra.mxu0 0.0
        %3693 = vmatprep.subr.mxu0 0.0
        %3694 = vmatpush1.msra.mxu0 0.0
        %3695 = vmatprep.subr.mxu0 0.0
        %3696 = vmatpush1.msra.mxu0 0.0
        %3697 = vmatprep.mubr.f32.mxu0 0.0
        %3698 = vmatmul.mubr.f32.gmra.mrb[0].mxu0 %v3622
        %v3699 = vpop.f32.mrb[0].mxu0
        %v3700 = vadd.f32 0.0, %v3699
        %v3701 = vpop.f32.mrb[0].mxu0
        %v3702 = vadd.f32 0.0, %v3701
        %3703 = vmatprep.mubr.f32.mxu0 0.0
        %3704 = vmatmul.mubr.f32.gmra.mrb[0].mxu0 %v3625
        %v3705 = vpop.f32.mrb[0].mxu0
        %v3706 = vadd.f32 0.0, %v3705
        %v3707 = vpop.f32.mrb[0].mxu0
        %v3708 = vadd.f32 0.0, %v3707
        %3709 = vmatprep.mubr.f32.mxu0 0.0
        %3710 = vmatmul.mubr.f32.gmra.mrb[0].mxu0 %v3628
        %v3711 = vpop.f32.mrb[0].mxu0
        %v3712 = vadd.f32 0.0, %v3711
        %v3713 = vpop.f32.mrb[0].mxu0
        %v3714 = vadd.f32 0.0, %v3713
        %3715 = vmatprep.mubr.f32.mxu0 0.0
        %3716 = vmatmul.mubr.f32.gmra.mrb[0].mxu0 %v3631
        %v3717 = vpop.f32.mrb[0].mxu0
        %v3718 = vadd.f32 0.0, %v3717
        %v3719 = vpop.f32.mrb[0].mxu0
        %v3720 = vadd.f32 0.0, %v3719
        %3721 = vdwg.mxu0
        %v3722 = vadd.f32 %v2344, %v3700
        %v3723 = vadd.f32 %v2346, %v3702
        %v3724 = vadd.f32 %v2350, %v3706
        %v3725 = vadd.f32 %v2352, %v3708
        %v3726 = vadd.f32 %v2356, %v3712
        %v3727 = vadd.f32 %v2358, %v3714
        %v3728 = vadd.f32 %v2362, %v3718
        %v3729 = vadd.f32 %v2364, %v3720
        %v3730 = vld [vmem:[%s2 + $0x80] sm:$0xff]
        %v3731 = vld [vmem:[%s2 + $0x88] sm:$0xff]
        %v3732 = vld [vmem:[%s2 + $0x90] sm:$0xff]
        %v3733 = vld [vmem:[%s2 + $0x98] sm:$0xff]
        %v3735 = vsel %vm1261, %v3730, 0
        %v3738 = vsel %vm1261, %v3731, 0
        %v3741 = vsel %vm1261, %v3732, 0
        %v3744 = vsel %vm1261, %v3733, 0
        %3746 = vmatprep.subr.mxu0 %v3610
        %3747 = vmatpush1.msra.mxu0 %v3609
        %3748 = vmatprep.subr.mxu0 %v3612
        %3749 = vmatpush1.msra.mxu0 %v3611
        %3750 = vmatprep.subr.mxu0 %v3614
        %3751 = vmatpush1.msra.mxu0 %v3613
        %3752 = vmatprep.subr.mxu0 %v3616
        %3753 = vmatpush1.msra.mxu0 %v3615
        %3754 = vmatprep.subr.mxu0 0.0
        %3755 = vmatpush1.msra.mxu0 0.0
        %3756 = vmatprep.subr.mxu0 0.0
        %3757 = vmatpush1.msra.mxu0 0.0
        %3758 = vmatprep.subr.mxu0 0.0
        %3759 = vmatpush1.msra.mxu0 0.0
        %3760 = vmatprep.subr.mxu0 0.0
        %3761 = vmatpush1.msra.mxu0 0.0
        %3762 = vmatprep.subr.mxu0 0.0
        %3763 = vmatpush1.msra.mxu0 0.0
        %3764 = vmatprep.subr.mxu0 0.0
        %3765 = vmatpush1.msra.mxu0 0.0
        %3766 = vmatprep.subr.mxu0 0.0
        %3767 = vmatpush1.msra.mxu0 0.0
        %3768 = vmatprep.subr.mxu0 0.0
        %3769 = vmatpush1.msra.mxu0 0.0
        %3770 = vmatprep.subr.mxu0 0.0
        %3771 = vmatpush1.msra.mxu0 0.0
        %3772 = vmatprep.subr.mxu0 0.0
        %3773 = vmatpush1.msra.mxu0 0.0
        %3774 = vmatprep.subr.mxu0 0.0
        %3775 = vmatpush1.msra.mxu0 0.0
        %3776 = vmatprep.subr.mxu0 0.0
        %3777 = vmatpush1.msra.mxu0 0.0
        %3778 = vmatprep.subr.mxu0 0.0
        %3779 = vmatpush1.msra.mxu0 0.0
        %3780 = vmatprep.subr.mxu0 0.0
        %3781 = vmatpush1.msra.mxu0 0.0
        %3782 = vmatprep.subr.mxu0 0.0
        %3783 = vmatpush1.msra.mxu0 0.0
        %3784 = vmatprep.subr.mxu0 0.0
        %3785 = vmatpush1.msra.mxu0 0.0
        %3786 = vmatprep.subr.mxu0 0.0
        %3787 = vmatpush1.msra.mxu0 0.0
        %3788 = vmatprep.subr.mxu0 0.0
        %3789 = vmatpush1.msra.mxu0 0.0
        %3790 = vmatprep.subr.mxu0 0.0
        %3791 = vmatpush1.msra.mxu0 0.0
        %3792 = vmatprep.subr.mxu0 0.0
        %3793 = vmatpush1.msra.mxu0 0.0
        %3794 = vmatprep.subr.mxu0 0.0
        %3795 = vmatpush1.msra.mxu0 0.0
        %3796 = vmatprep.subr.mxu0 0.0
        %3797 = vmatpush1.msra.mxu0 0.0
        %3798 = vmatprep.subr.mxu0 0.0
        %3799 = vmatpush1.msra.mxu0 0.0
        %3800 = vmatprep.subr.mxu0 0.0
        %3801 = vmatpush1.msra.mxu0 0.0
        %3802 = vmatprep.subr.mxu0 0.0
        %3803 = vmatpush1.msra.mxu0 0.0
        %3804 = vmatprep.subr.mxu0 0.0
        %3805 = vmatpush1.msra.mxu0 0.0
        %3806 = vmatprep.subr.mxu0 0.0
        %3807 = vmatpush1.msra.mxu0 0.0
        %3808 = vmatprep.subr.mxu0 0.0
        %3809 = vmatpush1.msra.mxu0 0.0
        %3810 = vmatprep.mubr.f32.mxu0 0.0
        %3811 = vmatmul.mubr.f32.gmra.mrb[0].mxu0 %v3735
        %v3812 = vpop.f32.mrb[0].mxu0
        %v3813 = vadd.f32 0.0, %v3812
        %v3814 = vpop.f32.mrb[0].mxu0
        %v3815 = vadd.f32 0.0, %v3814
        %3816 = vmatprep.mubr.f32.mxu0 0.0
        %3817 = vmatmul.mubr.f32.gmra.mrb[0].mxu0 %v3738
        %v3818 = vpop.f32.mrb[0].mxu0
        %v3819 = vadd.f32 0.0, %v3818
        %v3820 = vpop.f32.mrb[0].mxu0
        %v3821 = vadd.f32 0.0, %v3820
        %3822 = vmatprep.mubr.f32.mxu0 0.0
        %3823 = vmatmul.mubr.f32.gmra.mrb[0].mxu0 %v3741
        %v3824 = vpop.f32.mrb[0].mxu0
        %v3825 = vadd.f32 0.0, %v3824
        %v3826 = vpop.f32.mrb[0].mxu0
        %v3827 = vadd.f32 0.0, %v3826
        %3828 = vmatprep.mubr.f32.mxu0 0.0
        %3829 = vmatmul.mubr.f32.gmra.mrb[0].mxu0 %v3744
        %v3830 = vpop.f32.mrb[0].mxu0
        %v3831 = vadd.f32 0.0, %v3830
        %v3832 = vpop.f32.mrb[0].mxu0
        %v3833 = vadd.f32 0.0, %v3832
        %3834 = vdwg.mxu0
        %v3835 = vadd.f32 %v3722, %v3813
        %v3836 = vadd.f32 %v3723, %v3815
        %v3837 = vadd.f32 %v3724, %v3819
        %v3838 = vadd.f32 %v3725, %v3821
        %v3839 = vadd.f32 %v3726, %v3825
        %v3840 = vadd.f32 %v3727, %v3827
        %v3841 = vadd.f32 %v3728, %v3831
        %v3842 = vadd.f32 %v3729, %v3833
        %3843 = vset.pattern.permute.xlu0 4
        %3844 = vperm.xlu0 %3843, %v3319
        %v3845 = vpop.permute.xlu0 %3844
        %3847 = vset.pattern.permute.xlu0 4
        %3848 = vperm.xlu0 %3847, %v3320
        %v3849 = vpop.permute.xlu0 %3848
        %3851 = vset.pattern.permute.xlu0 4
        %3852 = vperm.xlu0 %3851, %v3321
        %v3853 = vpop.permute.xlu0 %3852
        %3855 = vset.pattern.permute.xlu0 4
        %3856 = vperm.xlu0 %3855, %v3322
        %v3857 = vpop.permute.xlu0 %3856
        %v3859 = vadd.f32 %v3835, %v3845
        %v3860 = vadd.f32 %v3836, %v3845
        %v3861 = vadd.f32 %v3837, %v3849
        %v3862 = vadd.f32 %v3838, %v3849
        %v3863 = vadd.f32 %v3839, %v3853
        %v3864 = vadd.f32 %v3840, %v3853
        %v3865 = vadd.f32 %v3841, %v3857
        %v3866 = vadd.f32 %v3842, %v3857
        %v3867 = vmax.f32 %v3859, 0.0
        %v3868 = vmax.f32 %v3860, 0.0
        %v3869 = vmax.f32 %v3861, 0.0
        %v3870 = vmax.f32 %v3862, 0.0
        %v3871 = vmax.f32 %v3863, 0.0
        %v3872 = vmax.f32 %v3864, 0.0
        %v3873 = vmax.f32 %v3865, 0.0
        %v3874 = vmax.f32 %v3866, 0.0
        %v3875 = vld [vmem:[%s2 + $0xa0] sm:$0xff]
        %v3876 = vld [vmem:[%s2 + $0xa8] sm:$0xff]
        %v3877 = vld [vmem:[%s2 + $0xb0] sm:$0xff]
        %v3878 = vld [vmem:[%s2 + $0xb8] sm:$0xff]
        %3879 = vset.pattern.permute.xlu0 5
        %3880 = vperm.xlu0 %3879, %v3319
        %v3881 = vpop.permute.xlu0 %3880
        %3883 = vset.pattern.permute.xlu0 5
        %3884 = vperm.xlu0 %3883, %v3320
        %v3885 = vpop.permute.xlu0 %3884
        %3887 = vset.pattern.permute.xlu0 5
        %3888 = vperm.xlu0 %3887, %v3321
        %v3889 = vpop.permute.xlu0 %3888
        %3891 = vset.pattern.permute.xlu0 5
        %3892 = vperm.xlu0 %3891, %v3322
        %v3893 = vpop.permute.xlu0 %3892
        %v3896 = vsel %vm1261, %v3875, 0
        %v3899 = vsel %vm1261, %v3876, 0
        %v3902 = vsel %vm1261, %v3877, 0
        %v3905 = vsel %vm1261, %v3878, 0
        %3907 = vmatprep.subr.mxu0 %v3868
        %3908 = vmatpush1.msra.mxu0 %v3867
        %3909 = vmatprep.subr.mxu0 %v3870
        %3910 = vmatpush1.msra.mxu0 %v3869
        %3911 = vmatprep.subr.mxu0 %v3872
        %3912 = vmatpush1.msra.mxu0 %v3871
        %3913 = vmatprep.subr.mxu0 %v3874
        %3914 = vmatpush1.msra.mxu0 %v3873
        %3915 = vmatprep.subr.mxu0 0.0
        %3916 = vmatpush1.msra.mxu0 0.0
        %3917 = vmatprep.subr.mxu0 0.0
        %3918 = vmatpush1.msra.mxu0 0.0
        %3919 = vmatprep.subr.mxu0 0.0
        %3920 = vmatpush1.msra.mxu0 0.0
        %3921 = vmatprep.subr.mxu0 0.0
        %3922 = vmatpush1.msra.mxu0 0.0
        %3923 = vmatprep.subr.mxu0 0.0
        %3924 = vmatpush1.msra.mxu0 0.0
        %3925 = vmatprep.subr.mxu0 0.0
        %3926 = vmatpush1.msra.mxu0 0.0
        %3927 = vmatprep.subr.mxu0 0.0
        %3928 = vmatpush1.msra.mxu0 0.0
        %3929 = vmatprep.subr.mxu0 0.0
        %3930 = vmatpush1.msra.mxu0 0.0
        %3931 = vmatprep.subr.mxu0 0.0
        %3932 = vmatpush1.msra.mxu0 0.0
        %3933 = vmatprep.subr.mxu0 0.0
        %3934 = vmatpush1.msra.mxu0 0.0
        %3935 = vmatprep.subr.mxu0 0.0
        %3936 = vmatpush1.msra.mxu0 0.0
        %3937 = vmatprep.subr.mxu0 0.0
        %3938 = vmatpush1.msra.mxu0 0.0
        %3939 = vmatprep.subr.mxu0 0.0
        %3940 = vmatpush1.msra.mxu0 0.0
        %3941 = vmatprep.subr.mxu0 0.0
        %3942 = vmatpush1.msra.mxu0 0.0
        %3943 = vmatprep.subr.mxu0 0.0
        %3944 = vmatpush1.msra.mxu0 0.0
        %3945 = vmatprep.subr.mxu0 0.0
        %3946 = vmatpush1.msra.mxu0 0.0
        %3947 = vmatprep.subr.mxu0 0.0
        %3948 = vmatpush1.msra.mxu0 0.0
        %3949 = vmatprep.subr.mxu0 0.0
        %3950 = vmatpush1.msra.mxu0 0.0
        %3951 = vmatprep.subr.mxu0 0.0
        %3952 = vmatpush1.msra.mxu0 0.0
        %3953 = vmatprep.subr.mxu0 0.0
        %3954 = vmatpush1.msra.mxu0 0.0
        %3955 = vmatprep.subr.mxu0 0.0
        %3956 = vmatpush1.msra.mxu0 0.0
        %3957 = vmatprep.subr.mxu0 0.0
        %3958 = vmatpush1.msra.mxu0 0.0
        %3959 = vmatprep.subr.mxu0 0.0
        %3960 = vmatpush1.msra.mxu0 0.0
        %3961 = vmatprep.subr.mxu0 0.0
        %3962 = vmatpush1.msra.mxu0 0.0
        %3963 = vmatprep.subr.mxu0 0.0
        %3964 = vmatpush1.msra.mxu0 0.0
        %3965 = vmatprep.subr.mxu0 0.0
        %3966 = vmatpush1.msra.mxu0 0.0
        %3967 = vmatprep.subr.mxu0 0.0
        %3968 = vmatpush1.msra.mxu0 0.0
        %3969 = vmatprep.subr.mxu0 0.0
        %3970 = vmatpush1.msra.mxu0 0.0
        %3971 = vmatprep.mubr.f32.mxu0 0.0
        %3972 = vmatmul.mubr.f32.gmra.mrb[0].mxu0 %v3896
        %v3973 = vpop.f32.mrb[0].mxu0
        %v3974 = vadd.f32 %v3881, %v3973
        %v3975 = vpop.f32.mrb[0].mxu0
        %v3976 = vadd.f32 %v3881, %v3975
        %3977 = vmatprep.mubr.f32.mxu0 0.0
        %3978 = vmatmul.mubr.f32.gmra.mrb[0].mxu0 %v3899
        %v3979 = vpop.f32.mrb[0].mxu0
        %v3980 = vadd.f32 %v3885, %v3979
        %v3981 = vpop.f32.mrb[0].mxu0
        %v3982 = vadd.f32 %v3885, %v3981
        %3983 = vmatprep.mubr.f32.mxu0 0.0
        %3984 = vmatmul.mubr.f32.gmra.mrb[0].mxu0 %v3902
        %v3985 = vpop.f32.mrb[0].mxu0
        %v3986 = vadd.f32 %v3889, %v3985
        %v3987 = vpop.f32.mrb[0].mxu0
        %v3988 = vadd.f32 %v3889, %v3987
        %3989 = vmatprep.mubr.f32.mxu0 0.0
        %3990 = vmatmul.mubr.f32.gmra.mrb[0].mxu0 %v3905
        %v3991 = vpop.f32.mrb[0].mxu0
        %v3992 = vadd.f32 %v3893, %v3991
        %v3993 = vpop.f32.mrb[0].mxu0
        %v3994 = vadd.f32 %v3893, %v3993
        %3995 = vdwg.mxu0
        %v3996 = vmax.f32 %v3974, 0.0
        %v3997 = vmax.f32 %v3976, 0.0
        %v3998 = vmax.f32 %v3980, 0.0
        %v3999 = vmax.f32 %v3982, 0.0
        %v4000 = vmax.f32 %v3986, 0.0
        %v4001 = vmax.f32 %v3988, 0.0
        %v4002 = vmax.f32 %v3992, 0.0
        %v4003 = vmax.f32 %v3994, 0.0
        %v4004 = vld [vmem:[%s2 + $0xc0] sm:$0xff]
        %v4005 = vld [vmem:[%s2 + $0xc8] sm:$0xff]
        %v4006 = vld [vmem:[%s2 + $0xd0] sm:$0xff]
        %v4007 = vld [vmem:[%s2 + $0xd8] sm:$0xff]
        %4008 = vset.pattern.permute.xlu0 6
        %4009 = vperm.xlu0 %4008, %v3319
        %v4010 = vpop.permute.xlu0 %4009
        %4012 = vset.pattern.permute.xlu0 6
        %4013 = vperm.xlu0 %4012, %v3320
        %v4014 = vpop.permute.xlu0 %4013
        %4015 = vset.pattern.permute.xlu0 6
        %4016 = vperm.xlu0 %4015, %v3321
        %v4017 = vpop.permute.xlu0 %4016
        %4018 = vset.pattern.permute.xlu0 6
        %4019 = vperm.xlu0 %4018, %v3322
        %v4020 = vpop.permute.xlu0 %4019
        %v4022 = vsel %vm1261, %v4004, 0
        %v4025 = vsel %vm1261, %v4005, 0
        %v4028 = vsel %vm1261, %v4006, 0
        %v4031 = vsel %vm1261, %v4007, 0
        %4033 = vmatprep.subr.mxu0 %v3997
        %4034 = vmatpush1.msra.mxu0 %v3996
        %4035 = vmatprep.subr.mxu0 %v3999
        %4036 = vmatpush1.msra.mxu0 %v3998
        %4037 = vmatprep.subr.mxu0 %v4001
        %4038 = vmatpush1.msra.mxu0 %v4000
        %4039 = vmatprep.subr.mxu0 %v4003
        %4040 = vmatpush1.msra.mxu0 %v4002
        %4041 = vmatprep.subr.mxu0 0.0
        %4042 = vmatpush1.msra.mxu0 0.0
        %4043 = vmatprep.subr.mxu0 0.0
        %4044 = vmatpush1.msra.mxu0 0.0
        %4045 = vmatprep.subr.mxu0 0.0
        %4046 = vmatpush1.msra.mxu0 0.0
        %4047 = vmatprep.subr.mxu0 0.0
        %4048 = vmatpush1.msra.mxu0 0.0
        %4049 = vmatprep.subr.mxu0 0.0
        %4050 = vmatpush1.msra.mxu0 0.0
        %4051 = vmatprep.subr.mxu0 0.0
        %4052 = vmatpush1.msra.mxu0 0.0
        %4053 = vmatprep.subr.mxu0 0.0
        %4054 = vmatpush1.msra.mxu0 0.0
        %4055 = vmatprep.subr.mxu0 0.0
        %4056 = vmatpush1.msra.mxu0 0.0
        %4057 = vmatprep.subr.mxu0 0.0
        %4058 = vmatpush1.msra.mxu0 0.0
        %4059 = vmatprep.subr.mxu0 0.0
        %4060 = vmatpush1.msra.mxu0 0.0
        %4061 = vmatprep.subr.mxu0 0.0
        %4062 = vmatpush1.msra.mxu0 0.0
        %4063 = vmatprep.subr.mxu0 0.0
        %4064 = vmatpush1.msra.mxu0 0.0
        %4065 = vmatprep.subr.mxu0 0.0
        %4066 = vmatpush1.msra.mxu0 0.0
        %4067 = vmatprep.subr.mxu0 0.0
        %4068 = vmatpush1.msra.mxu0 0.0
        %4069 = vmatprep.subr.mxu0 0.0
        %4070 = vmatpush1.msra.mxu0 0.0
        %4071 = vmatprep.subr.mxu0 0.0
        %4072 = vmatpush1.msra.mxu0 0.0
        %4073 = vmatprep.subr.mxu0 0.0
        %4074 = vmatpush1.msra.mxu0 0.0
        %4075 = vmatprep.subr.mxu0 0.0
        %4076 = vmatpush1.msra.mxu0 0.0
        %4077 = vmatprep.subr.mxu0 0.0
        %4078 = vmatpush1.msra.mxu0 0.0
        %4079 = vmatprep.subr.mxu0 0.0
        %4080 = vmatpush1.msra.mxu0 0.0
        %4081 = vmatprep.subr.mxu0 0.0
        %4082 = vmatpush1.msra.mxu0 0.0
        %4083 = vmatprep.subr.mxu0 0.0
        %4084 = vmatpush1.msra.mxu0 0.0
        %4085 = vmatprep.subr.mxu0 0.0
        %4086 = vmatpush1.msra.mxu0 0.0
        %4087 = vmatprep.subr.mxu0 0.0
        %4088 = vmatpush1.msra.mxu0 0.0
        %4089 = vmatprep.subr.mxu0 0.0
        %4090 = vmatpush1.msra.mxu0 0.0
        %4091 = vmatprep.subr.mxu0 0.0
        %4092 = vmatpush1.msra.mxu0 0.0
        %4093 = vmatprep.subr.mxu0 0.0
        %4094 = vmatpush1.msra.mxu0 0.0
        %4095 = vmatprep.subr.mxu0 0.0
        %4096 = vmatpush1.msra.mxu0 0.0
        %4097 = vmatprep.mubr.f32.mxu0 0.0
        %4098 = vmatmul.mubr.f32.gmra.mrb[0].mxu0 %v4022
        %v4099 = vpop.f32.mrb[0].mxu0
        %v4100 = vadd.f32 %v4010, %v4099
        %v4101 = vpop.f32.mrb[0].mxu0
        %v4102 = vadd.f32 %v4010, %v4101
        %4103 = vmatprep.mubr.f32.mxu0 0.0
        %4104 = vmatmul.mubr.f32.gmra.mrb[0].mxu0 %v4025
        %v4105 = vpop.f32.mrb[0].mxu0
        %v4106 = vpop.f32.mrb[0].mxu0
        %4107 = vmatprep.mubr.f32.mxu0 0.0
        %4108 = vmatmul.mubr.f32.gmra.mrb[0].mxu0 %v4028
        %v4109 = vpop.f32.mrb[0].mxu0
        %v4110 = vpop.f32.mrb[0].mxu0
        %4111 = vmatprep.mubr.f32.mxu0 0.0
        %4112 = vmatmul.mubr.f32.gmra.mrb[0].mxu0 %v4031
        %v4113 = vpop.f32.mrb[0].mxu0
        %v4114 = vpop.f32.mrb[0].mxu0
        %4115 = vdwg.mxu0
        %v4118 = vcombine.low %v4100, %v4102
        %s4120 = scalar_lea.vmem %s191, 8 [#allocation2]
        %4121 = vst [vmem:[%s4120] sm:$0x77] %v4118
        %s4122 = scalar_lea.vmem %s196, 16
        %v4123 = vld [vmem:[%s4122] sm:$0xff]
        %v4124 = vld [vmem:[%s1] sm:$0xff]
        %v4125 = vld [vmem:[%s1 + $0x8] sm:$0xff]
        %v4126 = vld [vmem:[%s1 + $0x10] sm:$0xff]
        %v4127 = vld [vmem:[%s1 + $0x18] sm:$0xff]
        %v4128 = vld [vmem:[%s1 + $0x20] sm:$0xff]
        %v4129 = vld [vmem:[%s1 + $0x28] sm:$0xff]
        %v4130 = vld [vmem:[%s1 + $0x30] sm:$0xff]
        %v4131 = vld [vmem:[%s1 + $0x38] sm:$0xff]
        %v4132 = vld [vmem:[%s1 + $0x40] sm:$0xff]
        %v4133 = vld [vmem:[%s1 + $0x48] sm:$0xff]
        %v4134 = vld [vmem:[%s1 + $0x50] sm:$0xff]
        %v4135 = vld [vmem:[%s1 + $0x58] sm:$0xff]
        %v4137 = vcombine.high %v4123, %v4123
        %v4139 = vsel %vm218, %v4124, 0
        %v4142 = vsel %vm218, %v4125, 0
        %v4145 = vsel %vm218, %v4126, 0
        %v4148 = vsel %vm218, %v4127, 0
        %v4151 = vsel %vm218, %v4128, 0
        %v4154 = vsel %vm218, %v4129, 0
        %v4157 = vsel %vm218, %v4130, 0
        %v4160 = vsel %vm218, %v4131, 0
        %v4163 = vsel %vm218, %v4132, 0
        %v4166 = vsel %vm218, %v4133, 0
        %v4169 = vsel %vm218, %v4134, 0
        %v4172 = vsel %vm218, %v4135, 0
        %v4174 = vsel %vm255, %v4123, 0
        %v4176 = vsel %vm255, %v4137, 0
        %4178 = vmatprep.subr.mxu0 %v4176
        %4179 = vmatpush1.msra.mxu0 %v4174
        %4180 = vmatprep.subr.mxu0 0.0
        %4181 = vmatpush1.msra.mxu0 0.0
        %4182 = vmatprep.subr.mxu0 0.0
        %4183 = vmatpush1.msra.mxu0 0.0
        %4184 = vmatprep.subr.mxu0 0.0
        %4185 = vmatpush1.msra.mxu0 0.0
        %4186 = vmatprep.subr.mxu0 0.0
        %4187 = vmatpush1.msra.mxu0 0.0
        %4188 = vmatprep.subr.mxu0 0.0
        %4189 = vmatpush1.msra.mxu0 0.0
        %4190 = vmatprep.subr.mxu0 0.0
        %4191 = vmatpush1.msra.mxu0 0.0
        %4192 = vmatprep.subr.mxu0 0.0
        %4193 = vmatpush1.msra.mxu0 0.0
        %4194 = vmatprep.subr.mxu0 0.0
        %4195 = vmatpush1.msra.mxu0 0.0
        %4196 = vmatprep.subr.mxu0 0.0
        %4197 = vmatpush1.msra.mxu0 0.0
        %4198 = vmatprep.subr.mxu0 0.0
        %4199 = vmatpush1.msra.mxu0 0.0
        %4200 = vmatprep.subr.mxu0 0.0
        %4201 = vmatpush1.msra.mxu0 0.0
        %4202 = vmatprep.subr.mxu0 0.0
        %4203 = vmatpush1.msra.mxu0 0.0
        %4204 = vmatprep.subr.mxu0 0.0
        %4205 = vmatpush1.msra.mxu0 0.0
        %4206 = vmatprep.subr.mxu0 0.0
        %4207 = vmatpush1.msra.mxu0 0.0
        %4208 = vmatprep.subr.mxu0 0.0
        %4209 = vmatpush1.msra.mxu0 0.0
        %4210 = vmatprep.subr.mxu0 0.0
        %4211 = vmatpush1.msra.mxu0 0.0
        %4212 = vmatprep.subr.mxu0 0.0
        %4213 = vmatpush1.msra.mxu0 0.0
        %4214 = vmatprep.subr.mxu0 0.0
        %4215 = vmatpush1.msra.mxu0 0.0
        %4216 = vmatprep.subr.mxu0 0.0
        %4217 = vmatpush1.msra.mxu0 0.0
        %4218 = vmatprep.subr.mxu0 0.0
        %4219 = vmatpush1.msra.mxu0 0.0
        %4220 = vmatprep.subr.mxu0 0.0
        %4221 = vmatpush1.msra.mxu0 0.0
        %4222 = vmatprep.subr.mxu0 0.0
        %4223 = vmatpush1.msra.mxu0 0.0
        %4224 = vmatprep.subr.mxu0 0.0
        %4225 = vmatpush1.msra.mxu0 0.0
        %4226 = vmatprep.subr.mxu0 0.0
        %4227 = vmatpush1.msra.mxu0 0.0
        %4228 = vmatprep.subr.mxu0 0.0
        %4229 = vmatpush1.msra.mxu0 0.0
        %4230 = vmatprep.subr.mxu0 0.0
        %4231 = vmatpush1.msra.mxu0 0.0
        %4232 = vmatprep.subr.mxu0 0.0
        %4233 = vmatpush1.msra.mxu0 0.0
        %4234 = vmatprep.subr.mxu0 0.0
        %4235 = vmatpush1.msra.mxu0 0.0
        %4236 = vmatprep.subr.mxu0 0.0
        %4237 = vmatpush1.msra.mxu0 0.0
        %4238 = vmatprep.subr.mxu0 0.0
        %4239 = vmatpush1.msra.mxu0 0.0
        %4240 = vmatprep.subr.mxu0 0.0
        %4241 = vmatpush1.msra.mxu0 0.0
        %4242 = vmatprep.mubr.f32.mxu0 0.0
        %4243 = vmatmul.mubr.f32.gmra.mrb[0].mxu0 %v4139
        %v4244 = vpop.f32.mrb[0].mxu0
        %v4245 = vadd.f32 0.0, %v4244
        %v4246 = vpop.f32.mrb[0].mxu0
        %v4247 = vadd.f32 0.0, %v4246
        %4248 = vmatprep.mubr.f32.mxu0 0.0
        %4249 = vmatmul.mubr.f32.gmra.mrb[0].mxu0 %v4142
        %v4250 = vpop.f32.mrb[0].mxu0
        %v4251 = vadd.f32 0.0, %v4250
        %v4252 = vpop.f32.mrb[0].mxu0
        %v4253 = vadd.f32 0.0, %v4252
        %4254 = vmatprep.mubr.f32.mxu0 0.0
        %4255 = vmatmul.mubr.f32.gmra.mrb[0].mxu0 %v4145
        %v4256 = vpop.f32.mrb[0].mxu0
        %v4257 = vadd.f32 0.0, %v4256
        %v4258 = vpop.f32.mrb[0].mxu0
        %v4259 = vadd.f32 0.0, %v4258
        %4260 = vmatprep.mubr.f32.mxu0 0.0
        %4261 = vmatmul.mubr.f32.gmra.mrb[0].mxu0 %v4148
        %v4262 = vpop.f32.mrb[0].mxu0
        %v4263 = vadd.f32 0.0, %v4262
        %v4264 = vpop.f32.mrb[0].mxu0
        %v4265 = vadd.f32 0.0, %v4264
        %4266 = vmatprep.mubr.f32.mxu0 0.0
        %4267 = vmatmul.mubr.f32.gmra.mrb[0].mxu0 %v4151
        %v4268 = vpop.f32.mrb[0].mxu0
        %v4269 = vadd.f32 0.0, %v4268
        %v4270 = vpop.f32.mrb[0].mxu0
        %v4271 = vadd.f32 0.0, %v4270
        %4272 = vmatprep.mubr.f32.mxu0 0.0
        %4273 = vmatmul.mubr.f32.gmra.mrb[0].mxu0 %v4154
        %v4274 = vpop.f32.mrb[0].mxu0
        %v4275 = vadd.f32 0.0, %v4274
        %v4276 = vpop.f32.mrb[0].mxu0
        %v4277 = vadd.f32 0.0, %v4276
        %4278 = vmatprep.mubr.f32.mxu0 0.0
        %4279 = vmatmul.mubr.f32.gmra.mrb[0].mxu0 %v4157
        %v4280 = vpop.f32.mrb[0].mxu0
        %v4281 = vadd.f32 0.0, %v4280
        %v4282 = vpop.f32.mrb[0].mxu0
        %v4283 = vadd.f32 0.0, %v4282
        %4284 = vmatprep.mubr.f32.mxu0 0.0
        %4285 = vmatmul.mubr.f32.gmra.mrb[0].mxu0 %v4160
        %v4286 = vpop.f32.mrb[0].mxu0
        %v4287 = vadd.f32 0.0, %v4286
        %v4288 = vpop.f32.mrb[0].mxu0
        %v4289 = vadd.f32 0.0, %v4288
        %4290 = vmatprep.mubr.f32.mxu0 0.0
        %4291 = vmatmul.mubr.f32.gmra.mrb[0].mxu0 %v4163
        %v4292 = vpop.f32.mrb[0].mxu0
        %v4293 = vadd.f32 0.0, %v4292
        %v4294 = vpop.f32.mrb[0].mxu0
        %v4295 = vadd.f32 0.0, %v4294
        %4296 = vmatprep.mubr.f32.mxu0 0.0
        %4297 = vmatmul.mubr.f32.gmra.mrb[0].mxu0 %v4166
        %v4298 = vpop.f32.mrb[0].mxu0
        %v4299 = vadd.f32 0.0, %v4298
        %v4300 = vpop.f32.mrb[0].mxu0
        %v4301 = vadd.f32 0.0, %v4300
        %4302 = vmatprep.mubr.f32.mxu0 0.0
        %4303 = vmatmul.mubr.f32.gmra.mrb[0].mxu0 %v4169
        %v4304 = vpop.f32.mrb[0].mxu0
        %v4305 = vadd.f32 0.0, %v4304
        %v4306 = vpop.f32.mrb[0].mxu0
        %v4307 = vadd.f32 0.0, %v4306
        %4308 = vmatprep.mubr.f32.mxu0 0.0
        %4309 = vmatmul.mubr.f32.gmra.mrb[0].mxu0 %v4172
        %v4310 = vpop.f32.mrb[0].mxu0
        %v4311 = vadd.f32 0.0, %v4310
        %v4312 = vpop.f32.mrb[0].mxu0
        %v4313 = vadd.f32 0.0, %v4312
        %4314 = vdwg.mxu0
        %v4315 = vadd.f32 %v4245, %v400
        %v4316 = vadd.f32 %v4247, %v400
        %v4317 = vadd.f32 %v4251, %v405
        %v4318 = vadd.f32 %v4253, %v405
        %v4319 = vadd.f32 %v4257, %v410
        %v4320 = vadd.f32 %v4259, %v410
        %v4321 = vadd.f32 %v4263, %v415
        %v4322 = vadd.f32 %v4265, %v415
        %v4323 = vand.u32 2147483647, %v4315
        %vm4324 = vcmp.le.f32.partialorder %v4323, 0.7853982
        %vm4325 = vcmp.lt.s32.totalorder %v4315, 0
        %v4326 = vand.u32 %v4315, 2139095040
        %v4327 = vshrl.u32 %v4326, 23
        %v4328 = vsub.s32 %v4327, 127
        %v4329 = vand.u32 2147483647, %v4315
        %v4330 = vand.u32 %v4329, 8388607
        %v4331 = vor.u32 %v4330, 8388608
        %v4332 = vsub.s32 0, %v4331
        %v4333 = vadd.s32 %v4328, 1
        %vm4334 = vcmp.gt.s32.totalorder %v4333, 0
        %v4335 = vsel %vm4334, %v4333, 0
        %v4336 = vshrl.u32 %v4335, 5
        %v4337 = vand.u32 %v4335, 31
        %v4338 = vsub.s32 32, %v4337
        %v4339 = vshrl.u32 683565275, %v4338
        %v4340 = vshll.u32 683565275, %v4337
        %v4341 = vshrl.u32 2475754826, %v4338
        %v4342 = vor.u32 %v4340, %v4341
        %v4343 = vshll.u32 2475754826, %v4337
        %v4344 = vshrl.u32 2131351028, %v4338
        %v4345 = vor.u32 %v4343, %v4344
        %v4346 = vshll.u32 2131351028, %v4337
        %v4347 = vshrl.u32 2102212464, %v4338
        %v4348 = vor.u32 %v4346, %v4347
        %v4349 = vshll.u32 2102212464, %v4337
        %v4350 = vshrl.u32 920167782, %v4338
        %v4351 = vor.u32 %v4349, %v4350
        %v4352 = vshll.u32 920167782, %v4337
        %v4353 = vshrl.u32 1326507024, %v4338
        %v4354 = vor.u32 %v4352, %v4353
        %vm4355 = vcmp.lt.s32.totalorder %v4336, 1
        %vm4356 = vcmp.lt.s32.totalorder %v4336, 2
        %vm4357 = vcmp.lt.s32.totalorder %v4336, 3
        %vm4358 = vcmp.lt.s32.totalorder %v4336, 4
        %v4359 = vsel %vm4355, %v4339, %v4342
        %v4360 = vsel %vm4358, %v4348, 2102212464
        %v4361 = vsel %vm4357, %v4345, %v4360
        %v4362 = vsel %vm4356, %v4359, %v4361
        %v4363 = vsel %vm4355, %v4342, %v4345
        %v4364 = vsel %vm4358, %v4351, 920167782
        %v4365 = vsel %vm4357, %v4348, %v4364
        %v4366 = vsel %vm4356, %v4363, %v4365
        %v4367 = vsel %vm4355, %v4345, %v4348
        %v4368 = vsel %vm4358, %v4354, 1326507024
        %v4369 = vsel %vm4357, %v4351, %v4368
        %v4370 = vsel %vm4356, %v4367, %v4369
        %v4371 = vshll.u32 %v4331, 8
        %v4372 = vmul.u32.u64.compose %v4371, %v4370
        %v4373 = vextract.low.u32 %v4372
        %v4374 = vextract.high.u32 %v4372
        %v4375 = vmul.u32.u64.compose %v4371, %v4366
        %v4376 = vextract.low.u32 %v4375
        %v4377 = vextract.high.u32 %v4375
        %v4378 = vmul.u32 %v4371, %v4362
        %v4379 = vadd.s32 %v4374, %v4376
        %vm4380 = vc.u32 %v4374, %v4376
        %v4381 = vadd.s32 %v4377, 1
        %v4382 = vsel %vm4380, %v4381, %v4377
        %v4383 = vadd.s32 %v4378, %v4382
        %v4384 = vadd.s32 %v4383, 536870912
        %v4385 = vshrl.u32 %v4384, 30
        %v4386 = vshll.u32 %v4385, 30
        %v4387 = vsub.s32 %v4383, %v4386
        %vm4388 = vcmp.lt.s32.totalorder %v4387, 0
        %v4389 = vsub.s32 0, %v4387
        %v4390 = vsel %vm4388, %v4389, %v4387
        %v4391 = vclz %v4390
        %v4392 = vsub.s32 %v4391, 2
        %vm4393 = vcmp.gt.s32.totalorder 0, %v4392
        %v4394 = vsel %vm4393, 0, %v4392
        %v4395 = vsub.s32 32, %v4394
        %v4396 = vshll.u32 %v4387, %v4394
        %v4397 = vshrl.u32 %v4379, %v4395
        %v4398 = vor.u32 %v4396, %v4397
        %v4399 = vsub.s32 4294967266, %v4394
        %v4400 = vadd.s32 %v4399, 127
        %v4401 = vshll.u32 %v4400, 23
        %v4402 = vor.u32 4788187, %v4401
        %v4403 = vand.u32 2147483647, %v4402
        %v4405 = vcvt.s32.f32 %v4398
        %v4406 = vmul.f32 %v4405, %v4403
        %v4407 = vxor.u32 %v4406, 2147483648
        %v4408 = vsel %vm4325, %v4407, %v4406
        %v4409 = vsub.s32 4, %v4385
        %v4410 = vsel %vm4325, %v4409, %v4385
        %v4411 = vsel %vm4324, %v4315, %v4408
        %v4412 = vsel %vm4324, 0, %v4410
        %v4413 = vcosq.f32.pop %v4411
        %v4414 = vsinq.f32.pop %v4411
        %vm4415 = vweird.f32 %v4315
        %v4416 = vadd.s32 %v4412, 3
        %v4417 = vand.u32 %v4416, 3
        %vm4418 = vcmp.lt.s32.totalorder %v4417, 2
        %vm4419 = vcmp.eq.s32.totalorder %v4417, 0
        %v4420 = vxor.u32 %v4414, 2147483648
        %v4421 = vsel %vm4419, %v4413, %v4420
        %vm4422 = vcmp.eq.s32.totalorder %v4417, 2
        %v4423 = vxor.u32 %v4413, 2147483648
        %v4424 = vsel %vm4422, %v4423, %v4414
        %v4425 = vsel %vm4418, %v4421, %v4424
        %v4426 = vsel %vm4415, nan, %v4425
        %v4427 = vand.u32 2147483647, %v4316
        %vm4428 = vcmp.le.f32.partialorder %v4427, 0.7853982
        %vm4429 = vcmp.lt.s32.totalorder %v4316, 0
        %v4430 = vand.u32 %v4316, 2139095040
        %v4431 = vshrl.u32 %v4430, 23
        %v4432 = vsub.s32 %v4431, 127
        %v4433 = vand.u32 2147483647, %v4316
        %v4434 = vand.u32 %v4433, 8388607
        %v4435 = vor.u32 %v4434, 8388608
        %v4436 = vsub.s32 0, %v4435
        %v4437 = vadd.s32 %v4432, 1
        %vm4438 = vcmp.gt.s32.totalorder %v4437, 0
        %v4439 = vsel %vm4438, %v4437, 0
        %v4440 = vshrl.u32 %v4439, 5
        %v4441 = vand.u32 %v4439, 31
        %v4442 = vsub.s32 32, %v4441
        %v4443 = vshrl.u32 683565275, %v4442
        %v4444 = vshll.u32 683565275, %v4441
        %v4445 = vshrl.u32 2475754826, %v4442
        %v4446 = vor.u32 %v4444, %v4445
        %v4447 = vshll.u32 2475754826, %v4441
        %v4448 = vshrl.u32 2131351028, %v4442
        %v4449 = vor.u32 %v4447, %v4448
        %v4450 = vshll.u32 2131351028, %v4441
        %v4451 = vshrl.u32 2102212464, %v4442
        %v4452 = vor.u32 %v4450, %v4451
        %v4453 = vshll.u32 2102212464, %v4441
        %v4454 = vshrl.u32 920167782, %v4442
        %v4455 = vor.u32 %v4453, %v4454
        %v4456 = vshll.u32 920167782, %v4441
        %v4457 = vshrl.u32 1326507024, %v4442
        %v4458 = vor.u32 %v4456, %v4457
        %vm4459 = vcmp.lt.s32.totalorder %v4440, 1
        %vm4460 = vcmp.lt.s32.totalorder %v4440, 2
        %vm4461 = vcmp.lt.s32.totalorder %v4440, 3
        %vm4462 = vcmp.lt.s32.totalorder %v4440, 4
        %v4463 = vsel %vm4459, %v4443, %v4446
        %v4464 = vsel %vm4462, %v4452, 2102212464
        %v4465 = vsel %vm4461, %v4449, %v4464
        %v4466 = vsel %vm4460, %v4463, %v4465
        %v4467 = vsel %vm4459, %v4446, %v4449
        %v4468 = vsel %vm4462, %v4455, 920167782
        %v4469 = vsel %vm4461, %v4452, %v4468
        %v4470 = vsel %vm4460, %v4467, %v4469
        %v4471 = vsel %vm4459, %v4449, %v4452
        %v4472 = vsel %vm4462, %v4458, 1326507024
        %v4473 = vsel %vm4461, %v4455, %v4472
        %v4474 = vsel %vm4460, %v4471, %v4473
        %v4475 = vshll.u32 %v4435, 8
        %v4476 = vmul.u32.u64.compose %v4475, %v4474
        %v4477 = vextract.low.u32 %v4476
        %v4478 = vextract.high.u32 %v4476
        %v4479 = vmul.u32.u64.compose %v4475, %v4470
        %v4480 = vextract.low.u32 %v4479
        %v4481 = vextract.high.u32 %v4479
        %v4482 = vmul.u32 %v4475, %v4466
        %v4483 = vadd.s32 %v4478, %v4480
        %vm4484 = vc.u32 %v4478, %v4480
        %v4485 = vadd.s32 %v4481, 1
        %v4486 = vsel %vm4484, %v4485, %v4481
        %v4487 = vadd.s32 %v4482, %v4486
        %v4488 = vadd.s32 %v4487, 536870912
        %v4489 = vshrl.u32 %v4488, 30
        %v4490 = vshll.u32 %v4489, 30
        %v4491 = vsub.s32 %v4487, %v4490
        %vm4492 = vcmp.lt.s32.totalorder %v4491, 0
        %v4493 = vsub.s32 0, %v4491
        %v4494 = vsel %vm4492, %v4493, %v4491
        %v4495 = vclz %v4494
        %v4496 = vsub.s32 %v4495, 2
        %vm4497 = vcmp.gt.s32.totalorder 0, %v4496
        %v4498 = vsel %vm4497, 0, %v4496
        %v4499 = vsub.s32 32, %v4498
        %v4500 = vshll.u32 %v4491, %v4498
        %v4501 = vshrl.u32 %v4483, %v4499
        %v4502 = vor.u32 %v4500, %v4501
        %v4503 = vsub.s32 4294967266, %v4498
        %v4504 = vadd.s32 %v4503, 127
        %v4505 = vshll.u32 %v4504, 23
        %v4506 = vor.u32 4788187, %v4505
        %v4507 = vand.u32 2147483647, %v4506
        %v4509 = vcvt.s32.f32 %v4502
        %v4510 = vmul.f32 %v4509, %v4507
        %v4511 = vxor.u32 %v4510, 2147483648
        %v4512 = vsel %vm4429, %v4511, %v4510
        %v4513 = vsub.s32 4, %v4489
        %v4514 = vsel %vm4429, %v4513, %v4489
        %v4515 = vsel %vm4428, %v4316, %v4512
        %v4516 = vsel %vm4428, 0, %v4514
        %v4517 = vcosq.f32.pop %v4515
        %v4518 = vsinq.f32.pop %v4515
        %vm4519 = vweird.f32 %v4316
        %v4520 = vadd.s32 %v4516, 3
        %v4521 = vand.u32 %v4520, 3
        %vm4522 = vcmp.lt.s32.totalorder %v4521, 2
        %vm4523 = vcmp.eq.s32.totalorder %v4521, 0
        %v4524 = vxor.u32 %v4518, 2147483648
        %v4525 = vsel %vm4523, %v4517, %v4524
        %vm4526 = vcmp.eq.s32.totalorder %v4521, 2
        %v4527 = vxor.u32 %v4517, 2147483648
        %v4528 = vsel %vm4526, %v4527, %v4518
        %v4529 = vsel %vm4522, %v4525, %v4528
        %v4530 = vsel %vm4519, nan, %v4529
        %v4531 = vand.u32 2147483647, %v4317
        %vm4532 = vcmp.le.f32.partialorder %v4531, 0.7853982
        %vm4533 = vcmp.lt.s32.totalorder %v4317, 0
        %v4534 = vand.u32 %v4317, 2139095040
        %v4535 = vshrl.u32 %v4534, 23
        %v4536 = vsub.s32 %v4535, 127
        %v4537 = vand.u32 2147483647, %v4317
        %v4538 = vand.u32 %v4537, 8388607
        %v4539 = vor.u32 %v4538, 8388608
        %v4540 = vsub.s32 0, %v4539
        %v4541 = vadd.s32 %v4536, 1
        %vm4542 = vcmp.gt.s32.totalorder %v4541, 0
        %v4543 = vsel %vm4542, %v4541, 0
        %v4544 = vshrl.u32 %v4543, 5
        %v4545 = vand.u32 %v4543, 31
        %v4546 = vsub.s32 32, %v4545
        %v4547 = vshrl.u32 683565275, %v4546
        %v4548 = vshll.u32 683565275, %v4545
        %v4549 = vshrl.u32 2475754826, %v4546
        %v4550 = vor.u32 %v4548, %v4549
        %v4551 = vshll.u32 2475754826, %v4545
        %v4552 = vshrl.u32 2131351028, %v4546
        %v4553 = vor.u32 %v4551, %v4552
        %v4554 = vshll.u32 2131351028, %v4545
        %v4555 = vshrl.u32 2102212464, %v4546
        %v4556 = vor.u32 %v4554, %v4555
        %v4557 = vshll.u32 2102212464, %v4545
        %v4558 = vshrl.u32 920167782, %v4546
        %v4559 = vor.u32 %v4557, %v4558
        %v4560 = vshll.u32 920167782, %v4545
        %v4561 = vshrl.u32 1326507024, %v4546
        %v4562 = vor.u32 %v4560, %v4561
        %vm4563 = vcmp.lt.s32.totalorder %v4544, 1
        %vm4564 = vcmp.lt.s32.totalorder %v4544, 2
        %vm4565 = vcmp.lt.s32.totalorder %v4544, 3
        %vm4566 = vcmp.lt.s32.totalorder %v4544, 4
        %v4567 = vsel %vm4563, %v4547, %v4550
        %v4568 = vsel %vm4566, %v4556, 2102212464
        %v4569 = vsel %vm4565, %v4553, %v4568
        %v4570 = vsel %vm4564, %v4567, %v4569
        %v4571 = vsel %vm4563, %v4550, %v4553
        %v4572 = vsel %vm4566, %v4559, 920167782
        %v4573 = vsel %vm4565, %v4556, %v4572
        %v4574 = vsel %vm4564, %v4571, %v4573
        %v4575 = vsel %vm4563, %v4553, %v4556
        %v4576 = vsel %vm4566, %v4562, 1326507024
        %v4577 = vsel %vm4565, %v4559, %v4576
        %v4578 = vsel %vm4564, %v4575, %v4577
        %v4579 = vshll.u32 %v4539, 8
        %v4580 = vmul.u32.u64.compose %v4579, %v4578
        %v4581 = vextract.low.u32 %v4580
        %v4582 = vextract.high.u32 %v4580
        %v4583 = vmul.u32.u64.compose %v4579, %v4574
        %v4584 = vextract.low.u32 %v4583
        %v4585 = vextract.high.u32 %v4583
        %v4586 = vmul.u32 %v4579, %v4570
        %v4587 = vadd.s32 %v4582, %v4584
        %vm4588 = vc.u32 %v4582, %v4584
        %v4589 = vadd.s32 %v4585, 1
        %v4590 = vsel %vm4588, %v4589, %v4585
        %v4591 = vadd.s32 %v4586, %v4590
        %v4592 = vadd.s32 %v4591, 536870912
        %v4593 = vshrl.u32 %v4592, 30
        %v4594 = vshll.u32 %v4593, 30
        %v4595 = vsub.s32 %v4591, %v4594
        %vm4596 = vcmp.lt.s32.totalorder %v4595, 0
        %v4597 = vsub.s32 0, %v4595
        %v4598 = vsel %vm4596, %v4597, %v4595
        %v4599 = vclz %v4598
        %v4600 = vsub.s32 %v4599, 2
        %vm4601 = vcmp.gt.s32.totalorder 0, %v4600
        %v4602 = vsel %vm4601, 0, %v4600
        %v4603 = vsub.s32 32, %v4602
        %v4604 = vshll.u32 %v4595, %v4602
        %v4605 = vshrl.u32 %v4587, %v4603
        %v4606 = vor.u32 %v4604, %v4605
        %v4607 = vsub.s32 4294967266, %v4602
        %v4608 = vadd.s32 %v4607, 127
        %v4609 = vshll.u32 %v4608, 23
        %v4610 = vor.u32 4788187, %v4609
        %v4611 = vand.u32 2147483647, %v4610
        %v4613 = vcvt.s32.f32 %v4606
        %v4614 = vmul.f32 %v4613, %v4611
        %v4615 = vxor.u32 %v4614, 2147483648
        %v4616 = vsel %vm4533, %v4615, %v4614
        %v4617 = vsub.s32 4, %v4593
        %v4618 = vsel %vm4533, %v4617, %v4593
        %v4619 = vsel %vm4532, %v4317, %v4616
        %v4620 = vsel %vm4532, 0, %v4618
        %v4621 = vcosq.f32.pop %v4619
        %v4622 = vsinq.f32.pop %v4619
        %vm4623 = vweird.f32 %v4317
        %v4624 = vadd.s32 %v4620, 3
        %v4625 = vand.u32 %v4624, 3
        %vm4626 = vcmp.lt.s32.totalorder %v4625, 2
        %vm4627 = vcmp.eq.s32.totalorder %v4625, 0
        %v4628 = vxor.u32 %v4622, 2147483648
        %v4629 = vsel %vm4627, %v4621, %v4628
        %vm4630 = vcmp.eq.s32.totalorder %v4625, 2
        %v4631 = vxor.u32 %v4621, 2147483648
        %v4632 = vsel %vm4630, %v4631, %v4622
        %v4633 = vsel %vm4626, %v4629, %v4632
        %v4634 = vsel %vm4623, nan, %v4633
        %v4635 = vand.u32 2147483647, %v4318
        %vm4636 = vcmp.le.f32.partialorder %v4635, 0.7853982
        %vm4637 = vcmp.lt.s32.totalorder %v4318, 0
        %v4638 = vand.u32 %v4318, 2139095040
        %v4639 = vshrl.u32 %v4638, 23
        %v4640 = vsub.s32 %v4639, 127
        %v4641 = vand.u32 2147483647, %v4318
        %v4642 = vand.u32 %v4641, 8388607
        %v4643 = vor.u32 %v4642, 8388608
        %v4644 = vsub.s32 0, %v4643
        %v4645 = vadd.s32 %v4640, 1
        %vm4646 = vcmp.gt.s32.totalorder %v4645, 0
        %v4647 = vsel %vm4646, %v4645, 0
        %v4648 = vshrl.u32 %v4647, 5
        %v4649 = vand.u32 %v4647, 31
        %v4650 = vsub.s32 32, %v4649
        %v4651 = vshrl.u32 683565275, %v4650
        %v4652 = vshll.u32 683565275, %v4649
        %v4653 = vshrl.u32 2475754826, %v4650
        %v4654 = vor.u32 %v4652, %v4653
        %v4655 = vshll.u32 2475754826, %v4649
        %v4656 = vshrl.u32 2131351028, %v4650
        %v4657 = vor.u32 %v4655, %v4656
        %v4658 = vshll.u32 2131351028, %v4649
        %v4659 = vshrl.u32 2102212464, %v4650
        %v4660 = vor.u32 %v4658, %v4659
        %v4661 = vshll.u32 2102212464, %v4649
        %v4662 = vshrl.u32 920167782, %v4650
        %v4663 = vor.u32 %v4661, %v4662
        %v4664 = vshll.u32 920167782, %v4649
        %v4665 = vshrl.u32 1326507024, %v4650
        %v4666 = vor.u32 %v4664, %v4665
        %vm4667 = vcmp.lt.s32.totalorder %v4648, 1
        %vm4668 = vcmp.lt.s32.totalorder %v4648, 2
        %vm4669 = vcmp.lt.s32.totalorder %v4648, 3
        %vm4670 = vcmp.lt.s32.totalorder %v4648, 4
        %v4671 = vsel %vm4667, %v4651, %v4654
        %v4672 = vsel %vm4670, %v4660, 2102212464
        %v4673 = vsel %vm4669, %v4657, %v4672
        %v4674 = vsel %vm4668, %v4671, %v4673
        %v4675 = vsel %vm4667, %v4654, %v4657
        %v4676 = vsel %vm4670, %v4663, 920167782
        %v4677 = vsel %vm4669, %v4660, %v4676
        %v4678 = vsel %vm4668, %v4675, %v4677
        %v4679 = vsel %vm4667, %v4657, %v4660
        %v4680 = vsel %vm4670, %v4666, 1326507024
        %v4681 = vsel %vm4669, %v4663, %v4680
        %v4682 = vsel %vm4668, %v4679, %v4681
        %v4683 = vshll.u32 %v4643, 8
        %v4684 = vmul.u32.u64.compose %v4683, %v4682
        %v4685 = vextract.low.u32 %v4684
        %v4686 = vextract.high.u32 %v4684
        %v4687 = vmul.u32.u64.compose %v4683, %v4678
        %v4688 = vextract.low.u32 %v4687
        %v4689 = vextract.high.u32 %v4687
        %v4690 = vmul.u32 %v4683, %v4674
        %v4691 = vadd.s32 %v4686, %v4688
        %vm4692 = vc.u32 %v4686, %v4688
        %v4693 = vadd.s32 %v4689, 1
        %v4694 = vsel %vm4692, %v4693, %v4689
        %v4695 = vadd.s32 %v4690, %v4694
        %v4696 = vadd.s32 %v4695, 536870912
        %v4697 = vshrl.u32 %v4696, 30
        %v4698 = vshll.u32 %v4697, 30
        %v4699 = vsub.s32 %v4695, %v4698
        %vm4700 = vcmp.lt.s32.totalorder %v4699, 0
        %v4701 = vsub.s32 0, %v4699
        %v4702 = vsel %vm4700, %v4701, %v4699
        %v4703 = vclz %v4702
        %v4704 = vsub.s32 %v4703, 2
        %vm4705 = vcmp.gt.s32.totalorder 0, %v4704
        %v4706 = vsel %vm4705, 0, %v4704
        %v4707 = vsub.s32 32, %v4706
        %v4708 = vshll.u32 %v4699, %v4706
        %v4709 = vshrl.u32 %v4691, %v4707
        %v4710 = vor.u32 %v4708, %v4709
        %v4711 = vsub.s32 4294967266, %v4706
        %v4712 = vadd.s32 %v4711, 127
        %v4713 = vshll.u32 %v4712, 23
        %v4714 = vor.u32 4788187, %v4713
        %v4715 = vand.u32 2147483647, %v4714
        %v4717 = vcvt.s32.f32 %v4710
        %v4718 = vmul.f32 %v4717, %v4715
        %v4719 = vxor.u32 %v4718, 2147483648
        %v4720 = vsel %vm4637, %v4719, %v4718
        %v4721 = vsub.s32 4, %v4697
        %v4722 = vsel %vm4637, %v4721, %v4697
        %v4723 = vsel %vm4636, %v4318, %v4720
        %v4724 = vsel %vm4636, 0, %v4722
        %v4725 = vcosq.f32.pop %v4723
        %v4726 = vsinq.f32.pop %v4723
        %vm4727 = vweird.f32 %v4318
        %v4728 = vadd.s32 %v4724, 3
        %v4729 = vand.u32 %v4728, 3
        %vm4730 = vcmp.lt.s32.totalorder %v4729, 2
        %vm4731 = vcmp.eq.s32.totalorder %v4729, 0
        %v4732 = vxor.u32 %v4726, 2147483648
        %v4733 = vsel %vm4731, %v4725, %v4732
        %vm4734 = vcmp.eq.s32.totalorder %v4729, 2
        %v4735 = vxor.u32 %v4725, 2147483648
        %v4736 = vsel %vm4734, %v4735, %v4726
        %v4737 = vsel %vm4730, %v4733, %v4736
        %v4738 = vsel %vm4727, nan, %v4737
        %v4739 = vand.u32 2147483647, %v4319
        %vm4740 = vcmp.le.f32.partialorder %v4739, 0.7853982
        %vm4741 = vcmp.lt.s32.totalorder %v4319, 0
        %v4742 = vand.u32 %v4319, 2139095040
        %v4743 = vshrl.u32 %v4742, 23
        %v4744 = vsub.s32 %v4743, 127
        %v4745 = vand.u32 2147483647, %v4319
        %v4746 = vand.u32 %v4745, 8388607
        %v4747 = vor.u32 %v4746, 8388608
        %v4748 = vsub.s32 0, %v4747
        %v4749 = vadd.s32 %v4744, 1
        %vm4750 = vcmp.gt.s32.totalorder %v4749, 0
        %v4751 = vsel %vm4750, %v4749, 0
        %v4752 = vshrl.u32 %v4751, 5
        %v4753 = vand.u32 %v4751, 31
        %v4754 = vsub.s32 32, %v4753
        %v4755 = vshrl.u32 683565275, %v4754
        %v4756 = vshll.u32 683565275, %v4753
        %v4757 = vshrl.u32 2475754826, %v4754
        %v4758 = vor.u32 %v4756, %v4757
        %v4759 = vshll.u32 2475754826, %v4753
        %v4760 = vshrl.u32 2131351028, %v4754
        %v4761 = vor.u32 %v4759, %v4760
        %v4762 = vshll.u32 2131351028, %v4753
        %v4763 = vshrl.u32 2102212464, %v4754
        %v4764 = vor.u32 %v4762, %v4763
        %v4765 = vshll.u32 2102212464, %v4753
        %v4766 = vshrl.u32 920167782, %v4754
        %v4767 = vor.u32 %v4765, %v4766
        %v4768 = vshll.u32 920167782, %v4753
        %v4769 = vshrl.u32 1326507024, %v4754
        %v4770 = vor.u32 %v4768, %v4769
        %vm4771 = vcmp.lt.s32.totalorder %v4752, 1
        %vm4772 = vcmp.lt.s32.totalorder %v4752, 2
        %vm4773 = vcmp.lt.s32.totalorder %v4752, 3
        %vm4774 = vcmp.lt.s32.totalorder %v4752, 4
        %v4775 = vsel %vm4771, %v4755, %v4758
        %v4776 = vsel %vm4774, %v4764, 2102212464
        %v4777 = vsel %vm4773, %v4761, %v4776
        %v4778 = vsel %vm4772, %v4775, %v4777
        %v4779 = vsel %vm4771, %v4758, %v4761
        %v4780 = vsel %vm4774, %v4767, 920167782
        %v4781 = vsel %vm4773, %v4764, %v4780
        %v4782 = vsel %vm4772, %v4779, %v4781
        %v4783 = vsel %vm4771, %v4761, %v4764
        %v4784 = vsel %vm4774, %v4770, 1326507024
        %v4785 = vsel %vm4773, %v4767, %v4784
        %v4786 = vsel %vm4772, %v4783, %v4785
        %v4787 = vshll.u32 %v4747, 8
        %v4788 = vmul.u32.u64.compose %v4787, %v4786
        %v4789 = vextract.low.u32 %v4788
        %v4790 = vextract.high.u32 %v4788
        %v4791 = vmul.u32.u64.compose %v4787, %v4782
        %v4792 = vextract.low.u32 %v4791
        %v4793 = vextract.high.u32 %v4791
        %v4794 = vmul.u32 %v4787, %v4778
        %v4795 = vadd.s32 %v4790, %v4792
        %vm4796 = vc.u32 %v4790, %v4792
        %v4797 = vadd.s32 %v4793, 1
        %v4798 = vsel %vm4796, %v4797, %v4793
        %v4799 = vadd.s32 %v4794, %v4798
        %v4800 = vadd.s32 %v4799, 536870912
        %v4801 = vshrl.u32 %v4800, 30
        %v4802 = vshll.u32 %v4801, 30
        %v4803 = vsub.s32 %v4799, %v4802
        %vm4804 = vcmp.lt.s32.totalorder %v4803, 0
        %v4805 = vsub.s32 0, %v4803
        %v4806 = vsel %vm4804, %v4805, %v4803
        %v4807 = vclz %v4806
        %v4808 = vsub.s32 %v4807, 2
        %vm4809 = vcmp.gt.s32.totalorder 0, %v4808
        %v4810 = vsel %vm4809, 0, %v4808
        %v4811 = vsub.s32 32, %v4810
        %v4812 = vshll.u32 %v4803, %v4810
        %v4813 = vshrl.u32 %v4795, %v4811
        %v4814 = vor.u32 %v4812, %v4813
        %v4815 = vsub.s32 4294967266, %v4810
        %v4816 = vadd.s32 %v4815, 127
        %v4817 = vshll.u32 %v4816, 23
        %v4818 = vor.u32 4788187, %v4817
        %v4819 = vand.u32 2147483647, %v4818
        %v4821 = vcvt.s32.f32 %v4814
        %v4822 = vmul.f32 %v4821, %v4819
        %v4823 = vxor.u32 %v4822, 2147483648
        %v4824 = vsel %vm4741, %v4823, %v4822
        %v4825 = vsub.s32 4, %v4801
        %v4826 = vsel %vm4741, %v4825, %v4801
        %v4827 = vsel %vm4740, %v4319, %v4824
        %v4828 = vsel %vm4740, 0, %v4826
        %v4829 = vcosq.f32.pop %v4827
        %v4830 = vsinq.f32.pop %v4827
        %vm4831 = vweird.f32 %v4319
        %v4832 = vadd.s32 %v4828, 3
        %v4833 = vand.u32 %v4832, 3
        %vm4834 = vcmp.lt.s32.totalorder %v4833, 2
        %vm4835 = vcmp.eq.s32.totalorder %v4833, 0
        %v4836 = vxor.u32 %v4830, 2147483648
        %v4837 = vsel %vm4835, %v4829, %v4836
        %vm4838 = vcmp.eq.s32.totalorder %v4833, 2
        %v4839 = vxor.u32 %v4829, 2147483648
        %v4840 = vsel %vm4838, %v4839, %v4830
        %v4841 = vsel %vm4834, %v4837, %v4840
        %v4842 = vsel %vm4831, nan, %v4841
        %v4843 = vand.u32 2147483647, %v4320
        %vm4844 = vcmp.le.f32.partialorder %v4843, 0.7853982
        %vm4845 = vcmp.lt.s32.totalorder %v4320, 0
        %v4846 = vand.u32 %v4320, 2139095040
        %v4847 = vshrl.u32 %v4846, 23
        %v4848 = vsub.s32 %v4847, 127
        %v4849 = vand.u32 2147483647, %v4320
        %v4850 = vand.u32 %v4849, 8388607
        %v4851 = vor.u32 %v4850, 8388608
        %v4852 = vsub.s32 0, %v4851
        %v4853 = vadd.s32 %v4848, 1
        %vm4854 = vcmp.gt.s32.totalorder %v4853, 0
        %v4855 = vsel %vm4854, %v4853, 0
        %v4856 = vshrl.u32 %v4855, 5
        %v4857 = vand.u32 %v4855, 31
        %v4858 = vsub.s32 32, %v4857
        %v4859 = vshrl.u32 683565275, %v4858
        %v4860 = vshll.u32 683565275, %v4857
        %v4861 = vshrl.u32 2475754826, %v4858
        %v4862 = vor.u32 %v4860, %v4861
        %v4863 = vshll.u32 2475754826, %v4857
        %v4864 = vshrl.u32 2131351028, %v4858
        %v4865 = vor.u32 %v4863, %v4864
        %v4866 = vshll.u32 2131351028, %v4857
        %v4867 = vshrl.u32 2102212464, %v4858
        %v4868 = vor.u32 %v4866, %v4867
        %v4869 = vshll.u32 2102212464, %v4857
        %v4870 = vshrl.u32 920167782, %v4858
        %v4871 = vor.u32 %v4869, %v4870
        %v4872 = vshll.u32 920167782, %v4857
        %v4873 = vshrl.u32 1326507024, %v4858
        %v4874 = vor.u32 %v4872, %v4873
        %vm4875 = vcmp.lt.s32.totalorder %v4856, 1
        %vm4876 = vcmp.lt.s32.totalorder %v4856, 2
        %vm4877 = vcmp.lt.s32.totalorder %v4856, 3
        %vm4878 = vcmp.lt.s32.totalorder %v4856, 4
        %v4879 = vsel %vm4875, %v4859, %v4862
        %v4880 = vsel %vm4878, %v4868, 2102212464
        %v4881 = vsel %vm4877, %v4865, %v4880
        %v4882 = vsel %vm4876, %v4879, %v4881
        %v4883 = vsel %vm4875, %v4862, %v4865
        %v4884 = vsel %vm4878, %v4871, 920167782
        %v4885 = vsel %vm4877, %v4868, %v4884
        %v4886 = vsel %vm4876, %v4883, %v4885
        %v4887 = vsel %vm4875, %v4865, %v4868
        %v4888 = vsel %vm4878, %v4874, 1326507024
        %v4889 = vsel %vm4877, %v4871, %v4888
        %v4890 = vsel %vm4876, %v4887, %v4889
        %v4891 = vshll.u32 %v4851, 8
        %v4892 = vmul.u32.u64.compose %v4891, %v4890
        %v4893 = vextract.low.u32 %v4892
        %v4894 = vextract.high.u32 %v4892
        %v4895 = vmul.u32.u64.compose %v4891, %v4886
        %v4896 = vextract.low.u32 %v4895
        %v4897 = vextract.high.u32 %v4895
        %v4898 = vmul.u32 %v4891, %v4882
        %v4899 = vadd.s32 %v4894, %v4896
        %vm4900 = vc.u32 %v4894, %v4896
        %v4901 = vadd.s32 %v4897, 1
        %v4902 = vsel %vm4900, %v4901, %v4897
        %v4903 = vadd.s32 %v4898, %v4902
        %v4904 = vadd.s32 %v4903, 536870912
        %v4905 = vshrl.u32 %v4904, 30
        %v4906 = vshll.u32 %v4905, 30
        %v4907 = vsub.s32 %v4903, %v4906
        %vm4908 = vcmp.lt.s32.totalorder %v4907, 0
        %v4909 = vsub.s32 0, %v4907
        %v4910 = vsel %vm4908, %v4909, %v4907
        %v4911 = vclz %v4910
        %v4912 = vsub.s32 %v4911, 2
        %vm4913 = vcmp.gt.s32.totalorder 0, %v4912
        %v4914 = vsel %vm4913, 0, %v4912
        %v4915 = vsub.s32 32, %v4914
        %v4916 = vshll.u32 %v4907, %v4914
        %v4917 = vshrl.u32 %v4899, %v4915
        %v4918 = vor.u32 %v4916, %v4917
        %v4919 = vsub.s32 4294967266, %v4914
        %v4920 = vadd.s32 %v4919, 127
        %v4921 = vshll.u32 %v4920, 23
        %v4922 = vor.u32 4788187, %v4921
        %v4923 = vand.u32 2147483647, %v4922
        %v4925 = vcvt.s32.f32 %v4918
        %v4926 = vmul.f32 %v4925, %v4923
        %v4927 = vxor.u32 %v4926, 2147483648
        %v4928 = vsel %vm4845, %v4927, %v4926
        %v4929 = vsub.s32 4, %v4905
        %v4930 = vsel %vm4845, %v4929, %v4905
        %v4931 = vsel %vm4844, %v4320, %v4928
        %v4932 = vsel %vm4844, 0, %v4930
        %v4933 = vcosq.f32.pop %v4931
        %v4934 = vsinq.f32.pop %v4931
        %vm4935 = vweird.f32 %v4320
        %v4936 = vadd.s32 %v4932, 3
        %v4937 = vand.u32 %v4936, 3
        %vm4938 = vcmp.lt.s32.totalorder %v4937, 2
        %vm4939 = vcmp.eq.s32.totalorder %v4937, 0
        %v4940 = vxor.u32 %v4934, 2147483648
        %v4941 = vsel %vm4939, %v4933, %v4940
        %vm4942 = vcmp.eq.s32.totalorder %v4937, 2
        %v4943 = vxor.u32 %v4933, 2147483648
        %v4944 = vsel %vm4942, %v4943, %v4934
        %v4945 = vsel %vm4938, %v4941, %v4944
        %v4946 = vsel %vm4935, nan, %v4945
        %v4947 = vand.u32 2147483647, %v4321
        %vm4948 = vcmp.le.f32.partialorder %v4947, 0.7853982
        %vm4949 = vcmp.lt.s32.totalorder %v4321, 0
        %v4950 = vand.u32 %v4321, 2139095040
        %v4951 = vshrl.u32 %v4950, 23
        %v4952 = vsub.s32 %v4951, 127
        %v4953 = vand.u32 2147483647, %v4321
        %v4954 = vand.u32 %v4953, 8388607
        %v4955 = vor.u32 %v4954, 8388608
        %v4956 = vsub.s32 0, %v4955
        %v4957 = vadd.s32 %v4952, 1
        %vm4958 = vcmp.gt.s32.totalorder %v4957, 0
        %v4959 = vsel %vm4958, %v4957, 0
        %v4960 = vshrl.u32 %v4959, 5
        %v4961 = vand.u32 %v4959, 31
        %v4962 = vsub.s32 32, %v4961
        %v4963 = vshrl.u32 683565275, %v4962
        %v4964 = vshll.u32 683565275, %v4961
        %v4965 = vshrl.u32 2475754826, %v4962
        %v4966 = vor.u32 %v4964, %v4965
        %v4967 = vshll.u32 2475754826, %v4961
        %v4968 = vshrl.u32 2131351028, %v4962
        %v4969 = vor.u32 %v4967, %v4968
        %v4970 = vshll.u32 2131351028, %v4961
        %v4971 = vshrl.u32 2102212464, %v4962
        %v4972 = vor.u32 %v4970, %v4971
        %v4973 = vshll.u32 2102212464, %v4961
        %v4974 = vshrl.u32 920167782, %v4962
        %v4975 = vor.u32 %v4973, %v4974
        %v4976 = vshll.u32 920167782, %v4961
        %v4977 = vshrl.u32 1326507024, %v4962
        %v4978 = vor.u32 %v4976, %v4977
        %vm4979 = vcmp.lt.s32.totalorder %v4960, 1
        %vm4980 = vcmp.lt.s32.totalorder %v4960, 2
        %vm4981 = vcmp.lt.s32.totalorder %v4960, 3
        %vm4982 = vcmp.lt.s32.totalorder %v4960, 4
        %v4983 = vsel %vm4979, %v4963, %v4966
        %v4984 = vsel %vm4982, %v4972, 2102212464
        %v4985 = vsel %vm4981, %v4969, %v4984
        %v4986 = vsel %vm4980, %v4983, %v4985
        %v4987 = vsel %vm4979, %v4966, %v4969
        %v4988 = vsel %vm4982, %v4975, 920167782
        %v4989 = vsel %vm4981, %v4972, %v4988
        %v4990 = vsel %vm4980, %v4987, %v4989
        %v4991 = vsel %vm4979, %v4969, %v4972
        %v4992 = vsel %vm4982, %v4978, 1326507024
        %v4993 = vsel %vm4981, %v4975, %v4992
        %v4994 = vsel %vm4980, %v4991, %v4993
        %v4995 = vshll.u32 %v4955, 8
        %v4996 = vmul.u32.u64.compose %v4995, %v4994
        %v4997 = vextract.low.u32 %v4996
        %v4998 = vextract.high.u32 %v4996
        %v4999 = vmul.u32.u64.compose %v4995, %v4990
        %v5000 = vextract.low.u32 %v4999
        %v5001 = vextract.high.u32 %v4999
        %v5002 = vmul.u32 %v4995, %v4986
        %v5003 = vadd.s32 %v4998, %v5000
        %vm5004 = vc.u32 %v4998, %v5000
        %v5005 = vadd.s32 %v5001, 1
        %v5006 = vsel %vm5004, %v5005, %v5001
        %v5007 = vadd.s32 %v5002, %v5006
        %v5008 = vadd.s32 %v5007, 536870912
        %v5009 = vshrl.u32 %v5008, 30
        %v5010 = vshll.u32 %v5009, 30
        %v5011 = vsub.s32 %v5007, %v5010
        %vm5012 = vcmp.lt.s32.totalorder %v5011, 0
        %v5013 = vsub.s32 0, %v5011
        %v5014 = vsel %vm5012, %v5013, %v5011
        %v5015 = vclz %v5014
        %v5016 = vsub.s32 %v5015, 2
        %vm5017 = vcmp.gt.s32.totalorder 0, %v5016
        %v5018 = vsel %vm5017, 0, %v5016
        %v5019 = vsub.s32 32, %v5018
        %v5020 = vshll.u32 %v5011, %v5018
        %v5021 = vshrl.u32 %v5003, %v5019
        %v5022 = vor.u32 %v5020, %v5021
        %v5023 = vsub.s32 4294967266, %v5018
        %v5024 = vadd.s32 %v5023, 127
        %v5025 = vshll.u32 %v5024, 23
        %v5026 = vor.u32 4788187, %v5025
        %v5027 = vand.u32 2147483647, %v5026
        %v5029 = vcvt.s32.f32 %v5022
        %v5030 = vmul.f32 %v5029, %v5027
        %v5031 = vxor.u32 %v5030, 2147483648
        %v5032 = vsel %vm4949, %v5031, %v5030
        %v5033 = vsub.s32 4, %v5009
        %v5034 = vsel %vm4949, %v5033, %v5009
        %v5035 = vsel %vm4948, %v4321, %v5032
        %v5036 = vsel %vm4948, 0, %v5034
        %v5037 = vcosq.f32.pop %v5035
        %v5038 = vsinq.f32.pop %v5035
        %vm5039 = vweird.f32 %v4321
        %v5040 = vadd.s32 %v5036, 3
        %v5041 = vand.u32 %v5040, 3
        %vm5042 = vcmp.lt.s32.totalorder %v5041, 2
        %vm5043 = vcmp.eq.s32.totalorder %v5041, 0
        %v5044 = vxor.u32 %v5038, 2147483648
        %v5045 = vsel %vm5043, %v5037, %v5044
        %vm5046 = vcmp.eq.s32.totalorder %v5041, 2
        %v5047 = vxor.u32 %v5037, 2147483648
        %v5048 = vsel %vm5046, %v5047, %v5038
        %v5049 = vsel %vm5042, %v5045, %v5048
        %v5050 = vsel %vm5039, nan, %v5049
        %v5051 = vand.u32 2147483647, %v4322
        %vm5052 = vcmp.le.f32.partialorder %v5051, 0.7853982
        %vm5053 = vcmp.lt.s32.totalorder %v4322, 0
        %v5054 = vand.u32 %v4322, 2139095040
        %v5055 = vshrl.u32 %v5054, 23
        %v5056 = vsub.s32 %v5055, 127
        %v5057 = vand.u32 2147483647, %v4322
        %v5058 = vand.u32 %v5057, 8388607
        %v5059 = vor.u32 %v5058, 8388608
        %v5060 = vsub.s32 0, %v5059
        %v5061 = vadd.s32 %v5056, 1
        %vm5062 = vcmp.gt.s32.totalorder %v5061, 0
        %v5063 = vsel %vm5062, %v5061, 0
        %v5064 = vshrl.u32 %v5063, 5
        %v5065 = vand.u32 %v5063, 31
        %v5066 = vsub.s32 32, %v5065
        %v5067 = vshrl.u32 683565275, %v5066
        %v5068 = vshll.u32 683565275, %v5065
        %v5069 = vshrl.u32 2475754826, %v5066
        %v5070 = vor.u32 %v5068, %v5069
        %v5071 = vshll.u32 2475754826, %v5065
        %v5072 = vshrl.u32 2131351028, %v5066
        %v5073 = vor.u32 %v5071, %v5072
        %v5074 = vshll.u32 2131351028, %v5065
        %v5075 = vshrl.u32 2102212464, %v5066
        %v5076 = vor.u32 %v5074, %v5075
        %v5077 = vshll.u32 2102212464, %v5065
        %v5078 = vshrl.u32 920167782, %v5066
        %v5079 = vor.u32 %v5077, %v5078
        %v5080 = vshll.u32 920167782, %v5065
        %v5081 = vshrl.u32 1326507024, %v5066
        %v5082 = vor.u32 %v5080, %v5081
        %vm5083 = vcmp.lt.s32.totalorder %v5064, 1
        %vm5084 = vcmp.lt.s32.totalorder %v5064, 2
        %vm5085 = vcmp.lt.s32.totalorder %v5064, 3
        %vm5086 = vcmp.lt.s32.totalorder %v5064, 4
        %v5087 = vsel %vm5083, %v5067, %v5070
        %v5088 = vsel %vm5086, %v5076, 2102212464
        %v5089 = vsel %vm5085, %v5073, %v5088
        %v5090 = vsel %vm5084, %v5087, %v5089
        %v5091 = vsel %vm5083, %v5070, %v5073
        %v5092 = vsel %vm5086, %v5079, 920167782
        %v5093 = vsel %vm5085, %v5076, %v5092
        %v5094 = vsel %vm5084, %v5091, %v5093
        %v5095 = vsel %vm5083, %v5073, %v5076
        %v5096 = vsel %vm5086, %v5082, 1326507024
        %v5097 = vsel %vm5085, %v5079, %v5096
        %v5098 = vsel %vm5084, %v5095, %v5097
        %v5099 = vshll.u32 %v5059, 8
        %v5100 = vmul.u32.u64.compose %v5099, %v5098
        %v5101 = vextract.low.u32 %v5100
        %v5102 = vextract.high.u32 %v5100
        %v5103 = vmul.u32.u64.compose %v5099, %v5094
        %v5104 = vextract.low.u32 %v5103
        %v5105 = vextract.high.u32 %v5103
        %v5106 = vmul.u32 %v5099, %v5090
        %v5107 = vadd.s32 %v5102, %v5104
        %vm5108 = vc.u32 %v5102, %v5104
        %v5109 = vadd.s32 %v5105, 1
        %v5110 = vsel %vm5108, %v5109, %v5105
        %v5111 = vadd.s32 %v5106, %v5110
        %v5112 = vadd.s32 %v5111, 536870912
        %v5113 = vshrl.u32 %v5112, 30
        %v5114 = vshll.u32 %v5113, 30
        %v5115 = vsub.s32 %v5111, %v5114
        %vm5116 = vcmp.lt.s32.totalorder %v5115, 0
        %v5117 = vsub.s32 0, %v5115
        %v5118 = vsel %vm5116, %v5117, %v5115
        %v5119 = vclz %v5118
        %v5120 = vsub.s32 %v5119, 2
        %vm5121 = vcmp.gt.s32.totalorder 0, %v5120
        %v5122 = vsel %vm5121, 0, %v5120
        %v5123 = vsub.s32 32, %v5122
        %v5124 = vshll.u32 %v5115, %v5122
        %v5125 = vshrl.u32 %v5107, %v5123
        %v5126 = vor.u32 %v5124, %v5125
        %v5127 = vsub.s32 4294967266, %v5122
        %v5128 = vadd.s32 %v5127, 127
        %v5129 = vshll.u32 %v5128, 23
        %v5130 = vor.u32 4788187, %v5129
        %v5131 = vand.u32 2147483647, %v5130
        %v5133 = vcvt.s32.f32 %v5126
        %v5134 = vmul.f32 %v5133, %v5131
        %v5135 = vxor.u32 %v5134, 2147483648
        %v5136 = vsel %vm5053, %v5135, %v5134
        %v5137 = vsub.s32 4, %v5113
        %v5138 = vsel %vm5053, %v5137, %v5113
        %v5139 = vsel %vm5052, %v4322, %v5136
        %v5140 = vsel %vm5052, 0, %v5138
        %v5141 = vcosq.f32.pop %v5139
        %v5142 = vsinq.f32.pop %v5139
        %vm5143 = vweird.f32 %v4322
        %v5144 = vadd.s32 %v5140, 3
        %v5145 = vand.u32 %v5144, 3
        %vm5146 = vcmp.lt.s32.totalorder %v5145, 2
        %vm5147 = vcmp.eq.s32.totalorder %v5145, 0
        %v5148 = vxor.u32 %v5142, 2147483648
        %v5149 = vsel %vm5147, %v5141, %v5148
        %vm5150 = vcmp.eq.s32.totalorder %v5145, 2
        %v5151 = vxor.u32 %v5141, 2147483648
        %v5152 = vsel %vm5150, %v5151, %v5142
        %v5153 = vsel %vm5146, %v5149, %v5152
        %v5154 = vsel %vm5143, nan, %v5153
        %v5155 = vld [vmem:[%s2] sm:$0xff]
        %v5156 = vld [vmem:[%s2 + $0x8] sm:$0xff]
        %v5157 = vld [vmem:[%s2 + $0x10] sm:$0xff]
        %v5158 = vld [vmem:[%s2 + $0x18] sm:$0xff]
        %v5160 = vsel %vm1261, %v5155, 0
        %v5163 = vsel %vm1261, %v5156, 0
        %v5166 = vsel %vm1261, %v5157, 0
        %v5169 = vsel %vm1261, %v5158, 0
        %5171 = vmatprep.subr.mxu0 %v4530
        %5172 = vmatpush1.msra.mxu0 %v4426
        %5173 = vmatprep.subr.mxu0 %v4738
        %5174 = vmatpush1.msra.mxu0 %v4634
        %5175 = vmatprep.subr.mxu0 %v4946
        %5176 = vmatpush1.msra.mxu0 %v4842
        %5177 = vmatprep.subr.mxu0 %v5154
        %5178 = vmatpush1.msra.mxu0 %v5050
        %5179 = vmatprep.subr.mxu0 0.0
        %5180 = vmatpush1.msra.mxu0 0.0
        %5181 = vmatprep.subr.mxu0 0.0
        %5182 = vmatpush1.msra.mxu0 0.0
        %5183 = vmatprep.subr.mxu0 0.0
        %5184 = vmatpush1.msra.mxu0 0.0
        %5185 = vmatprep.subr.mxu0 0.0
        %5186 = vmatpush1.msra.mxu0 0.0
        %5187 = vmatprep.subr.mxu0 0.0
        %5188 = vmatpush1.msra.mxu0 0.0
        %5189 = vmatprep.subr.mxu0 0.0
        %5190 = vmatpush1.msra.mxu0 0.0
        %5191 = vmatprep.subr.mxu0 0.0
        %5192 = vmatpush1.msra.mxu0 0.0
        %5193 = vmatprep.subr.mxu0 0.0
        %5194 = vmatpush1.msra.mxu0 0.0
        %5195 = vmatprep.subr.mxu0 0.0
        %5196 = vmatpush1.msra.mxu0 0.0
        %5197 = vmatprep.subr.mxu0 0.0
        %5198 = vmatpush1.msra.mxu0 0.0
        %5199 = vmatprep.subr.mxu0 0.0
        %5200 = vmatpush1.msra.mxu0 0.0
        %5201 = vmatprep.subr.mxu0 0.0
        %5202 = vmatpush1.msra.mxu0 0.0
        %5203 = vmatprep.subr.mxu0 0.0
        %5204 = vmatpush1.msra.mxu0 0.0
        %5205 = vmatprep.subr.mxu0 0.0
        %5206 = vmatpush1.msra.mxu0 0.0
        %5207 = vmatprep.subr.mxu0 0.0
        %5208 = vmatpush1.msra.mxu0 0.0
        %5209 = vmatprep.subr.mxu0 0.0
        %5210 = vmatpush1.msra.mxu0 0.0
        %5211 = vmatprep.subr.mxu0 0.0
        %5212 = vmatpush1.msra.mxu0 0.0
        %5213 = vmatprep.subr.mxu0 0.0
        %5214 = vmatpush1.msra.mxu0 0.0
        %5215 = vmatprep.subr.mxu0 0.0
        %5216 = vmatpush1.msra.mxu0 0.0
        %5217 = vmatprep.subr.mxu0 0.0
        %5218 = vmatpush1.msra.mxu0 0.0
        %5219 = vmatprep.subr.mxu0 0.0
        %5220 = vmatpush1.msra.mxu0 0.0
        %5221 = vmatprep.subr.mxu0 0.0
        %5222 = vmatpush1.msra.mxu0 0.0
        %5223 = vmatprep.subr.mxu0 0.0
        %5224 = vmatpush1.msra.mxu0 0.0
        %5225 = vmatprep.subr.mxu0 0.0
        %5226 = vmatpush1.msra.mxu0 0.0
        %5227 = vmatprep.subr.mxu0 0.0
        %5228 = vmatpush1.msra.mxu0 0.0
        %5229 = vmatprep.subr.mxu0 0.0
        %5230 = vmatpush1.msra.mxu0 0.0
        %5231 = vmatprep.subr.mxu0 0.0
        %5232 = vmatpush1.msra.mxu0 0.0
        %5233 = vmatprep.subr.mxu0 0.0
        %5234 = vmatpush1.msra.mxu0 0.0
        %5235 = vmatprep.mubr.f32.mxu0 0.0
        %5236 = vmatmul.mubr.f32.gmra.mrb[0].mxu0 %v5160
        %v5237 = vpop.f32.mrb[0].mxu0
        %v5238 = vadd.f32 0.0, %v5237
        %v5239 = vpop.f32.mrb[0].mxu0
        %v5240 = vadd.f32 0.0, %v5239
        %5241 = vmatprep.mubr.f32.mxu0 0.0
        %5242 = vmatmul.mubr.f32.gmra.mrb[0].mxu0 %v5163
        %v5243 = vpop.f32.mrb[0].mxu0
        %v5244 = vadd.f32 0.0, %v5243
        %v5245 = vpop.f32.mrb[0].mxu0
        %v5246 = vadd.f32 0.0, %v5245
        %5247 = vmatprep.mubr.f32.mxu0 0.0
        %5248 = vmatmul.mubr.f32.gmra.mrb[0].mxu0 %v5166
        %v5249 = vpop.f32.mrb[0].mxu0
        %v5250 = vadd.f32 0.0, %v5249
        %v5251 = vpop.f32.mrb[0].mxu0
        %v5252 = vadd.f32 0.0, %v5251
        %5253 = vmatprep.mubr.f32.mxu0 0.0
        %5254 = vmatmul.mubr.f32.gmra.mrb[0].mxu0 %v5169
        %v5255 = vpop.f32.mrb[0].mxu0
        %v5256 = vadd.f32 0.0, %v5255
        %v5257 = vpop.f32.mrb[0].mxu0
        %v5258 = vadd.f32 0.0, %v5257
        %5259 = vdwg.mxu0
        %v5260 = vadd.f32 %v4269, %v5238
        %v5261 = vadd.f32 %v4271, %v5240
        %v5262 = vadd.f32 %v4275, %v5244
        %v5263 = vadd.f32 %v4277, %v5246
        %v5264 = vadd.f32 %v4281, %v5250
        %v5265 = vadd.f32 %v4283, %v5252
        %v5266 = vadd.f32 %v4287, %v5256
        %v5267 = vadd.f32 %v4289, %v5258
        %v5268 = vld [vmem:[%s3] sm:$0xff]
        %v5269 = vld [vmem:[%s3 + $0x8] sm:$0xff]
        %v5270 = vld [vmem:[%s3 + $0x10] sm:$0xff]
        %v5271 = vld [vmem:[%s3 + $0x18] sm:$0xff]
        %5273 = vset.pattern.permute.xlu0 1
        %5274 = vperm.xlu0 %5273, %v5268
        %v5275 = vpop.permute.xlu0 %5274
        %5278 = vset.pattern.permute.xlu0 1
        %5279 = vperm.xlu0 %5278, %v5269
        %v5280 = vpop.permute.xlu0 %5279
        %5283 = vset.pattern.permute.xlu0 1
        %5284 = vperm.xlu0 %5283, %v5270
        %v5285 = vpop.permute.xlu0 %5284
        %5288 = vset.pattern.permute.xlu0 1
        %5289 = vperm.xlu0 %5288, %v5271
        %v5290 = vpop.permute.xlu0 %5289
        %v5292 = vadd.f32 %v5260, %v5275
        %v5293 = vadd.f32 %v5261, %v5275
        %v5294 = vadd.f32 %v5262, %v5280
        %v5295 = vadd.f32 %v5263, %v5280
        %v5296 = vadd.f32 %v5264, %v5285
        %v5297 = vadd.f32 %v5265, %v5285
        %v5298 = vadd.f32 %v5266, %v5290
        %v5299 = vadd.f32 %v5267, %v5290
        %v5300 = vmax.f32 %v5292, 0.0
        %v5301 = vmax.f32 %v5293, 0.0
        %v5302 = vmax.f32 %v5294, 0.0
        %v5303 = vmax.f32 %v5295, 0.0
        %v5304 = vmax.f32 %v5296, 0.0
        %v5305 = vmax.f32 %v5297, 0.0
        %v5306 = vmax.f32 %v5298, 0.0
        %v5307 = vmax.f32 %v5299, 0.0
        %v5308 = vld [vmem:[%s2 + $0x20] sm:$0xff]
        %v5309 = vld [vmem:[%s2 + $0x28] sm:$0xff]
        %v5310 = vld [vmem:[%s2 + $0x30] sm:$0xff]
        %v5311 = vld [vmem:[%s2 + $0x38] sm:$0xff]
        %5312 = vset.pattern.permute.xlu0 2
        %5313 = vperm.xlu0 %5312, %v5268
        %v5314 = vpop.permute.xlu0 %5313
        %5316 = vset.pattern.permute.xlu0 2
        %5317 = vperm.xlu0 %5316, %v5269
        %v5318 = vpop.permute.xlu0 %5317
        %5320 = vset.pattern.permute.xlu0 2
        %5321 = vperm.xlu0 %5320, %v5270
        %v5322 = vpop.permute.xlu0 %5321
        %5324 = vset.pattern.permute.xlu0 2
        %5325 = vperm.xlu0 %5324, %v5271
        %v5326 = vpop.permute.xlu0 %5325
        %v5329 = vsel %vm1261, %v5308, 0
        %v5332 = vsel %vm1261, %v5309, 0
        %v5335 = vsel %vm1261, %v5310, 0
        %v5338 = vsel %vm1261, %v5311, 0
        %5340 = vmatprep.subr.mxu0 %v5301
        %5341 = vmatpush1.msra.mxu0 %v5300
        %5342 = vmatprep.subr.mxu0 %v5303
        %5343 = vmatpush1.msra.mxu0 %v5302
        %5344 = vmatprep.subr.mxu0 %v5305
        %5345 = vmatpush1.msra.mxu0 %v5304
        %5346 = vmatprep.subr.mxu0 %v5307
        %5347 = vmatpush1.msra.mxu0 %v5306
        %5348 = vmatprep.subr.mxu0 0.0
        %5349 = vmatpush1.msra.mxu0 0.0
        %5350 = vmatprep.subr.mxu0 0.0
        %5351 = vmatpush1.msra.mxu0 0.0
        %5352 = vmatprep.subr.mxu0 0.0
        %5353 = vmatpush1.msra.mxu0 0.0
        %5354 = vmatprep.subr.mxu0 0.0
        %5355 = vmatpush1.msra.mxu0 0.0
        %5356 = vmatprep.subr.mxu0 0.0
        %5357 = vmatpush1.msra.mxu0 0.0
        %5358 = vmatprep.subr.mxu0 0.0
        %5359 = vmatpush1.msra.mxu0 0.0
        %5360 = vmatprep.subr.mxu0 0.0
        %5361 = vmatpush1.msra.mxu0 0.0
        %5362 = vmatprep.subr.mxu0 0.0
        %5363 = vmatpush1.msra.mxu0 0.0
        %5364 = vmatprep.subr.mxu0 0.0
        %5365 = vmatpush1.msra.mxu0 0.0
        %5366 = vmatprep.subr.mxu0 0.0
        %5367 = vmatpush1.msra.mxu0 0.0
        %5368 = vmatprep.subr.mxu0 0.0
        %5369 = vmatpush1.msra.mxu0 0.0
        %5370 = vmatprep.subr.mxu0 0.0
        %5371 = vmatpush1.msra.mxu0 0.0
        %5372 = vmatprep.subr.mxu0 0.0
        %5373 = vmatpush1.msra.mxu0 0.0
        %5374 = vmatprep.subr.mxu0 0.0
        %5375 = vmatpush1.msra.mxu0 0.0
        %5376 = vmatprep.subr.mxu0 0.0
        %5377 = vmatpush1.msra.mxu0 0.0
        %5378 = vmatprep.subr.mxu0 0.0
        %5379 = vmatpush1.msra.mxu0 0.0
        %5380 = vmatprep.subr.mxu0 0.0
        %5381 = vmatpush1.msra.mxu0 0.0
        %5382 = vmatprep.subr.mxu0 0.0
        %5383 = vmatpush1.msra.mxu0 0.0
        %5384 = vmatprep.subr.mxu0 0.0
        %5385 = vmatpush1.msra.mxu0 0.0
        %5386 = vmatprep.subr.mxu0 0.0
        %5387 = vmatpush1.msra.mxu0 0.0
        %5388 = vmatprep.subr.mxu0 0.0
        %5389 = vmatpush1.msra.mxu0 0.0
        %5390 = vmatprep.subr.mxu0 0.0
        %5391 = vmatpush1.msra.mxu0 0.0
        %5392 = vmatprep.subr.mxu0 0.0
        %5393 = vmatpush1.msra.mxu0 0.0
        %5394 = vmatprep.subr.mxu0 0.0
        %5395 = vmatpush1.msra.mxu0 0.0
        %5396 = vmatprep.subr.mxu0 0.0
        %5397 = vmatpush1.msra.mxu0 0.0
        %5398 = vmatprep.subr.mxu0 0.0
        %5399 = vmatpush1.msra.mxu0 0.0
        %5400 = vmatprep.subr.mxu0 0.0
        %5401 = vmatpush1.msra.mxu0 0.0
        %5402 = vmatprep.subr.mxu0 0.0
        %5403 = vmatpush1.msra.mxu0 0.0
        %5404 = vmatprep.mubr.f32.mxu0 0.0
        %5405 = vmatmul.mubr.f32.gmra.mrb[0].mxu0 %v5329
        %v5406 = vpop.f32.mrb[0].mxu0
        %v5407 = vadd.f32 %v5314, %v5406
        %v5408 = vpop.f32.mrb[0].mxu0
        %v5409 = vadd.f32 %v5314, %v5408
        %5410 = vmatprep.mubr.f32.mxu0 0.0
        %5411 = vmatmul.mubr.f32.gmra.mrb[0].mxu0 %v5332
        %v5412 = vpop.f32.mrb[0].mxu0
        %v5413 = vadd.f32 %v5318, %v5412
        %v5414 = vpop.f32.mrb[0].mxu0
        %v5415 = vadd.f32 %v5318, %v5414
        %5416 = vmatprep.mubr.f32.mxu0 0.0
        %5417 = vmatmul.mubr.f32.gmra.mrb[0].mxu0 %v5335
        %v5418 = vpop.f32.mrb[0].mxu0
        %v5419 = vadd.f32 %v5322, %v5418
        %v5420 = vpop.f32.mrb[0].mxu0
        %v5421 = vadd.f32 %v5322, %v5420
        %5422 = vmatprep.mubr.f32.mxu0 0.0
        %5423 = vmatmul.mubr.f32.gmra.mrb[0].mxu0 %v5338
        %v5424 = vpop.f32.mrb[0].mxu0
        %v5425 = vadd.f32 %v5326, %v5424
        %v5426 = vpop.f32.mrb[0].mxu0
        %v5427 = vadd.f32 %v5326, %v5426
        %5428 = vdwg.mxu0
        %v5429 = vmax.f32 %v5407, 0.0
        %v5430 = vmax.f32 %v5409, 0.0
        %v5431 = vmax.f32 %v5413, 0.0
        %v5432 = vmax.f32 %v5415, 0.0
        %v5433 = vmax.f32 %v5419, 0.0
        %v5434 = vmax.f32 %v5421, 0.0
        %v5435 = vmax.f32 %v5425, 0.0
        %v5436 = vmax.f32 %v5427, 0.0
        %v5437 = vld [vmem:[%s2 + $0x40] sm:$0xff]
        %v5438 = vld [vmem:[%s2 + $0x48] sm:$0xff]
        %v5439 = vld [vmem:[%s2 + $0x50] sm:$0xff]
        %v5440 = vld [vmem:[%s2 + $0x58] sm:$0xff]
        %5441 = vset.pattern.permute.xlu0 3
        %5442 = vperm.xlu0 %5441, %v5268
        %v5443 = vpop.permute.xlu0 %5442
        %5445 = vset.pattern.permute.xlu0 3
        %5446 = vperm.xlu0 %5445, %v5269
        %v5447 = vpop.permute.xlu0 %5446
        %5449 = vset.pattern.permute.xlu0 3
        %5450 = vperm.xlu0 %5449, %v5270
        %v5451 = vpop.permute.xlu0 %5450
        %5453 = vset.pattern.permute.xlu0 3
        %5454 = vperm.xlu0 %5453, %v5271
        %v5455 = vpop.permute.xlu0 %5454
        %v5458 = vsel %vm1261, %v5437, 0
        %v5461 = vsel %vm1261, %v5438, 0
        %v5464 = vsel %vm1261, %v5439, 0
        %v5467 = vsel %vm1261, %v5440, 0
        %5469 = vmatprep.subr.mxu0 %v5430
        %5470 = vmatpush1.msra.mxu0 %v5429
        %5471 = vmatprep.subr.mxu0 %v5432
        %5472 = vmatpush1.msra.mxu0 %v5431
        %5473 = vmatprep.subr.mxu0 %v5434
        %5474 = vmatpush1.msra.mxu0 %v5433
        %5475 = vmatprep.subr.mxu0 %v5436
        %5476 = vmatpush1.msra.mxu0 %v5435
        %5477 = vmatprep.subr.mxu0 0.0
        %5478 = vmatpush1.msra.mxu0 0.0
        %5479 = vmatprep.subr.mxu0 0.0
        %5480 = vmatpush1.msra.mxu0 0.0
        %5481 = vmatprep.subr.mxu0 0.0
        %5482 = vmatpush1.msra.mxu0 0.0
        %5483 = vmatprep.subr.mxu0 0.0
        %5484 = vmatpush1.msra.mxu0 0.0
        %5485 = vmatprep.subr.mxu0 0.0
        %5486 = vmatpush1.msra.mxu0 0.0
        %5487 = vmatprep.subr.mxu0 0.0
        %5488 = vmatpush1.msra.mxu0 0.0
        %5489 = vmatprep.subr.mxu0 0.0
        %5490 = vmatpush1.msra.mxu0 0.0
        %5491 = vmatprep.subr.mxu0 0.0
        %5492 = vmatpush1.msra.mxu0 0.0
        %5493 = vmatprep.subr.mxu0 0.0
        %5494 = vmatpush1.msra.mxu0 0.0
        %5495 = vmatprep.subr.mxu0 0.0
        %5496 = vmatpush1.msra.mxu0 0.0
        %5497 = vmatprep.subr.mxu0 0.0
        %5498 = vmatpush1.msra.mxu0 0.0
        %5499 = vmatprep.subr.mxu0 0.0
        %5500 = vmatpush1.msra.mxu0 0.0
        %5501 = vmatprep.subr.mxu0 0.0
        %5502 = vmatpush1.msra.mxu0 0.0
        %5503 = vmatprep.subr.mxu0 0.0
        %5504 = vmatpush1.msra.mxu0 0.0
        %5505 = vmatprep.subr.mxu0 0.0
        %5506 = vmatpush1.msra.mxu0 0.0
        %5507 = vmatprep.subr.mxu0 0.0
        %5508 = vmatpush1.msra.mxu0 0.0
        %5509 = vmatprep.subr.mxu0 0.0
        %5510 = vmatpush1.msra.mxu0 0.0
        %5511 = vmatprep.subr.mxu0 0.0
        %5512 = vmatpush1.msra.mxu0 0.0
        %5513 = vmatprep.subr.mxu0 0.0
        %5514 = vmatpush1.msra.mxu0 0.0
        %5515 = vmatprep.subr.mxu0 0.0
        %5516 = vmatpush1.msra.mxu0 0.0
        %5517 = vmatprep.subr.mxu0 0.0
        %5518 = vmatpush1.msra.mxu0 0.0
        %5519 = vmatprep.subr.mxu0 0.0
        %5520 = vmatpush1.msra.mxu0 0.0
        %5521 = vmatprep.subr.mxu0 0.0
        %5522 = vmatpush1.msra.mxu0 0.0
        %5523 = vmatprep.subr.mxu0 0.0
        %5524 = vmatpush1.msra.mxu0 0.0
        %5525 = vmatprep.subr.mxu0 0.0
        %5526 = vmatpush1.msra.mxu0 0.0
        %5527 = vmatprep.subr.mxu0 0.0
        %5528 = vmatpush1.msra.mxu0 0.0
        %5529 = vmatprep.subr.mxu0 0.0
        %5530 = vmatpush1.msra.mxu0 0.0
        %5531 = vmatprep.subr.mxu0 0.0
        %5532 = vmatpush1.msra.mxu0 0.0
        %5533 = vmatprep.mubr.f32.mxu0 0.0
        %5534 = vmatmul.mubr.f32.gmra.mrb[0].mxu0 %v5458
        %v5535 = vpop.f32.mrb[0].mxu0
        %v5536 = vadd.f32 %v5443, %v5535
        %v5537 = vpop.f32.mrb[0].mxu0
        %v5538 = vadd.f32 %v5443, %v5537
        %5539 = vmatprep.mubr.f32.mxu0 0.0
        %5540 = vmatmul.mubr.f32.gmra.mrb[0].mxu0 %v5461
        %v5541 = vpop.f32.mrb[0].mxu0
        %v5542 = vadd.f32 %v5447, %v5541
        %v5543 = vpop.f32.mrb[0].mxu0
        %v5544 = vadd.f32 %v5447, %v5543
        %5545 = vmatprep.mubr.f32.mxu0 0.0
        %5546 = vmatmul.mubr.f32.gmra.mrb[0].mxu0 %v5464
        %v5547 = vpop.f32.mrb[0].mxu0
        %v5548 = vadd.f32 %v5451, %v5547
        %v5549 = vpop.f32.mrb[0].mxu0
        %v5550 = vadd.f32 %v5451, %v5549
        %5551 = vmatprep.mubr.f32.mxu0 0.0
        %5552 = vmatmul.mubr.f32.gmra.mrb[0].mxu0 %v5467
        %v5553 = vpop.f32.mrb[0].mxu0
        %v5554 = vadd.f32 %v5455, %v5553
        %v5555 = vpop.f32.mrb[0].mxu0
        %v5556 = vadd.f32 %v5455, %v5555
        %5557 = vdwg.mxu0
        %v5558 = vmax.f32 %v5536, 0.0
        %v5559 = vmax.f32 %v5538, 0.0
        %v5560 = vmax.f32 %v5542, 0.0
        %v5561 = vmax.f32 %v5544, 0.0
        %v5562 = vmax.f32 %v5548, 0.0
        %v5563 = vmax.f32 %v5550, 0.0
        %v5564 = vmax.f32 %v5554, 0.0
        %v5565 = vmax.f32 %v5556, 0.0
        %v5566 = vld [vmem:[%s2 + $0x60] sm:$0xff]
        %v5567 = vld [vmem:[%s2 + $0x68] sm:$0xff]
        %v5568 = vld [vmem:[%s2 + $0x70] sm:$0xff]
        %v5569 = vld [vmem:[%s2 + $0x78] sm:$0xff]
        %v5571 = vsel %vm1261, %v5566, 0
        %v5574 = vsel %vm1261, %v5567, 0
        %v5577 = vsel %vm1261, %v5568, 0
        %v5580 = vsel %vm1261, %v5569, 0
        %5582 = vmatprep.subr.mxu0 %v4530
        %5583 = vmatpush1.msra.mxu0 %v4426
        %5584 = vmatprep.subr.mxu0 %v4738
        %5585 = vmatpush1.msra.mxu0 %v4634
        %5586 = vmatprep.subr.mxu0 %v4946
        %5587 = vmatpush1.msra.mxu0 %v4842
        %5588 = vmatprep.subr.mxu0 %v5154
        %5589 = vmatpush1.msra.mxu0 %v5050
        %5590 = vmatprep.subr.mxu0 0.0
        %5591 = vmatpush1.msra.mxu0 0.0
        %5592 = vmatprep.subr.mxu0 0.0
        %5593 = vmatpush1.msra.mxu0 0.0
        %5594 = vmatprep.subr.mxu0 0.0
        %5595 = vmatpush1.msra.mxu0 0.0
        %5596 = vmatprep.subr.mxu0 0.0
        %5597 = vmatpush1.msra.mxu0 0.0
        %5598 = vmatprep.subr.mxu0 0.0
        %5599 = vmatpush1.msra.mxu0 0.0
        %5600 = vmatprep.subr.mxu0 0.0
        %5601 = vmatpush1.msra.mxu0 0.0
        %5602 = vmatprep.subr.mxu0 0.0
        %5603 = vmatpush1.msra.mxu0 0.0
        %5604 = vmatprep.subr.mxu0 0.0
        %5605 = vmatpush1.msra.mxu0 0.0
        %5606 = vmatprep.subr.mxu0 0.0
        %5607 = vmatpush1.msra.mxu0 0.0
        %5608 = vmatprep.subr.mxu0 0.0
        %5609 = vmatpush1.msra.mxu0 0.0
        %5610 = vmatprep.subr.mxu0 0.0
        %5611 = vmatpush1.msra.mxu0 0.0
        %5612 = vmatprep.subr.mxu0 0.0
        %5613 = vmatpush1.msra.mxu0 0.0
        %5614 = vmatprep.subr.mxu0 0.0
        %5615 = vmatpush1.msra.mxu0 0.0
        %5616 = vmatprep.subr.mxu0 0.0
        %5617 = vmatpush1.msra.mxu0 0.0
        %5618 = vmatprep.subr.mxu0 0.0
        %5619 = vmatpush1.msra.mxu0 0.0
        %5620 = vmatprep.subr.mxu0 0.0
        %5621 = vmatpush1.msra.mxu0 0.0
        %5622 = vmatprep.subr.mxu0 0.0
        %5623 = vmatpush1.msra.mxu0 0.0
        %5624 = vmatprep.subr.mxu0 0.0
        %5625 = vmatpush1.msra.mxu0 0.0
        %5626 = vmatprep.subr.mxu0 0.0
        %5627 = vmatpush1.msra.mxu0 0.0
        %5628 = vmatprep.subr.mxu0 0.0
        %5629 = vmatpush1.msra.mxu0 0.0
        %5630 = vmatprep.subr.mxu0 0.0
        %5631 = vmatpush1.msra.mxu0 0.0
        %5632 = vmatprep.subr.mxu0 0.0
        %5633 = vmatpush1.msra.mxu0 0.0
        %5634 = vmatprep.subr.mxu0 0.0
        %5635 = vmatpush1.msra.mxu0 0.0
        %5636 = vmatprep.subr.mxu0 0.0
        %5637 = vmatpush1.msra.mxu0 0.0
        %5638 = vmatprep.subr.mxu0 0.0
        %5639 = vmatpush1.msra.mxu0 0.0
        %5640 = vmatprep.subr.mxu0 0.0
        %5641 = vmatpush1.msra.mxu0 0.0
        %5642 = vmatprep.subr.mxu0 0.0
        %5643 = vmatpush1.msra.mxu0 0.0
        %5644 = vmatprep.subr.mxu0 0.0
        %5645 = vmatpush1.msra.mxu0 0.0
        %5646 = vmatprep.mubr.f32.mxu0 0.0
        %5647 = vmatmul.mubr.f32.gmra.mrb[0].mxu0 %v5571
        %v5648 = vpop.f32.mrb[0].mxu0
        %v5649 = vadd.f32 0.0, %v5648
        %v5650 = vpop.f32.mrb[0].mxu0
        %v5651 = vadd.f32 0.0, %v5650
        %5652 = vmatprep.mubr.f32.mxu0 0.0
        %5653 = vmatmul.mubr.f32.gmra.mrb[0].mxu0 %v5574
        %v5654 = vpop.f32.mrb[0].mxu0
        %v5655 = vadd.f32 0.0, %v5654
        %v5656 = vpop.f32.mrb[0].mxu0
        %v5657 = vadd.f32 0.0, %v5656
        %5658 = vmatprep.mubr.f32.mxu0 0.0
        %5659 = vmatmul.mubr.f32.gmra.mrb[0].mxu0 %v5577
        %v5660 = vpop.f32.mrb[0].mxu0
        %v5661 = vadd.f32 0.0, %v5660
        %v5662 = vpop.f32.mrb[0].mxu0
        %v5663 = vadd.f32 0.0, %v5662
        %5664 = vmatprep.mubr.f32.mxu0 0.0
        %5665 = vmatmul.mubr.f32.gmra.mrb[0].mxu0 %v5580
        %v5666 = vpop.f32.mrb[0].mxu0
        %v5667 = vadd.f32 0.0, %v5666
        %v5668 = vpop.f32.mrb[0].mxu0
        %v5669 = vadd.f32 0.0, %v5668
        %5670 = vdwg.mxu0
        %v5671 = vadd.f32 %v4293, %v5649
        %v5672 = vadd.f32 %v4295, %v5651
        %v5673 = vadd.f32 %v4299, %v5655
        %v5674 = vadd.f32 %v4301, %v5657
        %v5675 = vadd.f32 %v4305, %v5661
        %v5676 = vadd.f32 %v4307, %v5663
        %v5677 = vadd.f32 %v4311, %v5667
        %v5678 = vadd.f32 %v4313, %v5669
        %v5679 = vld [vmem:[%s2 + $0x80] sm:$0xff]
        %v5680 = vld [vmem:[%s2 + $0x88] sm:$0xff]
        %v5681 = vld [vmem:[%s2 + $0x90] sm:$0xff]
        %v5682 = vld [vmem:[%s2 + $0x98] sm:$0xff]
        %v5684 = vsel %vm1261, %v5679, 0
        %v5687 = vsel %vm1261, %v5680, 0
        %v5690 = vsel %vm1261, %v5681, 0
        %v5693 = vsel %vm1261, %v5682, 0
        %5695 = vmatprep.subr.mxu0 %v5559
        %5696 = vmatpush1.msra.mxu0 %v5558
        %5697 = vmatprep.subr.mxu0 %v5561
        %5698 = vmatpush1.msra.mxu0 %v5560
        %5699 = vmatprep.subr.mxu0 %v5563
        %5700 = vmatpush1.msra.mxu0 %v5562
        %5701 = vmatprep.subr.mxu0 %v5565
        %5702 = vmatpush1.msra.mxu0 %v5564
        %5703 = vmatprep.subr.mxu0 0.0
        %5704 = vmatpush1.msra.mxu0 0.0
        %5705 = vmatprep.subr.mxu0 0.0
        %5706 = vmatpush1.msra.mxu0 0.0
        %5707 = vmatprep.subr.mxu0 0.0
        %5708 = vmatpush1.msra.mxu0 0.0
        %5709 = vmatprep.subr.mxu0 0.0
        %5710 = vmatpush1.msra.mxu0 0.0
        %5711 = vmatprep.subr.mxu0 0.0
        %5712 = vmatpush1.msra.mxu0 0.0
        %5713 = vmatprep.subr.mxu0 0.0
        %5714 = vmatpush1.msra.mxu0 0.0
        %5715 = vmatprep.subr.mxu0 0.0
        %5716 = vmatpush1.msra.mxu0 0.0
        %5717 = vmatprep.subr.mxu0 0.0
        %5718 = vmatpush1.msra.mxu0 0.0
        %5719 = vmatprep.subr.mxu0 0.0
        %5720 = vmatpush1.msra.mxu0 0.0
        %5721 = vmatprep.subr.mxu0 0.0
        %5722 = vmatpush1.msra.mxu0 0.0
        %5723 = vmatprep.subr.mxu0 0.0
        %5724 = vmatpush1.msra.mxu0 0.0
        %5725 = vmatprep.subr.mxu0 0.0
        %5726 = vmatpush1.msra.mxu0 0.0
        %5727 = vmatprep.subr.mxu0 0.0
        %5728 = vmatpush1.msra.mxu0 0.0
        %5729 = vmatprep.subr.mxu0 0.0
        %5730 = vmatpush1.msra.mxu0 0.0
        %5731 = vmatprep.subr.mxu0 0.0
        %5732 = vmatpush1.msra.mxu0 0.0
        %5733 = vmatprep.subr.mxu0 0.0
        %5734 = vmatpush1.msra.mxu0 0.0
        %5735 = vmatprep.subr.mxu0 0.0
        %5736 = vmatpush1.msra.mxu0 0.0
        %5737 = vmatprep.subr.mxu0 0.0
        %5738 = vmatpush1.msra.mxu0 0.0
        %5739 = vmatprep.subr.mxu0 0.0
        %5740 = vmatpush1.msra.mxu0 0.0
        %5741 = vmatprep.subr.mxu0 0.0
        %5742 = vmatpush1.msra.mxu0 0.0
        %5743 = vmatprep.subr.mxu0 0.0
        %5744 = vmatpush1.msra.mxu0 0.0
        %5745 = vmatprep.subr.mxu0 0.0
        %5746 = vmatpush1.msra.mxu0 0.0
        %5747 = vmatprep.subr.mxu0 0.0
        %5748 = vmatpush1.msra.mxu0 0.0
        %5749 = vmatprep.subr.mxu0 0.0
        %5750 = vmatpush1.msra.mxu0 0.0
        %5751 = vmatprep.subr.mxu0 0.0
        %5752 = vmatpush1.msra.mxu0 0.0
        %5753 = vmatprep.subr.mxu0 0.0
        %5754 = vmatpush1.msra.mxu0 0.0
        %5755 = vmatprep.subr.mxu0 0.0
        %5756 = vmatpush1.msra.mxu0 0.0
        %5757 = vmatprep.subr.mxu0 0.0
        %5758 = vmatpush1.msra.mxu0 0.0
        %5759 = vmatprep.mubr.f32.mxu0 0.0
        %5760 = vmatmul.mubr.f32.gmra.mrb[0].mxu0 %v5684
        %v5761 = vpop.f32.mrb[0].mxu0
        %v5762 = vadd.f32 0.0, %v5761
        %v5763 = vpop.f32.mrb[0].mxu0
        %v5764 = vadd.f32 0.0, %v5763
        %5765 = vmatprep.mubr.f32.mxu0 0.0
        %5766 = vmatmul.mubr.f32.gmra.mrb[0].mxu0 %v5687
        %v5767 = vpop.f32.mrb[0].mxu0
        %v5768 = vadd.f32 0.0, %v5767
        %v5769 = vpop.f32.mrb[0].mxu0
        %v5770 = vadd.f32 0.0, %v5769
        %5771 = vmatprep.mubr.f32.mxu0 0.0
        %5772 = vmatmul.mubr.f32.gmra.mrb[0].mxu0 %v5690
        %v5773 = vpop.f32.mrb[0].mxu0
        %v5774 = vadd.f32 0.0, %v5773
        %v5775 = vpop.f32.mrb[0].mxu0
        %v5776 = vadd.f32 0.0, %v5775
        %5777 = vmatprep.mubr.f32.mxu0 0.0
        %5778 = vmatmul.mubr.f32.gmra.mrb[0].mxu0 %v5693
        %v5779 = vpop.f32.mrb[0].mxu0
        %v5780 = vadd.f32 0.0, %v5779
        %v5781 = vpop.f32.mrb[0].mxu0
        %v5782 = vadd.f32 0.0, %v5781
        %5783 = vdwg.mxu0
        %v5784 = vadd.f32 %v5671, %v5762
        %v5785 = vadd.f32 %v5672, %v5764
        %v5786 = vadd.f32 %v5673, %v5768
        %v5787 = vadd.f32 %v5674, %v5770
        %v5788 = vadd.f32 %v5675, %v5774
        %v5789 = vadd.f32 %v5676, %v5776
        %v5790 = vadd.f32 %v5677, %v5780
        %v5791 = vadd.f32 %v5678, %v5782
        %5792 = vset.pattern.permute.xlu0 4
        %5793 = vperm.xlu0 %5792, %v5268
        %v5794 = vpop.permute.xlu0 %5793
        %5796 = vset.pattern.permute.xlu0 4
        %5797 = vperm.xlu0 %5796, %v5269
        %v5798 = vpop.permute.xlu0 %5797
        %5800 = vset.pattern.permute.xlu0 4
        %5801 = vperm.xlu0 %5800, %v5270
        %v5802 = vpop.permute.xlu0 %5801
        %5804 = vset.pattern.permute.xlu0 4
        %5805 = vperm.xlu0 %5804, %v5271
        %v5806 = vpop.permute.xlu0 %5805
        %v5808 = vadd.f32 %v5784, %v5794
        %v5809 = vadd.f32 %v5785, %v5794
        %v5810 = vadd.f32 %v5786, %v5798
        %v5811 = vadd.f32 %v5787, %v5798
        %v5812 = vadd.f32 %v5788, %v5802
        %v5813 = vadd.f32 %v5789, %v5802
        %v5814 = vadd.f32 %v5790, %v5806
        %v5815 = vadd.f32 %v5791, %v5806
        %v5816 = vmax.f32 %v5808, 0.0
        %v5817 = vmax.f32 %v5809, 0.0
        %v5818 = vmax.f32 %v5810, 0.0
        %v5819 = vmax.f32 %v5811, 0.0
        %v5820 = vmax.f32 %v5812, 0.0
        %v5821 = vmax.f32 %v5813, 0.0
        %v5822 = vmax.f32 %v5814, 0.0
        %v5823 = vmax.f32 %v5815, 0.0
        %v5824 = vld [vmem:[%s2 + $0xa0] sm:$0xff]
        %v5825 = vld [vmem:[%s2 + $0xa8] sm:$0xff]
        %v5826 = vld [vmem:[%s2 + $0xb0] sm:$0xff]
        %v5827 = vld [vmem:[%s2 + $0xb8] sm:$0xff]
        %5828 = vset.pattern.permute.xlu0 5
        %5829 = vperm.xlu0 %5828, %v5268
        %v5830 = vpop.permute.xlu0 %5829
        %5832 = vset.pattern.permute.xlu0 5
        %5833 = vperm.xlu0 %5832, %v5269
        %v5834 = vpop.permute.xlu0 %5833
        %5836 = vset.pattern.permute.xlu0 5
        %5837 = vperm.xlu0 %5836, %v5270
        %v5838 = vpop.permute.xlu0 %5837
        %5840 = vset.pattern.permute.xlu0 5
        %5841 = vperm.xlu0 %5840, %v5271
        %v5842 = vpop.permute.xlu0 %5841
        %v5845 = vsel %vm1261, %v5824, 0
        %v5848 = vsel %vm1261, %v5825, 0
        %v5851 = vsel %vm1261, %v5826, 0
        %v5854 = vsel %vm1261, %v5827, 0
        %5856 = vmatprep.subr.mxu0 %v5817
        %5857 = vmatpush1.msra.mxu0 %v5816
        %5858 = vmatprep.subr.mxu0 %v5819
        %5859 = vmatpush1.msra.mxu0 %v5818
        %5860 = vmatprep.subr.mxu0 %v5821
        %5861 = vmatpush1.msra.mxu0 %v5820
        %5862 = vmatprep.subr.mxu0 %v5823
        %5863 = vmatpush1.msra.mxu0 %v5822
        %5864 = vmatprep.subr.mxu0 0.0
        %5865 = vmatpush1.msra.mxu0 0.0
        %5866 = vmatprep.subr.mxu0 0.0
        %5867 = vmatpush1.msra.mxu0 0.0
        %5868 = vmatprep.subr.mxu0 0.0
        %5869 = vmatpush1.msra.mxu0 0.0
        %5870 = vmatprep.subr.mxu0 0.0
        %5871 = vmatpush1.msra.mxu0 0.0
        %5872 = vmatprep.subr.mxu0 0.0
        %5873 = vmatpush1.msra.mxu0 0.0
        %5874 = vmatprep.subr.mxu0 0.0
        %5875 = vmatpush1.msra.mxu0 0.0
        %5876 = vmatprep.subr.mxu0 0.0
        %5877 = vmatpush1.msra.mxu0 0.0
        %5878 = vmatprep.subr.mxu0 0.0
        %5879 = vmatpush1.msra.mxu0 0.0
        %5880 = vmatprep.subr.mxu0 0.0
        %5881 = vmatpush1.msra.mxu0 0.0
        %5882 = vmatprep.subr.mxu0 0.0
        %5883 = vmatpush1.msra.mxu0 0.0
        %5884 = vmatprep.subr.mxu0 0.0
        %5885 = vmatpush1.msra.mxu0 0.0
        %5886 = vmatprep.subr.mxu0 0.0
        %5887 = vmatpush1.msra.mxu0 0.0
        %5888 = vmatprep.subr.mxu0 0.0
        %5889 = vmatpush1.msra.mxu0 0.0
        %5890 = vmatprep.subr.mxu0 0.0
        %5891 = vmatpush1.msra.mxu0 0.0
        %5892 = vmatprep.subr.mxu0 0.0
        %5893 = vmatpush1.msra.mxu0 0.0
        %5894 = vmatprep.subr.mxu0 0.0
        %5895 = vmatpush1.msra.mxu0 0.0
        %5896 = vmatprep.subr.mxu0 0.0
        %5897 = vmatpush1.msra.mxu0 0.0
        %5898 = vmatprep.subr.mxu0 0.0
        %5899 = vmatpush1.msra.mxu0 0.0
        %5900 = vmatprep.subr.mxu0 0.0
        %5901 = vmatpush1.msra.mxu0 0.0
        %5902 = vmatprep.subr.mxu0 0.0
        %5903 = vmatpush1.msra.mxu0 0.0
        %5904 = vmatprep.subr.mxu0 0.0
        %5905 = vmatpush1.msra.mxu0 0.0
        %5906 = vmatprep.subr.mxu0 0.0
        %5907 = vmatpush1.msra.mxu0 0.0
        %5908 = vmatprep.subr.mxu0 0.0
        %5909 = vmatpush1.msra.mxu0 0.0
        %5910 = vmatprep.subr.mxu0 0.0
        %5911 = vmatpush1.msra.mxu0 0.0
        %5912 = vmatprep.subr.mxu0 0.0
        %5913 = vmatpush1.msra.mxu0 0.0
        %5914 = vmatprep.subr.mxu0 0.0
        %5915 = vmatpush1.msra.mxu0 0.0
        %5916 = vmatprep.subr.mxu0 0.0
        %5917 = vmatpush1.msra.mxu0 0.0
        %5918 = vmatprep.subr.mxu0 0.0
        %5919 = vmatpush1.msra.mxu0 0.0
        %5920 = vmatprep.mubr.f32.mxu0 0.0
        %5921 = vmatmul.mubr.f32.gmra.mrb[0].mxu0 %v5845
        %v5922 = vpop.f32.mrb[0].mxu0
        %v5923 = vadd.f32 %v5830, %v5922
        %v5924 = vpop.f32.mrb[0].mxu0
        %v5925 = vadd.f32 %v5830, %v5924
        %5926 = vmatprep.mubr.f32.mxu0 0.0
        %5927 = vmatmul.mubr.f32.gmra.mrb[0].mxu0 %v5848
        %v5928 = vpop.f32.mrb[0].mxu0
        %v5929 = vadd.f32 %v5834, %v5928
        %v5930 = vpop.f32.mrb[0].mxu0
        %v5931 = vadd.f32 %v5834, %v5930
        %5932 = vmatprep.mubr.f32.mxu0 0.0
        %5933 = vmatmul.mubr.f32.gmra.mrb[0].mxu0 %v5851
        %v5934 = vpop.f32.mrb[0].mxu0
        %v5935 = vadd.f32 %v5838, %v5934
        %v5936 = vpop.f32.mrb[0].mxu0
        %v5937 = vadd.f32 %v5838, %v5936
        %5938 = vmatprep.mubr.f32.mxu0 0.0
        %5939 = vmatmul.mubr.f32.gmra.mrb[0].mxu0 %v5854
        %v5940 = vpop.f32.mrb[0].mxu0
        %v5941 = vadd.f32 %v5842, %v5940
        %v5942 = vpop.f32.mrb[0].mxu0
        %v5943 = vadd.f32 %v5842, %v5942
        %5944 = vdwg.mxu0
        %v5945 = vmax.f32 %v5923, 0.0
        %v5946 = vmax.f32 %v5925, 0.0
        %v5947 = vmax.f32 %v5929, 0.0
        %v5948 = vmax.f32 %v5931, 0.0
        %v5949 = vmax.f32 %v5935, 0.0
        %v5950 = vmax.f32 %v5937, 0.0
        %v5951 = vmax.f32 %v5941, 0.0
        %v5952 = vmax.f32 %v5943, 0.0
        %v5953 = vld [vmem:[%s2 + $0xc0] sm:$0xff]
        %v5954 = vld [vmem:[%s2 + $0xc8] sm:$0xff]
        %v5955 = vld [vmem:[%s2 + $0xd0] sm:$0xff]
        %v5956 = vld [vmem:[%s2 + $0xd8] sm:$0xff]
        %5957 = vset.pattern.permute.xlu0 6
        %5958 = vperm.xlu0 %5957, %v5268
        %v5959 = vpop.permute.xlu0 %5958
        %5961 = vset.pattern.permute.xlu0 6
        %5962 = vperm.xlu0 %5961, %v5269
        %v5963 = vpop.permute.xlu0 %5962
        %5964 = vset.pattern.permute.xlu0 6
        %5965 = vperm.xlu0 %5964, %v5270
        %v5966 = vpop.permute.xlu0 %5965
        %5967 = vset.pattern.permute.xlu0 6
        %5968 = vperm.xlu0 %5967, %v5271
        %v5969 = vpop.permute.xlu0 %5968
        %v5971 = vsel %vm1261, %v5953, 0
        %v5974 = vsel %vm1261, %v5954, 0
        %v5977 = vsel %vm1261, %v5955, 0
        %v5980 = vsel %vm1261, %v5956, 0
        %5982 = vmatprep.subr.mxu0 %v5946
        %5983 = vmatpush1.msra.mxu0 %v5945
        %5984 = vmatprep.subr.mxu0 %v5948
        %5985 = vmatpush1.msra.mxu0 %v5947
        %5986 = vmatprep.subr.mxu0 %v5950
        %5987 = vmatpush1.msra.mxu0 %v5949
        %5988 = vmatprep.subr.mxu0 %v5952
        %5989 = vmatpush1.msra.mxu0 %v5951
        %5990 = vmatprep.subr.mxu0 0.0
        %5991 = vmatpush1.msra.mxu0 0.0
        %5992 = vmatprep.subr.mxu0 0.0
        %5993 = vmatpush1.msra.mxu0 0.0
        %5994 = vmatprep.subr.mxu0 0.0
        %5995 = vmatpush1.msra.mxu0 0.0
        %5996 = vmatprep.subr.mxu0 0.0
        %5997 = vmatpush1.msra.mxu0 0.0
        %5998 = vmatprep.subr.mxu0 0.0
        %5999 = vmatpush1.msra.mxu0 0.0
        %6000 = vmatprep.subr.mxu0 0.0
        %6001 = vmatpush1.msra.mxu0 0.0
        %6002 = vmatprep.subr.mxu0 0.0
        %6003 = vmatpush1.msra.mxu0 0.0
        %6004 = vmatprep.subr.mxu0 0.0
        %6005 = vmatpush1.msra.mxu0 0.0
        %6006 = vmatprep.subr.mxu0 0.0
        %6007 = vmatpush1.msra.mxu0 0.0
        %6008 = vmatprep.subr.mxu0 0.0
        %6009 = vmatpush1.msra.mxu0 0.0
        %6010 = vmatprep.subr.mxu0 0.0
        %6011 = vmatpush1.msra.mxu0 0.0
        %6012 = vmatprep.subr.mxu0 0.0
        %6013 = vmatpush1.msra.mxu0 0.0
        %6014 = vmatprep.subr.mxu0 0.0
        %6015 = vmatpush1.msra.mxu0 0.0
        %6016 = vmatprep.subr.mxu0 0.0
        %6017 = vmatpush1.msra.mxu0 0.0
        %6018 = vmatprep.subr.mxu0 0.0
        %6019 = vmatpush1.msra.mxu0 0.0
        %6020 = vmatprep.subr.mxu0 0.0
        %6021 = vmatpush1.msra.mxu0 0.0
        %6022 = vmatprep.subr.mxu0 0.0
        %6023 = vmatpush1.msra.mxu0 0.0
        %6024 = vmatprep.subr.mxu0 0.0
        %6025 = vmatpush1.msra.mxu0 0.0
        %6026 = vmatprep.subr.mxu0 0.0
        %6027 = vmatpush1.msra.mxu0 0.0
        %6028 = vmatprep.subr.mxu0 0.0
        %6029 = vmatpush1.msra.mxu0 0.0
        %6030 = vmatprep.subr.mxu0 0.0
        %6031 = vmatpush1.msra.mxu0 0.0
        %6032 = vmatprep.subr.mxu0 0.0
        %6033 = vmatpush1.msra.mxu0 0.0
        %6034 = vmatprep.subr.mxu0 0.0
        %6035 = vmatpush1.msra.mxu0 0.0
        %6036 = vmatprep.subr.mxu0 0.0
        %6037 = vmatpush1.msra.mxu0 0.0
        %6038 = vmatprep.subr.mxu0 0.0
        %6039 = vmatpush1.msra.mxu0 0.0
        %6040 = vmatprep.subr.mxu0 0.0
        %6041 = vmatpush1.msra.mxu0 0.0
        %6042 = vmatprep.subr.mxu0 0.0
        %6043 = vmatpush1.msra.mxu0 0.0
        %6044 = vmatprep.subr.mxu0 0.0
        %6045 = vmatpush1.msra.mxu0 0.0
        %6046 = vmatprep.mubr.f32.mxu0 0.0
        %6047 = vmatmul.mubr.f32.gmra.mrb[0].mxu0 %v5971
        %v6048 = vpop.f32.mrb[0].mxu0
        %v6049 = vadd.f32 %v5959, %v6048
        %v6050 = vpop.f32.mrb[0].mxu0
        %v6051 = vadd.f32 %v5959, %v6050
        %6052 = vmatprep.mubr.f32.mxu0 0.0
        %6053 = vmatmul.mubr.f32.gmra.mrb[0].mxu0 %v5974
        %v6054 = vpop.f32.mrb[0].mxu0
        %v6055 = vpop.f32.mrb[0].mxu0
        %6056 = vmatprep.mubr.f32.mxu0 0.0
        %6057 = vmatmul.mubr.f32.gmra.mrb[0].mxu0 %v5977
        %v6058 = vpop.f32.mrb[0].mxu0
        %v6059 = vpop.f32.mrb[0].mxu0
        %6060 = vmatprep.mubr.f32.mxu0 0.0
        %6061 = vmatmul.mubr.f32.gmra.mrb[0].mxu0 %v5980
        %v6062 = vpop.f32.mrb[0].mxu0
        %v6063 = vpop.f32.mrb[0].mxu0
        %6064 = vdwg.mxu0
        %v6067 = vcombine.low %v6049, %v6051
        %s6069 = scalar_lea.vmem %s191, 16 [#allocation2]
        %6070 = vst [vmem:[%s6069] sm:$0x77] %v6067
        %s6071 = scalar_lea.vmem %s196, 24
        %v6072 = vld [vmem:[%s6071] sm:$0xff]
        %v6073 = vld [vmem:[%s1] sm:$0xff]
        %v6074 = vld [vmem:[%s1 + $0x8] sm:$0xff]
        %v6075 = vld [vmem:[%s1 + $0x10] sm:$0xff]
        %v6076 = vld [vmem:[%s1 + $0x18] sm:$0xff]
        %v6077 = vld [vmem:[%s1 + $0x20] sm:$0xff]
        %v6078 = vld [vmem:[%s1 + $0x28] sm:$0xff]
        %v6079 = vld [vmem:[%s1 + $0x30] sm:$0xff]
        %v6080 = vld [vmem:[%s1 + $0x38] sm:$0xff]
        %v6081 = vld [vmem:[%s1 + $0x40] sm:$0xff]
        %v6082 = vld [vmem:[%s1 + $0x48] sm:$0xff]
        %v6083 = vld [vmem:[%s1 + $0x50] sm:$0xff]
        %v6084 = vld [vmem:[%s1 + $0x58] sm:$0xff]
        %v6086 = vcombine.high %v6072, %v6072
        %v6088 = vsel %vm218, %v6073, 0
        %v6091 = vsel %vm218, %v6074, 0
        %v6094 = vsel %vm218, %v6075, 0
        %v6097 = vsel %vm218, %v6076, 0
        %v6100 = vsel %vm218, %v6077, 0
        %v6103 = vsel %vm218, %v6078, 0
        %v6106 = vsel %vm218, %v6079, 0
        %v6109 = vsel %vm218, %v6080, 0
        %v6112 = vsel %vm218, %v6081, 0
        %v6115 = vsel %vm218, %v6082, 0
        %v6118 = vsel %vm218, %v6083, 0
        %v6121 = vsel %vm218, %v6084, 0
        %v6123 = vsel %vm255, %v6072, 0
        %v6125 = vsel %vm255, %v6086, 0
        %6127 = vmatprep.subr.mxu0 %v6125
        %6128 = vmatpush1.msra.mxu0 %v6123
        %6129 = vmatprep.subr.mxu0 0.0
        %6130 = vmatpush1.msra.mxu0 0.0
        %6131 = vmatprep.subr.mxu0 0.0
        %6132 = vmatpush1.msra.mxu0 0.0
        %6133 = vmatprep.subr.mxu0 0.0
        %6134 = vmatpush1.msra.mxu0 0.0
        %6135 = vmatprep.subr.mxu0 0.0
        %6136 = vmatpush1.msra.mxu0 0.0
        %6137 = vmatprep.subr.mxu0 0.0
        %6138 = vmatpush1.msra.mxu0 0.0
        %6139 = vmatprep.subr.mxu0 0.0
        %6140 = vmatpush1.msra.mxu0 0.0
        %6141 = vmatprep.subr.mxu0 0.0
        %6142 = vmatpush1.msra.mxu0 0.0
        %6143 = vmatprep.subr.mxu0 0.0
        %6144 = vmatpush1.msra.mxu0 0.0
        %6145 = vmatprep.subr.mxu0 0.0
        %6146 = vmatpush1.msra.mxu0 0.0
        %6147 = vmatprep.subr.mxu0 0.0
        %6148 = vmatpush1.msra.mxu0 0.0
        %6149 = vmatprep.subr.mxu0 0.0
        %6150 = vmatpush1.msra.mxu0 0.0
        %6151 = vmatprep.subr.mxu0 0.0
        %6152 = vmatpush1.msra.mxu0 0.0
        %6153 = vmatprep.subr.mxu0 0.0
        %6154 = vmatpush1.msra.mxu0 0.0
        %6155 = vmatprep.subr.mxu0 0.0
        %6156 = vmatpush1.msra.mxu0 0.0
        %6157 = vmatprep.subr.mxu0 0.0
        %6158 = vmatpush1.msra.mxu0 0.0
        %6159 = vmatprep.subr.mxu0 0.0
        %6160 = vmatpush1.msra.mxu0 0.0
        %6161 = vmatprep.subr.mxu0 0.0
        %6162 = vmatpush1.msra.mxu0 0.0
        %6163 = vmatprep.subr.mxu0 0.0
        %6164 = vmatpush1.msra.mxu0 0.0
        %6165 = vmatprep.subr.mxu0 0.0
        %6166 = vmatpush1.msra.mxu0 0.0
        %6167 = vmatprep.subr.mxu0 0.0
        %6168 = vmatpush1.msra.mxu0 0.0
        %6169 = vmatprep.subr.mxu0 0.0
        %6170 = vmatpush1.msra.mxu0 0.0
        %6171 = vmatprep.subr.mxu0 0.0
        %6172 = vmatpush1.msra.mxu0 0.0
        %6173 = vmatprep.subr.mxu0 0.0
        %6174 = vmatpush1.msra.mxu0 0.0
        %6175 = vmatprep.subr.mxu0 0.0
        %6176 = vmatpush1.msra.mxu0 0.0
        %6177 = vmatprep.subr.mxu0 0.0
        %6178 = vmatpush1.msra.mxu0 0.0
        %6179 = vmatprep.subr.mxu0 0.0
        %6180 = vmatpush1.msra.mxu0 0.0
        %6181 = vmatprep.subr.mxu0 0.0
        %6182 = vmatpush1.msra.mxu0 0.0
        %6183 = vmatprep.subr.mxu0 0.0
        %6184 = vmatpush1.msra.mxu0 0.0
        %6185 = vmatprep.subr.mxu0 0.0
        %6186 = vmatpush1.msra.mxu0 0.0
        %6187 = vmatprep.subr.mxu0 0.0
        %6188 = vmatpush1.msra.mxu0 0.0
        %6189 = vmatprep.subr.mxu0 0.0
        %6190 = vmatpush1.msra.mxu0 0.0
        %6191 = vmatprep.mubr.f32.mxu0 0.0
        %6192 = vmatmul.mubr.f32.gmra.mrb[0].mxu0 %v6088
        %v6193 = vpop.f32.mrb[0].mxu0
        %v6194 = vadd.f32 0.0, %v6193
        %v6195 = vpop.f32.mrb[0].mxu0
        %v6196 = vadd.f32 0.0, %v6195
        %6197 = vmatprep.mubr.f32.mxu0 0.0
        %6198 = vmatmul.mubr.f32.gmra.mrb[0].mxu0 %v6091
        %v6199 = vpop.f32.mrb[0].mxu0
        %v6200 = vadd.f32 0.0, %v6199
        %v6201 = vpop.f32.mrb[0].mxu0
        %v6202 = vadd.f32 0.0, %v6201
        %6203 = vmatprep.mubr.f32.mxu0 0.0
        %6204 = vmatmul.mubr.f32.gmra.mrb[0].mxu0 %v6094
        %v6205 = vpop.f32.mrb[0].mxu0
        %v6206 = vadd.f32 0.0, %v6205
        %v6207 = vpop.f32.mrb[0].mxu0
        %v6208 = vadd.f32 0.0, %v6207
        %6209 = vmatprep.mubr.f32.mxu0 0.0
        %6210 = vmatmul.mubr.f32.gmra.mrb[0].mxu0 %v6097
        %v6211 = vpop.f32.mrb[0].mxu0
        %v6212 = vadd.f32 0.0, %v6211
        %v6213 = vpop.f32.mrb[0].mxu0
        %v6214 = vadd.f32 0.0, %v6213
        %6215 = vmatprep.mubr.f32.mxu0 0.0
        %6216 = vmatmul.mubr.f32.gmra.mrb[0].mxu0 %v6100
        %v6217 = vpop.f32.mrb[0].mxu0
        %v6218 = vadd.f32 0.0, %v6217
        %v6219 = vpop.f32.mrb[0].mxu0
        %v6220 = vadd.f32 0.0, %v6219
        %6221 = vmatprep.mubr.f32.mxu0 0.0
        %6222 = vmatmul.mubr.f32.gmra.mrb[0].mxu0 %v6103
        %v6223 = vpop.f32.mrb[0].mxu0
        %v6224 = vadd.f32 0.0, %v6223
        %v6225 = vpop.f32.mrb[0].mxu0
        %v6226 = vadd.f32 0.0, %v6225
        %6227 = vmatprep.mubr.f32.mxu0 0.0
        %6228 = vmatmul.mubr.f32.gmra.mrb[0].mxu0 %v6106
        %v6229 = vpop.f32.mrb[0].mxu0
        %v6230 = vadd.f32 0.0, %v6229
        %v6231 = vpop.f32.mrb[0].mxu0
        %v6232 = vadd.f32 0.0, %v6231
        %6233 = vmatprep.mubr.f32.mxu0 0.0
        %6234 = vmatmul.mubr.f32.gmra.mrb[0].mxu0 %v6109
        %v6235 = vpop.f32.mrb[0].mxu0
        %v6236 = vadd.f32 0.0, %v6235
        %v6237 = vpop.f32.mrb[0].mxu0
        %v6238 = vadd.f32 0.0, %v6237
        %6239 = vmatprep.mubr.f32.mxu0 0.0
        %6240 = vmatmul.mubr.f32.gmra.mrb[0].mxu0 %v6112
        %v6241 = vpop.f32.mrb[0].mxu0
        %v6242 = vadd.f32 0.0, %v6241
        %v6243 = vpop.f32.mrb[0].mxu0
        %v6244 = vadd.f32 0.0, %v6243
        %6245 = vmatprep.mubr.f32.mxu0 0.0
        %6246 = vmatmul.mubr.f32.gmra.mrb[0].mxu0 %v6115
        %v6247 = vpop.f32.mrb[0].mxu0
        %v6248 = vadd.f32 0.0, %v6247
        %v6249 = vpop.f32.mrb[0].mxu0
        %v6250 = vadd.f32 0.0, %v6249
        %6251 = vmatprep.mubr.f32.mxu0 0.0
        %6252 = vmatmul.mubr.f32.gmra.mrb[0].mxu0 %v6118
        %v6253 = vpop.f32.mrb[0].mxu0
        %v6254 = vadd.f32 0.0, %v6253
        %v6255 = vpop.f32.mrb[0].mxu0
        %v6256 = vadd.f32 0.0, %v6255
        %6257 = vmatprep.mubr.f32.mxu0 0.0
        %6258 = vmatmul.mubr.f32.gmra.mrb[0].mxu0 %v6121
        %v6259 = vpop.f32.mrb[0].mxu0
        %v6260 = vadd.f32 0.0, %v6259
        %v6261 = vpop.f32.mrb[0].mxu0
        %v6262 = vadd.f32 0.0, %v6261
        %6263 = vdwg.mxu0
        %v6264 = vadd.f32 %v6194, %v400
        %v6265 = vadd.f32 %v6196, %v400
        %v6266 = vadd.f32 %v6200, %v405
        %v6267 = vadd.f32 %v6202, %v405
        %v6268 = vadd.f32 %v6206, %v410
        %v6269 = vadd.f32 %v6208, %v410
        %v6270 = vadd.f32 %v6212, %v415
        %v6271 = vadd.f32 %v6214, %v415
        %v6272 = vand.u32 2147483647, %v6264
        %vm6273 = vcmp.le.f32.partialorder %v6272, 0.7853982
        %vm6274 = vcmp.lt.s32.totalorder %v6264, 0
        %v6275 = vand.u32 %v6264, 2139095040
        %v6276 = vshrl.u32 %v6275, 23
        %v6277 = vsub.s32 %v6276, 127
        %v6278 = vand.u32 2147483647, %v6264
        %v6279 = vand.u32 %v6278, 8388607
        %v6280 = vor.u32 %v6279, 8388608
        %v6281 = vsub.s32 0, %v6280
        %v6282 = vadd.s32 %v6277, 1
        %vm6283 = vcmp.gt.s32.totalorder %v6282, 0
        %v6284 = vsel %vm6283, %v6282, 0
        %v6285 = vshrl.u32 %v6284, 5
        %v6286 = vand.u32 %v6284, 31
        %v6287 = vsub.s32 32, %v6286
        %v6288 = vshrl.u32 683565275, %v6287
        %v6289 = vshll.u32 683565275, %v6286
        %v6290 = vshrl.u32 2475754826, %v6287
        %v6291 = vor.u32 %v6289, %v6290
        %v6292 = vshll.u32 2475754826, %v6286
        %v6293 = vshrl.u32 2131351028, %v6287
        %v6294 = vor.u32 %v6292, %v6293
        %v6295 = vshll.u32 2131351028, %v6286
        %v6296 = vshrl.u32 2102212464, %v6287
        %v6297 = vor.u32 %v6295, %v6296
        %v6298 = vshll.u32 2102212464, %v6286
        %v6299 = vshrl.u32 920167782, %v6287
        %v6300 = vor.u32 %v6298, %v6299
        %v6301 = vshll.u32 920167782, %v6286
        %v6302 = vshrl.u32 1326507024, %v6287
        %v6303 = vor.u32 %v6301, %v6302
        %vm6304 = vcmp.lt.s32.totalorder %v6285, 1
        %vm6305 = vcmp.lt.s32.totalorder %v6285, 2
        %vm6306 = vcmp.lt.s32.totalorder %v6285, 3
        %vm6307 = vcmp.lt.s32.totalorder %v6285, 4
        %v6308 = vsel %vm6304, %v6288, %v6291
        %v6309 = vsel %vm6307, %v6297, 2102212464
        %v6310 = vsel %vm6306, %v6294, %v6309
        %v6311 = vsel %vm6305, %v6308, %v6310
        %v6312 = vsel %vm6304, %v6291, %v6294
        %v6313 = vsel %vm6307, %v6300, 920167782
        %v6314 = vsel %vm6306, %v6297, %v6313
        %v6315 = vsel %vm6305, %v6312, %v6314
        %v6316 = vsel %vm6304, %v6294, %v6297
        %v6317 = vsel %vm6307, %v6303, 1326507024
        %v6318 = vsel %vm6306, %v6300, %v6317
        %v6319 = vsel %vm6305, %v6316, %v6318
        %v6320 = vshll.u32 %v6280, 8
        %v6321 = vmul.u32.u64.compose %v6320, %v6319
        %v6322 = vextract.low.u32 %v6321
        %v6323 = vextract.high.u32 %v6321
        %v6324 = vmul.u32.u64.compose %v6320, %v6315
        %v6325 = vextract.low.u32 %v6324
        %v6326 = vextract.high.u32 %v6324
        %v6327 = vmul.u32 %v6320, %v6311
        %v6328 = vadd.s32 %v6323, %v6325
        %vm6329 = vc.u32 %v6323, %v6325
        %v6330 = vadd.s32 %v6326, 1
        %v6331 = vsel %vm6329, %v6330, %v6326
        %v6332 = vadd.s32 %v6327, %v6331
        %v6333 = vadd.s32 %v6332, 536870912
        %v6334 = vshrl.u32 %v6333, 30
        %v6335 = vshll.u32 %v6334, 30
        %v6336 = vsub.s32 %v6332, %v6335
        %vm6337 = vcmp.lt.s32.totalorder %v6336, 0
        %v6338 = vsub.s32 0, %v6336
        %v6339 = vsel %vm6337, %v6338, %v6336
        %v6340 = vclz %v6339
        %v6341 = vsub.s32 %v6340, 2
        %vm6342 = vcmp.gt.s32.totalorder 0, %v6341
        %v6343 = vsel %vm6342, 0, %v6341
        %v6344 = vsub.s32 32, %v6343
        %v6345 = vshll.u32 %v6336, %v6343
        %v6346 = vshrl.u32 %v6328, %v6344
        %v6347 = vor.u32 %v6345, %v6346
        %v6348 = vsub.s32 4294967266, %v6343
        %v6349 = vadd.s32 %v6348, 127
        %v6350 = vshll.u32 %v6349, 23
        %v6351 = vor.u32 4788187, %v6350
        %v6352 = vand.u32 2147483647, %v6351
        %v6354 = vcvt.s32.f32 %v6347
        %v6355 = vmul.f32 %v6354, %v6352
        %v6356 = vxor.u32 %v6355, 2147483648
        %v6357 = vsel %vm6274, %v6356, %v6355
        %v6358 = vsub.s32 4, %v6334
        %v6359 = vsel %vm6274, %v6358, %v6334
        %v6360 = vsel %vm6273, %v6264, %v6357
        %v6361 = vsel %vm6273, 0, %v6359
        %v6362 = vcosq.f32.pop %v6360
        %v6363 = vsinq.f32.pop %v6360
        %vm6364 = vweird.f32 %v6264
        %v6365 = vadd.s32 %v6361, 3
        %v6366 = vand.u32 %v6365, 3
        %vm6367 = vcmp.lt.s32.totalorder %v6366, 2
        %vm6368 = vcmp.eq.s32.totalorder %v6366, 0
        %v6369 = vxor.u32 %v6363, 2147483648
        %v6370 = vsel %vm6368, %v6362, %v6369
        %vm6371 = vcmp.eq.s32.totalorder %v6366, 2
        %v6372 = vxor.u32 %v6362, 2147483648
        %v6373 = vsel %vm6371, %v6372, %v6363
        %v6374 = vsel %vm6367, %v6370, %v6373
        %v6375 = vsel %vm6364, nan, %v6374
        %v6376 = vand.u32 2147483647, %v6265
        %vm6377 = vcmp.le.f32.partialorder %v6376, 0.7853982
        %vm6378 = vcmp.lt.s32.totalorder %v6265, 0
        %v6379 = vand.u32 %v6265, 2139095040
        %v6380 = vshrl.u32 %v6379, 23
        %v6381 = vsub.s32 %v6380, 127
        %v6382 = vand.u32 2147483647, %v6265
        %v6383 = vand.u32 %v6382, 8388607
        %v6384 = vor.u32 %v6383, 8388608
        %v6385 = vsub.s32 0, %v6384
        %v6386 = vadd.s32 %v6381, 1
        %vm6387 = vcmp.gt.s32.totalorder %v6386, 0
        %v6388 = vsel %vm6387, %v6386, 0
        %v6389 = vshrl.u32 %v6388, 5
        %v6390 = vand.u32 %v6388, 31
        %v6391 = vsub.s32 32, %v6390
        %v6392 = vshrl.u32 683565275, %v6391
        %v6393 = vshll.u32 683565275, %v6390
        %v6394 = vshrl.u32 2475754826, %v6391
        %v6395 = vor.u32 %v6393, %v6394
        %v6396 = vshll.u32 2475754826, %v6390
        %v6397 = vshrl.u32 2131351028, %v6391
        %v6398 = vor.u32 %v6396, %v6397
        %v6399 = vshll.u32 2131351028, %v6390
        %v6400 = vshrl.u32 2102212464, %v6391
        %v6401 = vor.u32 %v6399, %v6400
        %v6402 = vshll.u32 2102212464, %v6390
        %v6403 = vshrl.u32 920167782, %v6391
        %v6404 = vor.u32 %v6402, %v6403
        %v6405 = vshll.u32 920167782, %v6390
        %v6406 = vshrl.u32 1326507024, %v6391
        %v6407 = vor.u32 %v6405, %v6406
        %vm6408 = vcmp.lt.s32.totalorder %v6389, 1
        %vm6409 = vcmp.lt.s32.totalorder %v6389, 2
        %vm6410 = vcmp.lt.s32.totalorder %v6389, 3
        %vm6411 = vcmp.lt.s32.totalorder %v6389, 4
        %v6412 = vsel %vm6408, %v6392, %v6395
        %v6413 = vsel %vm6411, %v6401, 2102212464
        %v6414 = vsel %vm6410, %v6398, %v6413
        %v6415 = vsel %vm6409, %v6412, %v6414
        %v6416 = vsel %vm6408, %v6395, %v6398
        %v6417 = vsel %vm6411, %v6404, 920167782
        %v6418 = vsel %vm6410, %v6401, %v6417
        %v6419 = vsel %vm6409, %v6416, %v6418
        %v6420 = vsel %vm6408, %v6398, %v6401
        %v6421 = vsel %vm6411, %v6407, 1326507024
        %v6422 = vsel %vm6410, %v6404, %v6421
        %v6423 = vsel %vm6409, %v6420, %v6422
        %v6424 = vshll.u32 %v6384, 8
        %v6425 = vmul.u32.u64.compose %v6424, %v6423
        %v6426 = vextract.low.u32 %v6425
        %v6427 = vextract.high.u32 %v6425
        %v6428 = vmul.u32.u64.compose %v6424, %v6419
        %v6429 = vextract.low.u32 %v6428
        %v6430 = vextract.high.u32 %v6428
        %v6431 = vmul.u32 %v6424, %v6415
        %v6432 = vadd.s32 %v6427, %v6429
        %vm6433 = vc.u32 %v6427, %v6429
        %v6434 = vadd.s32 %v6430, 1
        %v6435 = vsel %vm6433, %v6434, %v6430
        %v6436 = vadd.s32 %v6431, %v6435
        %v6437 = vadd.s32 %v6436, 536870912
        %v6438 = vshrl.u32 %v6437, 30
        %v6439 = vshll.u32 %v6438, 30
        %v6440 = vsub.s32 %v6436, %v6439
        %vm6441 = vcmp.lt.s32.totalorder %v6440, 0
        %v6442 = vsub.s32 0, %v6440
        %v6443 = vsel %vm6441, %v6442, %v6440
        %v6444 = vclz %v6443
        %v6445 = vsub.s32 %v6444, 2
        %vm6446 = vcmp.gt.s32.totalorder 0, %v6445
        %v6447 = vsel %vm6446, 0, %v6445
        %v6448 = vsub.s32 32, %v6447
        %v6449 = vshll.u32 %v6440, %v6447
        %v6450 = vshrl.u32 %v6432, %v6448
        %v6451 = vor.u32 %v6449, %v6450
        %v6452 = vsub.s32 4294967266, %v6447
        %v6453 = vadd.s32 %v6452, 127
        %v6454 = vshll.u32 %v6453, 23
        %v6455 = vor.u32 4788187, %v6454
        %v6456 = vand.u32 2147483647, %v6455
        %v6458 = vcvt.s32.f32 %v6451
        %v6459 = vmul.f32 %v6458, %v6456
        %v6460 = vxor.u32 %v6459, 2147483648
        %v6461 = vsel %vm6378, %v6460, %v6459
        %v6462 = vsub.s32 4, %v6438
        %v6463 = vsel %vm6378, %v6462, %v6438
        %v6464 = vsel %vm6377, %v6265, %v6461
        %v6465 = vsel %vm6377, 0, %v6463
        %v6466 = vcosq.f32.pop %v6464
        %v6467 = vsinq.f32.pop %v6464
        %vm6468 = vweird.f32 %v6265
        %v6469 = vadd.s32 %v6465, 3
        %v6470 = vand.u32 %v6469, 3
        %vm6471 = vcmp.lt.s32.totalorder %v6470, 2
        %vm6472 = vcmp.eq.s32.totalorder %v6470, 0
        %v6473 = vxor.u32 %v6467, 2147483648
        %v6474 = vsel %vm6472, %v6466, %v6473
        %vm6475 = vcmp.eq.s32.totalorder %v6470, 2
        %v6476 = vxor.u32 %v6466, 2147483648
        %v6477 = vsel %vm6475, %v6476, %v6467
        %v6478 = vsel %vm6471, %v6474, %v6477
        %v6479 = vsel %vm6468, nan, %v6478
        %v6480 = vand.u32 2147483647, %v6266
        %vm6481 = vcmp.le.f32.partialorder %v6480, 0.7853982
        %vm6482 = vcmp.lt.s32.totalorder %v6266, 0
        %v6483 = vand.u32 %v6266, 2139095040
        %v6484 = vshrl.u32 %v6483, 23
        %v6485 = vsub.s32 %v6484, 127
        %v6486 = vand.u32 2147483647, %v6266
        %v6487 = vand.u32 %v6486, 8388607
        %v6488 = vor.u32 %v6487, 8388608
        %v6489 = vsub.s32 0, %v6488
        %v6490 = vadd.s32 %v6485, 1
        %vm6491 = vcmp.gt.s32.totalorder %v6490, 0
        %v6492 = vsel %vm6491, %v6490, 0
        %v6493 = vshrl.u32 %v6492, 5
        %v6494 = vand.u32 %v6492, 31
        %v6495 = vsub.s32 32, %v6494
        %v6496 = vshrl.u32 683565275, %v6495
        %v6497 = vshll.u32 683565275, %v6494
        %v6498 = vshrl.u32 2475754826, %v6495
        %v6499 = vor.u32 %v6497, %v6498
        %v6500 = vshll.u32 2475754826, %v6494
        %v6501 = vshrl.u32 2131351028, %v6495
        %v6502 = vor.u32 %v6500, %v6501
        %v6503 = vshll.u32 2131351028, %v6494
        %v6504 = vshrl.u32 2102212464, %v6495
        %v6505 = vor.u32 %v6503, %v6504
        %v6506 = vshll.u32 2102212464, %v6494
        %v6507 = vshrl.u32 920167782, %v6495
        %v6508 = vor.u32 %v6506, %v6507
        %v6509 = vshll.u32 920167782, %v6494
        %v6510 = vshrl.u32 1326507024, %v6495
        %v6511 = vor.u32 %v6509, %v6510
        %vm6512 = vcmp.lt.s32.totalorder %v6493, 1
        %vm6513 = vcmp.lt.s32.totalorder %v6493, 2
        %vm6514 = vcmp.lt.s32.totalorder %v6493, 3
        %vm6515 = vcmp.lt.s32.totalorder %v6493, 4
        %v6516 = vsel %vm6512, %v6496, %v6499
        %v6517 = vsel %vm6515, %v6505, 2102212464
        %v6518 = vsel %vm6514, %v6502, %v6517
        %v6519 = vsel %vm6513, %v6516, %v6518
        %v6520 = vsel %vm6512, %v6499, %v6502
        %v6521 = vsel %vm6515, %v6508, 920167782
        %v6522 = vsel %vm6514, %v6505, %v6521
        %v6523 = vsel %vm6513, %v6520, %v6522
        %v6524 = vsel %vm6512, %v6502, %v6505
        %v6525 = vsel %vm6515, %v6511, 1326507024
        %v6526 = vsel %vm6514, %v6508, %v6525
        %v6527 = vsel %vm6513, %v6524, %v6526
        %v6528 = vshll.u32 %v6488, 8
        %v6529 = vmul.u32.u64.compose %v6528, %v6527
        %v6530 = vextract.low.u32 %v6529
        %v6531 = vextract.high.u32 %v6529
        %v6532 = vmul.u32.u64.compose %v6528, %v6523
        %v6533 = vextract.low.u32 %v6532
        %v6534 = vextract.high.u32 %v6532
        %v6535 = vmul.u32 %v6528, %v6519
        %v6536 = vadd.s32 %v6531, %v6533
        %vm6537 = vc.u32 %v6531, %v6533
        %v6538 = vadd.s32 %v6534, 1
        %v6539 = vsel %vm6537, %v6538, %v6534
        %v6540 = vadd.s32 %v6535, %v6539
        %v6541 = vadd.s32 %v6540, 536870912
        %v6542 = vshrl.u32 %v6541, 30
        %v6543 = vshll.u32 %v6542, 30
        %v6544 = vsub.s32 %v6540, %v6543
        %vm6545 = vcmp.lt.s32.totalorder %v6544, 0
        %v6546 = vsub.s32 0, %v6544
        %v6547 = vsel %vm6545, %v6546, %v6544
        %v6548 = vclz %v6547
        %v6549 = vsub.s32 %v6548, 2
        %vm6550 = vcmp.gt.s32.totalorder 0, %v6549
        %v6551 = vsel %vm6550, 0, %v6549
        %v6552 = vsub.s32 32, %v6551
        %v6553 = vshll.u32 %v6544, %v6551
        %v6554 = vshrl.u32 %v6536, %v6552
        %v6555 = vor.u32 %v6553, %v6554
        %v6556 = vsub.s32 4294967266, %v6551
        %v6557 = vadd.s32 %v6556, 127
        %v6558 = vshll.u32 %v6557, 23
        %v6559 = vor.u32 4788187, %v6558
        %v6560 = vand.u32 2147483647, %v6559
        %v6562 = vcvt.s32.f32 %v6555
        %v6563 = vmul.f32 %v6562, %v6560
        %v6564 = vxor.u32 %v6563, 2147483648
        %v6565 = vsel %vm6482, %v6564, %v6563
        %v6566 = vsub.s32 4, %v6542
        %v6567 = vsel %vm6482, %v6566, %v6542
        %v6568 = vsel %vm6481, %v6266, %v6565
        %v6569 = vsel %vm6481, 0, %v6567
        %v6570 = vcosq.f32.pop %v6568
        %v6571 = vsinq.f32.pop %v6568
        %vm6572 = vweird.f32 %v6266
        %v6573 = vadd.s32 %v6569, 3
        %v6574 = vand.u32 %v6573, 3
        %vm6575 = vcmp.lt.s32.totalorder %v6574, 2
        %vm6576 = vcmp.eq.s32.totalorder %v6574, 0
        %v6577 = vxor.u32 %v6571, 2147483648
        %v6578 = vsel %vm6576, %v6570, %v6577
        %vm6579 = vcmp.eq.s32.totalorder %v6574, 2
        %v6580 = vxor.u32 %v6570, 2147483648
        %v6581 = vsel %vm6579, %v6580, %v6571
        %v6582 = vsel %vm6575, %v6578, %v6581
        %v6583 = vsel %vm6572, nan, %v6582
        %v6584 = vand.u32 2147483647, %v6267
        %vm6585 = vcmp.le.f32.partialorder %v6584, 0.7853982
        %vm6586 = vcmp.lt.s32.totalorder %v6267, 0
        %v6587 = vand.u32 %v6267, 2139095040
        %v6588 = vshrl.u32 %v6587, 23
        %v6589 = vsub.s32 %v6588, 127
        %v6590 = vand.u32 2147483647, %v6267
        %v6591 = vand.u32 %v6590, 8388607
        %v6592 = vor.u32 %v6591, 8388608
        %v6593 = vsub.s32 0, %v6592
        %v6594 = vadd.s32 %v6589, 1
        %vm6595 = vcmp.gt.s32.totalorder %v6594, 0
        %v6596 = vsel %vm6595, %v6594, 0
        %v6597 = vshrl.u32 %v6596, 5
        %v6598 = vand.u32 %v6596, 31
        %v6599 = vsub.s32 32, %v6598
        %v6600 = vshrl.u32 683565275, %v6599
        %v6601 = vshll.u32 683565275, %v6598
        %v6602 = vshrl.u32 2475754826, %v6599
        %v6603 = vor.u32 %v6601, %v6602
        %v6604 = vshll.u32 2475754826, %v6598
        %v6605 = vshrl.u32 2131351028, %v6599
        %v6606 = vor.u32 %v6604, %v6605
        %v6607 = vshll.u32 2131351028, %v6598
        %v6608 = vshrl.u32 2102212464, %v6599
        %v6609 = vor.u32 %v6607, %v6608
        %v6610 = vshll.u32 2102212464, %v6598
        %v6611 = vshrl.u32 920167782, %v6599
        %v6612 = vor.u32 %v6610, %v6611
        %v6613 = vshll.u32 920167782, %v6598
        %v6614 = vshrl.u32 1326507024, %v6599
        %v6615 = vor.u32 %v6613, %v6614
        %vm6616 = vcmp.lt.s32.totalorder %v6597, 1
        %vm6617 = vcmp.lt.s32.totalorder %v6597, 2
        %vm6618 = vcmp.lt.s32.totalorder %v6597, 3
        %vm6619 = vcmp.lt.s32.totalorder %v6597, 4
        %v6620 = vsel %vm6616, %v6600, %v6603
        %v6621 = vsel %vm6619, %v6609, 2102212464
        %v6622 = vsel %vm6618, %v6606, %v6621
        %v6623 = vsel %vm6617, %v6620, %v6622
        %v6624 = vsel %vm6616, %v6603, %v6606
        %v6625 = vsel %vm6619, %v6612, 920167782
        %v6626 = vsel %vm6618, %v6609, %v6625
        %v6627 = vsel %vm6617, %v6624, %v6626
        %v6628 = vsel %vm6616, %v6606, %v6609
        %v6629 = vsel %vm6619, %v6615, 1326507024
        %v6630 = vsel %vm6618, %v6612, %v6629
        %v6631 = vsel %vm6617, %v6628, %v6630
        %v6632 = vshll.u32 %v6592, 8
        %v6633 = vmul.u32.u64.compose %v6632, %v6631
        %v6634 = vextract.low.u32 %v6633
        %v6635 = vextract.high.u32 %v6633
        %v6636 = vmul.u32.u64.compose %v6632, %v6627
        %v6637 = vextract.low.u32 %v6636
        %v6638 = vextract.high.u32 %v6636
        %v6639 = vmul.u32 %v6632, %v6623
        %v6640 = vadd.s32 %v6635, %v6637
        %vm6641 = vc.u32 %v6635, %v6637
        %v6642 = vadd.s32 %v6638, 1
        %v6643 = vsel %vm6641, %v6642, %v6638
        %v6644 = vadd.s32 %v6639, %v6643
        %v6645 = vadd.s32 %v6644, 536870912
        %v6646 = vshrl.u32 %v6645, 30
        %v6647 = vshll.u32 %v6646, 30
        %v6648 = vsub.s32 %v6644, %v6647
        %vm6649 = vcmp.lt.s32.totalorder %v6648, 0
        %v6650 = vsub.s32 0, %v6648
        %v6651 = vsel %vm6649, %v6650, %v6648
        %v6652 = vclz %v6651
        %v6653 = vsub.s32 %v6652, 2
        %vm6654 = vcmp.gt.s32.totalorder 0, %v6653
        %v6655 = vsel %vm6654, 0, %v6653
        %v6656 = vsub.s32 32, %v6655
        %v6657 = vshll.u32 %v6648, %v6655
        %v6658 = vshrl.u32 %v6640, %v6656
        %v6659 = vor.u32 %v6657, %v6658
        %v6660 = vsub.s32 4294967266, %v6655
        %v6661 = vadd.s32 %v6660, 127
        %v6662 = vshll.u32 %v6661, 23
        %v6663 = vor.u32 4788187, %v6662
        %v6664 = vand.u32 2147483647, %v6663
        %v6666 = vcvt.s32.f32 %v6659
        %v6667 = vmul.f32 %v6666, %v6664
        %v6668 = vxor.u32 %v6667, 2147483648
        %v6669 = vsel %vm6586, %v6668, %v6667
        %v6670 = vsub.s32 4, %v6646
        %v6671 = vsel %vm6586, %v6670, %v6646
        %v6672 = vsel %vm6585, %v6267, %v6669
        %v6673 = vsel %vm6585, 0, %v6671
        %v6674 = vcosq.f32.pop %v6672
        %v6675 = vsinq.f32.pop %v6672
        %vm6676 = vweird.f32 %v6267
        %v6677 = vadd.s32 %v6673, 3
        %v6678 = vand.u32 %v6677, 3
        %vm6679 = vcmp.lt.s32.totalorder %v6678, 2
        %vm6680 = vcmp.eq.s32.totalorder %v6678, 0
        %v6681 = vxor.u32 %v6675, 2147483648
        %v6682 = vsel %vm6680, %v6674, %v6681
        %vm6683 = vcmp.eq.s32.totalorder %v6678, 2
        %v6684 = vxor.u32 %v6674, 2147483648
        %v6685 = vsel %vm6683, %v6684, %v6675
        %v6686 = vsel %vm6679, %v6682, %v6685
        %v6687 = vsel %vm6676, nan, %v6686
        %v6688 = vand.u32 2147483647, %v6268
        %vm6689 = vcmp.le.f32.partialorder %v6688, 0.7853982
        %vm6690 = vcmp.lt.s32.totalorder %v6268, 0
        %v6691 = vand.u32 %v6268, 2139095040
        %v6692 = vshrl.u32 %v6691, 23
        %v6693 = vsub.s32 %v6692, 127
        %v6694 = vand.u32 2147483647, %v6268
        %v6695 = vand.u32 %v6694, 8388607
        %v6696 = vor.u32 %v6695, 8388608
        %v6697 = vsub.s32 0, %v6696
        %v6698 = vadd.s32 %v6693, 1
        %vm6699 = vcmp.gt.s32.totalorder %v6698, 0
        %v6700 = vsel %vm6699, %v6698, 0
        %v6701 = vshrl.u32 %v6700, 5
        %v6702 = vand.u32 %v6700, 31
        %v6703 = vsub.s32 32, %v6702
        %v6704 = vshrl.u32 683565275, %v6703
        %v6705 = vshll.u32 683565275, %v6702
        %v6706 = vshrl.u32 2475754826, %v6703
        %v6707 = vor.u32 %v6705, %v6706
        %v6708 = vshll.u32 2475754826, %v6702
        %v6709 = vshrl.u32 2131351028, %v6703
        %v6710 = vor.u32 %v6708, %v6709
        %v6711 = vshll.u32 2131351028, %v6702
        %v6712 = vshrl.u32 2102212464, %v6703
        %v6713 = vor.u32 %v6711, %v6712
        %v6714 = vshll.u32 2102212464, %v6702
        %v6715 = vshrl.u32 920167782, %v6703
        %v6716 = vor.u32 %v6714, %v6715
        %v6717 = vshll.u32 920167782, %v6702
        %v6718 = vshrl.u32 1326507024, %v6703
        %v6719 = vor.u32 %v6717, %v6718
        %vm6720 = vcmp.lt.s32.totalorder %v6701, 1
        %vm6721 = vcmp.lt.s32.totalorder %v6701, 2
        %vm6722 = vcmp.lt.s32.totalorder %v6701, 3
        %vm6723 = vcmp.lt.s32.totalorder %v6701, 4
        %v6724 = vsel %vm6720, %v6704, %v6707
        %v6725 = vsel %vm6723, %v6713, 2102212464
        %v6726 = vsel %vm6722, %v6710, %v6725
        %v6727 = vsel %vm6721, %v6724, %v6726
        %v6728 = vsel %vm6720, %v6707, %v6710
        %v6729 = vsel %vm6723, %v6716, 920167782
        %v6730 = vsel %vm6722, %v6713, %v6729
        %v6731 = vsel %vm6721, %v6728, %v6730
        %v6732 = vsel %vm6720, %v6710, %v6713
        %v6733 = vsel %vm6723, %v6719, 1326507024
        %v6734 = vsel %vm6722, %v6716, %v6733
        %v6735 = vsel %vm6721, %v6732, %v6734
        %v6736 = vshll.u32 %v6696, 8
        %v6737 = vmul.u32.u64.compose %v6736, %v6735
        %v6738 = vextract.low.u32 %v6737
        %v6739 = vextract.high.u32 %v6737
        %v6740 = vmul.u32.u64.compose %v6736, %v6731
        %v6741 = vextract.low.u32 %v6740
        %v6742 = vextract.high.u32 %v6740
        %v6743 = vmul.u32 %v6736, %v6727
        %v6744 = vadd.s32 %v6739, %v6741
        %vm6745 = vc.u32 %v6739, %v6741
        %v6746 = vadd.s32 %v6742, 1
        %v6747 = vsel %vm6745, %v6746, %v6742
        %v6748 = vadd.s32 %v6743, %v6747
        %v6749 = vadd.s32 %v6748, 536870912
        %v6750 = vshrl.u32 %v6749, 30
        %v6751 = vshll.u32 %v6750, 30
        %v6752 = vsub.s32 %v6748, %v6751
        %vm6753 = vcmp.lt.s32.totalorder %v6752, 0
        %v6754 = vsub.s32 0, %v6752
        %v6755 = vsel %vm6753, %v6754, %v6752
        %v6756 = vclz %v6755
        %v6757 = vsub.s32 %v6756, 2
        %vm6758 = vcmp.gt.s32.totalorder 0, %v6757
        %v6759 = vsel %vm6758, 0, %v6757
        %v6760 = vsub.s32 32, %v6759
        %v6761 = vshll.u32 %v6752, %v6759
        %v6762 = vshrl.u32 %v6744, %v6760
        %v6763 = vor.u32 %v6761, %v6762
        %v6764 = vsub.s32 4294967266, %v6759
        %v6765 = vadd.s32 %v6764, 127
        %v6766 = vshll.u32 %v6765, 23
        %v6767 = vor.u32 4788187, %v6766
        %v6768 = vand.u32 2147483647, %v6767
        %v6770 = vcvt.s32.f32 %v6763
        %v6771 = vmul.f32 %v6770, %v6768
        %v6772 = vxor.u32 %v6771, 2147483648
        %v6773 = vsel %vm6690, %v6772, %v6771
        %v6774 = vsub.s32 4, %v6750
        %v6775 = vsel %vm6690, %v6774, %v6750
        %v6776 = vsel %vm6689, %v6268, %v6773
        %v6777 = vsel %vm6689, 0, %v6775
        %v6778 = vcosq.f32.pop %v6776
        %v6779 = vsinq.f32.pop %v6776
        %vm6780 = vweird.f32 %v6268
        %v6781 = vadd.s32 %v6777, 3
        %v6782 = vand.u32 %v6781, 3
        %vm6783 = vcmp.lt.s32.totalorder %v6782, 2
        %vm6784 = vcmp.eq.s32.totalorder %v6782, 0
        %v6785 = vxor.u32 %v6779, 2147483648
        %v6786 = vsel %vm6784, %v6778, %v6785
        %vm6787 = vcmp.eq.s32.totalorder %v6782, 2
        %v6788 = vxor.u32 %v6778, 2147483648
        %v6789 = vsel %vm6787, %v6788, %v6779
        %v6790 = vsel %vm6783, %v6786, %v6789
        %v6791 = vsel %vm6780, nan, %v6790
        %v6792 = vand.u32 2147483647, %v6269
        %vm6793 = vcmp.le.f32.partialorder %v6792, 0.7853982
        %vm6794 = vcmp.lt.s32.totalorder %v6269, 0
        %v6795 = vand.u32 %v6269, 2139095040
        %v6796 = vshrl.u32 %v6795, 23
        %v6797 = vsub.s32 %v6796, 127
        %v6798 = vand.u32 2147483647, %v6269
        %v6799 = vand.u32 %v6798, 8388607
        %v6800 = vor.u32 %v6799, 8388608
        %v6801 = vsub.s32 0, %v6800
        %v6802 = vadd.s32 %v6797, 1
        %vm6803 = vcmp.gt.s32.totalorder %v6802, 0
        %v6804 = vsel %vm6803, %v6802, 0
        %v6805 = vshrl.u32 %v6804, 5
        %v6806 = vand.u32 %v6804, 31
        %v6807 = vsub.s32 32, %v6806
        %v6808 = vshrl.u32 683565275, %v6807
        %v6809 = vshll.u32 683565275, %v6806
        %v6810 = vshrl.u32 2475754826, %v6807
        %v6811 = vor.u32 %v6809, %v6810
        %v6812 = vshll.u32 2475754826, %v6806
        %v6813 = vshrl.u32 2131351028, %v6807
        %v6814 = vor.u32 %v6812, %v6813
        %v6815 = vshll.u32 2131351028, %v6806
        %v6816 = vshrl.u32 2102212464, %v6807
        %v6817 = vor.u32 %v6815, %v6816
        %v6818 = vshll.u32 2102212464, %v6806
        %v6819 = vshrl.u32 920167782, %v6807
        %v6820 = vor.u32 %v6818, %v6819
        %v6821 = vshll.u32 920167782, %v6806
        %v6822 = vshrl.u32 1326507024, %v6807
        %v6823 = vor.u32 %v6821, %v6822
        %vm6824 = vcmp.lt.s32.totalorder %v6805, 1
        %vm6825 = vcmp.lt.s32.totalorder %v6805, 2
        %vm6826 = vcmp.lt.s32.totalorder %v6805, 3
        %vm6827 = vcmp.lt.s32.totalorder %v6805, 4
        %v6828 = vsel %vm6824, %v6808, %v6811
        %v6829 = vsel %vm6827, %v6817, 2102212464
        %v6830 = vsel %vm6826, %v6814, %v6829
        %v6831 = vsel %vm6825, %v6828, %v6830
        %v6832 = vsel %vm6824, %v6811, %v6814
        %v6833 = vsel %vm6827, %v6820, 920167782
        %v6834 = vsel %vm6826, %v6817, %v6833
        %v6835 = vsel %vm6825, %v6832, %v6834
        %v6836 = vsel %vm6824, %v6814, %v6817
        %v6837 = vsel %vm6827, %v6823, 1326507024
        %v6838 = vsel %vm6826, %v6820, %v6837
        %v6839 = vsel %vm6825, %v6836, %v6838
        %v6840 = vshll.u32 %v6800, 8
        %v6841 = vmul.u32.u64.compose %v6840, %v6839
        %v6842 = vextract.low.u32 %v6841
        %v6843 = vextract.high.u32 %v6841
        %v6844 = vmul.u32.u64.compose %v6840, %v6835
        %v6845 = vextract.low.u32 %v6844
        %v6846 = vextract.high.u32 %v6844
        %v6847 = vmul.u32 %v6840, %v6831
        %v6848 = vadd.s32 %v6843, %v6845
        %vm6849 = vc.u32 %v6843, %v6845
        %v6850 = vadd.s32 %v6846, 1
        %v6851 = vsel %vm6849, %v6850, %v6846
        %v6852 = vadd.s32 %v6847, %v6851
        %v6853 = vadd.s32 %v6852, 536870912
        %v6854 = vshrl.u32 %v6853, 30
        %v6855 = vshll.u32 %v6854, 30
        %v6856 = vsub.s32 %v6852, %v6855
        %vm6857 = vcmp.lt.s32.totalorder %v6856, 0
        %v6858 = vsub.s32 0, %v6856
        %v6859 = vsel %vm6857, %v6858, %v6856
        %v6860 = vclz %v6859
        %v6861 = vsub.s32 %v6860, 2
        %vm6862 = vcmp.gt.s32.totalorder 0, %v6861
        %v6863 = vsel %vm6862, 0, %v6861
        %v6864 = vsub.s32 32, %v6863
        %v6865 = vshll.u32 %v6856, %v6863
        %v6866 = vshrl.u32 %v6848, %v6864
        %v6867 = vor.u32 %v6865, %v6866
        %v6868 = vsub.s32 4294967266, %v6863
        %v6869 = vadd.s32 %v6868, 127
        %v6870 = vshll.u32 %v6869, 23
        %v6871 = vor.u32 4788187, %v6870
        %v6872 = vand.u32 2147483647, %v6871
        %v6874 = vcvt.s32.f32 %v6867
        %v6875 = vmul.f32 %v6874, %v6872
        %v6876 = vxor.u32 %v6875, 2147483648
        %v6877 = vsel %vm6794, %v6876, %v6875
        %v6878 = vsub.s32 4, %v6854
        %v6879 = vsel %vm6794, %v6878, %v6854
        %v6880 = vsel %vm6793, %v6269, %v6877
        %v6881 = vsel %vm6793, 0, %v6879
        %v6882 = vcosq.f32.pop %v6880
        %v6883 = vsinq.f32.pop %v6880
        %vm6884 = vweird.f32 %v6269
        %v6885 = vadd.s32 %v6881, 3
        %v6886 = vand.u32 %v6885, 3
        %vm6887 = vcmp.lt.s32.totalorder %v6886, 2
        %vm6888 = vcmp.eq.s32.totalorder %v6886, 0
        %v6889 = vxor.u32 %v6883, 2147483648
        %v6890 = vsel %vm6888, %v6882, %v6889
        %vm6891 = vcmp.eq.s32.totalorder %v6886, 2
        %v6892 = vxor.u32 %v6882, 2147483648
        %v6893 = vsel %vm6891, %v6892, %v6883
        %v6894 = vsel %vm6887, %v6890, %v6893
        %v6895 = vsel %vm6884, nan, %v6894
        %v6896 = vand.u32 2147483647, %v6270
        %vm6897 = vcmp.le.f32.partialorder %v6896, 0.7853982
        %vm6898 = vcmp.lt.s32.totalorder %v6270, 0
        %v6899 = vand.u32 %v6270, 2139095040
        %v6900 = vshrl.u32 %v6899, 23
        %v6901 = vsub.s32 %v6900, 127
        %v6902 = vand.u32 2147483647, %v6270
        %v6903 = vand.u32 %v6902, 8388607
        %v6904 = vor.u32 %v6903, 8388608
        %v6905 = vsub.s32 0, %v6904
        %v6906 = vadd.s32 %v6901, 1
        %vm6907 = vcmp.gt.s32.totalorder %v6906, 0
        %v6908 = vsel %vm6907, %v6906, 0
        %v6909 = vshrl.u32 %v6908, 5
        %v6910 = vand.u32 %v6908, 31
        %v6911 = vsub.s32 32, %v6910
        %v6912 = vshrl.u32 683565275, %v6911
        %v6913 = vshll.u32 683565275, %v6910
        %v6914 = vshrl.u32 2475754826, %v6911
        %v6915 = vor.u32 %v6913, %v6914
        %v6916 = vshll.u32 2475754826, %v6910
        %v6917 = vshrl.u32 2131351028, %v6911
        %v6918 = vor.u32 %v6916, %v6917
        %v6919 = vshll.u32 2131351028, %v6910
        %v6920 = vshrl.u32 2102212464, %v6911
        %v6921 = vor.u32 %v6919, %v6920
        %v6922 = vshll.u32 2102212464, %v6910
        %v6923 = vshrl.u32 920167782, %v6911
        %v6924 = vor.u32 %v6922, %v6923
        %v6925 = vshll.u32 920167782, %v6910
        %v6926 = vshrl.u32 1326507024, %v6911
        %v6927 = vor.u32 %v6925, %v6926
        %vm6928 = vcmp.lt.s32.totalorder %v6909, 1
        %vm6929 = vcmp.lt.s32.totalorder %v6909, 2
        %vm6930 = vcmp.lt.s32.totalorder %v6909, 3
        %vm6931 = vcmp.lt.s32.totalorder %v6909, 4
        %v6932 = vsel %vm6928, %v6912, %v6915
        %v6933 = vsel %vm6931, %v6921, 2102212464
        %v6934 = vsel %vm6930, %v6918, %v6933
        %v6935 = vsel %vm6929, %v6932, %v6934
        %v6936 = vsel %vm6928, %v6915, %v6918
        %v6937 = vsel %vm6931, %v6924, 920167782
        %v6938 = vsel %vm6930, %v6921, %v6937
        %v6939 = vsel %vm6929, %v6936, %v6938
        %v6940 = vsel %vm6928, %v6918, %v6921
        %v6941 = vsel %vm6931, %v6927, 1326507024
        %v6942 = vsel %vm6930, %v6924, %v6941
        %v6943 = vsel %vm6929, %v6940, %v6942
        %v6944 = vshll.u32 %v6904, 8
        %v6945 = vmul.u32.u64.compose %v6944, %v6943
        %v6946 = vextract.low.u32 %v6945
        %v6947 = vextract.high.u32 %v6945
        %v6948 = vmul.u32.u64.compose %v6944, %v6939
        %v6949 = vextract.low.u32 %v6948
        %v6950 = vextract.high.u32 %v6948
        %v6951 = vmul.u32 %v6944, %v6935
        %v6952 = vadd.s32 %v6947, %v6949
        %vm6953 = vc.u32 %v6947, %v6949
        %v6954 = vadd.s32 %v6950, 1
        %v6955 = vsel %vm6953, %v6954, %v6950
        %v6956 = vadd.s32 %v6951, %v6955
        %v6957 = vadd.s32 %v6956, 536870912
        %v6958 = vshrl.u32 %v6957, 30
        %v6959 = vshll.u32 %v6958, 30
        %v6960 = vsub.s32 %v6956, %v6959
        %vm6961 = vcmp.lt.s32.totalorder %v6960, 0
        %v6962 = vsub.s32 0, %v6960
        %v6963 = vsel %vm6961, %v6962, %v6960
        %v6964 = vclz %v6963
        %v6965 = vsub.s32 %v6964, 2
        %vm6966 = vcmp.gt.s32.totalorder 0, %v6965
        %v6967 = vsel %vm6966, 0, %v6965
        %v6968 = vsub.s32 32, %v6967
        %v6969 = vshll.u32 %v6960, %v6967
        %v6970 = vshrl.u32 %v6952, %v6968
        %v6971 = vor.u32 %v6969, %v6970
        %v6972 = vsub.s32 4294967266, %v6967
        %v6973 = vadd.s32 %v6972, 127
        %v6974 = vshll.u32 %v6973, 23
        %v6975 = vor.u32 4788187, %v6974
        %v6976 = vand.u32 2147483647, %v6975
        %v6978 = vcvt.s32.f32 %v6971
        %v6979 = vmul.f32 %v6978, %v6976
        %v6980 = vxor.u32 %v6979, 2147483648
        %v6981 = vsel %vm6898, %v6980, %v6979
        %v6982 = vsub.s32 4, %v6958
        %v6983 = vsel %vm6898, %v6982, %v6958
        %v6984 = vsel %vm6897, %v6270, %v6981
        %v6985 = vsel %vm6897, 0, %v6983
        %v6986 = vcosq.f32.pop %v6984
        %v6987 = vsinq.f32.pop %v6984
        %vm6988 = vweird.f32 %v6270
        %v6989 = vadd.s32 %v6985, 3
        %v6990 = vand.u32 %v6989, 3
        %vm6991 = vcmp.lt.s32.totalorder %v6990, 2
        %vm6992 = vcmp.eq.s32.totalorder %v6990, 0
        %v6993 = vxor.u32 %v6987, 2147483648
        %v6994 = vsel %vm6992, %v6986, %v6993
        %vm6995 = vcmp.eq.s32.totalorder %v6990, 2
        %v6996 = vxor.u32 %v6986, 2147483648
        %v6997 = vsel %vm6995, %v6996, %v6987
        %v6998 = vsel %vm6991, %v6994, %v6997
        %v6999 = vsel %vm6988, nan, %v6998
        %v7000 = vand.u32 2147483647, %v6271
        %vm7001 = vcmp.le.f32.partialorder %v7000, 0.7853982
        %vm7002 = vcmp.lt.s32.totalorder %v6271, 0
        %v7003 = vand.u32 %v6271, 2139095040
        %v7004 = vshrl.u32 %v7003, 23
        %v7005 = vsub.s32 %v7004, 127
        %v7006 = vand.u32 2147483647, %v6271
        %v7007 = vand.u32 %v7006, 8388607
        %v7008 = vor.u32 %v7007, 8388608
        %v7009 = vsub.s32 0, %v7008
        %v7010 = vadd.s32 %v7005, 1
        %vm7011 = vcmp.gt.s32.totalorder %v7010, 0
        %v7012 = vsel %vm7011, %v7010, 0
        %v7013 = vshrl.u32 %v7012, 5
        %v7014 = vand.u32 %v7012, 31
        %v7015 = vsub.s32 32, %v7014
        %v7016 = vshrl.u32 683565275, %v7015
        %v7017 = vshll.u32 683565275, %v7014
        %v7018 = vshrl.u32 2475754826, %v7015
        %v7019 = vor.u32 %v7017, %v7018
        %v7020 = vshll.u32 2475754826, %v7014
        %v7021 = vshrl.u32 2131351028, %v7015
        %v7022 = vor.u32 %v7020, %v7021
        %v7023 = vshll.u32 2131351028, %v7014
        %v7024 = vshrl.u32 2102212464, %v7015
        %v7025 = vor.u32 %v7023, %v7024
        %v7026 = vshll.u32 2102212464, %v7014
        %v7027 = vshrl.u32 920167782, %v7015
        %v7028 = vor.u32 %v7026, %v7027
        %v7029 = vshll.u32 920167782, %v7014
        %v7030 = vshrl.u32 1326507024, %v7015
        %v7031 = vor.u32 %v7029, %v7030
        %vm7032 = vcmp.lt.s32.totalorder %v7013, 1
        %vm7033 = vcmp.lt.s32.totalorder %v7013, 2
        %vm7034 = vcmp.lt.s32.totalorder %v7013, 3
        %vm7035 = vcmp.lt.s32.totalorder %v7013, 4
        %v7036 = vsel %vm7032, %v7016, %v7019
        %v7037 = vsel %vm7035, %v7025, 2102212464
        %v7038 = vsel %vm7034, %v7022, %v7037
        %v7039 = vsel %vm7033, %v7036, %v7038
        %v7040 = vsel %vm7032, %v7019, %v7022
        %v7041 = vsel %vm7035, %v7028, 920167782
        %v7042 = vsel %vm7034, %v7025, %v7041
        %v7043 = vsel %vm7033, %v7040, %v7042
        %v7044 = vsel %vm7032, %v7022, %v7025
        %v7045 = vsel %vm7035, %v7031, 1326507024
        %v7046 = vsel %vm7034, %v7028, %v7045
        %v7047 = vsel %vm7033, %v7044, %v7046
        %v7048 = vshll.u32 %v7008, 8
        %v7049 = vmul.u32.u64.compose %v7048, %v7047
        %v7050 = vextract.low.u32 %v7049
        %v7051 = vextract.high.u32 %v7049
        %v7052 = vmul.u32.u64.compose %v7048, %v7043
        %v7053 = vextract.low.u32 %v7052
        %v7054 = vextract.high.u32 %v7052
        %v7055 = vmul.u32 %v7048, %v7039
        %v7056 = vadd.s32 %v7051, %v7053
        %vm7057 = vc.u32 %v7051, %v7053
        %v7058 = vadd.s32 %v7054, 1
        %v7059 = vsel %vm7057, %v7058, %v7054
        %v7060 = vadd.s32 %v7055, %v7059
        %v7061 = vadd.s32 %v7060, 536870912
        %v7062 = vshrl.u32 %v7061, 30
        %v7063 = vshll.u32 %v7062, 30
        %v7064 = vsub.s32 %v7060, %v7063
        %vm7065 = vcmp.lt.s32.totalorder %v7064, 0
        %v7066 = vsub.s32 0, %v7064
        %v7067 = vsel %vm7065, %v7066, %v7064
        %v7068 = vclz %v7067
        %v7069 = vsub.s32 %v7068, 2
        %vm7070 = vcmp.gt.s32.totalorder 0, %v7069
        %v7071 = vsel %vm7070, 0, %v7069
        %v7072 = vsub.s32 32, %v7071
        %v7073 = vshll.u32 %v7064, %v7071
        %v7074 = vshrl.u32 %v7056, %v7072
        %v7075 = vor.u32 %v7073, %v7074
        %v7076 = vsub.s32 4294967266, %v7071
        %v7077 = vadd.s32 %v7076, 127
        %v7078 = vshll.u32 %v7077, 23
        %v7079 = vor.u32 4788187, %v7078
        %v7080 = vand.u32 2147483647, %v7079
        %v7082 = vcvt.s32.f32 %v7075
        %v7083 = vmul.f32 %v7082, %v7080
        %v7084 = vxor.u32 %v7083, 2147483648
        %v7085 = vsel %vm7002, %v7084, %v7083
        %v7086 = vsub.s32 4, %v7062
        %v7087 = vsel %vm7002, %v7086, %v7062
        %v7088 = vsel %vm7001, %v6271, %v7085
        %v7089 = vsel %vm7001, 0, %v7087
        %v7090 = vcosq.f32.pop %v7088
        %v7091 = vsinq.f32.pop %v7088
        %vm7092 = vweird.f32 %v6271
        %v7093 = vadd.s32 %v7089, 3
        %v7094 = vand.u32 %v7093, 3
        %vm7095 = vcmp.lt.s32.totalorder %v7094, 2
        %vm7096 = vcmp.eq.s32.totalorder %v7094, 0
        %v7097 = vxor.u32 %v7091, 2147483648
        %v7098 = vsel %vm7096, %v7090, %v7097
        %vm7099 = vcmp.eq.s32.totalorder %v7094, 2
        %v7100 = vxor.u32 %v7090, 2147483648
        %v7101 = vsel %vm7099, %v7100, %v7091
        %v7102 = vsel %vm7095, %v7098, %v7101
        %v7103 = vsel %vm7092, nan, %v7102
        %v7104 = vld [vmem:[%s2] sm:$0xff]
        %v7105 = vld [vmem:[%s2 + $0x8] sm:$0xff]
        %v7106 = vld [vmem:[%s2 + $0x10] sm:$0xff]
        %v7107 = vld [vmem:[%s2 + $0x18] sm:$0xff]
        %v7109 = vsel %vm1261, %v7104, 0
        %v7112 = vsel %vm1261, %v7105, 0
        %v7115 = vsel %vm1261, %v7106, 0
        %v7118 = vsel %vm1261, %v7107, 0
        %7120 = vmatprep.subr.mxu0 %v6479
        %7121 = vmatpush1.msra.mxu0 %v6375
        %7122 = vmatprep.subr.mxu0 %v6687
        %7123 = vmatpush1.msra.mxu0 %v6583
        %7124 = vmatprep.subr.mxu0 %v6895
        %7125 = vmatpush1.msra.mxu0 %v6791
        %7126 = vmatprep.subr.mxu0 %v7103
        %7127 = vmatpush1.msra.mxu0 %v6999
        %7128 = vmatprep.subr.mxu0 0.0
        %7129 = vmatpush1.msra.mxu0 0.0
        %7130 = vmatprep.subr.mxu0 0.0
        %7131 = vmatpush1.msra.mxu0 0.0
        %7132 = vmatprep.subr.mxu0 0.0
        %7133 = vmatpush1.msra.mxu0 0.0
        %7134 = vmatprep.subr.mxu0 0.0
        %7135 = vmatpush1.msra.mxu0 0.0
        %7136 = vmatprep.subr.mxu0 0.0
        %7137 = vmatpush1.msra.mxu0 0.0
        %7138 = vmatprep.subr.mxu0 0.0
        %7139 = vmatpush1.msra.mxu0 0.0
        %7140 = vmatprep.subr.mxu0 0.0
        %7141 = vmatpush1.msra.mxu0 0.0
        %7142 = vmatprep.subr.mxu0 0.0
        %7143 = vmatpush1.msra.mxu0 0.0
        %7144 = vmatprep.subr.mxu0 0.0
        %7145 = vmatpush1.msra.mxu0 0.0
        %7146 = vmatprep.subr.mxu0 0.0
        %7147 = vmatpush1.msra.mxu0 0.0
        %7148 = vmatprep.subr.mxu0 0.0
        %7149 = vmatpush1.msra.mxu0 0.0
        %7150 = vmatprep.subr.mxu0 0.0
        %7151 = vmatpush1.msra.mxu0 0.0
        %7152 = vmatprep.subr.mxu0 0.0
        %7153 = vmatpush1.msra.mxu0 0.0
        %7154 = vmatprep.subr.mxu0 0.0
        %7155 = vmatpush1.msra.mxu0 0.0
        %7156 = vmatprep.subr.mxu0 0.0
        %7157 = vmatpush1.msra.mxu0 0.0
        %7158 = vmatprep.subr.mxu0 0.0
        %7159 = vmatpush1.msra.mxu0 0.0
        %7160 = vmatprep.subr.mxu0 0.0
        %7161 = vmatpush1.msra.mxu0 0.0
        %7162 = vmatprep.subr.mxu0 0.0
        %7163 = vmatpush1.msra.mxu0 0.0
        %7164 = vmatprep.subr.mxu0 0.0
        %7165 = vmatpush1.msra.mxu0 0.0
        %7166 = vmatprep.subr.mxu0 0.0
        %7167 = vmatpush1.msra.mxu0 0.0
        %7168 = vmatprep.subr.mxu0 0.0
        %7169 = vmatpush1.msra.mxu0 0.0
        %7170 = vmatprep.subr.mxu0 0.0
        %7171 = vmatpush1.msra.mxu0 0.0
        %7172 = vmatprep.subr.mxu0 0.0
        %7173 = vmatpush1.msra.mxu0 0.0
        %7174 = vmatprep.subr.mxu0 0.0
        %7175 = vmatpush1.msra.mxu0 0.0
        %7176 = vmatprep.subr.mxu0 0.0
        %7177 = vmatpush1.msra.mxu0 0.0
        %7178 = vmatprep.subr.mxu0 0.0
        %7179 = vmatpush1.msra.mxu0 0.0
        %7180 = vmatprep.subr.mxu0 0.0
        %7181 = vmatpush1.msra.mxu0 0.0
        %7182 = vmatprep.subr.mxu0 0.0
        %7183 = vmatpush1.msra.mxu0 0.0
        %7184 = vmatprep.mubr.f32.mxu0 0.0
        %7185 = vmatmul.mubr.f32.gmra.mrb[0].mxu0 %v7109
        %v7186 = vpop.f32.mrb[0].mxu0
        %v7187 = vadd.f32 0.0, %v7186
        %v7188 = vpop.f32.mrb[0].mxu0
        %v7189 = vadd.f32 0.0, %v7188
        %7190 = vmatprep.mubr.f32.mxu0 0.0
        %7191 = vmatmul.mubr.f32.gmra.mrb[0].mxu0 %v7112
        %v7192 = vpop.f32.mrb[0].mxu0
        %v7193 = vadd.f32 0.0, %v7192
        %v7194 = vpop.f32.mrb[0].mxu0
        %v7195 = vadd.f32 0.0, %v7194
        %7196 = vmatprep.mubr.f32.mxu0 0.0
        %7197 = vmatmul.mubr.f32.gmra.mrb[0].mxu0 %v7115
        %v7198 = vpop.f32.mrb[0].mxu0
        %v7199 = vadd.f32 0.0, %v7198
        %v7200 = vpop.f32.mrb[0].mxu0
        %v7201 = vadd.f32 0.0, %v7200
        %7202 = vmatprep.mubr.f32.mxu0 0.0
        %7203 = vmatmul.mubr.f32.gmra.mrb[0].mxu0 %v7118
        %v7204 = vpop.f32.mrb[0].mxu0
        %v7205 = vadd.f32 0.0, %v7204
        %v7206 = vpop.f32.mrb[0].mxu0
        %v7207 = vadd.f32 0.0, %v7206
        %7208 = vdwg.mxu0
        %v7209 = vadd.f32 %v6218, %v7187
        %v7210 = vadd.f32 %v6220, %v7189
        %v7211 = vadd.f32 %v6224, %v7193
        %v7212 = vadd.f32 %v6226, %v7195
        %v7213 = vadd.f32 %v6230, %v7199
        %v7214 = vadd.f32 %v6232, %v7201
        %v7215 = vadd.f32 %v6236, %v7205
        %v7216 = vadd.f32 %v6238, %v7207
        %v7217 = vld [vmem:[%s3] sm:$0xff]
        %v7218 = vld [vmem:[%s3 + $0x8] sm:$0xff]
        %v7219 = vld [vmem:[%s3 + $0x10] sm:$0xff]
        %v7220 = vld [vmem:[%s3 + $0x18] sm:$0xff]
        %7222 = vset.pattern.permute.xlu0 1
        %7223 = vperm.xlu0 %7222, %v7217
        %v7224 = vpop.permute.xlu0 %7223
        %7227 = vset.pattern.permute.xlu0 1
        %7228 = vperm.xlu0 %7227, %v7218
        %v7229 = vpop.permute.xlu0 %7228
        %7232 = vset.pattern.permute.xlu0 1
        %7233 = vperm.xlu0 %7232, %v7219
        %v7234 = vpop.permute.xlu0 %7233
        %7237 = vset.pattern.permute.xlu0 1
        %7238 = vperm.xlu0 %7237, %v7220
        %v7239 = vpop.permute.xlu0 %7238
        %v7241 = vadd.f32 %v7209, %v7224
        %v7242 = vadd.f32 %v7210, %v7224
        %v7243 = vadd.f32 %v7211, %v7229
        %v7244 = vadd.f32 %v7212, %v7229
        %v7245 = vadd.f32 %v7213, %v7234
        %v7246 = vadd.f32 %v7214, %v7234
        %v7247 = vadd.f32 %v7215, %v7239
        %v7248 = vadd.f32 %v7216, %v7239
        %v7249 = vmax.f32 %v7241, 0.0
        %v7250 = vmax.f32 %v7242, 0.0
        %v7251 = vmax.f32 %v7243, 0.0
        %v7252 = vmax.f32 %v7244, 0.0
        %v7253 = vmax.f32 %v7245, 0.0
        %v7254 = vmax.f32 %v7246, 0.0
        %v7255 = vmax.f32 %v7247, 0.0
        %v7256 = vmax.f32 %v7248, 0.0
        %v7257 = vld [vmem:[%s2 + $0x20] sm:$0xff]
        %v7258 = vld [vmem:[%s2 + $0x28] sm:$0xff]
        %v7259 = vld [vmem:[%s2 + $0x30] sm:$0xff]
        %v7260 = vld [vmem:[%s2 + $0x38] sm:$0xff]
        %7261 = vset.pattern.permute.xlu0 2
        %7262 = vperm.xlu0 %7261, %v7217
        %v7263 = vpop.permute.xlu0 %7262
        %7265 = vset.pattern.permute.xlu0 2
        %7266 = vperm.xlu0 %7265, %v7218
        %v7267 = vpop.permute.xlu0 %7266
        %7269 = vset.pattern.permute.xlu0 2
        %7270 = vperm.xlu0 %7269, %v7219
        %v7271 = vpop.permute.xlu0 %7270
        %7273 = vset.pattern.permute.xlu0 2
        %7274 = vperm.xlu0 %7273, %v7220
        %v7275 = vpop.permute.xlu0 %7274
        %v7278 = vsel %vm1261, %v7257, 0
        %v7281 = vsel %vm1261, %v7258, 0
        %v7284 = vsel %vm1261, %v7259, 0
        %v7287 = vsel %vm1261, %v7260, 0
        %7289 = vmatprep.subr.mxu0 %v7250
        %7290 = vmatpush1.msra.mxu0 %v7249
        %7291 = vmatprep.subr.mxu0 %v7252
        %7292 = vmatpush1.msra.mxu0 %v7251
        %7293 = vmatprep.subr.mxu0 %v7254
        %7294 = vmatpush1.msra.mxu0 %v7253
        %7295 = vmatprep.subr.mxu0 %v7256
        %7296 = vmatpush1.msra.mxu0 %v7255
        %7297 = vmatprep.subr.mxu0 0.0
        %7298 = vmatpush1.msra.mxu0 0.0
        %7299 = vmatprep.subr.mxu0 0.0
        %7300 = vmatpush1.msra.mxu0 0.0
        %7301 = vmatprep.subr.mxu0 0.0
        %7302 = vmatpush1.msra.mxu0 0.0
        %7303 = vmatprep.subr.mxu0 0.0
        %7304 = vmatpush1.msra.mxu0 0.0
        %7305 = vmatprep.subr.mxu0 0.0
        %7306 = vmatpush1.msra.mxu0 0.0
        %7307 = vmatprep.subr.mxu0 0.0
        %7308 = vmatpush1.msra.mxu0 0.0
        %7309 = vmatprep.subr.mxu0 0.0
        %7310 = vmatpush1.msra.mxu0 0.0
        %7311 = vmatprep.subr.mxu0 0.0
        %7312 = vmatpush1.msra.mxu0 0.0
        %7313 = vmatprep.subr.mxu0 0.0
        %7314 = vmatpush1.msra.mxu0 0.0
        %7315 = vmatprep.subr.mxu0 0.0
        %7316 = vmatpush1.msra.mxu0 0.0
        %7317 = vmatprep.subr.mxu0 0.0
        %7318 = vmatpush1.msra.mxu0 0.0
        %7319 = vmatprep.subr.mxu0 0.0
        %7320 = vmatpush1.msra.mxu0 0.0
        %7321 = vmatprep.subr.mxu0 0.0
        %7322 = vmatpush1.msra.mxu0 0.0
        %7323 = vmatprep.subr.mxu0 0.0
        %7324 = vmatpush1.msra.mxu0 0.0
        %7325 = vmatprep.subr.mxu0 0.0
        %7326 = vmatpush1.msra.mxu0 0.0
        %7327 = vmatprep.subr.mxu0 0.0
        %7328 = vmatpush1.msra.mxu0 0.0
        %7329 = vmatprep.subr.mxu0 0.0
        %7330 = vmatpush1.msra.mxu0 0.0
        %7331 = vmatprep.subr.mxu0 0.0
        %7332 = vmatpush1.msra.mxu0 0.0
        %7333 = vmatprep.subr.mxu0 0.0
        %7334 = vmatpush1.msra.mxu0 0.0
        %7335 = vmatprep.subr.mxu0 0.0
        %7336 = vmatpush1.msra.mxu0 0.0
        %7337 = vmatprep.subr.mxu0 0.0
        %7338 = vmatpush1.msra.mxu0 0.0
        %7339 = vmatprep.subr.mxu0 0.0
        %7340 = vmatpush1.msra.mxu0 0.0
        %7341 = vmatprep.subr.mxu0 0.0
        %7342 = vmatpush1.msra.mxu0 0.0
        %7343 = vmatprep.subr.mxu0 0.0
        %7344 = vmatpush1.msra.mxu0 0.0
        %7345 = vmatprep.subr.mxu0 0.0
        %7346 = vmatpush1.msra.mxu0 0.0
        %7347 = vmatprep.subr.mxu0 0.0
        %7348 = vmatpush1.msra.mxu0 0.0
        %7349 = vmatprep.subr.mxu0 0.0
        %7350 = vmatpush1.msra.mxu0 0.0
        %7351 = vmatprep.subr.mxu0 0.0
        %7352 = vmatpush1.msra.mxu0 0.0
        %7353 = vmatprep.mubr.f32.mxu0 0.0
        %7354 = vmatmul.mubr.f32.gmra.mrb[0].mxu0 %v7278
        %v7355 = vpop.f32.mrb[0].mxu0
        %v7356 = vadd.f32 %v7263, %v7355
        %v7357 = vpop.f32.mrb[0].mxu0
        %v7358 = vadd.f32 %v7263, %v7357
        %7359 = vmatprep.mubr.f32.mxu0 0.0
        %7360 = vmatmul.mubr.f32.gmra.mrb[0].mxu0 %v7281
        %v7361 = vpop.f32.mrb[0].mxu0
        %v7362 = vadd.f32 %v7267, %v7361
        %v7363 = vpop.f32.mrb[0].mxu0
        %v7364 = vadd.f32 %v7267, %v7363
        %7365 = vmatprep.mubr.f32.mxu0 0.0
        %7366 = vmatmul.mubr.f32.gmra.mrb[0].mxu0 %v7284
        %v7367 = vpop.f32.mrb[0].mxu0
        %v7368 = vadd.f32 %v7271, %v7367
        %v7369 = vpop.f32.mrb[0].mxu0
        %v7370 = vadd.f32 %v7271, %v7369
        %7371 = vmatprep.mubr.f32.mxu0 0.0
        %7372 = vmatmul.mubr.f32.gmra.mrb[0].mxu0 %v7287
        %v7373 = vpop.f32.mrb[0].mxu0
        %v7374 = vadd.f32 %v7275, %v7373
        %v7375 = vpop.f32.mrb[0].mxu0
        %v7376 = vadd.f32 %v7275, %v7375
        %7377 = vdwg.mxu0
        %v7378 = vmax.f32 %v7356, 0.0
        %v7379 = vmax.f32 %v7358, 0.0
        %v7380 = vmax.f32 %v7362, 0.0
        %v7381 = vmax.f32 %v7364, 0.0
        %v7382 = vmax.f32 %v7368, 0.0
        %v7383 = vmax.f32 %v7370, 0.0
        %v7384 = vmax.f32 %v7374, 0.0
        %v7385 = vmax.f32 %v7376, 0.0
        %v7386 = vld [vmem:[%s2 + $0x40] sm:$0xff]
        %v7387 = vld [vmem:[%s2 + $0x48] sm:$0xff]
        %v7388 = vld [vmem:[%s2 + $0x50] sm:$0xff]
        %v7389 = vld [vmem:[%s2 + $0x58] sm:$0xff]
        %7390 = vset.pattern.permute.xlu0 3
        %7391 = vperm.xlu0 %7390, %v7217
        %v7392 = vpop.permute.xlu0 %7391
        %7394 = vset.pattern.permute.xlu0 3
        %7395 = vperm.xlu0 %7394, %v7218
        %v7396 = vpop.permute.xlu0 %7395
        %7398 = vset.pattern.permute.xlu0 3
        %7399 = vperm.xlu0 %7398, %v7219
        %v7400 = vpop.permute.xlu0 %7399
        %7402 = vset.pattern.permute.xlu0 3
        %7403 = vperm.xlu0 %7402, %v7220
        %v7404 = vpop.permute.xlu0 %7403
        %v7407 = vsel %vm1261, %v7386, 0
        %v7410 = vsel %vm1261, %v7387, 0
        %v7413 = vsel %vm1261, %v7388, 0
        %v7416 = vsel %vm1261, %v7389, 0
        %7418 = vmatprep.subr.mxu0 %v7379
        %7419 = vmatpush1.msra.mxu0 %v7378
        %7420 = vmatprep.subr.mxu0 %v7381
        %7421 = vmatpush1.msra.mxu0 %v7380
        %7422 = vmatprep.subr.mxu0 %v7383
        %7423 = vmatpush1.msra.mxu0 %v7382
        %7424 = vmatprep.subr.mxu0 %v7385
        %7425 = vmatpush1.msra.mxu0 %v7384
        %7426 = vmatprep.subr.mxu0 0.0
        %7427 = vmatpush1.msra.mxu0 0.0
        %7428 = vmatprep.subr.mxu0 0.0
        %7429 = vmatpush1.msra.mxu0 0.0
        %7430 = vmatprep.subr.mxu0 0.0
        %7431 = vmatpush1.msra.mxu0 0.0
        %7432 = vmatprep.subr.mxu0 0.0
        %7433 = vmatpush1.msra.mxu0 0.0
        %7434 = vmatprep.subr.mxu0 0.0
        %7435 = vmatpush1.msra.mxu0 0.0
        %7436 = vmatprep.subr.mxu0 0.0
        %7437 = vmatpush1.msra.mxu0 0.0
        %7438 = vmatprep.subr.mxu0 0.0
        %7439 = vmatpush1.msra.mxu0 0.0
        %7440 = vmatprep.subr.mxu0 0.0
        %7441 = vmatpush1.msra.mxu0 0.0
        %7442 = vmatprep.subr.mxu0 0.0
        %7443 = vmatpush1.msra.mxu0 0.0
        %7444 = vmatprep.subr.mxu0 0.0
        %7445 = vmatpush1.msra.mxu0 0.0
        %7446 = vmatprep.subr.mxu0 0.0
        %7447 = vmatpush1.msra.mxu0 0.0
        %7448 = vmatprep.subr.mxu0 0.0
        %7449 = vmatpush1.msra.mxu0 0.0
        %7450 = vmatprep.subr.mxu0 0.0
        %7451 = vmatpush1.msra.mxu0 0.0
        %7452 = vmatprep.subr.mxu0 0.0
        %7453 = vmatpush1.msra.mxu0 0.0
        %7454 = vmatprep.subr.mxu0 0.0
        %7455 = vmatpush1.msra.mxu0 0.0
        %7456 = vmatprep.subr.mxu0 0.0
        %7457 = vmatpush1.msra.mxu0 0.0
        %7458 = vmatprep.subr.mxu0 0.0
        %7459 = vmatpush1.msra.mxu0 0.0
        %7460 = vmatprep.subr.mxu0 0.0
        %7461 = vmatpush1.msra.mxu0 0.0
        %7462 = vmatprep.subr.mxu0 0.0
        %7463 = vmatpush1.msra.mxu0 0.0
        %7464 = vmatprep.subr.mxu0 0.0
        %7465 = vmatpush1.msra.mxu0 0.0
        %7466 = vmatprep.subr.mxu0 0.0
        %7467 = vmatpush1.msra.mxu0 0.0
        %7468 = vmatprep.subr.mxu0 0.0
        %7469 = vmatpush1.msra.mxu0 0.0
        %7470 = vmatprep.subr.mxu0 0.0
        %7471 = vmatpush1.msra.mxu0 0.0
        %7472 = vmatprep.subr.mxu0 0.0
        %7473 = vmatpush1.msra.mxu0 0.0
        %7474 = vmatprep.subr.mxu0 0.0
        %7475 = vmatpush1.msra.mxu0 0.0
        %7476 = vmatprep.subr.mxu0 0.0
        %7477 = vmatpush1.msra.mxu0 0.0
        %7478 = vmatprep.subr.mxu0 0.0
        %7479 = vmatpush1.msra.mxu0 0.0
        %7480 = vmatprep.subr.mxu0 0.0
        %7481 = vmatpush1.msra.mxu0 0.0
        %7482 = vmatprep.mubr.f32.mxu0 0.0
        %7483 = vmatmul.mubr.f32.gmra.mrb[0].mxu0 %v7407
        %v7484 = vpop.f32.mrb[0].mxu0
        %v7485 = vadd.f32 %v7392, %v7484
        %v7486 = vpop.f32.mrb[0].mxu0
        %v7487 = vadd.f32 %v7392, %v7486
        %7488 = vmatprep.mubr.f32.mxu0 0.0
        %7489 = vmatmul.mubr.f32.gmra.mrb[0].mxu0 %v7410
        %v7490 = vpop.f32.mrb[0].mxu0
        %v7491 = vadd.f32 %v7396, %v7490
        %v7492 = vpop.f32.mrb[0].mxu0
        %v7493 = vadd.f32 %v7396, %v7492
        %7494 = vmatprep.mubr.f32.mxu0 0.0
        %7495 = vmatmul.mubr.f32.gmra.mrb[0].mxu0 %v7413
        %v7496 = vpop.f32.mrb[0].mxu0
        %v7497 = vadd.f32 %v7400, %v7496
        %v7498 = vpop.f32.mrb[0].mxu0
        %v7499 = vadd.f32 %v7400, %v7498
        %7500 = vmatprep.mubr.f32.mxu0 0.0
        %7501 = vmatmul.mubr.f32.gmra.mrb[0].mxu0 %v7416
        %v7502 = vpop.f32.mrb[0].mxu0
        %v7503 = vadd.f32 %v7404, %v7502
        %v7504 = vpop.f32.mrb[0].mxu0
        %v7505 = vadd.f32 %v7404, %v7504
        %7506 = vdwg.mxu0
        %v7507 = vmax.f32 %v7485, 0.0
        %v7508 = vmax.f32 %v7487, 0.0
        %v7509 = vmax.f32 %v7491, 0.0
        %v7510 = vmax.f32 %v7493, 0.0
        %v7511 = vmax.f32 %v7497, 0.0
        %v7512 = vmax.f32 %v7499, 0.0
        %v7513 = vmax.f32 %v7503, 0.0
        %v7514 = vmax.f32 %v7505, 0.0
        %v7515 = vld [vmem:[%s2 + $0x60] sm:$0xff]
        %v7516 = vld [vmem:[%s2 + $0x68] sm:$0xff]
        %v7517 = vld [vmem:[%s2 + $0x70] sm:$0xff]
        %v7518 = vld [vmem:[%s2 + $0x78] sm:$0xff]
        %v7520 = vsel %vm1261, %v7515, 0
        %v7523 = vsel %vm1261, %v7516, 0
        %v7526 = vsel %vm1261, %v7517, 0
        %v7529 = vsel %vm1261, %v7518, 0
        %7531 = vmatprep.subr.mxu0 %v6479
        %7532 = vmatpush1.msra.mxu0 %v6375
        %7533 = vmatprep.subr.mxu0 %v6687
        %7534 = vmatpush1.msra.mxu0 %v6583
        %7535 = vmatprep.subr.mxu0 %v6895
        %7536 = vmatpush1.msra.mxu0 %v6791
        %7537 = vmatprep.subr.mxu0 %v7103
        %7538 = vmatpush1.msra.mxu0 %v6999
        %7539 = vmatprep.subr.mxu0 0.0
        %7540 = vmatpush1.msra.mxu0 0.0
        %7541 = vmatprep.subr.mxu0 0.0
        %7542 = vmatpush1.msra.mxu0 0.0
        %7543 = vmatprep.subr.mxu0 0.0
        %7544 = vmatpush1.msra.mxu0 0.0
        %7545 = vmatprep.subr.mxu0 0.0
        %7546 = vmatpush1.msra.mxu0 0.0
        %7547 = vmatprep.subr.mxu0 0.0
        %7548 = vmatpush1.msra.mxu0 0.0
        %7549 = vmatprep.subr.mxu0 0.0
        %7550 = vmatpush1.msra.mxu0 0.0
        %7551 = vmatprep.subr.mxu0 0.0
        %7552 = vmatpush1.msra.mxu0 0.0
        %7553 = vmatprep.subr.mxu0 0.0
        %7554 = vmatpush1.msra.mxu0 0.0
        %7555 = vmatprep.subr.mxu0 0.0
        %7556 = vmatpush1.msra.mxu0 0.0
        %7557 = vmatprep.subr.mxu0 0.0
        %7558 = vmatpush1.msra.mxu0 0.0
        %7559 = vmatprep.subr.mxu0 0.0
        %7560 = vmatpush1.msra.mxu0 0.0
        %7561 = vmatprep.subr.mxu0 0.0
        %7562 = vmatpush1.msra.mxu0 0.0
        %7563 = vmatprep.subr.mxu0 0.0
        %7564 = vmatpush1.msra.mxu0 0.0
        %7565 = vmatprep.subr.mxu0 0.0
        %7566 = vmatpush1.msra.mxu0 0.0
        %7567 = vmatprep.subr.mxu0 0.0
        %7568 = vmatpush1.msra.mxu0 0.0
        %7569 = vmatprep.subr.mxu0 0.0
        %7570 = vmatpush1.msra.mxu0 0.0
        %7571 = vmatprep.subr.mxu0 0.0
        %7572 = vmatpush1.msra.mxu0 0.0
        %7573 = vmatprep.subr.mxu0 0.0
        %7574 = vmatpush1.msra.mxu0 0.0
        %7575 = vmatprep.subr.mxu0 0.0
        %7576 = vmatpush1.msra.mxu0 0.0
        %7577 = vmatprep.subr.mxu0 0.0
        %7578 = vmatpush1.msra.mxu0 0.0
        %7579 = vmatprep.subr.mxu0 0.0
        %7580 = vmatpush1.msra.mxu0 0.0
        %7581 = vmatprep.subr.mxu0 0.0
        %7582 = vmatpush1.msra.mxu0 0.0
        %7583 = vmatprep.subr.mxu0 0.0
        %7584 = vmatpush1.msra.mxu0 0.0
        %7585 = vmatprep.subr.mxu0 0.0
        %7586 = vmatpush1.msra.mxu0 0.0
        %7587 = vmatprep.subr.mxu0 0.0
        %7588 = vmatpush1.msra.mxu0 0.0
        %7589 = vmatprep.subr.mxu0 0.0
        %7590 = vmatpush1.msra.mxu0 0.0
        %7591 = vmatprep.subr.mxu0 0.0
        %7592 = vmatpush1.msra.mxu0 0.0
        %7593 = vmatprep.subr.mxu0 0.0
        %7594 = vmatpush1.msra.mxu0 0.0
        %7595 = vmatprep.mubr.f32.mxu0 0.0
        %7596 = vmatmul.mubr.f32.gmra.mrb[0].mxu0 %v7520
        %v7597 = vpop.f32.mrb[0].mxu0
        %v7598 = vadd.f32 0.0, %v7597
        %v7599 = vpop.f32.mrb[0].mxu0
        %v7600 = vadd.f32 0.0, %v7599
        %7601 = vmatprep.mubr.f32.mxu0 0.0
        %7602 = vmatmul.mubr.f32.gmra.mrb[0].mxu0 %v7523
        %v7603 = vpop.f32.mrb[0].mxu0
        %v7604 = vadd.f32 0.0, %v7603
        %v7605 = vpop.f32.mrb[0].mxu0
        %v7606 = vadd.f32 0.0, %v7605
        %7607 = vmatprep.mubr.f32.mxu0 0.0
        %7608 = vmatmul.mubr.f32.gmra.mrb[0].mxu0 %v7526
        %v7609 = vpop.f32.mrb[0].mxu0
        %v7610 = vadd.f32 0.0, %v7609
        %v7611 = vpop.f32.mrb[0].mxu0
        %v7612 = vadd.f32 0.0, %v7611
        %7613 = vmatprep.mubr.f32.mxu0 0.0
        %7614 = vmatmul.mubr.f32.gmra.mrb[0].mxu0 %v7529
        %v7615 = vpop.f32.mrb[0].mxu0
        %v7616 = vadd.f32 0.0, %v7615
        %v7617 = vpop.f32.mrb[0].mxu0
        %v7618 = vadd.f32 0.0, %v7617
        %7619 = vdwg.mxu0
        %v7620 = vadd.f32 %v6242, %v7598
        %v7621 = vadd.f32 %v6244, %v7600
        %v7622 = vadd.f32 %v6248, %v7604
        %v7623 = vadd.f32 %v6250, %v7606
        %v7624 = vadd.f32 %v6254, %v7610
        %v7625 = vadd.f32 %v6256, %v7612
        %v7626 = vadd.f32 %v6260, %v7616
        %v7627 = vadd.f32 %v6262, %v7618
        %v7628 = vld [vmem:[%s2 + $0x80] sm:$0xff]
        %v7629 = vld [vmem:[%s2 + $0x88] sm:$0xff]
        %v7630 = vld [vmem:[%s2 + $0x90] sm:$0xff]
        %v7631 = vld [vmem:[%s2 + $0x98] sm:$0xff]
        %v7633 = vsel %vm1261, %v7628, 0
        %v7636 = vsel %vm1261, %v7629, 0
        %v7639 = vsel %vm1261, %v7630, 0
        %v7642 = vsel %vm1261, %v7631, 0
        %7644 = vmatprep.subr.mxu0 %v7508
        %7645 = vmatpush1.msra.mxu0 %v7507
        %7646 = vmatprep.subr.mxu0 %v7510
        %7647 = vmatpush1.msra.mxu0 %v7509
        %7648 = vmatprep.subr.mxu0 %v7512
        %7649 = vmatpush1.msra.mxu0 %v7511
        %7650 = vmatprep.subr.mxu0 %v7514
        %7651 = vmatpush1.msra.mxu0 %v7513
        %7652 = vmatprep.subr.mxu0 0.0
        %7653 = vmatpush1.msra.mxu0 0.0
        %7654 = vmatprep.subr.mxu0 0.0
        %7655 = vmatpush1.msra.mxu0 0.0
        %7656 = vmatprep.subr.mxu0 0.0
        %7657 = vmatpush1.msra.mxu0 0.0
        %7658 = vmatprep.subr.mxu0 0.0
        %7659 = vmatpush1.msra.mxu0 0.0
        %7660 = vmatprep.subr.mxu0 0.0
        %7661 = vmatpush1.msra.mxu0 0.0
        %7662 = vmatprep.subr.mxu0 0.0
        %7663 = vmatpush1.msra.mxu0 0.0
        %7664 = vmatprep.subr.mxu0 0.0
        %7665 = vmatpush1.msra.mxu0 0.0
        %7666 = vmatprep.subr.mxu0 0.0
        %7667 = vmatpush1.msra.mxu0 0.0
        %7668 = vmatprep.subr.mxu0 0.0
        %7669 = vmatpush1.msra.mxu0 0.0
        %7670 = vmatprep.subr.mxu0 0.0
        %7671 = vmatpush1.msra.mxu0 0.0
        %7672 = vmatprep.subr.mxu0 0.0
        %7673 = vmatpush1.msra.mxu0 0.0
        %7674 = vmatprep.subr.mxu0 0.0
        %7675 = vmatpush1.msra.mxu0 0.0
        %7676 = vmatprep.subr.mxu0 0.0
        %7677 = vmatpush1.msra.mxu0 0.0
        %7678 = vmatprep.subr.mxu0 0.0
        %7679 = vmatpush1.msra.mxu0 0.0
        %7680 = vmatprep.subr.mxu0 0.0
        %7681 = vmatpush1.msra.mxu0 0.0
        %7682 = vmatprep.subr.mxu0 0.0
        %7683 = vmatpush1.msra.mxu0 0.0
        %7684 = vmatprep.subr.mxu0 0.0
        %7685 = vmatpush1.msra.mxu0 0.0
        %7686 = vmatprep.subr.mxu0 0.0
        %7687 = vmatpush1.msra.mxu0 0.0
        %7688 = vmatprep.subr.mxu0 0.0
        %7689 = vmatpush1.msra.mxu0 0.0
        %7690 = vmatprep.subr.mxu0 0.0
        %7691 = vmatpush1.msra.mxu0 0.0
        %7692 = vmatprep.subr.mxu0 0.0
        %7693 = vmatpush1.msra.mxu0 0.0
        %7694 = vmatprep.subr.mxu0 0.0
        %7695 = vmatpush1.msra.mxu0 0.0
        %7696 = vmatprep.subr.mxu0 0.0
        %7697 = vmatpush1.msra.mxu0 0.0
        %7698 = vmatprep.subr.mxu0 0.0
        %7699 = vmatpush1.msra.mxu0 0.0
        %7700 = vmatprep.subr.mxu0 0.0
        %7701 = vmatpush1.msra.mxu0 0.0
        %7702 = vmatprep.subr.mxu0 0.0
        %7703 = vmatpush1.msra.mxu0 0.0
        %7704 = vmatprep.subr.mxu0 0.0
        %7705 = vmatpush1.msra.mxu0 0.0
        %7706 = vmatprep.subr.mxu0 0.0
        %7707 = vmatpush1.msra.mxu0 0.0
        %7708 = vmatprep.mubr.f32.mxu0 0.0
        %7709 = vmatmul.mubr.f32.gmra.mrb[0].mxu0 %v7633
        %v7710 = vpop.f32.mrb[0].mxu0
        %v7711 = vadd.f32 0.0, %v7710
        %v7712 = vpop.f32.mrb[0].mxu0
        %v7713 = vadd.f32 0.0, %v7712
        %7714 = vmatprep.mubr.f32.mxu0 0.0
        %7715 = vmatmul.mubr.f32.gmra.mrb[0].mxu0 %v7636
        %v7716 = vpop.f32.mrb[0].mxu0
        %v7717 = vadd.f32 0.0, %v7716
        %v7718 = vpop.f32.mrb[0].mxu0
        %v7719 = vadd.f32 0.0, %v7718
        %7720 = vmatprep.mubr.f32.mxu0 0.0
        %7721 = vmatmul.mubr.f32.gmra.mrb[0].mxu0 %v7639
        %v7722 = vpop.f32.mrb[0].mxu0
        %v7723 = vadd.f32 0.0, %v7722
        %v7724 = vpop.f32.mrb[0].mxu0
        %v7725 = vadd.f32 0.0, %v7724
        %7726 = vmatprep.mubr.f32.mxu0 0.0
        %7727 = vmatmul.mubr.f32.gmra.mrb[0].mxu0 %v7642
        %v7728 = vpop.f32.mrb[0].mxu0
        %v7729 = vadd.f32 0.0, %v7728
        %v7730 = vpop.f32.mrb[0].mxu0
        %v7731 = vadd.f32 0.0, %v7730
        %7732 = vdwg.mxu0
        %v7733 = vadd.f32 %v7620, %v7711
        %v7734 = vadd.f32 %v7621, %v7713
        %v7735 = vadd.f32 %v7622, %v7717
        %v7736 = vadd.f32 %v7623, %v7719
        %v7737 = vadd.f32 %v7624, %v7723
        %v7738 = vadd.f32 %v7625, %v7725
        %v7739 = vadd.f32 %v7626, %v7729
        %v7740 = vadd.f32 %v7627, %v7731
        %7741 = vset.pattern.permute.xlu0 4
        %7742 = vperm.xlu0 %7741, %v7217
        %v7743 = vpop.permute.xlu0 %7742
        %7745 = vset.pattern.permute.xlu0 4
        %7746 = vperm.xlu0 %7745, %v7218
        %v7747 = vpop.permute.xlu0 %7746
        %7749 = vset.pattern.permute.xlu0 4
        %7750 = vperm.xlu0 %7749, %v7219
        %v7751 = vpop.permute.xlu0 %7750
        %7753 = vset.pattern.permute.xlu0 4
        %7754 = vperm.xlu0 %7753, %v7220
        %v7755 = vpop.permute.xlu0 %7754
        %v7757 = vadd.f32 %v7733, %v7743
        %v7758 = vadd.f32 %v7734, %v7743
        %v7759 = vadd.f32 %v7735, %v7747
        %v7760 = vadd.f32 %v7736, %v7747
        %v7761 = vadd.f32 %v7737, %v7751
        %v7762 = vadd.f32 %v7738, %v7751
        %v7763 = vadd.f32 %v7739, %v7755
        %v7764 = vadd.f32 %v7740, %v7755
        %v7765 = vmax.f32 %v7757, 0.0
        %v7766 = vmax.f32 %v7758, 0.0
        %v7767 = vmax.f32 %v7759, 0.0
        %v7768 = vmax.f32 %v7760, 0.0
        %v7769 = vmax.f32 %v7761, 0.0
        %v7770 = vmax.f32 %v7762, 0.0
        %v7771 = vmax.f32 %v7763, 0.0
        %v7772 = vmax.f32 %v7764, 0.0
        %v7773 = vld [vmem:[%s2 + $0xa0] sm:$0xff]
        %v7774 = vld [vmem:[%s2 + $0xa8] sm:$0xff]
        %v7775 = vld [vmem:[%s2 + $0xb0] sm:$0xff]
        %v7776 = vld [vmem:[%s2 + $0xb8] sm:$0xff]
        %7777 = vset.pattern.permute.xlu0 5
        %7778 = vperm.xlu0 %7777, %v7217
        %v7779 = vpop.permute.xlu0 %7778
        %7781 = vset.pattern.permute.xlu0 5
        %7782 = vperm.xlu0 %7781, %v7218
        %v7783 = vpop.permute.xlu0 %7782
        %7785 = vset.pattern.permute.xlu0 5
        %7786 = vperm.xlu0 %7785, %v7219
        %v7787 = vpop.permute.xlu0 %7786
        %7789 = vset.pattern.permute.xlu0 5
        %7790 = vperm.xlu0 %7789, %v7220
        %v7791 = vpop.permute.xlu0 %7790
        %v7794 = vsel %vm1261, %v7773, 0
        %v7797 = vsel %vm1261, %v7774, 0
        %v7800 = vsel %vm1261, %v7775, 0
        %v7803 = vsel %vm1261, %v7776, 0
        %7805 = vmatprep.subr.mxu0 %v7766
        %7806 = vmatpush1.msra.mxu0 %v7765
        %7807 = vmatprep.subr.mxu0 %v7768
        %7808 = vmatpush1.msra.mxu0 %v7767
        %7809 = vmatprep.subr.mxu0 %v7770
        %7810 = vmatpush1.msra.mxu0 %v7769
        %7811 = vmatprep.subr.mxu0 %v7772
        %7812 = vmatpush1.msra.mxu0 %v7771
        %7813 = vmatprep.subr.mxu0 0.0
        %7814 = vmatpush1.msra.mxu0 0.0
        %7815 = vmatprep.subr.mxu0 0.0
        %7816 = vmatpush1.msra.mxu0 0.0
        %7817 = vmatprep.subr.mxu0 0.0
        %7818 = vmatpush1.msra.mxu0 0.0
        %7819 = vmatprep.subr.mxu0 0.0
        %7820 = vmatpush1.msra.mxu0 0.0
        %7821 = vmatprep.subr.mxu0 0.0
        %7822 = vmatpush1.msra.mxu0 0.0
        %7823 = vmatprep.subr.mxu0 0.0
        %7824 = vmatpush1.msra.mxu0 0.0
        %7825 = vmatprep.subr.mxu0 0.0
        %7826 = vmatpush1.msra.mxu0 0.0
        %7827 = vmatprep.subr.mxu0 0.0
        %7828 = vmatpush1.msra.mxu0 0.0
        %7829 = vmatprep.subr.mxu0 0.0
        %7830 = vmatpush1.msra.mxu0 0.0
        %7831 = vmatprep.subr.mxu0 0.0
        %7832 = vmatpush1.msra.mxu0 0.0
        %7833 = vmatprep.subr.mxu0 0.0
        %7834 = vmatpush1.msra.mxu0 0.0
        %7835 = vmatprep.subr.mxu0 0.0
        %7836 = vmatpush1.msra.mxu0 0.0
        %7837 = vmatprep.subr.mxu0 0.0
        %7838 = vmatpush1.msra.mxu0 0.0
        %7839 = vmatprep.subr.mxu0 0.0
        %7840 = vmatpush1.msra.mxu0 0.0
        %7841 = vmatprep.subr.mxu0 0.0
        %7842 = vmatpush1.msra.mxu0 0.0
        %7843 = vmatprep.subr.mxu0 0.0
        %7844 = vmatpush1.msra.mxu0 0.0
        %7845 = vmatprep.subr.mxu0 0.0
        %7846 = vmatpush1.msra.mxu0 0.0
        %7847 = vmatprep.subr.mxu0 0.0
        %7848 = vmatpush1.msra.mxu0 0.0
        %7849 = vmatprep.subr.mxu0 0.0
        %7850 = vmatpush1.msra.mxu0 0.0
        %7851 = vmatprep.subr.mxu0 0.0
        %7852 = vmatpush1.msra.mxu0 0.0
        %7853 = vmatprep.subr.mxu0 0.0
        %7854 = vmatpush1.msra.mxu0 0.0
        %7855 = vmatprep.subr.mxu0 0.0
        %7856 = vmatpush1.msra.mxu0 0.0
        %7857 = vmatprep.subr.mxu0 0.0
        %7858 = vmatpush1.msra.mxu0 0.0
        %7859 = vmatprep.subr.mxu0 0.0
        %7860 = vmatpush1.msra.mxu0 0.0
        %7861 = vmatprep.subr.mxu0 0.0
        %7862 = vmatpush1.msra.mxu0 0.0
        %7863 = vmatprep.subr.mxu0 0.0
        %7864 = vmatpush1.msra.mxu0 0.0
        %7865 = vmatprep.subr.mxu0 0.0
        %7866 = vmatpush1.msra.mxu0 0.0
        %7867 = vmatprep.subr.mxu0 0.0
        %7868 = vmatpush1.msra.mxu0 0.0
        %7869 = vmatprep.mubr.f32.mxu0 0.0
        %7870 = vmatmul.mubr.f32.gmra.mrb[0].mxu0 %v7794
        %v7871 = vpop.f32.mrb[0].mxu0
        %v7872 = vadd.f32 %v7779, %v7871
        %v7873 = vpop.f32.mrb[0].mxu0
        %v7874 = vadd.f32 %v7779, %v7873
        %7875 = vmatprep.mubr.f32.mxu0 0.0
        %7876 = vmatmul.mubr.f32.gmra.mrb[0].mxu0 %v7797
        %v7877 = vpop.f32.mrb[0].mxu0
        %v7878 = vadd.f32 %v7783, %v7877
        %v7879 = vpop.f32.mrb[0].mxu0
        %v7880 = vadd.f32 %v7783, %v7879
        %7881 = vmatprep.mubr.f32.mxu0 0.0
        %7882 = vmatmul.mubr.f32.gmra.mrb[0].mxu0 %v7800
        %v7883 = vpop.f32.mrb[0].mxu0
        %v7884 = vadd.f32 %v7787, %v7883
        %v7885 = vpop.f32.mrb[0].mxu0
        %v7886 = vadd.f32 %v7787, %v7885
        %7887 = vmatprep.mubr.f32.mxu0 0.0
        %7888 = vmatmul.mubr.f32.gmra.mrb[0].mxu0 %v7803
        %v7889 = vpop.f32.mrb[0].mxu0
        %v7890 = vadd.f32 %v7791, %v7889
        %v7891 = vpop.f32.mrb[0].mxu0
        %v7892 = vadd.f32 %v7791, %v7891
        %7893 = vdwg.mxu0
        %v7894 = vmax.f32 %v7872, 0.0
        %v7895 = vmax.f32 %v7874, 0.0
        %v7896 = vmax.f32 %v7878, 0.0
        %v7897 = vmax.f32 %v7880, 0.0
        %v7898 = vmax.f32 %v7884, 0.0
        %v7899 = vmax.f32 %v7886, 0.0
        %v7900 = vmax.f32 %v7890, 0.0
        %v7901 = vmax.f32 %v7892, 0.0
        %v7902 = vld [vmem:[%s2 + $0xc0] sm:$0xff]
        %v7903 = vld [vmem:[%s2 + $0xc8] sm:$0xff]
        %v7904 = vld [vmem:[%s2 + $0xd0] sm:$0xff]
        %v7905 = vld [vmem:[%s2 + $0xd8] sm:$0xff]
        %7906 = vset.pattern.permute.xlu0 6
        %7907 = vperm.xlu0 %7906, %v7217
        %v7908 = vpop.permute.xlu0 %7907
        %7910 = vset.pattern.permute.xlu0 6
        %7911 = vperm.xlu0 %7910, %v7218
        %v7912 = vpop.permute.xlu0 %7911
        %7913 = vset.pattern.permute.xlu0 6
        %7914 = vperm.xlu0 %7913, %v7219
        %v7915 = vpop.permute.xlu0 %7914
        %7916 = vset.pattern.permute.xlu0 6
        %7917 = vperm.xlu0 %7916, %v7220
        %v7918 = vpop.permute.xlu0 %7917
        %v7920 = vsel %vm1261, %v7902, 0
        %v7923 = vsel %vm1261, %v7903, 0
        %v7926 = vsel %vm1261, %v7904, 0
        %v7929 = vsel %vm1261, %v7905, 0
        %7931 = vmatprep.subr.mxu0 %v7895
        %7932 = vmatpush1.msra.mxu0 %v7894
        %7933 = vmatprep.subr.mxu0 %v7897
        %7934 = vmatpush1.msra.mxu0 %v7896
        %7935 = vmatprep.subr.mxu0 %v7899
        %7936 = vmatpush1.msra.mxu0 %v7898
        %7937 = vmatprep.subr.mxu0 %v7901
        %7938 = vmatpush1.msra.mxu0 %v7900
        %7939 = vmatprep.subr.mxu0 0.0
        %7940 = vmatpush1.msra.mxu0 0.0
        %7941 = vmatprep.subr.mxu0 0.0
        %7942 = vmatpush1.msra.mxu0 0.0
        %7943 = vmatprep.subr.mxu0 0.0
        %7944 = vmatpush1.msra.mxu0 0.0
        %7945 = vmatprep.subr.mxu0 0.0
        %7946 = vmatpush1.msra.mxu0 0.0
        %7947 = vmatprep.subr.mxu0 0.0
        %7948 = vmatpush1.msra.mxu0 0.0
        %7949 = vmatprep.subr.mxu0 0.0
        %7950 = vmatpush1.msra.mxu0 0.0
        %7951 = vmatprep.subr.mxu0 0.0
        %7952 = vmatpush1.msra.mxu0 0.0
        %7953 = vmatprep.subr.mxu0 0.0
        %7954 = vmatpush1.msra.mxu0 0.0
        %7955 = vmatprep.subr.mxu0 0.0
        %7956 = vmatpush1.msra.mxu0 0.0
        %7957 = vmatprep.subr.mxu0 0.0
        %7958 = vmatpush1.msra.mxu0 0.0
        %7959 = vmatprep.subr.mxu0 0.0
        %7960 = vmatpush1.msra.mxu0 0.0
        %7961 = vmatprep.subr.mxu0 0.0
        %7962 = vmatpush1.msra.mxu0 0.0
        %7963 = vmatprep.subr.mxu0 0.0
        %7964 = vmatpush1.msra.mxu0 0.0
        %7965 = vmatprep.subr.mxu0 0.0
        %7966 = vmatpush1.msra.mxu0 0.0
        %7967 = vmatprep.subr.mxu0 0.0
        %7968 = vmatpush1.msra.mxu0 0.0
        %7969 = vmatprep.subr.mxu0 0.0
        %7970 = vmatpush1.msra.mxu0 0.0
        %7971 = vmatprep.subr.mxu0 0.0
        %7972 = vmatpush1.msra.mxu0 0.0
        %7973 = vmatprep.subr.mxu0 0.0
        %7974 = vmatpush1.msra.mxu0 0.0
        %7975 = vmatprep.subr.mxu0 0.0
        %7976 = vmatpush1.msra.mxu0 0.0
        %7977 = vmatprep.subr.mxu0 0.0
        %7978 = vmatpush1.msra.mxu0 0.0
        %7979 = vmatprep.subr.mxu0 0.0
        %7980 = vmatpush1.msra.mxu0 0.0
        %7981 = vmatprep.subr.mxu0 0.0
        %7982 = vmatpush1.msra.mxu0 0.0
        %7983 = vmatprep.subr.mxu0 0.0
        %7984 = vmatpush1.msra.mxu0 0.0
        %7985 = vmatprep.subr.mxu0 0.0
        %7986 = vmatpush1.msra.mxu0 0.0
        %7987 = vmatprep.subr.mxu0 0.0
        %7988 = vmatpush1.msra.mxu0 0.0
        %7989 = vmatprep.subr.mxu0 0.0
        %7990 = vmatpush1.msra.mxu0 0.0
        %7991 = vmatprep.subr.mxu0 0.0
        %7992 = vmatpush1.msra.mxu0 0.0
        %7993 = vmatprep.subr.mxu0 0.0
        %7994 = vmatpush1.msra.mxu0 0.0
        %7995 = vmatprep.mubr.f32.mxu0 0.0
        %7996 = vmatmul.mubr.f32.gmra.mrb[0].mxu0 %v7920
        %v7997 = vpop.f32.mrb[0].mxu0
        %v7998 = vadd.f32 %v7908, %v7997
        %v7999 = vpop.f32.mrb[0].mxu0
        %v8000 = vadd.f32 %v7908, %v7999
        %8001 = vmatprep.mubr.f32.mxu0 0.0
        %8002 = vmatmul.mubr.f32.gmra.mrb[0].mxu0 %v7923
        %v8003 = vpop.f32.mrb[0].mxu0
        %v8004 = vpop.f32.mrb[0].mxu0
        %8005 = vmatprep.mubr.f32.mxu0 0.0
        %8006 = vmatmul.mubr.f32.gmra.mrb[0].mxu0 %v7926
        %v8007 = vpop.f32.mrb[0].mxu0
        %v8008 = vpop.f32.mrb[0].mxu0
        %8009 = vmatprep.mubr.f32.mxu0 0.0
        %8010 = vmatmul.mubr.f32.gmra.mrb[0].mxu0 %v7929
        %v8011 = vpop.f32.mrb[0].mxu0
        %v8012 = vpop.f32.mrb[0].mxu0
        %8013 = vdwg.mxu0
        %v8016 = vcombine.low %v7998, %v8000
        %s8018 = scalar_lea.vmem %s191, 24 [#allocation2]
        %8019 = vst [vmem:[%s8018] sm:$0x77] %v8016
        %s8020 = sand.u32 %s115, 1
        %s8021 = scalar_lea.sflag [#allocation3], %s8020
        %s8022 = sand.u32 %s115, 1
        %s8023 = smul.addr %s8022, 32
        %s8024 = scalar_lea.vmem [#allocation2], %s8023
        // Predicated region
        $region37: #{tpu_custom_call.1} parent=35 // pred_check
          %p8025 = pneg %p125
        $region38: #{tpu_custom_call.1} parent=35 // pred_check_branch
          %8027 = sbr.rel (%p8025) target = $region40
        $region39: #{tpu_custom_call.1} parent=35 // pred_region
          %s8028 = smul.u32 8, %s18
          %s8030 = ssub.s32 512, 512
          %8031 = vsyncadd %s8021, %s8030
          %s8032 = smul.addr %s8028, 64
          %s8033 = scalar_lea.hbm %s4, %s8032
          %s8035 = sshll.u32 %s8024, 4
          %s8036 = int_to_ptr.vmem [resolvable:$true] %s8035
          %8038 = dma.vmem_to_hbm [thread:$0]  %s8036, 512, %s8033, %s8021
        $region40: #{tpu_custom_call.1} parent=35 // pred_fallthru
          _
      $region36: #{tpu_custom_call.1} parent=5 // pred_fallthru
        _
      %p8039 = scmp.le.s32.totalorder 2, %s13
      // Predicated region
      $region41: #{tpu_custom_call.1} parent=5 // pred_check
        %p8040 = pneg %p8039
      $region42: #{tpu_custom_call.1} parent=5 // pred_check_branch
        %8042 = sbr.rel (%p8040) target = $region44
      $region43: #{tpu_custom_call.1} parent=5 // pred_region
        %s8043 = ssub.s32 %s13, 2
        // Predicated region
        $region45: #{tpu_custom_call.1} parent=43 // pred_check
          %p8044 = pneg %p131
        $region46: #{tpu_custom_call.1} parent=43 // pred_check_branch
          %8046 = sbr.rel (%p8044) target = $region48
        $region47: #{tpu_custom_call.1} parent=43 // pred_region
          %s8047 = sand.u32 %s116, 1
          %s8048 = scalar_lea.sflag [#allocation3], %s8047
          %s8049 = sand.u32 %s116, 1
          %s8050 = smul.addr %s8049, 32
          %s8051 = scalar_lea.vmem [#allocation2], %s8050
          %8052 = dma.done %s8048, 512
        $region48: #{tpu_custom_call.1} parent=43 // pred_fallthru
          _
      $region44: #{tpu_custom_call.1} parent=5 // pred_fallthru
        _
    $region6: #{tpu_custom_call.1} parent=1 // loop_footer
      %s17 = sadd.s32 1, %s13
    $region7: #{tpu_custom_call.1} parent=1 // loop_footer_branch
      %12 = sbr.rel target = $region3
    $region8: #{tpu_custom_call.1} parent=1 // loop_exit
      _
    %8053 = vsyncpa [#allocation3], 1
    %s8054 = scalar_lea.sflag [#allocation3], 1
    %8055 = vsyncpa %s8054, 1

</llo_original>
